<compile_context>
chip_gen: v5e
topology: v5e:2x2
jax: 0.10.0
libtpu: 0.0.40
codegen_flags: <defaults>
</compile_context>

<pallas_src>
import math
from functools import partial

import jax
import jax.numpy as jnp
from jax.experimental import pallas as pl
from jax.experimental.pallas import tpu as pltpu

NEG_INF = -1e9
LN_EPS = 1e-6


# ------------------------- in-kernel helper math ---------------------------

def _layer_norm_rows(x, g, b):
    """annotated-transformer LayerNorm: unbiased std (ddof=1), eps added to std."""
    d = x.shape[-1]
    mean = jnp.mean(x, axis=-1, keepdims=True)
    var = jnp.sum((x - mean) ** 2, axis=-1, keepdims=True) * (1.0 / (d - 1))
    inv = pl.reciprocal(jnp.sqrt(var) + LN_EPS, approx=True)
    return g * (x - mean) * inv + b


def _softmax_rows(s):
    s = s - jnp.max(s, axis=-1, keepdims=True)
    p = jnp.exp(s)
    return p * pl.reciprocal(jnp.sum(p, axis=-1, keepdims=True), approx=True)


def _heads_attention(q, k_all, v_all, mask, nhead):
    """q: [Sq, E], k_all/v_all: [Sk, E], mask: additive [Sq, Sk] -> [Sq, E]."""
    e = q.shape[-1]
    dh = e // nhead
    inv_sqrt = 1.0 / math.sqrt(dh)
    heads = []
    for h in range(nhead):                      # static unroll, lane slices
        qh = q[:, h * dh:(h + 1) * dh]
        kh = k_all[:, h * dh:(h + 1) * dh]
        vh = v_all[:, h * dh:(h + 1) * dh]
        sc = jnp.dot(qh, kh.T, preferred_element_type=jnp.float32) * inv_sqrt
        p = _softmax_rows(sc + mask)
        heads.append(jnp.dot(p, vh, preferred_element_type=jnp.float32))
    return jnp.concatenate(heads, axis=-1)      # [Sq, E]


# ----------------------------- Pallas kernels ------------------------------

def _encoder_stack_kernel(nhead, nlayers, scale,
                          emb_ref, pe_ref, mask_ref,
                          wqkv_ref, bqkv_ref, wo_ref, bo_ref,
                          ln1g_ref, ln1b_ref,
                          w1_ref, b1_ref, w2_ref, b2_ref,
                          ln2g_ref, ln2b_ref,
                          lnfg_ref, lnfb_ref, o_ref):
    """Whole encoder (PE add + L pre-norm layers + final LN) for one batch elem."""
    x = emb_ref[0] * scale + pe_ref[...]            # [S, E]
    mask = mask_ref[0]                              # [S, S] additive (0 / -1e9)
    e = x.shape[-1]
    for l in range(nlayers):                        # static unroll over layers
        # --- self-attention sublayer (pre-norm, residual) ---
        y = _layer_norm_rows(x, ln1g_ref[l], ln1b_ref[l])
        qkv = jnp.dot(y, wqkv_ref[l],
                      preferred_element_type=jnp.float32) + bqkv_ref[l]
        o = _heads_attention(qkv[:, :e], qkv[:, e:2 * e], qkv[:, 2 * e:],
                             mask, nhead)
        x = x + jnp.dot(o, wo_ref[l],
                        preferred_element_type=jnp.float32) + bo_ref[l]
        # --- feed-forward sublayer (pre-norm, residual) ---
        y = _layer_norm_rows(x, ln2g_ref[l], ln2b_ref[l])
        h = jnp.maximum(jnp.dot(y, w1_ref[l],
                                preferred_element_type=jnp.float32) + b1_ref[l],
                        0.0)
        x = x + jnp.dot(h, w2_ref[l],
                        preferred_element_type=jnp.float32) + b2_ref[l]
    o_ref[0] = _layer_norm_rows(x, lnfg_ref[...], lnfb_ref[...])


def _decoder_stack_kernel(nhead, nlayers, scale,
                          emb_ref, pe_ref, mem_ref, tmask_ref, mmask_ref,
                          sa_wqkv_ref, sa_bqkv_ref, sa_wo_ref, sa_bo_ref,
                          ln1g_ref, ln1b_ref,
                          ca_wq_ref, ca_bq_ref, ca_wkv_ref, ca_bkv_ref,
                          ca_wo_ref, ca_bo_ref, ln2g_ref, ln2b_ref,
                          w1_ref, b1_ref, w2_ref, b2_ref, ln3g_ref, ln3b_ref,
                          lnfg_ref, lnfb_ref, o_ref):
    """Whole decoder (PE add + L pre-norm layers + final LN) for one batch elem."""
    x = emb_ref[0] * scale + pe_ref[...]            # [St, E]
    mem = mem_ref[0]                                # [Ss, E]
    tmask = tmask_ref[0]                            # [St, St]
    mmask = mmask_ref[0]                            # [St, Ss]
    e = x.shape[-1]
    for l in range(nlayers):
        # --- masked self-attention ---
        y = _layer_norm_rows(x, ln1g_ref[l], ln1b_ref[l])
        qkv = jnp.dot(y, sa_wqkv_ref[l],
                      preferred_element_type=jnp.float32) + sa_bqkv_ref[l]
        o = _heads_attention(qkv[:, :e], qkv[:, e:2 * e], qkv[:, 2 * e:],
                             tmask, nhead)
        x = x + jnp.dot(o, sa_wo_ref[l],
                        preferred_element_type=jnp.float32) + sa_bo_ref[l]
        # --- cross-attention (K/V from encoder memory) ---
        y = _layer_norm_rows(x, ln2g_ref[l], ln2b_ref[l])
        q = jnp.dot(y, ca_wq_ref[l],
                    preferred_element_type=jnp.float32) + ca_bq_ref[l]
        kv = jnp.dot(mem, ca_wkv_ref[l],
                     preferred_element_type=jnp.float32) + ca_bkv_ref[l]
        o = _heads_attention(q, kv[:, :e], kv[:, e:], mmask, nhead)
        x = x + jnp.dot(o, ca_wo_ref[l],
                        preferred_element_type=jnp.float32) + ca_bo_ref[l]
        # --- feed-forward ---
        y = _layer_norm_rows(x, ln3g_ref[l], ln3b_ref[l])
        h = jnp.maximum(jnp.dot(y, w1_ref[l],
                                preferred_element_type=jnp.float32) + b1_ref[l],
                        0.0)
        x = x + jnp.dot(h, w2_ref[l],
                        preferred_element_type=jnp.float32) + b2_ref[l]
    o_ref[0] = _layer_norm_rows(x, lnfg_ref[...], lnfb_ref[...])


# ----------------------------- kernel wrappers ------------------------------

def _const_spec(shape):
    """Full-array block, constant index_map -> stays resident in VMEM."""
    return pl.BlockSpec(shape, lambda b, _n=len(shape): (0,) * _n)


def encoder_stack(enc, emb, pe_s, mask_add, nhead):
    B, S, E = emb.shape
    L = enc['wqkv'].shape[0]
    F = enc['w1'].shape[2]
    return pl.pallas_call(
        partial(_encoder_stack_kernel, nhead, L, math.sqrt(E)),
        grid=(B,),
        out_shape=jax.ShapeDtypeStruct((B, S, E), jnp.float32),
        in_specs=[pl.BlockSpec((1, S, E), lambda b: (b, 0, 0)),      # emb
                  _const_spec((S, E)),                               # pe
                  pl.BlockSpec((1, S, S), lambda b: (b, 0, 0)),      # mask
                  _const_spec((L, E, 3 * E)), _const_spec((L, 1, 3 * E)),
                  _const_spec((L, E, E)), _const_spec((L, 1, E)),
                  _const_spec((L, 1, E)), _const_spec((L, 1, E)),
                  _const_spec((L, E, F)), _const_spec((L, 1, F)),
                  _const_spec((L, F, E)), _const_spec((L, 1, E)),
                  _const_spec((L, 1, E)), _const_spec((L, 1, E)),
                  _const_spec((1, E)), _const_spec((1, E))],
        out_specs=pl.BlockSpec((1, S, E), lambda b: (b, 0, 0)),
        compiler_params=pltpu.CompilerParams(dimension_semantics=("parallel",)),
    )(emb, pe_s, mask_add,
      enc['wqkv'], enc['bqkv'], enc['wo'], enc['bo'],
      enc['ln1g'], enc['ln1b'],
      enc['w1'], enc['b1'], enc['w2'], enc['b2'],
      enc['ln2g'], enc['ln2b'],
      enc['lnfg'], enc['lnfb'])


def decoder_stack(dec, emb, pe_t, memory, tgt_mask_add, mem_mask_add, nhead):
    B, St, E = emb.shape
    Ss = memory.shape[1]
    L = dec['sa_wqkv'].shape[0]
    F = dec['w1'].shape[2]
    return pl.pallas_call(
        partial(_decoder_stack_kernel, nhead, L, math.sqrt(E)),
        grid=(B,),
        out_shape=jax.ShapeDtypeStruct((B, St, E), jnp.float32),
        in_specs=[pl.BlockSpec((1, St, E), lambda b: (b, 0, 0)),     # emb
                  _const_spec((St, E)),                              # pe
                  pl.BlockSpec((1, Ss, E), lambda b: (b, 0, 0)),     # memory
                  pl.BlockSpec((1, St, St), lambda b: (b, 0, 0)),    # tgt mask
                  pl.BlockSpec((1, St, Ss), lambda b: (b, 0, 0)),    # mem mask
                  _const_spec((L, E, 3 * E)), _const_spec((L, 1, 3 * E)),
                  _const_spec((L, E, E)), _const_spec((L, 1, E)),
                  _const_spec((L, 1, E)), _const_spec((L, 1, E)),
                  _const_spec((L, E, E)), _const_spec((L, 1, E)),
                  _const_spec((L, E, 2 * E)), _const_spec((L, 1, 2 * E)),
                  _const_spec((L, E, E)), _const_spec((L, 1, E)),
                  _const_spec((L, 1, E)), _const_spec((L, 1, E)),
                  _const_spec((L, E, F)), _const_spec((L, 1, F)),
                  _const_spec((L, F, E)), _const_spec((L, 1, E)),
                  _const_spec((L, 1, E)), _const_spec((L, 1, E)),
                  _const_spec((1, E)), _const_spec((1, E))],
        out_specs=pl.BlockSpec((1, St, E), lambda b: (b, 0, 0)),
        compiler_params=pltpu.CompilerParams(dimension_semantics=("parallel",)),
    )(emb, pe_t, memory, tgt_mask_add, mem_mask_add,
      dec['sa_wqkv'], dec['sa_bqkv'], dec['sa_wo'], dec['sa_bo'],
      dec['ln1g'], dec['ln1b'],
      dec['ca_wq'], dec['ca_bq'], dec['ca_wkv'], dec['ca_bkv'],
      dec['ca_wo'], dec['ca_bo'], dec['ln2g'], dec['ln2b'],
      dec['w1'], dec['b1'], dec['w2'], dec['b2'], dec['ln3g'], dec['ln3b'],
      dec['lnfg'], dec['lnfb'])


# ----------------------------- JAX glue ------------------------------------

def make_additive_mask(attn_mask, key_padding_mask, B, Sq, Sk):
    """attn_mask: [Sq,Sk] bool True=attend (or None);
       key_padding_mask: [B,Sk] bool True=PAD (or None) -> [B,Sq,Sk] float.
       (Tiny at these shapes; at long sequence lengths generate in-kernel.)"""
    allowed = jnp.ones((B, Sq, Sk), dtype=bool)
    if attn_mask is not None:
        allowed = allowed & attn_mask[None, :, :]
    if key_padding_mask is not None:
        allowed = allowed & (~key_padding_mask)[:, None, :]
    return jnp.where(allowed, 0.0, NEG_INF).astype(jnp.float32)


def positional_encoding_table(emb_size, maxlen=512):
    pos = jnp.arange(maxlen, dtype=jnp.float32)[:, None]
    den = jnp.exp(-jnp.arange(0, emb_size, 2, dtype=jnp.float32)
                  * math.log(10000.0) / emb_size)
    pe = jnp.zeros((maxlen, emb_size), dtype=jnp.float32)
    pe = pe.at[:, 0::2].set(jnp.sin(pos * den))
    pe = pe.at[:, 1::2].set(jnp.cos(pos * den))
    return pe


# ----------------------------- full transformer ---------------------------

@partial(jax.jit, static_argnames=('nhead',))
def transformer_forward(params, src, tgt, src_mask, tgt_mask,
                        src_padding_mask, tgt_padding_mask,
                        memory_key_padding_mask, nhead):
    # forward() returns decoder output (generator is NOT applied, as in the
    # reference forward()); memory_mask is None, as in the reference.
    B, Ss = src.shape
    _, St = tgt.shape
    # TODO(synk): embedding gather left in plain JAX (data-dependent lookup);
    # the sqrt(E) scale and PE add are folded into the stack kernels.
    src_emb = params['src_emb'][src]                     # [B, Ss, E]
    tgt_emb = params['tgt_emb'][tgt]                     # [B, St, E]
    src_mask_add = make_additive_mask(src_mask, src_padding_mask, B, Ss, Ss)
    tgt_mask_add = make_additive_mask(tgt_mask, tgt_padding_mask, B, St, St)
    mem_mask_add = make_additive_mask(None, memory_key_padding_mask, B, St, Ss)
    memory = encoder_stack(params['enc'], src_emb, params['pe'][:Ss],
                           src_mask_add, nhead)
    return decoder_stack(params['dec'], tgt_emb, params['pe'][:St], memory,
                         tgt_mask_add, mem_mask_add, nhead)


# ----------------------------- parameter init -----------------------------

def init_linear(key, fan_in, fan_out):
    k1, k2 = jax.random.split(key)
    bound = 1.0 / math.sqrt(fan_in)
    w = jax.random.uniform(k1, (fan_in, fan_out), jnp.float32, -bound, bound)
    b = jax.random.uniform(k2, (fan_out,), jnp.float32, -bound, bound)
    return w, b


def init_attn(key, E):
    ks = jax.random.split(key, 4)
    wq, bq = init_linear(ks[0], E, E)
    wk, bk = init_linear(ks[1], E, E)
    wv, bv = init_linear(ks[2], E, E)
    wo, bo = init_linear(ks[3], E, E)
    # Pre-fuse projections once at init: QKV -> [E, 3E] (self-attn),
    # KV -> [E, 2E] (cross-attn). Avoids per-call concatenation and triples
    # the projection-output lane width.
    return dict(
        wqkv=jnp.concatenate([wq, wk, wv], axis=1),
        bqkv=jnp.concatenate([bq, bk, bv]),
        wq=wq, bq=bq,
        wkv=jnp.concatenate([wk, wv], axis=1),
        bkv=jnp.concatenate([bk, bv]),
        wo=wo, bo=bo)


def init_ff(key, E, F):
    k1, k2 = jax.random.split(key)
    w1, b1 = init_linear(k1, E, F)
    w2, b2 = init_linear(k2, F, E)
    return w1, b1, w2, b2


def init_params(key, num_enc, num_dec, E, src_vocab, tgt_vocab, F):
    keys = jax.random.split(key, 6)

    # ---- encoder stack: init per-layer then stack to [L, ...] arrays ----
    enc_attn, enc_ff = [], []
    for k in jax.random.split(keys[2], num_enc):
        k1, k2 = jax.random.split(k)
        enc_attn.append(init_attn(k1, E))
        enc_ff.append(init_ff(k2, E, F))
    enc = dict(
        wqkv=jnp.stack([a['wqkv'] for a in enc_attn]),
        bqkv=jnp.stack([a['bqkv'].reshape(1, -1) for a in enc_attn]),
        wo=jnp.stack([a['wo'] for a in enc_attn]),
        bo=jnp.stack([a['bo'].reshape(1, -1) for a in enc_attn]),
        ln1g=jnp.ones((num_enc, 1, E), jnp.float32),
        ln1b=jnp.zeros((num_enc, 1, E), jnp.float32),
        w1=jnp.stack([f[0] for f in enc_ff]),
        b1=jnp.stack([f[1].reshape(1, -1) for f in enc_ff]),
        w2=jnp.stack([f[2] for f in enc_ff]),
        b2=jnp.stack([f[3].reshape(1, -1) for f in enc_ff]),
        ln2g=jnp.ones((num_enc, 1, E), jnp.float32),
        ln2b=jnp.zeros((num_enc, 1, E), jnp.float32),
        lnfg=jnp.ones((1, E), jnp.float32),
        lnfb=jnp.zeros((1, E), jnp.float32),
    )

    # ---- decoder stack ----
    dec_sa, dec_ca, dec_ff = [], [], []
    for k in jax.random.split(keys[3], num_dec):
        k1, k2, k3 = jax.random.split(k, 3)
        dec_sa.append(init_attn(k1, E))
        dec_ca.append(init_attn(k2, E))
        dec_ff.append(init_ff(k3, E, F))
    dec = dict(
        sa_wqkv=jnp.stack([a['wqkv'] for a in dec_sa]),
        sa_bqkv=jnp.stack([a['bqkv'].reshape(1, -1) for a in dec_sa]),
        sa_wo=jnp.stack([a['wo'] for a in dec_sa]),
        sa_bo=jnp.stack([a['bo'].reshape(1, -1) for a in dec_sa]),
        ln1g=jnp.ones((num_dec, 1, E), jnp.float32),
        ln1b=jnp.zeros((num_dec, 1, E), jnp.float32),
        ca_wq=jnp.stack([a['wq'] for a in dec_ca]),
        ca_bq=jnp.stack([a['bq'].reshape(1, -1) for a in dec_ca]),
        ca_wkv=jnp.stack([a['wkv'] for a in dec_ca]),
        ca_bkv=jnp.stack([a['bkv'].reshape(1, -1) for a in dec_ca]),
        ca_wo=jnp.stack([a['wo'] for a in dec_ca]),
        ca_bo=jnp.stack([a['bo'].reshape(1, -1) for a in dec_ca]),
        ln2g=jnp.ones((num_dec, 1, E), jnp.float32),
        ln2b=jnp.zeros((num_dec, 1, E), jnp.float32),
        w1=jnp.stack([f[0] for f in dec_ff]),
        b1=jnp.stack([f[1].reshape(1, -1) for f in dec_ff]),
        w2=jnp.stack([f[2] for f in dec_ff]),
        b2=jnp.stack([f[3].reshape(1, -1) for f in dec_ff]),
        ln3g=jnp.ones((num_dec, 1, E), jnp.float32),
        ln3b=jnp.zeros((num_dec, 1, E), jnp.float32),
        lnfg=jnp.ones((1, E), jnp.float32),
        lnfb=jnp.zeros((1, E), jnp.float32),
    )

    params = {
        'src_emb': jax.random.normal(keys[0], (src_vocab, E), jnp.float32) * 0.02,
        'tgt_emb': jax.random.normal(keys[1], (tgt_vocab, E), jnp.float32) * 0.02,
        'pe': positional_encoding_table(E),
        'enc': enc,
        'dec': dec,
    }
    # generator exists in __init__ but is unused in forward(); init anyway.
    gw, gb = init_linear(keys[4], E, tgt_vocab)
    params['generator'] = dict(w=gw, b=gb)
    return params


# ----------------------------------- main ----------------------------------

if __name__ == "__main__":
    num_encoder_layers = 2
    num_decoder_layers = 2
    emb_size = 32
    nhead = 4
    src_vocab_size = 50
    tgt_vocab_size = 60
    dim_feedforward = 64
    batch = 2
    src_seq = 8
    tgt_seq = 8

    root = jax.random.PRNGKey(0)
    kp, ks, kt = jax.random.split(root, 3)
    params = init_params(kp, num_encoder_layers, num_decoder_layers,
                         emb_size, src_vocab_size, tgt_vocab_size,
                         dim_feedforward)

    src = jax.random.randint(ks, (batch, src_seq), 0, src_vocab_size, jnp.int32)
    tgt = jax.random.randint(kt, (batch, tgt_seq), 0, tgt_vocab_size, jnp.int32)

    src_mask = jnp.ones((src_seq, src_seq), dtype=bool)             # attend all
    tgt_mask = jnp.tril(jnp.ones((tgt_seq, tgt_seq), dtype=bool))   # causal
    src_padding_mask = jnp.zeros((batch, src_seq), dtype=bool)      # no padding
    tgt_padding_mask = jnp.zeros((batch, tgt_seq), dtype=bool)
    memory_key_padding_mask = jnp.zeros((batch, src_seq), dtype=bool)

    out = transformer_forward(params, src, tgt, src_mask, tgt_mask,
                              src_padding_mask, tgt_padding_mask,
                              memory_key_padding_mask, nhead=nhead)
    out = jax.block_until_ready(out)
    assert out.shape == (batch, tgt_seq, emb_size)
    assert bool(jnp.all(jnp.isfinite(out)))
    print("KERNEL_OK")
</pallas_src>

<mosaic_0001>
module attributes {stable_mosaic.version = 11 : i64} {
  func.func @_encoder_stack_kernel(%arg0: i32, %arg1: memref<1x8x32xf32, #tpu.memory_space<vmem>>, %arg2: memref<8x32xf32, #tpu.memory_space<vmem>>, %arg3: memref<1x8x8xf32, #tpu.memory_space<vmem>>, %arg4: memref<2x32x96xf32, #tpu.memory_space<vmem>>, %arg5: memref<2x1x96xf32, #tpu.memory_space<vmem>>, %arg6: memref<2x32x32xf32, #tpu.memory_space<vmem>>, %arg7: memref<2x1x32xf32, #tpu.memory_space<vmem>>, %arg8: memref<2x1x32xf32, #tpu.memory_space<vmem>>, %arg9: memref<2x1x32xf32, #tpu.memory_space<vmem>>, %arg10: memref<2x32x64xf32, #tpu.memory_space<vmem>>, %arg11: memref<2x1x64xf32, #tpu.memory_space<vmem>>, %arg12: memref<2x64x32xf32, #tpu.memory_space<vmem>>, %arg13: memref<2x1x32xf32, #tpu.memory_space<vmem>>, %arg14: memref<2x1x32xf32, #tpu.memory_space<vmem>>, %arg15: memref<2x1x32xf32, #tpu.memory_space<vmem>>, %arg16: memref<1x32xf32, #tpu.memory_space<vmem>>, %arg17: memref<1x32xf32, #tpu.memory_space<vmem>>, %arg18: memref<1x8x32xf32, #tpu.memory_space<vmem>>) attributes {dimension_semantics = [#tpu.dimension_semantics<parallel>], iteration_bounds = array<i64: 2>, scalar_prefetch = 0 : i64, scratch_operands = 0 : i64, tpu.core_type = #tpu.core_type<tc>, window_params = [{transform_indices = @transform_0, window_bounds = array<i64: 1, 8, 32>}, {pipeline_mode = #tpu.pipeline_mode<synchronous>, transform_indices = @transform_1, window_bounds = array<i64: 8, 32>}, {transform_indices = @transform_2, window_bounds = array<i64: 1, 8, 8>}, {pipeline_mode = #tpu.pipeline_mode<synchronous>, transform_indices = @transform_3, window_bounds = array<i64: 2, 32, 96>}, {pipeline_mode = #tpu.pipeline_mode<synchronous>, transform_indices = @transform_4, window_bounds = array<i64: 2, 1, 96>}, {pipeline_mode = #tpu.pipeline_mode<synchronous>, transform_indices = @transform_5, window_bounds = array<i64: 2, 32, 32>}, {pipeline_mode = #tpu.pipeline_mode<synchronous>, transform_indices = @transform_6, window_bounds = array<i64: 2, 1, 32>}, {pipeline_mode = #tpu.pipeline_mode<synchronous>, transform_indices = @transform_7, window_bounds = array<i64: 2, 1, 32>}, {pipeline_mode = #tpu.pipeline_mode<synchronous>, transform_indices = @transform_8, window_bounds = array<i64: 2, 1, 32>}, {pipeline_mode = #tpu.pipeline_mode<synchronous>, transform_indices = @transform_9, window_bounds = array<i64: 2, 32, 64>}, {pipeline_mode = #tpu.pipeline_mode<synchronous>, transform_indices = @transform_10, window_bounds = array<i64: 2, 1, 64>}, {pipeline_mode = #tpu.pipeline_mode<synchronous>, transform_indices = @transform_11, window_bounds = array<i64: 2, 64, 32>}, {pipeline_mode = #tpu.pipeline_mode<synchronous>, transform_indices = @transform_12, window_bounds = array<i64: 2, 1, 32>}, {pipeline_mode = #tpu.pipeline_mode<synchronous>, transform_indices = @transform_13, window_bounds = array<i64: 2, 1, 32>}, {pipeline_mode = #tpu.pipeline_mode<synchronous>, transform_indices = @transform_14, window_bounds = array<i64: 2, 1, 32>}, {pipeline_mode = #tpu.pipeline_mode<synchronous>, transform_indices = @transform_15, window_bounds = array<i64: 1, 32>}, {pipeline_mode = #tpu.pipeline_mode<synchronous>, transform_indices = @transform_16, window_bounds = array<i64: 1, 32>}, {transform_indices = @transform_17, window_bounds = array<i64: 1, 8, 32>}]} {
    %c0 = arith.constant 0 : index
    %c0_0 = arith.constant 0 : index
    %c0_1 = arith.constant 0 : index
    %0 = vector.load %arg1[%c0, %c0_0, %c0_1] : memref<1x8x32xf32, #tpu.memory_space<vmem>>, vector<1x8x32xf32>
    %1 = vector.shape_cast %0 : vector<1x8x32xf32> to vector<8x32xf32>
    %cst = arith.constant 5.65685415 : f32
    %2 = vector.broadcast %cst : f32 to vector<8x32xf32>
    %3 = arith.mulf %1, %2 : vector<8x32xf32>
    %c0_2 = arith.constant 0 : index
    %c0_3 = arith.constant 0 : index
    %4 = vector.load %arg2[%c0_2, %c0_3] : memref<8x32xf32, #tpu.memory_space<vmem>>, vector<8x32xf32>
    %5 = arith.addf %3, %4 : vector<8x32xf32>
    %c0_4 = arith.constant 0 : index
    %c0_5 = arith.constant 0 : index
    %c0_6 = arith.constant 0 : index
    %6 = vector.load %arg3[%c0_4, %c0_5, %c0_6] : memref<1x8x8xf32, #tpu.memory_space<vmem>>, vector<1x8x8xf32>
    %7 = vector.shape_cast %6 : vector<1x8x8xf32> to vector<8x8xf32>
    %c0_7 = arith.constant 0 : index
    %c0_8 = arith.constant 0 : index
    %c0_9 = arith.constant 0 : index
    %8 = vector.load %arg8[%c0_7, %c0_8, %c0_9] : memref<2x1x32xf32, #tpu.memory_space<vmem>>, vector<1x1x32xf32>
    %9 = vector.shape_cast %8 : vector<1x1x32xf32> to vector<1x32xf32>
    %c0_10 = arith.constant 0 : index
    %c0_11 = arith.constant 0 : index
    %c0_12 = arith.constant 0 : index
    %10 = vector.load %arg9[%c0_10, %c0_11, %c0_12] : memref<2x1x32xf32, #tpu.memory_space<vmem>>, vector<1x1x32xf32>
    %11 = vector.shape_cast %10 : vector<1x1x32xf32> to vector<1x32xf32>
    %cst_13 = arith.constant dense<0.000000e+00> : vector<8xf32>
    %12 = vector.multi_reduction <add>, %5, %cst_13 [1] : vector<8x32xf32> to vector<8xf32>
    %13 = vector.shape_cast %12 : vector<8xf32> to vector<8x1xf32>
    %cst_14 = arith.constant 3.200000e+01 : f32
    %14 = vector.broadcast %cst_14 : f32 to vector<8x1xf32>
    %15 = arith.divf %13, %14 : vector<8x1xf32>
    %16 = vector.broadcast %15 : vector<8x1xf32> to vector<8x32xf32>
    %17 = arith.subf %5, %16 : vector<8x32xf32>
    %18 = arith.mulf %17, %17 : vector<8x32xf32>
    %cst_15 = arith.constant dense<0.000000e+00> : vector<8xf32>
    %19 = vector.multi_reduction <add>, %18, %cst_15 [1] : vector<8x32xf32> to vector<8xf32>
    %20 = vector.shape_cast %19 : vector<8xf32> to vector<8x1xf32>
    %cst_16 = arith.constant 0.0322580636 : f32
    %21 = vector.broadcast %cst_16 : f32 to vector<8x1xf32>
    %22 = arith.mulf %20, %21 : vector<8x1xf32>
    %23 = math.sqrt %22 : vector<8x1xf32>
    %cst_17 = arith.constant 9.99999997E-7 : f32
    %24 = vector.broadcast %cst_17 : f32 to vector<8x1xf32>
    %25 = arith.addf %23, %24 : vector<8x1xf32>
    %26 = tpu.reciprocal %25 {approx = true} : vector<8x1xf32> -> vector<8x1xf32>
    %27 = vector.broadcast %15 : vector<8x1xf32> to vector<8x32xf32>
    %28 = arith.subf %5, %27 : vector<8x32xf32>
    %29 = vector.broadcast %9 : vector<1x32xf32> to vector<8x32xf32>
    %30 = arith.mulf %29, %28 : vector<8x32xf32>
    %31 = vector.broadcast %26 : vector<8x1xf32> to vector<8x32xf32>
    %32 = arith.mulf %30, %31 : vector<8x32xf32>
    %33 = vector.broadcast %11 : vector<1x32xf32> to vector<8x32xf32>
    %34 = arith.addf %32, %33 : vector<8x32xf32>
    %c0_18 = arith.constant 0 : index
    %c0_19 = arith.constant 0 : index
    %c0_20 = arith.constant 0 : index
    %35 = vector.load %arg4[%c0_18, %c0_19, %c0_20] : memref<2x32x96xf32, #tpu.memory_space<vmem>>, vector<1x32x96xf32>
    %36 = vector.shape_cast %35 : vector<1x32x96xf32> to vector<32x96xf32>
    %cst_21 = arith.constant dense<0.000000e+00> : vector<8x96xf32>
    %37 = tpu.matmul %34, %36, %cst_21 {dimension_numbers = #tpu.dot_dimension_numbers<[1], [0], [0], [1], [0, 0, 1, 1], [], []>} : vector<8x32xf32>, vector<32x96xf32>, vector<8x96xf32> -> vector<8x96xf32>
    %c0_22 = arith.constant 0 : index
    %c0_23 = arith.constant 0 : index
    %c0_24 = arith.constant 0 : index
    %38 = vector.load %arg5[%c0_22, %c0_23, %c0_24] : memref<2x1x96xf32, #tpu.memory_space<vmem>>, vector<1x1x96xf32>
    %39 = vector.shape_cast %38 : vector<1x1x96xf32> to vector<1x96xf32>
    %40 = vector.broadcast %39 : vector<1x96xf32> to vector<8x96xf32>
    %41 = arith.addf %37, %40 : vector<8x96xf32>
    %42 = vector.extract_strided_slice %41 {offsets = [0, 0], sizes = [8, 32], strides = [1, 1]} : vector<8x96xf32> to vector<8x32xf32>
    %43 = vector.extract_strided_slice %41 {offsets = [0, 32], sizes = [8, 32], strides = [1, 1]} : vector<8x96xf32> to vector<8x32xf32>
    %44 = vector.extract_strided_slice %41 {offsets = [0, 64], sizes = [8, 32], strides = [1, 1]} : vector<8x96xf32> to vector<8x32xf32>
    %45 = vector.extract_strided_slice %42 {offsets = [0, 0], sizes = [8, 8], strides = [1, 1]} : vector<8x32xf32> to vector<8x8xf32>
    %46 = vector.extract_strided_slice %43 {offsets = [0, 0], sizes = [8, 8], strides = [1, 1]} : vector<8x32xf32> to vector<8x8xf32>
    %47 = vector.extract_strided_slice %44 {offsets = [0, 0], sizes = [8, 8], strides = [1, 1]} : vector<8x32xf32> to vector<8x8xf32>
    %48 = tpu.transpose %46, [1, 0] : vector<8x8xf32> -> vector<8x8xf32>
    %cst_25 = arith.constant dense<0.000000e+00> : vector<8x8xf32>
    %49 = tpu.matmul %45, %48, %cst_25 {dimension_numbers = #tpu.dot_dimension_numbers<[1], [0], [0], [1], [0, 0, 1, 1], [], []>} : vector<8x8xf32>, vector<8x8xf32>, vector<8x8xf32> -> vector<8x8xf32>
    %cst_26 = arith.constant 0.353553385 : f32
    %50 = vector.broadcast %cst_26 : f32 to vector<8x8xf32>
    %51 = arith.mulf %49, %50 : vector<8x8xf32>
    %52 = arith.addf %51, %7 : vector<8x8xf32>
    %cst_27 = arith.constant dense<0xFF800000> : vector<8xf32>
    %53 = vector.multi_reduction <maximumf>, %52, %cst_27 [1] : vector<8x8xf32> to vector<8xf32>
    %54 = vector.shape_cast %53 : vector<8xf32> to vector<8x1xf32>
    %55 = vector.broadcast %54 : vector<8x1xf32> to vector<8x8xf32>
    %56 = arith.subf %52, %55 : vector<8x8xf32>
    %57 = math.exp %56 : vector<8x8xf32>
    %cst_28 = arith.constant dense<0.000000e+00> : vector<8xf32>
    %58 = vector.multi_reduction <add>, %57, %cst_28 [1] : vector<8x8xf32> to vector<8xf32>
    %59 = vector.shape_cast %58 : vector<8xf32> to vector<8x1xf32>
    %60 = tpu.reciprocal %59 {approx = true} : vector<8x1xf32> -> vector<8x1xf32>
    %61 = vector.broadcast %60 : vector<8x1xf32> to vector<8x8xf32>
    %62 = arith.mulf %57, %61 : vector<8x8xf32>
    %cst_29 = arith.constant dense<0.000000e+00> : vector<8x8xf32>
    %63 = tpu.matmul %62, %47, %cst_29 {dimension_numbers = #tpu.dot_dimension_numbers<[1], [0], [0], [1], [0, 0, 1, 1], [], []>} : vector<8x8xf32>, vector<8x8xf32>, vector<8x8xf32> -> vector<8x8xf32>
    %64 = vector.extract_strided_slice %42 {offsets = [0, 8], sizes = [8, 8], strides = [1, 1]} : vector<8x32xf32> to vector<8x8xf32>
    %65 = vector.extract_strided_slice %43 {offsets = [0, 8], sizes = [8, 8], strides = [1, 1]} : vector<8x32xf32> to vector<8x8xf32>
    %66 = vector.extract_strided_slice %44 {offsets = [0, 8], sizes = [8, 8], strides = [1, 1]} : vector<8x32xf32> to vector<8x8xf32>
    %67 = tpu.transpose %65, [1, 0] : vector<8x8xf32> -> vector<8x8xf32>
    %cst_30 = arith.constant dense<0.000000e+00> : vector<8x8xf32>
    %68 = tpu.matmul %64, %67, %cst_30 {dimension_numbers = #tpu.dot_dimension_numbers<[1], [0], [0], [1], [0, 0, 1, 1], [], []>} : vector<8x8xf32>, vector<8x8xf32>, vector<8x8xf32> -> vector<8x8xf32>
    %cst_31 = arith.constant 0.353553385 : f32
    %69 = vector.broadcast %cst_31 : f32 to vector<8x8xf32>
    %70 = arith.mulf %68, %69 : vector<8x8xf32>
    %71 = arith.addf %70, %7 : vector<8x8xf32>
    %cst_32 = arith.constant dense<0xFF800000> : vector<8xf32>
    %72 = vector.multi_reduction <maximumf>, %71, %cst_32 [1] : vector<8x8xf32> to vector<8xf32>
    %73 = vector.shape_cast %72 : vector<8xf32> to vector<8x1xf32>
    %74 = vector.broadcast %73 : vector<8x1xf32> to vector<8x8xf32>
    %75 = arith.subf %71, %74 : vector<8x8xf32>
    %76 = math.exp %75 : vector<8x8xf32>
    %cst_33 = arith.constant dense<0.000000e+00> : vector<8xf32>
    %77 = vector.multi_reduction <add>, %76, %cst_33 [1] : vector<8x8xf32> to vector<8xf32>
    %78 = vector.shape_cast %77 : vector<8xf32> to vector<8x1xf32>
    %79 = tpu.reciprocal %78 {approx = true} : vector<8x1xf32> -> vector<8x1xf32>
    %80 = vector.broadcast %79 : vector<8x1xf32> to vector<8x8xf32>
    %81 = arith.mulf %76, %80 : vector<8x8xf32>
    %cst_34 = arith.constant dense<0.000000e+00> : vector<8x8xf32>
    %82 = tpu.matmul %81, %66, %cst_34 {dimension_numbers = #tpu.dot_dimension_numbers<[1], [0], [0], [1], [0, 0, 1, 1], [], []>} : vector<8x8xf32>, vector<8x8xf32>, vector<8x8xf32> -> vector<8x8xf32>
    %83 = vector.extract_strided_slice %42 {offsets = [0, 16], sizes = [8, 8], strides = [1, 1]} : vector<8x32xf32> to vector<8x8xf32>
    %84 = vector.extract_strided_slice %43 {offsets = [0, 16], sizes = [8, 8], strides = [1, 1]} : vector<8x32xf32> to vector<8x8xf32>
    %85 = vector.extract_strided_slice %44 {offsets = [0, 16], sizes = [8, 8], strides = [1, 1]} : vector<8x32xf32> to vector<8x8xf32>
    %86 = tpu.transpose %84, [1, 0] : vector<8x8xf32> -> vector<8x8xf32>
    %cst_35 = arith.constant dense<0.000000e+00> : vector<8x8xf32>
    %87 = tpu.matmul %83, %86, %cst_35 {dimension_numbers = #tpu.dot_dimension_numbers<[1], [0], [0], [1], [0, 0, 1, 1], [], []>} : vector<8x8xf32>, vector<8x8xf32>, vector<8x8xf32> -> vector<8x8xf32>
    %cst_36 = arith.constant 0.353553385 : f32
    %88 = vector.broadcast %cst_36 : f32 to vector<8x8xf32>
    %89 = arith.mulf %87, %88 : vector<8x8xf32>
    %90 = arith.addf %89, %7 : vector<8x8xf32>
    %cst_37 = arith.constant dense<0xFF800000> : vector<8xf32>
    %91 = vector.multi_reduction <maximumf>, %90, %cst_37 [1] : vector<8x8xf32> to vector<8xf32>
    %92 = vector.shape_cast %91 : vector<8xf32> to vector<8x1xf32>
    %93 = vector.broadcast %92 : vector<8x1xf32> to vector<8x8xf32>
    %94 = arith.subf %90, %93 : vector<8x8xf32>
    %95 = math.exp %94 : vector<8x8xf32>
    %cst_38 = arith.constant dense<0.000000e+00> : vector<8xf32>
    %96 = vector.multi_reduction <add>, %95, %cst_38 [1] : vector<8x8xf32> to vector<8xf32>
    %97 = vector.shape_cast %96 : vector<8xf32> to vector<8x1xf32>
    %98 = tpu.reciprocal %97 {approx = true} : vector<8x1xf32> -> vector<8x1xf32>
    %99 = vector.broadcast %98 : vector<8x1xf32> to vector<8x8xf32>
    %100 = arith.mulf %95, %99 : vector<8x8xf32>
    %cst_39 = arith.constant dense<0.000000e+00> : vector<8x8xf32>
    %101 = tpu.matmul %100, %85, %cst_39 {dimension_numbers = #tpu.dot_dimension_numbers<[1], [0], [0], [1], [0, 0, 1, 1], [], []>} : vector<8x8xf32>, vector<8x8xf32>, vector<8x8xf32> -> vector<8x8xf32>
    %102 = vector.extract_strided_slice %42 {offsets = [0, 24], sizes = [8, 8], strides = [1, 1]} : vector<8x32xf32> to vector<8x8xf32>
    %103 = vector.extract_strided_slice %43 {offsets = [0, 24], sizes = [8, 8], strides = [1, 1]} : vector<8x32xf32> to vector<8x8xf32>
    %104 = vector.extract_strided_slice %44 {offsets = [0, 24], sizes = [8, 8], strides = [1, 1]} : vector<8x32xf32> to vector<8x8xf32>
    %105 = tpu.transpose %103, [1, 0] : vector<8x8xf32> -> vector<8x8xf32>
    %cst_40 = arith.constant dense<0.000000e+00> : vector<8x8xf32>
    %106 = tpu.matmul %102, %105, %cst_40 {dimension_numbers = #tpu.dot_dimension_numbers<[1], [0], [0], [1], [0, 0, 1, 1], [], []>} : vector<8x8xf32>, vector<8x8xf32>, vector<8x8xf32> -> vector<8x8xf32>
    %cst_41 = arith.constant 0.353553385 : f32
    %107 = vector.broadcast %cst_41 : f32 to vector<8x8xf32>
    %108 = arith.mulf %106, %107 : vector<8x8xf32>
    %109 = arith.addf %108, %7 : vector<8x8xf32>
    %cst_42 = arith.constant dense<0xFF800000> : vector<8xf32>
    %110 = vector.multi_reduction <maximumf>, %109, %cst_42 [1] : vector<8x8xf32> to vector<8xf32>
    %111 = vector.shape_cast %110 : vector<8xf32> to vector<8x1xf32>
    %112 = vector.broadcast %111 : vector<8x1xf32> to vector<8x8xf32>
    %113 = arith.subf %109, %112 : vector<8x8xf32>
    %114 = math.exp %113 : vector<8x8xf32>
    %cst_43 = arith.constant dense<0.000000e+00> : vector<8xf32>
    %115 = vector.multi_reduction <add>, %114, %cst_43 [1] : vector<8x8xf32> to vector<8xf32>
    %116 = vector.shape_cast %115 : vector<8xf32> to vector<8x1xf32>
    %117 = tpu.reciprocal %116 {approx = true} : vector<8x1xf32> -> vector<8x1xf32>
    %118 = vector.broadcast %117 : vector<8x1xf32> to vector<8x8xf32>
    %119 = arith.mulf %114, %118 : vector<8x8xf32>
    %cst_44 = arith.constant dense<0.000000e+00> : vector<8x8xf32>
    %120 = tpu.matmul %119, %104, %cst_44 {dimension_numbers = #tpu.dot_dimension_numbers<[1], [0], [0], [1], [0, 0, 1, 1], [], []>} : vector<8x8xf32>, vector<8x8xf32>, vector<8x8xf32> -> vector<8x8xf32>
    %121 = tpu.concatenate %63, %82, %101, %120 in 1 : vector<8x8xf32>, vector<8x8xf32>, vector<8x8xf32>, vector<8x8xf32> -> vector<8x32xf32>
    %c0_45 = arith.constant 0 : index
    %c0_46 = arith.constant 0 : index
    %c0_47 = arith.constant 0 : index
    %122 = vector.load %arg6[%c0_45, %c0_46, %c0_47] : memref<2x32x32xf32, #tpu.memory_space<vmem>>, vector<1x32x32xf32>
    %123 = vector.shape_cast %122 : vector<1x32x32xf32> to vector<32x32xf32>
    %cst_48 = arith.constant dense<0.000000e+00> : vector<8x32xf32>
    %124 = tpu.matmul %121, %123, %cst_48 {dimension_numbers = #tpu.dot_dimension_numbers<[1], [0], [0], [1], [0, 0, 1, 1], [], []>} : vector<8x32xf32>, vector<32x32xf32>, vector<8x32xf32> -> vector<8x32xf32>
    %125 = arith.addf %5, %124 : vector<8x32xf32>
    %c0_49 = arith.constant 0 : index
    %c0_50 = arith.constant 0 : index
    %c0_51 = arith.constant 0 : index
    %126 = vector.load %arg7[%c0_49, %c0_50, %c0_51] : memref<2x1x32xf32, #tpu.memory_space<vmem>>, vector<1x1x32xf32>
    %127 = vector.shape_cast %126 : vector<1x1x32xf32> to vector<1x32xf32>
    %128 = vector.broadcast %127 : vector<1x32xf32> to vector<8x32xf32>
    %129 = arith.addf %125, %128 : vector<8x32xf32>
    %c0_52 = arith.constant 0 : index
    %c0_53 = arith.constant 0 : index
    %c0_54 = arith.constant 0 : index
    %130 = vector.load %arg14[%c0_52, %c0_53, %c0_54] : memref<2x1x32xf32, #tpu.memory_space<vmem>>, vector<1x1x32xf32>
    %131 = vector.shape_cast %130 : vector<1x1x32xf32> to vector<1x32xf32>
    %c0_55 = arith.constant 0 : index
    %c0_56 = arith.constant 0 : index
    %c0_57 = arith.constant 0 : index
    %132 = vector.load %arg15[%c0_55, %c0_56, %c0_57] : memref<2x1x32xf32, #tpu.memory_space<vmem>>, vector<1x1x32xf32>
    %133 = vector.shape_cast %132 : vector<1x1x32xf32> to vector<1x32xf32>
    %cst_58 = arith.constant dense<0.000000e+00> : vector<8xf32>
    %134 = vector.multi_reduction <add>, %129, %cst_58 [1] : vector<8x32xf32> to vector<8xf32>
    %135 = vector.shape_cast %134 : vector<8xf32> to vector<8x1xf32>
    %cst_59 = arith.constant 3.200000e+01 : f32
    %136 = vector.broadcast %cst_59 : f32 to vector<8x1xf32>
    %137 = arith.divf %135, %136 : vector<8x1xf32>
    %138 = vector.broadcast %137 : vector<8x1xf32> to vector<8x32xf32>
    %139 = arith.subf %129, %138 : vector<8x32xf32>
    %140 = arith.mulf %139, %139 : vector<8x32xf32>
    %cst_60 = arith.constant dense<0.000000e+00> : vector<8xf32>
    %141 = vector.multi_reduction <add>, %140, %cst_60 [1] : vector<8x32xf32> to vector<8xf32>
    %142 = vector.shape_cast %141 : vector<8xf32> to vector<8x1xf32>
    %cst_61 = arith.constant 0.0322580636 : f32
    %143 = vector.broadcast %cst_61 : f32 to vector<8x1xf32>
    %144 = arith.mulf %142, %143 : vector<8x1xf32>
    %145 = math.sqrt %144 : vector<8x1xf32>
    %cst_62 = arith.constant 9.99999997E-7 : f32
    %146 = vector.broadcast %cst_62 : f32 to vector<8x1xf32>
    %147 = arith.addf %145, %146 : vector<8x1xf32>
    %148 = tpu.reciprocal %147 {approx = true} : vector<8x1xf32> -> vector<8x1xf32>
    %149 = vector.broadcast %137 : vector<8x1xf32> to vector<8x32xf32>
    %150 = arith.subf %129, %149 : vector<8x32xf32>
    %151 = vector.broadcast %131 : vector<1x32xf32> to vector<8x32xf32>
    %152 = arith.mulf %151, %150 : vector<8x32xf32>
    %153 = vector.broadcast %148 : vector<8x1xf32> to vector<8x32xf32>
    %154 = arith.mulf %152, %153 : vector<8x32xf32>
    %155 = vector.broadcast %133 : vector<1x32xf32> to vector<8x32xf32>
    %156 = arith.addf %154, %155 : vector<8x32xf32>
    %c0_63 = arith.constant 0 : index
    %c0_64 = arith.constant 0 : index
    %c0_65 = arith.constant 0 : index
    %157 = vector.load %arg10[%c0_63, %c0_64, %c0_65] : memref<2x32x64xf32, #tpu.memory_space<vmem>>, vector<1x32x64xf32>
    %158 = vector.shape_cast %157 : vector<1x32x64xf32> to vector<32x64xf32>
    %cst_66 = arith.constant dense<0.000000e+00> : vector<8x64xf32>
    %159 = tpu.matmul %156, %158, %cst_66 {dimension_numbers = #tpu.dot_dimension_numbers<[1], [0], [0], [1], [0, 0, 1, 1], [], []>} : vector<8x32xf32>, vector<32x64xf32>, vector<8x64xf32> -> vector<8x64xf32>
    %c0_67 = arith.constant 0 : index
    %c0_68 = arith.constant 0 : index
    %c0_69 = arith.constant 0 : index
    %160 = vector.load %arg11[%c0_67, %c0_68, %c0_69] : memref<2x1x64xf32, #tpu.memory_space<vmem>>, vector<1x1x64xf32>
    %161 = vector.shape_cast %160 : vector<1x1x64xf32> to vector<1x64xf32>
    %162 = vector.broadcast %161 : vector<1x64xf32> to vector<8x64xf32>
    %163 = arith.addf %159, %162 : vector<8x64xf32>
    %cst_70 = arith.constant 0.000000e+00 : f32
    %164 = vector.broadcast %cst_70 : f32 to vector<8x64xf32>
    %165 = arith.maximumf %163, %164 : vector<8x64xf32>
    %c0_71 = arith.constant 0 : index
    %c0_72 = arith.constant 0 : index
    %c0_73 = arith.constant 0 : index
    %166 = vector.load %arg12[%c0_71, %c0_72, %c0_73] : memref<2x64x32xf32, #tpu.memory_space<vmem>>, vector<1x64x32xf32>
    %167 = vector.shape_cast %166 : vector<1x64x32xf32> to vector<64x32xf32>
    %cst_74 = arith.constant dense<0.000000e+00> : vector<8x32xf32>
    %168 = tpu.matmul %165, %167, %cst_74 {dimension_numbers = #tpu.dot_dimension_numbers<[1], [0], [0], [1], [0, 0, 1, 1], [], []>} : vector<8x64xf32>, vector<64x32xf32>, vector<8x32xf32> -> vector<8x32xf32>
    %169 = arith.addf %129, %168 : vector<8x32xf32>
    %c0_75 = arith.constant 0 : index
    %c0_76 = arith.constant 0 : index
    %c0_77 = arith.constant 0 : index
    %170 = vector.load %arg13[%c0_75, %c0_76, %c0_77] : memref<2x1x32xf32, #tpu.memory_space<vmem>>, vector<1x1x32xf32>
    %171 = vector.shape_cast %170 : vector<1x1x32xf32> to vector<1x32xf32>
    %172 = vector.broadcast %171 : vector<1x32xf32> to vector<8x32xf32>
    %173 = arith.addf %169, %172 : vector<8x32xf32>
    %c1 = arith.constant 1 : index
    %c0_78 = arith.constant 0 : index
    %c0_79 = arith.constant 0 : index
    %174 = vector.load %arg8[%c1, %c0_78, %c0_79] : memref<2x1x32xf32, #tpu.memory_space<vmem>>, vector<1x1x32xf32>
    %175 = vector.shape_cast %174 : vector<1x1x32xf32> to vector<1x32xf32>
    %c1_80 = arith.constant 1 : index
    %c0_81 = arith.constant 0 : index
    %c0_82 = arith.constant 0 : index
    %176 = vector.load %arg9[%c1_80, %c0_81, %c0_82] : memref<2x1x32xf32, #tpu.memory_space<vmem>>, vector<1x1x32xf32>
    %177 = vector.shape_cast %176 : vector<1x1x32xf32> to vector<1x32xf32>
    %cst_83 = arith.constant dense<0.000000e+00> : vector<8xf32>
    %178 = vector.multi_reduction <add>, %173, %cst_83 [1] : vector<8x32xf32> to vector<8xf32>
    %179 = vector.shape_cast %178 : vector<8xf32> to vector<8x1xf32>
    %cst_84 = arith.constant 3.200000e+01 : f32
    %180 = vector.broadcast %cst_84 : f32 to vector<8x1xf32>
    %181 = arith.divf %179, %180 : vector<8x1xf32>
    %182 = vector.broadcast %181 : vector<8x1xf32> to vector<8x32xf32>
    %183 = arith.subf %173, %182 : vector<8x32xf32>
    %184 = arith.mulf %183, %183 : vector<8x32xf32>
    %cst_85 = arith.constant dense<0.000000e+00> : vector<8xf32>
    %185 = vector.multi_reduction <add>, %184, %cst_85 [1] : vector<8x32xf32> to vector<8xf32>
    %186 = vector.shape_cast %185 : vector<8xf32> to vector<8x1xf32>
    %cst_86 = arith.constant 0.0322580636 : f32
    %187 = vector.broadcast %cst_86 : f32 to vector<8x1xf32>
    %188 = arith.mulf %186, %187 : vector<8x1xf32>
    %189 = math.sqrt %188 : vector<8x1xf32>
    %cst_87 = arith.constant 9.99999997E-7 : f32
    %190 = vector.broadcast %cst_87 : f32 to vector<8x1xf32>
    %191 = arith.addf %189, %190 : vector<8x1xf32>
    %192 = tpu.reciprocal %191 {approx = true} : vector<8x1xf32> -> vector<8x1xf32>
    %193 = vector.broadcast %181 : vector<8x1xf32> to vector<8x32xf32>
    %194 = arith.subf %173, %193 : vector<8x32xf32>
    %195 = vector.broadcast %175 : vector<1x32xf32> to vector<8x32xf32>
    %196 = arith.mulf %195, %194 : vector<8x32xf32>
    %197 = vector.broadcast %192 : vector<8x1xf32> to vector<8x32xf32>
    %198 = arith.mulf %196, %197 : vector<8x32xf32>
    %199 = vector.broadcast %177 : vector<1x32xf32> to vector<8x32xf32>
    %200 = arith.addf %198, %199 : vector<8x32xf32>
    %c1_88 = arith.constant 1 : index
    %c0_89 = arith.constant 0 : index
    %c0_90 = arith.constant 0 : index
    %201 = vector.load %arg4[%c1_88, %c0_89, %c0_90] : memref<2x32x96xf32, #tpu.memory_space<vmem>>, vector<1x32x96xf32>
    %202 = vector.shape_cast %201 : vector<1x32x96xf32> to vector<32x96xf32>
    %cst_91 = arith.constant dense<0.000000e+00> : vector<8x96xf32>
    %203 = tpu.matmul %200, %202, %cst_91 {dimension_numbers = #tpu.dot_dimension_numbers<[1], [0], [0], [1], [0, 0, 1, 1], [], []>} : vector<8x32xf32>, vector<32x96xf32>, vector<8x96xf32> -> vector<8x96xf32>
    %c1_92 = arith.constant 1 : index
    %c0_93 = arith.constant 0 : index
    %c0_94 = arith.constant 0 : index
    %204 = vector.load %arg5[%c1_92, %c0_93, %c0_94] : memref<2x1x96xf32, #tpu.memory_space<vmem>>, vector<1x1x96xf32>
    %205 = vector.shape_cast %204 : vector<1x1x96xf32> to vector<1x96xf32>
    %206 = vector.broadcast %205 : vector<1x96xf32> to vector<8x96xf32>
    %207 = arith.addf %203, %206 : vector<8x96xf32>
    %208 = vector.extract_strided_slice %207 {offsets = [0, 0], sizes = [8, 32], strides = [1, 1]} : vector<8x96xf32> to vector<8x32xf32>
    %209 = vector.extract_strided_slice %207 {offsets = [0, 32], sizes = [8, 32], strides = [1, 1]} : vector<8x96xf32> to vector<8x32xf32>
    %210 = vector.extract_strided_slice %207 {offsets = [0, 64], sizes = [8, 32], strides = [1, 1]} : vector<8x96xf32> to vector<8x32xf32>
    %211 = vector.extract_strided_slice %208 {offsets = [0, 0], sizes = [8, 8], strides = [1, 1]} : vector<8x32xf32> to vector<8x8xf32>
    %212 = vector.extract_strided_slice %209 {offsets = [0, 0], sizes = [8, 8], strides = [1, 1]} : vector<8x32xf32> to vector<8x8xf32>
    %213 = vector.extract_strided_slice %210 {offsets = [0, 0], sizes = [8, 8], strides = [1, 1]} : vector<8x32xf32> to vector<8x8xf32>
    %214 = tpu.transpose %212, [1, 0] : vector<8x8xf32> -> vector<8x8xf32>
    %cst_95 = arith.constant dense<0.000000e+00> : vector<8x8xf32>
    %215 = tpu.matmul %211, %214, %cst_95 {dimension_numbers = #tpu.dot_dimension_numbers<[1], [0], [0], [1], [0, 0, 1, 1], [], []>} : vector<8x8xf32>, vector<8x8xf32>, vector<8x8xf32> -> vector<8x8xf32>
    %cst_96 = arith.constant 0.353553385 : f32
    %216 = vector.broadcast %cst_96 : f32 to vector<8x8xf32>
    %217 = arith.mulf %215, %216 : vector<8x8xf32>
    %218 = arith.addf %217, %7 : vector<8x8xf32>
    %cst_97 = arith.constant dense<0xFF800000> : vector<8xf32>
    %219 = vector.multi_reduction <maximumf>, %218, %cst_97 [1] : vector<8x8xf32> to vector<8xf32>
    %220 = vector.shape_cast %219 : vector<8xf32> to vector<8x1xf32>
    %221 = vector.broadcast %220 : vector<8x1xf32> to vector<8x8xf32>
    %222 = arith.subf %218, %221 : vector<8x8xf32>
    %223 = math.exp %222 : vector<8x8xf32>
    %cst_98 = arith.constant dense<0.000000e+00> : vector<8xf32>
    %224 = vector.multi_reduction <add>, %223, %cst_98 [1] : vector<8x8xf32> to vector<8xf32>
    %225 = vector.shape_cast %224 : vector<8xf32> to vector<8x1xf32>
    %226 = tpu.reciprocal %225 {approx = true} : vector<8x1xf32> -> vector<8x1xf32>
    %227 = vector.broadcast %226 : vector<8x1xf32> to vector<8x8xf32>
    %228 = arith.mulf %223, %227 : vector<8x8xf32>
    %cst_99 = arith.constant dense<0.000000e+00> : vector<8x8xf32>
    %229 = tpu.matmul %228, %213, %cst_99 {dimension_numbers = #tpu.dot_dimension_numbers<[1], [0], [0], [1], [0, 0, 1, 1], [], []>} : vector<8x8xf32>, vector<8x8xf32>, vector<8x8xf32> -> vector<8x8xf32>
    %230 = vector.extract_strided_slice %208 {offsets = [0, 8], sizes = [8, 8], strides = [1, 1]} : vector<8x32xf32> to vector<8x8xf32>
    %231 = vector.extract_strided_slice %209 {offsets = [0, 8], sizes = [8, 8], strides = [1, 1]} : vector<8x32xf32> to vector<8x8xf32>
    %232 = vector.extract_strided_slice %210 {offsets = [0, 8], sizes = [8, 8], strides = [1, 1]} : vector<8x32xf32> to vector<8x8xf32>
    %233 = tpu.transpose %231, [1, 0] : vector<8x8xf32> -> vector<8x8xf32>
    %cst_100 = arith.constant dense<0.000000e+00> : vector<8x8xf32>
    %234 = tpu.matmul %230, %233, %cst_100 {dimension_numbers = #tpu.dot_dimension_numbers<[1], [0], [0], [1], [0, 0, 1, 1], [], []>} : vector<8x8xf32>, vector<8x8xf32>, vector<8x8xf32> -> vector<8x8xf32>
    %cst_101 = arith.constant 0.353553385 : f32
    %235 = vector.broadcast %cst_101 : f32 to vector<8x8xf32>
    %236 = arith.mulf %234, %235 : vector<8x8xf32>
    %237 = arith.addf %236, %7 : vector<8x8xf32>
    %cst_102 = arith.constant dense<0xFF800000> : vector<8xf32>
    %238 = vector.multi_reduction <maximumf>, %237, %cst_102 [1] : vector<8x8xf32> to vector<8xf32>
    %239 = vector.shape_cast %238 : vector<8xf32> to vector<8x1xf32>
    %240 = vector.broadcast %239 : vector<8x1xf32> to vector<8x8xf32>
    %241 = arith.subf %237, %240 : vector<8x8xf32>
    %242 = math.exp %241 : vector<8x8xf32>
    %cst_103 = arith.constant dense<0.000000e+00> : vector<8xf32>
    %243 = vector.multi_reduction <add>, %242, %cst_103 [1] : vector<8x8xf32> to vector<8xf32>
    %244 = vector.shape_cast %243 : vector<8xf32> to vector<8x1xf32>
    %245 = tpu.reciprocal %244 {approx = true} : vector<8x1xf32> -> vector<8x1xf32>
    %246 = vector.broadcast %245 : vector<8x1xf32> to vector<8x8xf32>
    %247 = arith.mulf %242, %246 : vector<8x8xf32>
    %cst_104 = arith.constant dense<0.000000e+00> : vector<8x8xf32>
    %248 = tpu.matmul %247, %232, %cst_104 {dimension_numbers = #tpu.dot_dimension_numbers<[1], [0], [0], [1], [0, 0, 1, 1], [], []>} : vector<8x8xf32>, vector<8x8xf32>, vector<8x8xf32> -> vector<8x8xf32>
    %249 = vector.extract_strided_slice %208 {offsets = [0, 16], sizes = [8, 8], strides = [1, 1]} : vector<8x32xf32> to vector<8x8xf32>
    %250 = vector.extract_strided_slice %209 {offsets = [0, 16], sizes = [8, 8], strides = [1, 1]} : vector<8x32xf32> to vector<8x8xf32>
    %251 = vector.extract_strided_slice %210 {offsets = [0, 16], sizes = [8, 8], strides = [1, 1]} : vector<8x32xf32> to vector<8x8xf32>
    %252 = tpu.transpose %250, [1, 0] : vector<8x8xf32> -> vector<8x8xf32>
    %cst_105 = arith.constant dense<0.000000e+00> : vector<8x8xf32>
    %253 = tpu.matmul %249, %252, %cst_105 {dimension_numbers = #tpu.dot_dimension_numbers<[1], [0], [0], [1], [0, 0, 1, 1], [], []>} : vector<8x8xf32>, vector<8x8xf32>, vector<8x8xf32> -> vector<8x8xf32>
    %cst_106 = arith.constant 0.353553385 : f32
    %254 = vector.broadcast %cst_106 : f32 to vector<8x8xf32>
    %255 = arith.mulf %253, %254 : vector<8x8xf32>
    %256 = arith.addf %255, %7 : vector<8x8xf32>
    %cst_107 = arith.constant dense<0xFF800000> : vector<8xf32>
    %257 = vector.multi_reduction <maximumf>, %256, %cst_107 [1] : vector<8x8xf32> to vector<8xf32>
    %258 = vector.shape_cast %257 : vector<8xf32> to vector<8x1xf32>
    %259 = vector.broadcast %258 : vector<8x1xf32> to vector<8x8xf32>
    %260 = arith.subf %256, %259 : vector<8x8xf32>
    %261 = math.exp %260 : vector<8x8xf32>
    %cst_108 = arith.constant dense<0.000000e+00> : vector<8xf32>
    %262 = vector.multi_reduction <add>, %261, %cst_108 [1] : vector<8x8xf32> to vector<8xf32>
    %263 = vector.shape_cast %262 : vector<8xf32> to vector<8x1xf32>
    %264 = tpu.reciprocal %263 {approx = true} : vector<8x1xf32> -> vector<8x1xf32>
    %265 = vector.broadcast %264 : vector<8x1xf32> to vector<8x8xf32>
    %266 = arith.mulf %261, %265 : vector<8x8xf32>
    %cst_109 = arith.constant dense<0.000000e+00> : vector<8x8xf32>
    %267 = tpu.matmul %266, %251, %cst_109 {dimension_numbers = #tpu.dot_dimension_numbers<[1], [0], [0], [1], [0, 0, 1, 1], [], []>} : vector<8x8xf32>, vector<8x8xf32>, vector<8x8xf32> -> vector<8x8xf32>
    %268 = vector.extract_strided_slice %208 {offsets = [0, 24], sizes = [8, 8], strides = [1, 1]} : vector<8x32xf32> to vector<8x8xf32>
    %269 = vector.extract_strided_slice %209 {offsets = [0, 24], sizes = [8, 8], strides = [1, 1]} : vector<8x32xf32> to vector<8x8xf32>
    %270 = vector.extract_strided_slice %210 {offsets = [0, 24], sizes = [8, 8], strides = [1, 1]} : vector<8x32xf32> to vector<8x8xf32>
    %271 = tpu.transpose %269, [1, 0] : vector<8x8xf32> -> vector<8x8xf32>
    %cst_110 = arith.constant dense<0.000000e+00> : vector<8x8xf32>
    %272 = tpu.matmul %268, %271, %cst_110 {dimension_numbers = #tpu.dot_dimension_numbers<[1], [0], [0], [1], [0, 0, 1, 1], [], []>} : vector<8x8xf32>, vector<8x8xf32>, vector<8x8xf32> -> vector<8x8xf32>
    %cst_111 = arith.constant 0.353553385 : f32
    %273 = vector.broadcast %cst_111 : f32 to vector<8x8xf32>
    %274 = arith.mulf %272, %273 : vector<8x8xf32>
    %275 = arith.addf %274, %7 : vector<8x8xf32>
    %cst_112 = arith.constant dense<0xFF800000> : vector<8xf32>
    %276 = vector.multi_reduction <maximumf>, %275, %cst_112 [1] : vector<8x8xf32> to vector<8xf32>
    %277 = vector.shape_cast %276 : vector<8xf32> to vector<8x1xf32>
    %278 = vector.broadcast %277 : vector<8x1xf32> to vector<8x8xf32>
    %279 = arith.subf %275, %278 : vector<8x8xf32>
    %280 = math.exp %279 : vector<8x8xf32>
    %cst_113 = arith.constant dense<0.000000e+00> : vector<8xf32>
    %281 = vector.multi_reduction <add>, %280, %cst_113 [1] : vector<8x8xf32> to vector<8xf32>
    %282 = vector.shape_cast %281 : vector<8xf32> to vector<8x1xf32>
    %283 = tpu.reciprocal %282 {approx = true} : vector<8x1xf32> -> vector<8x1xf32>
    %284 = vector.broadcast %283 : vector<8x1xf32> to vector<8x8xf32>
    %285 = arith.mulf %280, %284 : vector<8x8xf32>
    %cst_114 = arith.constant dense<0.000000e+00> : vector<8x8xf32>
    %286 = tpu.matmul %285, %270, %cst_114 {dimension_numbers = #tpu.dot_dimension_numbers<[1], [0], [0], [1], [0, 0, 1, 1], [], []>} : vector<8x8xf32>, vector<8x8xf32>, vector<8x8xf32> -> vector<8x8xf32>
    %287 = tpu.concatenate %229, %248, %267, %286 in 1 : vector<8x8xf32>, vector<8x8xf32>, vector<8x8xf32>, vector<8x8xf32> -> vector<8x32xf32>
    %c1_115 = arith.constant 1 : index
    %c0_116 = arith.constant 0 : index
    %c0_117 = arith.constant 0 : index
    %288 = vector.load %arg6[%c1_115, %c0_116, %c0_117] : memref<2x32x32xf32, #tpu.memory_space<vmem>>, vector<1x32x32xf32>
    %289 = vector.shape_cast %288 : vector<1x32x32xf32> to vector<32x32xf32>
    %cst_118 = arith.constant dense<0.000000e+00> : vector<8x32xf32>
    %290 = tpu.matmul %287, %289, %cst_118 {dimension_numbers = #tpu.dot_dimension_numbers<[1], [0], [0], [1], [0, 0, 1, 1], [], []>} : vector<8x32xf32>, vector<32x32xf32>, vector<8x32xf32> -> vector<8x32xf32>
    %291 = arith.addf %173, %290 : vector<8x32xf32>
    %c1_119 = arith.constant 1 : index
    %c0_120 = arith.constant 0 : index
    %c0_121 = arith.constant 0 : index
    %292 = vector.load %arg7[%c1_119, %c0_120, %c0_121] : memref<2x1x32xf32, #tpu.memory_space<vmem>>, vector<1x1x32xf32>
    %293 = vector.shape_cast %292 : vector<1x1x32xf32> to vector<1x32xf32>
    %294 = vector.broadcast %293 : vector<1x32xf32> to vector<8x32xf32>
    %295 = arith.addf %291, %294 : vector<8x32xf32>
    %c1_122 = arith.constant 1 : index
    %c0_123 = arith.constant 0 : index
    %c0_124 = arith.constant 0 : index
    %296 = vector.load %arg14[%c1_122, %c0_123, %c0_124] : memref<2x1x32xf32, #tpu.memory_space<vmem>>, vector<1x1x32xf32>
    %297 = vector.shape_cast %296 : vector<1x1x32xf32> to vector<1x32xf32>
    %c1_125 = arith.constant 1 : index
    %c0_126 = arith.constant 0 : index
    %c0_127 = arith.constant 0 : index
    %298 = vector.load %arg15[%c1_125, %c0_126, %c0_127] : memref<2x1x32xf32, #tpu.memory_space<vmem>>, vector<1x1x32xf32>
    %299 = vector.shape_cast %298 : vector<1x1x32xf32> to vector<1x32xf32>
    %cst_128 = arith.constant dense<0.000000e+00> : vector<8xf32>
    %300 = vector.multi_reduction <add>, %295, %cst_128 [1] : vector<8x32xf32> to vector<8xf32>
    %301 = vector.shape_cast %300 : vector<8xf32> to vector<8x1xf32>
    %cst_129 = arith.constant 3.200000e+01 : f32
    %302 = vector.broadcast %cst_129 : f32 to vector<8x1xf32>
    %303 = arith.divf %301, %302 : vector<8x1xf32>
    %304 = vector.broadcast %303 : vector<8x1xf32> to vector<8x32xf32>
    %305 = arith.subf %295, %304 : vector<8x32xf32>
    %306 = arith.mulf %305, %305 : vector<8x32xf32>
    %cst_130 = arith.constant dense<0.000000e+00> : vector<8xf32>
    %307 = vector.multi_reduction <add>, %306, %cst_130 [1] : vector<8x32xf32> to vector<8xf32>
    %308 = vector.shape_cast %307 : vector<8xf32> to vector<8x1xf32>
    %cst_131 = arith.constant 0.0322580636 : f32
    %309 = vector.broadcast %cst_131 : f32 to vector<8x1xf32>
    %310 = arith.mulf %308, %309 : vector<8x1xf32>
    %311 = math.sqrt %310 : vector<8x1xf32>
    %cst_132 = arith.constant 9.99999997E-7 : f32
    %312 = vector.broadcast %cst_132 : f32 to vector<8x1xf32>
    %313 = arith.addf %311, %312 : vector<8x1xf32>
    %314 = tpu.reciprocal %313 {approx = true} : vector<8x1xf32> -> vector<8x1xf32>
    %315 = vector.broadcast %303 : vector<8x1xf32> to vector<8x32xf32>
    %316 = arith.subf %295, %315 : vector<8x32xf32>
    %317 = vector.broadcast %297 : vector<1x32xf32> to vector<8x32xf32>
    %318 = arith.mulf %317, %316 : vector<8x32xf32>
    %319 = vector.broadcast %314 : vector<8x1xf32> to vector<8x32xf32>
    %320 = arith.mulf %318, %319 : vector<8x32xf32>
    %321 = vector.broadcast %299 : vector<1x32xf32> to vector<8x32xf32>
    %322 = arith.addf %320, %321 : vector<8x32xf32>
    %c1_133 = arith.constant 1 : index
    %c0_134 = arith.constant 0 : index
    %c0_135 = arith.constant 0 : index
    %323 = vector.load %arg10[%c1_133, %c0_134, %c0_135] : memref<2x32x64xf32, #tpu.memory_space<vmem>>, vector<1x32x64xf32>
    %324 = vector.shape_cast %323 : vector<1x32x64xf32> to vector<32x64xf32>
    %cst_136 = arith.constant dense<0.000000e+00> : vector<8x64xf32>
    %325 = tpu.matmul %322, %324, %cst_136 {dimension_numbers = #tpu.dot_dimension_numbers<[1], [0], [0], [1], [0, 0, 1, 1], [], []>} : vector<8x32xf32>, vector<32x64xf32>, vector<8x64xf32> -> vector<8x64xf32>
    %c1_137 = arith.constant 1 : index
    %c0_138 = arith.constant 0 : index
    %c0_139 = arith.constant 0 : index
    %326 = vector.load %arg11[%c1_137, %c0_138, %c0_139] : memref<2x1x64xf32, #tpu.memory_space<vmem>>, vector<1x1x64xf32>
    %327 = vector.shape_cast %326 : vector<1x1x64xf32> to vector<1x64xf32>
    %328 = vector.broadcast %327 : vector<1x64xf32> to vector<8x64xf32>
    %329 = arith.addf %325, %328 : vector<8x64xf32>
    %cst_140 = arith.constant 0.000000e+00 : f32
    %330 = vector.broadcast %cst_140 : f32 to vector<8x64xf32>
    %331 = arith.maximumf %329, %330 : vector<8x64xf32>
    %c1_141 = arith.constant 1 : index
    %c0_142 = arith.constant 0 : index
    %c0_143 = arith.constant 0 : index
    %332 = vector.load %arg12[%c1_141, %c0_142, %c0_143] : memref<2x64x32xf32, #tpu.memory_space<vmem>>, vector<1x64x32xf32>
    %333 = vector.shape_cast %332 : vector<1x64x32xf32> to vector<64x32xf32>
    %cst_144 = arith.constant dense<0.000000e+00> : vector<8x32xf32>
    %334 = tpu.matmul %331, %333, %cst_144 {dimension_numbers = #tpu.dot_dimension_numbers<[1], [0], [0], [1], [0, 0, 1, 1], [], []>} : vector<8x64xf32>, vector<64x32xf32>, vector<8x32xf32> -> vector<8x32xf32>
    %335 = arith.addf %295, %334 : vector<8x32xf32>
    %c1_145 = arith.constant 1 : index
    %c0_146 = arith.constant 0 : index
    %c0_147 = arith.constant 0 : index
    %336 = vector.load %arg13[%c1_145, %c0_146, %c0_147] : memref<2x1x32xf32, #tpu.memory_space<vmem>>, vector<1x1x32xf32>
    %337 = vector.shape_cast %336 : vector<1x1x32xf32> to vector<1x32xf32>
    %338 = vector.broadcast %337 : vector<1x32xf32> to vector<8x32xf32>
    %339 = arith.addf %335, %338 : vector<8x32xf32>
    %c0_148 = arith.constant 0 : index
    %c0_149 = arith.constant 0 : index
    %340 = vector.load %arg16[%c0_148, %c0_149] : memref<1x32xf32, #tpu.memory_space<vmem>>, vector<1x32xf32>
    %c0_150 = arith.constant 0 : index
    %c0_151 = arith.constant 0 : index
    %341 = vector.load %arg17[%c0_150, %c0_151] : memref<1x32xf32, #tpu.memory_space<vmem>>, vector<1x32xf32>
    %cst_152 = arith.constant dense<0.000000e+00> : vector<8xf32>
    %342 = vector.multi_reduction <add>, %339, %cst_152 [1] : vector<8x32xf32> to vector<8xf32>
    %343 = vector.shape_cast %342 : vector<8xf32> to vector<8x1xf32>
    %cst_153 = arith.constant 3.200000e+01 : f32
    %344 = vector.broadcast %cst_153 : f32 to vector<8x1xf32>
    %345 = arith.divf %343, %344 : vector<8x1xf32>
    %346 = vector.broadcast %345 : vector<8x1xf32> to vector<8x32xf32>
    %347 = arith.subf %339, %346 : vector<8x32xf32>
    %348 = arith.mulf %347, %347 : vector<8x32xf32>
    %cst_154 = arith.constant dense<0.000000e+00> : vector<8xf32>
    %349 = vector.multi_reduction <add>, %348, %cst_154 [1] : vector<8x32xf32> to vector<8xf32>
    %350 = vector.shape_cast %349 : vector<8xf32> to vector<8x1xf32>
    %cst_155 = arith.constant 0.0322580636 : f32
    %351 = vector.broadcast %cst_155 : f32 to vector<8x1xf32>
    %352 = arith.mulf %350, %351 : vector<8x1xf32>
    %353 = math.sqrt %352 : vector<8x1xf32>
    %cst_156 = arith.constant 9.99999997E-7 : f32
    %354 = vector.broadcast %cst_156 : f32 to vector<8x1xf32>
    %355 = arith.addf %353, %354 : vector<8x1xf32>
    %356 = tpu.reciprocal %355 {approx = true} : vector<8x1xf32> -> vector<8x1xf32>
    %357 = vector.broadcast %345 : vector<8x1xf32> to vector<8x32xf32>
    %358 = arith.subf %339, %357 : vector<8x32xf32>
    %359 = vector.broadcast %340 : vector<1x32xf32> to vector<8x32xf32>
    %360 = arith.mulf %359, %358 : vector<8x32xf32>
    %361 = vector.broadcast %356 : vector<8x1xf32> to vector<8x32xf32>
    %362 = arith.mulf %360, %361 : vector<8x32xf32>
    %363 = vector.broadcast %341 : vector<1x32xf32> to vector<8x32xf32>
    %364 = arith.addf %362, %363 : vector<8x32xf32>
    %c0_157 = arith.constant 0 : index
    %c0_158 = arith.constant 0 : index
    %c0_159 = arith.constant 0 : index
    %365 = vector.load %arg18[%c0_157, %c0_158, %c0_159] : memref<1x8x32xf32, #tpu.memory_space<vmem>>, vector<1x8x32xf32>
    %366 = vector.shape_cast %365 : vector<1x8x32xf32> to vector<8x32xf32>
    %367 = vector.shape_cast %364 : vector<8x32xf32> to vector<1x8x32xf32>
    tpu.vector_store %arg18[%c0_157, %c0_158, %c0_159], %367 {strides = array<i32>} : memref<1x8x32xf32, #tpu.memory_space<vmem>>, vector<1x8x32xf32>,
    return
  }
  func.func @transform_0(%arg0: i32) -> (i32, i32, i32) {
    %c0_i32 = arith.constant 0 : i32
    %c0_i32_0 = arith.constant 0 : i32
    %c0_i32_1 = arith.constant 0 : i32
    return %arg0, %c0_i32, %c0_i32_0 : i32, i32, i32
  }
  func.func @transform_1(%arg0: i32) -> (i32, i32) {
    %c0_i32 = arith.constant 0 : i32
    %c0_i32_0 = arith.constant 0 : i32
    %c0_i32_1 = arith.constant 0 : i32
    return %c0_i32, %c0_i32_0 : i32, i32
  }
  func.func @transform_2(%arg0: i32) -> (i32, i32, i32) {
    %c0_i32 = arith.constant 0 : i32
    %c0_i32_0 = arith.constant 0 : i32
    %c0_i32_1 = arith.constant 0 : i32
    return %arg0, %c0_i32, %c0_i32_0 : i32, i32, i32
  }
  func.func @transform_3(%arg0: i32) -> (i32, i32, i32) {
    %c0_i32 = arith.constant 0 : i32
    %c0_i32_0 = arith.constant 0 : i32
    %c0_i32_1 = arith.constant 0 : i32
    %c0_i32_2 = arith.constant 0 : i32
    return %c0_i32, %c0_i32_0, %c0_i32_1 : i32, i32, i32
  }
  func.func @transform_4(%arg0: i32) -> (i32, i32, i32) {
    %c0_i32 = arith.constant 0 : i32
    %c0_i32_0 = arith.constant 0 : i32
    %c0_i32_1 = arith.constant 0 : i32
    %c0_i32_2 = arith.constant 0 : i32
    return %c0_i32, %c0_i32_0, %c0_i32_1 : i32, i32, i32
  }
  func.func @transform_5(%arg0: i32) -> (i32, i32, i32) {
    %c0_i32 = arith.constant 0 : i32
    %c0_i32_0 = arith.constant 0 : i32
    %c0_i32_1 = arith.constant 0 : i32
    %c0_i32_2 = arith.constant 0 : i32
    return %c0_i32, %c0_i32_0, %c0_i32_1 : i32, i32, i32
  }
  func.func @transform_6(%arg0: i32) -> (i32, i32, i32) {
    %c0_i32 = arith.constant 0 : i32
    %c0_i32_0 = arith.constant 0 : i32
    %c0_i32_1 = arith.constant 0 : i32
    %c0_i32_2 = arith.constant 0 : i32
    return %c0_i32, %c0_i32_0, %c0_i32_1 : i32, i32, i32
  }
  func.func @transform_7(%arg0: i32) -> (i32, i32, i32) {
    %c0_i32 = arith.constant 0 : i32
    %c0_i32_0 = arith.constant 0 : i32
    %c0_i32_1 = arith.constant 0 : i32
    %c0_i32_2 = arith.constant 0 : i32
    return %c0_i32, %c0_i32_0, %c0_i32_1 : i32, i32, i32
  }
  func.func @transform_8(%arg0: i32) -> (i32, i32, i32) {
    %c0_i32 = arith.constant 0 : i32
    %c0_i32_0 = arith.constant 0 : i32
    %c0_i32_1 = arith.constant 0 : i32
    %c0_i32_2 = arith.constant 0 : i32
    return %c0_i32, %c0_i32_0, %c0_i32_1 : i32, i32, i32
  }
  func.func @transform_9(%arg0: i32) -> (i32, i32, i32) {
    %c0_i32 = arith.constant 0 : i32
    %c0_i32_0 = arith.constant 0 : i32
    %c0_i32_1 = arith.constant 0 : i32
    %c0_i32_2 = arith.constant 0 : i32
    return %c0_i32, %c0_i32_0, %c0_i32_1 : i32, i32, i32
  }
  func.func @transform_10(%arg0: i32) -> (i32, i32, i32) {
    %c0_i32 = arith.constant 0 : i32
    %c0_i32_0 = arith.constant 0 : i32
    %c0_i32_1 = arith.constant 0 : i32
    %c0_i32_2 = arith.constant 0 : i32
    return %c0_i32, %c0_i32_0, %c0_i32_1 : i32, i32, i32
  }
  func.func @transform_11(%arg0: i32) -> (i32, i32, i32) {
    %c0_i32 = arith.constant 0 : i32
    %c0_i32_0 = arith.constant 0 : i32
    %c0_i32_1 = arith.constant 0 : i32
    %c0_i32_2 = arith.constant 0 : i32
    return %c0_i32, %c0_i32_0, %c0_i32_1 : i32, i32, i32
  }
  func.func @transform_12(%arg0: i32) -> (i32, i32, i32) {
    %c0_i32 = arith.constant 0 : i32
    %c0_i32_0 = arith.constant 0 : i32
    %c0_i32_1 = arith.constant 0 : i32
    %c0_i32_2 = arith.constant 0 : i32
    return %c0_i32, %c0_i32_0, %c0_i32_1 : i32, i32, i32
  }
  func.func @transform_13(%arg0: i32) -> (i32, i32, i32) {
    %c0_i32 = arith.constant 0 : i32
    %c0_i32_0 = arith.constant 0 : i32
    %c0_i32_1 = arith.constant 0 : i32
    %c0_i32_2 = arith.constant 0 : i32
    return %c0_i32, %c0_i32_0, %c0_i32_1 : i32, i32, i32
  }
  func.func @transform_14(%arg0: i32) -> (i32, i32, i32) {
    %c0_i32 = arith.constant 0 : i32
    %c0_i32_0 = arith.constant 0 : i32
    %c0_i32_1 = arith.constant 0 : i32
    %c0_i32_2 = arith.constant 0 : i32
    return %c0_i32, %c0_i32_0, %c0_i32_1 : i32, i32, i32
  }
  func.func @transform_15(%arg0: i32) -> (i32, i32) {
    %c0_i32 = arith.constant 0 : i32
    %c0_i32_0 = arith.constant 0 : i32
    %c0_i32_1 = arith.constant 0 : i32
    return %c0_i32, %c0_i32_0 : i32, i32
  }
  func.func @transform_16(%arg0: i32) -> (i32, i32) {
    %c0_i32 = arith.constant 0 : i32
    %c0_i32_0 = arith.constant 0 : i32
    %c0_i32_1 = arith.constant 0 : i32
    return %c0_i32, %c0_i32_0 : i32, i32
  }
  func.func @transform_17(%arg0: i32) -> (i32, i32, i32) {
    %c0_i32 = arith.constant 0 : i32
    %c0_i32_0 = arith.constant 0 : i32
    %c0_i32_1 = arith.constant 0 : i32
    return %arg0, %c0_i32, %c0_i32_0 : i32, i32, i32
  }
}

module attributes {stable_mosaic.version = 11 : i64} {
  func.func @_decoder_stack_kernel(%arg0: i32, %arg1: memref<1x8x32xf32, #tpu.memory_space<vmem>>, %arg2: memref<8x32xf32, #tpu.memory_space<vmem>>, %arg3: memref<1x8x32xf32, #tpu.memory_space<vmem>>, %arg4: memref<1x8x8xf32, #tpu.memory_space<vmem>>, %arg5: memref<1x8x8xf32, #tpu.memory_space<vmem>>, %arg6: memref<2x32x96xf32, #tpu.memory_space<vmem>>, %arg7: memref<2x1x96xf32, #tpu.memory_space<vmem>>, %arg8: memref<2x32x32xf32, #tpu.memory_space<vmem>>, %arg9: memref<2x1x32xf32, #tpu.memory_space<vmem>>, %arg10: memref<2x1x32xf32, #tpu.memory_space<vmem>>, %arg11: memref<2x1x32xf32, #tpu.memory_space<vmem>>, %arg12: memref<2x32x32xf32, #tpu.memory_space<vmem>>, %arg13: memref<2x1x32xf32, #tpu.memory_space<vmem>>, %arg14: memref<2x32x64xf32, #tpu.memory_space<vmem>>, %arg15: memref<2x1x64xf32, #tpu.memory_space<vmem>>, %arg16: memref<2x32x32xf32, #tpu.memory_space<vmem>>, %arg17: memref<2x1x32xf32, #tpu.memory_space<vmem>>, %arg18: memref<2x1x32xf32, #tpu.memory_space<vmem>>, %arg19: memref<2x1x32xf32, #tpu.memory_space<vmem>>, %arg20: memref<2x32x64xf32, #tpu.memory_space<vmem>>, %arg21: memref<2x1x64xf32, #tpu.memory_space<vmem>>, %arg22: memref<2x64x32xf32, #tpu.memory_space<vmem>>, %arg23: memref<2x1x32xf32, #tpu.memory_space<vmem>>, %arg24: memref<2x1x32xf32, #tpu.memory_space<vmem>>, %arg25: memref<2x1x32xf32, #tpu.memory_space<vmem>>, %arg26: memref<1x32xf32, #tpu.memory_space<vmem>>, %arg27: memref<1x32xf32, #tpu.memory_space<vmem>>, %arg28: memref<1x8x32xf32, #tpu.memory_space<vmem>>) attributes {dimension_semantics = [#tpu.dimension_semantics<parallel>], iteration_bounds = array<i64: 2>, scalar_prefetch = 0 : i64, scratch_operands = 0 : i64, tpu.core_type = #tpu.core_type<tc>, window_params = [{transform_indices = @transform_0, window_bounds = array<i64: 1, 8, 32>}, {pipeline_mode = #tpu.pipeline_mode<synchronous>, transform_indices = @transform_1, window_bounds = array<i64: 8, 32>}, {transform_indices = @transform_2, window_bounds = array<i64: 1, 8, 32>}, {transform_indices = @transform_3, window_bounds = array<i64: 1, 8, 8>}, {transform_indices = @transform_4, window_bounds = array<i64: 1, 8, 8>}, {pipeline_mode = #tpu.pipeline_mode<synchronous>, transform_indices = @transform_5, window_bounds = array<i64: 2, 32, 96>}, {pipeline_mode = #tpu.pipeline_mode<synchronous>, transform_indices = @transform_6, window_bounds = array<i64: 2, 1, 96>}, {pipeline_mode = #tpu.pipeline_mode<synchronous>, transform_indices = @transform_7, window_bounds = array<i64: 2, 32, 32>}, {pipeline_mode = #tpu.pipeline_mode<synchronous>, transform_indices = @transform_8, window_bounds = array<i64: 2, 1, 32>}, {pipeline_mode = #tpu.pipeline_mode<synchronous>, transform_indices = @transform_9, window_bounds = array<i64: 2, 1, 32>}, {pipeline_mode = #tpu.pipeline_mode<synchronous>, transform_indices = @transform_10, window_bounds = array<i64: 2, 1, 32>}, {pipeline_mode = #tpu.pipeline_mode<synchronous>, transform_indices = @transform_11, window_bounds = array<i64: 2, 32, 32>}, {pipeline_mode = #tpu.pipeline_mode<synchronous>, transform_indices = @transform_12, window_bounds = array<i64: 2, 1, 32>}, {pipeline_mode = #tpu.pipeline_mode<synchronous>, transform_indices = @transform_13, window_bounds = array<i64: 2, 32, 64>}, {pipeline_mode = #tpu.pipeline_mode<synchronous>, transform_indices = @transform_14, window_bounds = array<i64: 2, 1, 64>}, {pipeline_mode = #tpu.pipeline_mode<synchronous>, transform_indices = @transform_15, window_bounds = array<i64: 2, 32, 32>}, {pipeline_mode = #tpu.pipeline_mode<synchronous>, transform_indices = @transform_16, window_bounds = array<i64: 2, 1, 32>}, {pipeline_mode = #tpu.pipeline_mode<synchronous>, transform_indices = @transform_17, window_bounds = array<i64: 2, 1, 32>}, {pipeline_mode = #tpu.pipeline_mode<synchronous>, transform_indices = @transform_18, window_bounds = array<i64: 2, 1, 32>}, {pipeline_mode = #tpu.pipeline_mode<synchronous>, transform_indices = @transform_19, window_bounds = array<i64: 2, 32, 64>}, {pipeline_mode = #tpu.pipeline_mode<synchronous>, transform_indices = @transform_20, window_bounds = array<i64: 2, 1, 64>}, {pipeline_mode = #tpu.pipeline_mode<synchronous>, transform_indices = @transform_21, window_bounds = array<i64: 2, 64, 32>}, {pipeline_mode = #tpu.pipeline_mode<synchronous>, transform_indices = @transform_22, window_bounds = array<i64: 2, 1, 32>}, {pipeline_mode = #tpu.pipeline_mode<synchronous>, transform_indices = @transform_23, window_bounds = array<i64: 2, 1, 32>}, {pipeline_mode = #tpu.pipeline_mode<synchronous>, transform_indices = @transform_24, window_bounds = array<i64: 2, 1, 32>}, {pipeline_mode = #tpu.pipeline_mode<synchronous>, transform_indices = @transform_25, window_bounds = array<i64: 1, 32>}, {pipeline_mode = #tpu.pipeline_mode<synchronous>, transform_indices = @transform_26, window_bounds = array<i64: 1, 32>}, {transform_indices = @transform_27, window_bounds = array<i64: 1, 8, 32>}]} {
    %c0 = arith.constant 0 : index
    %c0_0 = arith.constant 0 : index
    %c0_1 = arith.constant 0 : index
    %0 = vector.load %arg1[%c0, %c0_0, %c0_1] : memref<1x8x32xf32, #tpu.memory_space<vmem>>, vector<1x8x32xf32>
    %1 = vector.shape_cast %0 : vector<1x8x32xf32> to vector<8x32xf32>
    %cst = arith.constant 5.65685415 : f32
    %2 = vector.broadcast %cst : f32 to vector<8x32xf32>
    %3 = arith.mulf %1, %2 : vector<8x32xf32>
    %c0_2 = arith.constant 0 : index
    %c0_3 = arith.constant 0 : index
    %4 = vector.load %arg2[%c0_2, %c0_3] : memref<8x32xf32, #tpu.memory_space<vmem>>, vector<8x32xf32>
    %5 = arith.addf %3, %4 : vector<8x32xf32>
    %c0_4 = arith.constant 0 : index
    %c0_5 = arith.constant 0 : index
    %c0_6 = arith.constant 0 : index
    %6 = vector.load %arg3[%c0_4, %c0_5, %c0_6] : memref<1x8x32xf32, #tpu.memory_space<vmem>>, vector<1x8x32xf32>
    %7 = vector.shape_cast %6 : vector<1x8x32xf32> to vector<8x32xf32>
    %c0_7 = arith.constant 0 : index
    %c0_8 = arith.constant 0 : index
    %c0_9 = arith.constant 0 : index
    %8 = vector.load %arg4[%c0_7, %c0_8, %c0_9] : memref<1x8x8xf32, #tpu.memory_space<vmem>>, vector<1x8x8xf32>
    %9 = vector.shape_cast %8 : vector<1x8x8xf32> to vector<8x8xf32>
    %c0_10 = arith.constant 0 : index
    %c0_11 = arith.constant 0 : index
    %c0_12 = arith.constant 0 : index
    %10 = vector.load %arg5[%c0_10, %c0_11, %c0_12] : memref<1x8x8xf32, #tpu.memory_space<vmem>>, vector<1x8x8xf32>
    %11 = vector.shape_cast %10 : vector<1x8x8xf32> to vector<8x8xf32>
    %c0_13 = arith.constant 0 : index
    %c0_14 = arith.constant 0 : index
    %c0_15 = arith.constant 0 : index
    %12 = vector.load %arg10[%c0_13, %c0_14, %c0_15] : memref<2x1x32xf32, #tpu.memory_space<vmem>>, vector<1x1x32xf32>
    %13 = vector.shape_cast %12 : vector<1x1x32xf32> to vector<1x32xf32>
    %c0_16 = arith.constant 0 : index
    %c0_17 = arith.constant 0 : index
    %c0_18 = arith.constant 0 : index
    %14 = vector.load %arg11[%c0_16, %c0_17, %c0_18] : memref<2x1x32xf32, #tpu.memory_space<vmem>>, vector<1x1x32xf32>
    %15 = vector.shape_cast %14 : vector<1x1x32xf32> to vector<1x32xf32>
    %cst_19 = arith.constant dense<0.000000e+00> : vector<8xf32>
    %16 = vector.multi_reduction <add>, %5, %cst_19 [1] : vector<8x32xf32> to vector<8xf32>
    %17 = vector.shape_cast %16 : vector<8xf32> to vector<8x1xf32>
    %cst_20 = arith.constant 3.200000e+01 : f32
    %18 = vector.broadcast %cst_20 : f32 to vector<8x1xf32>
    %19 = arith.divf %17, %18 : vector<8x1xf32>
    %20 = vector.broadcast %19 : vector<8x1xf32> to vector<8x32xf32>
    %21 = arith.subf %5, %20 : vector<8x32xf32>
    %22 = arith.mulf %21, %21 : vector<8x32xf32>
    %cst_21 = arith.constant dense<0.000000e+00> : vector<8xf32>
    %23 = vector.multi_reduction <add>, %22, %cst_21 [1] : vector<8x32xf32> to vector<8xf32>
    %24 = vector.shape_cast %23 : vector<8xf32> to vector<8x1xf32>
    %cst_22 = arith.constant 0.0322580636 : f32
    %25 = vector.broadcast %cst_22 : f32 to vector<8x1xf32>
    %26 = arith.mulf %24, %25 : vector<8x1xf32>
    %27 = math.sqrt %26 : vector<8x1xf32>
    %cst_23 = arith.constant 9.99999997E-7 : f32
    %28 = vector.broadcast %cst_23 : f32 to vector<8x1xf32>
    %29 = arith.addf %27, %28 : vector<8x1xf32>
    %30 = tpu.reciprocal %29 {approx = true} : vector<8x1xf32> -> vector<8x1xf32>
    %31 = vector.broadcast %19 : vector<8x1xf32> to vector<8x32xf32>
    %32 = arith.subf %5, %31 : vector<8x32xf32>
    %33 = vector.broadcast %13 : vector<1x32xf32> to vector<8x32xf32>
    %34 = arith.mulf %33, %32 : vector<8x32xf32>
    %35 = vector.broadcast %30 : vector<8x1xf32> to vector<8x32xf32>
    %36 = arith.mulf %34, %35 : vector<8x32xf32>
    %37 = vector.broadcast %15 : vector<1x32xf32> to vector<8x32xf32>
    %38 = arith.addf %36, %37 : vector<8x32xf32>
    %c0_24 = arith.constant 0 : index
    %c0_25 = arith.constant 0 : index
    %c0_26 = arith.constant 0 : index
    %39 = vector.load %arg6[%c0_24, %c0_25, %c0_26] : memref<2x32x96xf32, #tpu.memory_space<vmem>>, vector<1x32x96xf32>
    %40 = vector.shape_cast %39 : vector<1x32x96xf32> to vector<32x96xf32>
    %cst_27 = arith.constant dense<0.000000e+00> : vector<8x96xf32>
    %41 = tpu.matmul %38, %40, %cst_27 {dimension_numbers = #tpu.dot_dimension_numbers<[1], [0], [0], [1], [0, 0, 1, 1], [], []>} : vector<8x32xf32>, vector<32x96xf32>, vector<8x96xf32> -> vector<8x96xf32>
    %c0_28 = arith.constant 0 : index
    %c0_29 = arith.constant 0 : index
    %c0_30 = arith.constant 0 : index
    %42 = vector.load %arg7[%c0_28, %c0_29, %c0_30] : memref<2x1x96xf32, #tpu.memory_space<vmem>>, vector<1x1x96xf32>
    %43 = vector.shape_cast %42 : vector<1x1x96xf32> to vector<1x96xf32>
    %44 = vector.broadcast %43 : vector<1x96xf32> to vector<8x96xf32>
    %45 = arith.addf %41, %44 : vector<8x96xf32>
    %46 = vector.extract_strided_slice %45 {offsets = [0, 0], sizes = [8, 32], strides = [1, 1]} : vector<8x96xf32> to vector<8x32xf32>
    %47 = vector.extract_strided_slice %45 {offsets = [0, 32], sizes = [8, 32], strides = [1, 1]} : vector<8x96xf32> to vector<8x32xf32>
    %48 = vector.extract_strided_slice %45 {offsets = [0, 64], sizes = [8, 32], strides = [1, 1]} : vector<8x96xf32> to vector<8x32xf32>
    %49 = vector.extract_strided_slice %46 {offsets = [0, 0], sizes = [8, 8], strides = [1, 1]} : vector<8x32xf32> to vector<8x8xf32>
    %50 = vector.extract_strided_slice %47 {offsets = [0, 0], sizes = [8, 8], strides = [1, 1]} : vector<8x32xf32> to vector<8x8xf32>
    %51 = vector.extract_strided_slice %48 {offsets = [0, 0], sizes = [8, 8], strides = [1, 1]} : vector<8x32xf32> to vector<8x8xf32>
    %52 = tpu.transpose %50, [1, 0] : vector<8x8xf32> -> vector<8x8xf32>
    %cst_31 = arith.constant dense<0.000000e+00> : vector<8x8xf32>
    %53 = tpu.matmul %49, %52, %cst_31 {dimension_numbers = #tpu.dot_dimension_numbers<[1], [0], [0], [1], [0, 0, 1, 1], [], []>} : vector<8x8xf32>, vector<8x8xf32>, vector<8x8xf32> -> vector<8x8xf32>
    %cst_32 = arith.constant 0.353553385 : f32
    %54 = vector.broadcast %cst_32 : f32 to vector<8x8xf32>
    %55 = arith.mulf %53, %54 : vector<8x8xf32>
    %56 = arith.addf %55, %9 : vector<8x8xf32>
    %cst_33 = arith.constant dense<0xFF800000> : vector<8xf32>
    %57 = vector.multi_reduction <maximumf>, %56, %cst_33 [1] : vector<8x8xf32> to vector<8xf32>
    %58 = vector.shape_cast %57 : vector<8xf32> to vector<8x1xf32>
    %59 = vector.broadcast %58 : vector<8x1xf32> to vector<8x8xf32>
    %60 = arith.subf %56, %59 : vector<8x8xf32>
    %61 = math.exp %60 : vector<8x8xf32>
    %cst_34 = arith.constant dense<0.000000e+00> : vector<8xf32>
    %62 = vector.multi_reduction <add>, %61, %cst_34 [1] : vector<8x8xf32> to vector<8xf32>
    %63 = vector.shape_cast %62 : vector<8xf32> to vector<8x1xf32>
    %64 = tpu.reciprocal %63 {approx = true} : vector<8x1xf32> -> vector<8x1xf32>
    %65 = vector.broadcast %64 : vector<8x1xf32> to vector<8x8xf32>
    %66 = arith.mulf %61, %65 : vector<8x8xf32>
    %cst_35 = arith.constant dense<0.000000e+00> : vector<8x8xf32>
    %67 = tpu.matmul %66, %51, %cst_35 {dimension_numbers = #tpu.dot_dimension_numbers<[1], [0], [0], [1], [0, 0, 1, 1], [], []>} : vector<8x8xf32>, vector<8x8xf32>, vector<8x8xf32> -> vector<8x8xf32>
    %68 = vector.extract_strided_slice %46 {offsets = [0, 8], sizes = [8, 8], strides = [1, 1]} : vector<8x32xf32> to vector<8x8xf32>
    %69 = vector.extract_strided_slice %47 {offsets = [0, 8], sizes = [8, 8], strides = [1, 1]} : vector<8x32xf32> to vector<8x8xf32>
    %70 = vector.extract_strided_slice %48 {offsets = [0, 8], sizes = [8, 8], strides = [1, 1]} : vector<8x32xf32> to vector<8x8xf32>
    %71 = tpu.transpose %69, [1, 0] : vector<8x8xf32> -> vector<8x8xf32>
    %cst_36 = arith.constant dense<0.000000e+00> : vector<8x8xf32>
    %72 = tpu.matmul %68, %71, %cst_36 {dimension_numbers = #tpu.dot_dimension_numbers<[1], [0], [0], [1], [0, 0, 1, 1], [], []>} : vector<8x8xf32>, vector<8x8xf32>, vector<8x8xf32> -> vector<8x8xf32>
    %cst_37 = arith.constant 0.353553385 : f32
    %73 = vector.broadcast %cst_37 : f32 to vector<8x8xf32>
    %74 = arith.mulf %72, %73 : vector<8x8xf32>
    %75 = arith.addf %74, %9 : vector<8x8xf32>
    %cst_38 = arith.constant dense<0xFF800000> : vector<8xf32>
    %76 = vector.multi_reduction <maximumf>, %75, %cst_38 [1] : vector<8x8xf32> to vector<8xf32>
    %77 = vector.shape_cast %76 : vector<8xf32> to vector<8x1xf32>
    %78 = vector.broadcast %77 : vector<8x1xf32> to vector<8x8xf32>
    %79 = arith.subf %75, %78 : vector<8x8xf32>
    %80 = math.exp %79 : vector<8x8xf32>
    %cst_39 = arith.constant dense<0.000000e+00> : vector<8xf32>
    %81 = vector.multi_reduction <add>, %80, %cst_39 [1] : vector<8x8xf32> to vector<8xf32>
    %82 = vector.shape_cast %81 : vector<8xf32> to vector<8x1xf32>
    %83 = tpu.reciprocal %82 {approx = true} : vector<8x1xf32> -> vector<8x1xf32>
    %84 = vector.broadcast %83 : vector<8x1xf32> to vector<8x8xf32>
    %85 = arith.mulf %80, %84 : vector<8x8xf32>
    %cst_40 = arith.constant dense<0.000000e+00> : vector<8x8xf32>
    %86 = tpu.matmul %85, %70, %cst_40 {dimension_numbers = #tpu.dot_dimension_numbers<[1], [0], [0], [1], [0, 0, 1, 1], [], []>} : vector<8x8xf32>, vector<8x8xf32>, vector<8x8xf32> -> vector<8x8xf32>
    %87 = vector.extract_strided_slice %46 {offsets = [0, 16], sizes = [8, 8], strides = [1, 1]} : vector<8x32xf32> to vector<8x8xf32>
    %88 = vector.extract_strided_slice %47 {offsets = [0, 16], sizes = [8, 8], strides = [1, 1]} : vector<8x32xf32> to vector<8x8xf32>
    %89 = vector.extract_strided_slice %48 {offsets = [0, 16], sizes = [8, 8], strides = [1, 1]} : vector<8x32xf32> to vector<8x8xf32>
    %90 = tpu.transpose %88, [1, 0] : vector<8x8xf32> -> vector<8x8xf32>
    %cst_41 = arith.constant dense<0.000000e+00> : vector<8x8xf32>
    %91 = tpu.matmul %87, %90, %cst_41 {dimension_numbers = #tpu.dot_dimension_numbers<[1], [0], [0], [1], [0, 0, 1, 1], [], []>} : vector<8x8xf32>, vector<8x8xf32>, vector<8x8xf32> -> vector<8x8xf32>
    %cst_42 = arith.constant 0.353553385 : f32
    %92 = vector.broadcast %cst_42 : f32 to vector<8x8xf32>
    %93 = arith.mulf %91, %92 : vector<8x8xf32>
    %94 = arith.addf %93, %9 : vector<8x8xf32>
    %cst_43 = arith.constant dense<0xFF800000> : vector<8xf32>
    %95 = vector.multi_reduction <maximumf>, %94, %cst_43 [1] : vector<8x8xf32> to vector<8xf32>
    %96 = vector.shape_cast %95 : vector<8xf32> to vector<8x1xf32>
    %97 = vector.broadcast %96 : vector<8x1xf32> to vector<8x8xf32>
    %98 = arith.subf %94, %97 : vector<8x8xf32>
    %99 = math.exp %98 : vector<8x8xf32>
    %cst_44 = arith.constant dense<0.000000e+00> : vector<8xf32>
    %100 = vector.multi_reduction <add>, %99, %cst_44 [1] : vector<8x8xf32> to vector<8xf32>
    %101 = vector.shape_cast %100 : vector<8xf32> to vector<8x1xf32>
    %102 = tpu.reciprocal %101 {approx = true} : vector<8x1xf32> -> vector<8x1xf32>
    %103 = vector.broadcast %102 : vector<8x1xf32> to vector<8x8xf32>
    %104 = arith.mulf %99, %103 : vector<8x8xf32>
    %cst_45 = arith.constant dense<0.000000e+00> : vector<8x8xf32>
    %105 = tpu.matmul %104, %89, %cst_45 {dimension_numbers = #tpu.dot_dimension_numbers<[1], [0], [0], [1], [0, 0, 1, 1], [], []>} : vector<8x8xf32>, vector<8x8xf32>, vector<8x8xf32> -> vector<8x8xf32>
    %106 = vector.extract_strided_slice %46 {offsets = [0, 24], sizes = [8, 8], strides = [1, 1]} : vector<8x32xf32> to vector<8x8xf32>
    %107 = vector.extract_strided_slice %47 {offsets = [0, 24], sizes = [8, 8], strides = [1, 1]} : vector<8x32xf32> to vector<8x8xf32>
    %108 = vector.extract_strided_slice %48 {offsets = [0, 24], sizes = [8, 8], strides = [1, 1]} : vector<8x32xf32> to vector<8x8xf32>
    %109 = tpu.transpose %107, [1, 0] : vector<8x8xf32> -> vector<8x8xf32>
    %cst_46 = arith.constant dense<0.000000e+00> : vector<8x8xf32>
    %110 = tpu.matmul %106, %109, %cst_46 {dimension_numbers = #tpu.dot_dimension_numbers<[1], [0], [0], [1], [0, 0, 1, 1], [], []>} : vector<8x8xf32>, vector<8x8xf32>, vector<8x8xf32> -> vector<8x8xf32>
    %cst_47 = arith.constant 0.353553385 : f32
    %111 = vector.broadcast %cst_47 : f32 to vector<8x8xf32>
    %112 = arith.mulf %110, %111 : vector<8x8xf32>
    %113 = arith.addf %112, %9 : vector<8x8xf32>
    %cst_48 = arith.constant dense<0xFF800000> : vector<8xf32>
    %114 = vector.multi_reduction <maximumf>, %113, %cst_48 [1] : vector<8x8xf32> to vector<8xf32>
    %115 = vector.shape_cast %114 : vector<8xf32> to vector<8x1xf32>
    %116 = vector.broadcast %115 : vector<8x1xf32> to vector<8x8xf32>
    %117 = arith.subf %113, %116 : vector<8x8xf32>
    %118 = math.exp %117 : vector<8x8xf32>
    %cst_49 = arith.constant dense<0.000000e+00> : vector<8xf32>
    %119 = vector.multi_reduction <add>, %118, %cst_49 [1] : vector<8x8xf32> to vector<8xf32>
    %120 = vector.shape_cast %119 : vector<8xf32> to vector<8x1xf32>
    %121 = tpu.reciprocal %120 {approx = true} : vector<8x1xf32> -> vector<8x1xf32>
    %122 = vector.broadcast %121 : vector<8x1xf32> to vector<8x8xf32>
    %123 = arith.mulf %118, %122 : vector<8x8xf32>
    %cst_50 = arith.constant dense<0.000000e+00> : vector<8x8xf32>
    %124 = tpu.matmul %123, %108, %cst_50 {dimension_numbers = #tpu.dot_dimension_numbers<[1], [0], [0], [1], [0, 0, 1, 1], [], []>} : vector<8x8xf32>, vector<8x8xf32>, vector<8x8xf32> -> vector<8x8xf32>
    %125 = tpu.concatenate %67, %86, %105, %124 in 1 : vector<8x8xf32>, vector<8x8xf32>, vector<8x8xf32>, vector<8x8xf32> -> vector<8x32xf32>
    %c0_51 = arith.constant 0 : index
    %c0_52 = arith.constant 0 : index
    %c0_53 = arith.constant 0 : index
    %126 = vector.load %arg8[%c0_51, %c0_52, %c0_53] : memref<2x32x32xf32, #tpu.memory_space<vmem>>, vector<1x32x32xf32>
    %127 = vector.shape_cast %126 : vector<1x32x32xf32> to vector<32x32xf32>
    %cst_54 = arith.constant dense<0.000000e+00> : vector<8x32xf32>
    %128 = tpu.matmul %125, %127, %cst_54 {dimension_numbers = #tpu.dot_dimension_numbers<[1], [0], [0], [1], [0, 0, 1, 1], [], []>} : vector<8x32xf32>, vector<32x32xf32>, vector<8x32xf32> -> vector<8x32xf32>
    %129 = arith.addf %5, %128 : vector<8x32xf32>
    %c0_55 = arith.constant 0 : index
    %c0_56 = arith.constant 0 : index
    %c0_57 = arith.constant 0 : index
    %130 = vector.load %arg9[%c0_55, %c0_56, %c0_57] : memref<2x1x32xf32, #tpu.memory_space<vmem>>, vector<1x1x32xf32>
    %131 = vector.shape_cast %130 : vector<1x1x32xf32> to vector<1x32xf32>
    %132 = vector.broadcast %131 : vector<1x32xf32> to vector<8x32xf32>
    %133 = arith.addf %129, %132 : vector<8x32xf32>
    %c0_58 = arith.constant 0 : index
    %c0_59 = arith.constant 0 : index
    %c0_60 = arith.constant 0 : index
    %134 = vector.load %arg18[%c0_58, %c0_59, %c0_60] : memref<2x1x32xf32, #tpu.memory_space<vmem>>, vector<1x1x32xf32>
    %135 = vector.shape_cast %134 : vector<1x1x32xf32> to vector<1x32xf32>
    %c0_61 = arith.constant 0 : index
    %c0_62 = arith.constant 0 : index
    %c0_63 = arith.constant 0 : index
    %136 = vector.load %arg19[%c0_61, %c0_62, %c0_63] : memref<2x1x32xf32, #tpu.memory_space<vmem>>, vector<1x1x32xf32>
    %137 = vector.shape_cast %136 : vector<1x1x32xf32> to vector<1x32xf32>
    %cst_64 = arith.constant dense<0.000000e+00> : vector<8xf32>
    %138 = vector.multi_reduction <add>, %133, %cst_64 [1] : vector<8x32xf32> to vector<8xf32>
    %139 = vector.shape_cast %138 : vector<8xf32> to vector<8x1xf32>
    %cst_65 = arith.constant 3.200000e+01 : f32
    %140 = vector.broadcast %cst_65 : f32 to vector<8x1xf32>
    %141 = arith.divf %139, %140 : vector<8x1xf32>
    %142 = vector.broadcast %141 : vector<8x1xf32> to vector<8x32xf32>
    %143 = arith.subf %133, %142 : vector<8x32xf32>
    %144 = arith.mulf %143, %143 : vector<8x32xf32>
    %cst_66 = arith.constant dense<0.000000e+00> : vector<8xf32>
    %145 = vector.multi_reduction <add>, %144, %cst_66 [1] : vector<8x32xf32> to vector<8xf32>
    %146 = vector.shape_cast %145 : vector<8xf32> to vector<8x1xf32>
    %cst_67 = arith.constant 0.0322580636 : f32
    %147 = vector.broadcast %cst_67 : f32 to vector<8x1xf32>
    %148 = arith.mulf %146, %147 : vector<8x1xf32>
    %149 = math.sqrt %148 : vector<8x1xf32>
    %cst_68 = arith.constant 9.99999997E-7 : f32
    %150 = vector.broadcast %cst_68 : f32 to vector<8x1xf32>
    %151 = arith.addf %149, %150 : vector<8x1xf32>
    %152 = tpu.reciprocal %151 {approx = true} : vector<8x1xf32> -> vector<8x1xf32>
    %153 = vector.broadcast %141 : vector<8x1xf32> to vector<8x32xf32>
    %154 = arith.subf %133, %153 : vector<8x32xf32>
    %155 = vector.broadcast %135 : vector<1x32xf32> to vector<8x32xf32>
    %156 = arith.mulf %155, %154 : vector<8x32xf32>
    %157 = vector.broadcast %152 : vector<8x1xf32> to vector<8x32xf32>
    %158 = arith.mulf %156, %157 : vector<8x32xf32>
    %159 = vector.broadcast %137 : vector<1x32xf32> to vector<8x32xf32>
    %160 = arith.addf %158, %159 : vector<8x32xf32>
    %c0_69 = arith.constant 0 : index
    %c0_70 = arith.constant 0 : index
    %c0_71 = arith.constant 0 : index
    %161 = vector.load %arg12[%c0_69, %c0_70, %c0_71] : memref<2x32x32xf32, #tpu.memory_space<vmem>>, vector<1x32x32xf32>
    %162 = vector.shape_cast %161 : vector<1x32x32xf32> to vector<32x32xf32>
    %cst_72 = arith.constant dense<0.000000e+00> : vector<8x32xf32>
    %163 = tpu.matmul %160, %162, %cst_72 {dimension_numbers = #tpu.dot_dimension_numbers<[1], [0], [0], [1], [0, 0, 1, 1], [], []>} : vector<8x32xf32>, vector<32x32xf32>, vector<8x32xf32> -> vector<8x32xf32>
    %c0_73 = arith.constant 0 : index
    %c0_74 = arith.constant 0 : index
    %c0_75 = arith.constant 0 : index
    %164 = vector.load %arg13[%c0_73, %c0_74, %c0_75] : memref<2x1x32xf32, #tpu.memory_space<vmem>>, vector<1x1x32xf32>
    %165 = vector.shape_cast %164 : vector<1x1x32xf32> to vector<1x32xf32>
    %166 = vector.broadcast %165 : vector<1x32xf32> to vector<8x32xf32>
    %167 = arith.addf %163, %166 : vector<8x32xf32>
    %c0_76 = arith.constant 0 : index
    %c0_77 = arith.constant 0 : index
    %c0_78 = arith.constant 0 : index
    %168 = vector.load %arg14[%c0_76, %c0_77, %c0_78] : memref<2x32x64xf32, #tpu.memory_space<vmem>>, vector<1x32x64xf32>
    %169 = vector.shape_cast %168 : vector<1x32x64xf32> to vector<32x64xf32>
    %cst_79 = arith.constant dense<0.000000e+00> : vector<8x64xf32>
    %170 = tpu.matmul %7, %169, %cst_79 {dimension_numbers = #tpu.dot_dimension_numbers<[1], [0], [0], [1], [0, 0, 1, 1], [], []>} : vector<8x32xf32>, vector<32x64xf32>, vector<8x64xf32> -> vector<8x64xf32>
    %c0_80 = arith.constant 0 : index
    %c0_81 = arith.constant 0 : index
    %c0_82 = arith.constant 0 : index
    %171 = vector.load %arg15[%c0_80, %c0_81, %c0_82] : memref<2x1x64xf32, #tpu.memory_space<vmem>>, vector<1x1x64xf32>
    %172 = vector.shape_cast %171 : vector<1x1x64xf32> to vector<1x64xf32>
    %173 = vector.broadcast %172 : vector<1x64xf32> to vector<8x64xf32>
    %174 = arith.addf %170, %173 : vector<8x64xf32>
    %175 = vector.extract_strided_slice %174 {offsets = [0, 0], sizes = [8, 32], strides = [1, 1]} : vector<8x64xf32> to vector<8x32xf32>
    %176 = vector.extract_strided_slice %174 {offsets = [0, 32], sizes = [8, 32], strides = [1, 1]} : vector<8x64xf32> to vector<8x32xf32>
    %177 = vector.extract_strided_slice %167 {offsets = [0, 0], sizes = [8, 8], strides = [1, 1]} : vector<8x32xf32> to vector<8x8xf32>
    %178 = vector.extract_strided_slice %175 {offsets = [0, 0], sizes = [8, 8], strides = [1, 1]} : vector<8x32xf32> to vector<8x8xf32>
    %179 = vector.extract_strided_slice %176 {offsets = [0, 0], sizes = [8, 8], strides = [1, 1]} : vector<8x32xf32> to vector<8x8xf32>
    %180 = tpu.transpose %178, [1, 0] : vector<8x8xf32> -> vector<8x8xf32>
    %cst_83 = arith.constant dense<0.000000e+00> : vector<8x8xf32>
    %181 = tpu.matmul %177, %180, %cst_83 {dimension_numbers = #tpu.dot_dimension_numbers<[1], [0], [0], [1], [0, 0, 1, 1], [], []>} : vector<8x8xf32>, vector<8x8xf32>, vector<8x8xf32> -> vector<8x8xf32>
    %cst_84 = arith.constant 0.353553385 : f32
    %182 = vector.broadcast %cst_84 : f32 to vector<8x8xf32>
    %183 = arith.mulf %181, %182 : vector<8x8xf32>
    %184 = arith.addf %183, %11 : vector<8x8xf32>
    %cst_85 = arith.constant dense<0xFF800000> : vector<8xf32>
    %185 = vector.multi_reduction <maximumf>, %184, %cst_85 [1] : vector<8x8xf32> to vector<8xf32>
    %186 = vector.shape_cast %185 : vector<8xf32> to vector<8x1xf32>
    %187 = vector.broadcast %186 : vector<8x1xf32> to vector<8x8xf32>
    %188 = arith.subf %184, %187 : vector<8x8xf32>
    %189 = math.exp %188 : vector<8x8xf32>
    %cst_86 = arith.constant dense<0.000000e+00> : vector<8xf32>
    %190 = vector.multi_reduction <add>, %189, %cst_86 [1] : vector<8x8xf32> to vector<8xf32>
    %191 = vector.shape_cast %190 : vector<8xf32> to vector<8x1xf32>
    %192 = tpu.reciprocal %191 {approx = true} : vector<8x1xf32> -> vector<8x1xf32>
    %193 = vector.broadcast %192 : vector<8x1xf32> to vector<8x8xf32>
    %194 = arith.mulf %189, %193 : vector<8x8xf32>
    %cst_87 = arith.constant dense<0.000000e+00> : vector<8x8xf32>
    %195 = tpu.matmul %194, %179, %cst_87 {dimension_numbers = #tpu.dot_dimension_numbers<[1], [0], [0], [1], [0, 0, 1, 1], [], []>} : vector<8x8xf32>, vector<8x8xf32>, vector<8x8xf32> -> vector<8x8xf32>
    %196 = vector.extract_strided_slice %167 {offsets = [0, 8], sizes = [8, 8], strides = [1, 1]} : vector<8x32xf32> to vector<8x8xf32>
    %197 = vector.extract_strided_slice %175 {offsets = [0, 8], sizes = [8, 8], strides = [1, 1]} : vector<8x32xf32> to vector<8x8xf32>
    %198 = vector.extract_strided_slice %176 {offsets = [0, 8], sizes = [8, 8], strides = [1, 1]} : vector<8x32xf32> to vector<8x8xf32>
    %199 = tpu.transpose %197, [1, 0] : vector<8x8xf32> -> vector<8x8xf32>
    %cst_88 = arith.constant dense<0.000000e+00> : vector<8x8xf32>
    %200 = tpu.matmul %196, %199, %cst_88 {dimension_numbers = #tpu.dot_dimension_numbers<[1], [0], [0], [1], [0, 0, 1, 1], [], []>} : vector<8x8xf32>, vector<8x8xf32>, vector<8x8xf32> -> vector<8x8xf32>
    %cst_89 = arith.constant 0.353553385 : f32
    %201 = vector.broadcast %cst_89 : f32 to vector<8x8xf32>
    %202 = arith.mulf %200, %201 : vector<8x8xf32>
    %203 = arith.addf %202, %11 : vector<8x8xf32>
    %cst_90 = arith.constant dense<0xFF800000> : vector<8xf32>
    %204 = vector.multi_reduction <maximumf>, %203, %cst_90 [1] : vector<8x8xf32> to vector<8xf32>
    %205 = vector.shape_cast %204 : vector<8xf32> to vector<8x1xf32>
    %206 = vector.broadcast %205 : vector<8x1xf32> to vector<8x8xf32>
    %207 = arith.subf %203, %206 : vector<8x8xf32>
    %208 = math.exp %207 : vector<8x8xf32>
    %cst_91 = arith.constant dense<0.000000e+00> : vector<8xf32>
    %209 = vector.multi_reduction <add>, %208, %cst_91 [1] : vector<8x8xf32> to vector<8xf32>
    %210 = vector.shape_cast %209 : vector<8xf32> to vector<8x1xf32>
    %211 = tpu.reciprocal %210 {approx = true} : vector<8x1xf32> -> vector<8x1xf32>
    %212 = vector.broadcast %211 : vector<8x1xf32> to vector<8x8xf32>
    %213 = arith.mulf %208, %212 : vector<8x8xf32>
    %cst_92 = arith.constant dense<0.000000e+00> : vector<8x8xf32>
    %214 = tpu.matmul %213, %198, %cst_92 {dimension_numbers = #tpu.dot_dimension_numbers<[1], [0], [0], [1], [0, 0, 1, 1], [], []>} : vector<8x8xf32>, vector<8x8xf32>, vector<8x8xf32> -> vector<8x8xf32>
    %215 = vector.extract_strided_slice %167 {offsets = [0, 16], sizes = [8, 8], strides = [1, 1]} : vector<8x32xf32> to vector<8x8xf32>
    %216 = vector.extract_strided_slice %175 {offsets = [0, 16], sizes = [8, 8], strides = [1, 1]} : vector<8x32xf32> to vector<8x8xf32>
    %217 = vector.extract_strided_slice %176 {offsets = [0, 16], sizes = [8, 8], strides = [1, 1]} : vector<8x32xf32> to vector<8x8xf32>
    %218 = tpu.transpose %216, [1, 0] : vector<8x8xf32> -> vector<8x8xf32>
    %cst_93 = arith.constant dense<0.000000e+00> : vector<8x8xf32>
    %219 = tpu.matmul %215, %218, %cst_93 {dimension_numbers = #tpu.dot_dimension_numbers<[1], [0], [0], [1], [0, 0, 1, 1], [], []>} : vector<8x8xf32>, vector<8x8xf32>, vector<8x8xf32> -> vector<8x8xf32>
    %cst_94 = arith.constant 0.353553385 : f32
    %220 = vector.broadcast %cst_94 : f32 to vector<8x8xf32>
    %221 = arith.mulf %219, %220 : vector<8x8xf32>
    %222 = arith.addf %221, %11 : vector<8x8xf32>
    %cst_95 = arith.constant dense<0xFF800000> : vector<8xf32>
    %223 = vector.multi_reduction <maximumf>, %222, %cst_95 [1] : vector<8x8xf32> to vector<8xf32>
    %224 = vector.shape_cast %223 : vector<8xf32> to vector<8x1xf32>
    %225 = vector.broadcast %224 : vector<8x1xf32> to vector<8x8xf32>
    %226 = arith.subf %222, %225 : vector<8x8xf32>
    %227 = math.exp %226 : vector<8x8xf32>
    %cst_96 = arith.constant dense<0.000000e+00> : vector<8xf32>
    %228 = vector.multi_reduction <add>, %227, %cst_96 [1] : vector<8x8xf32> to vector<8xf32>
    %229 = vector.shape_cast %228 : vector<8xf32> to vector<8x1xf32>
    %230 = tpu.reciprocal %229 {approx = true} : vector<8x1xf32> -> vector<8x1xf32>
    %231 = vector.broadcast %230 : vector<8x1xf32> to vector<8x8xf32>
    %232 = arith.mulf %227, %231 : vector<8x8xf32>
    %cst_97 = arith.constant dense<0.000000e+00> : vector<8x8xf32>
    %233 = tpu.matmul %232, %217, %cst_97 {dimension_numbers = #tpu.dot_dimension_numbers<[1], [0], [0], [1], [0, 0, 1, 1], [], []>} : vector<8x8xf32>, vector<8x8xf32>, vector<8x8xf32> -> vector<8x8xf32>
    %234 = vector.extract_strided_slice %167 {offsets = [0, 24], sizes = [8, 8], strides = [1, 1]} : vector<8x32xf32> to vector<8x8xf32>
    %235 = vector.extract_strided_slice %175 {offsets = [0, 24], sizes = [8, 8], strides = [1, 1]} : vector<8x32xf32> to vector<8x8xf32>
    %236 = vector.extract_strided_slice %176 {offsets = [0, 24], sizes = [8, 8], strides = [1, 1]} : vector<8x32xf32> to vector<8x8xf32>
    %237 = tpu.transpose %235, [1, 0] : vector<8x8xf32> -> vector<8x8xf32>
    %cst_98 = arith.constant dense<0.000000e+00> : vector<8x8xf32>
    %238 = tpu.matmul %234, %237, %cst_98 {dimension_numbers = #tpu.dot_dimension_numbers<[1], [0], [0], [1], [0, 0, 1, 1], [], []>} : vector<8x8xf32>, vector<8x8xf32>, vector<8x8xf32> -> vector<8x8xf32>
    %cst_99 = arith.constant 0.353553385 : f32
    %239 = vector.broadcast %cst_99 : f32 to vector<8x8xf32>
    %240 = arith.mulf %238, %239 : vector<8x8xf32>
    %241 = arith.addf %240, %11 : vector<8x8xf32>
    %cst_100 = arith.constant dense<0xFF800000> : vector<8xf32>
    %242 = vector.multi_reduction <maximumf>, %241, %cst_100 [1] : vector<8x8xf32> to vector<8xf32>
    %243 = vector.shape_cast %242 : vector<8xf32> to vector<8x1xf32>
    %244 = vector.broadcast %243 : vector<8x1xf32> to vector<8x8xf32>
    %245 = arith.subf %241, %244 : vector<8x8xf32>
    %246 = math.exp %245 : vector<8x8xf32>
    %cst_101 = arith.constant dense<0.000000e+00> : vector<8xf32>
    %247 = vector.multi_reduction <add>, %246, %cst_101 [1] : vector<8x8xf32> to vector<8xf32>
    %248 = vector.shape_cast %247 : vector<8xf32> to vector<8x1xf32>
    %249 = tpu.reciprocal %248 {approx = true} : vector<8x1xf32> -> vector<8x1xf32>
    %250 = vector.broadcast %249 : vector<8x1xf32> to vector<8x8xf32>
    %251 = arith.mulf %246, %250 : vector<8x8xf32>
    %cst_102 = arith.constant dense<0.000000e+00> : vector<8x8xf32>
    %252 = tpu.matmul %251, %236, %cst_102 {dimension_numbers = #tpu.dot_dimension_numbers<[1], [0], [0], [1], [0, 0, 1, 1], [], []>} : vector<8x8xf32>, vector<8x8xf32>, vector<8x8xf32> -> vector<8x8xf32>
    %253 = tpu.concatenate %195, %214, %233, %252 in 1 : vector<8x8xf32>, vector<8x8xf32>, vector<8x8xf32>, vector<8x8xf32> -> vector<8x32xf32>
    %c0_103 = arith.constant 0 : index
    %c0_104 = arith.constant 0 : index
    %c0_105 = arith.constant 0 : index
    %254 = vector.load %arg16[%c0_103, %c0_104, %c0_105] : memref<2x32x32xf32, #tpu.memory_space<vmem>>, vector<1x32x32xf32>
    %255 = vector.shape_cast %254 : vector<1x32x32xf32> to vector<32x32xf32>
    %cst_106 = arith.constant dense<0.000000e+00> : vector<8x32xf32>
    %256 = tpu.matmul %253, %255, %cst_106 {dimension_numbers = #tpu.dot_dimension_numbers<[1], [0], [0], [1], [0, 0, 1, 1], [], []>} : vector<8x32xf32>, vector<32x32xf32>, vector<8x32xf32> -> vector<8x32xf32>
    %257 = arith.addf %133, %256 : vector<8x32xf32>
    %c0_107 = arith.constant 0 : index
    %c0_108 = arith.constant 0 : index
    %c0_109 = arith.constant 0 : index
    %258 = vector.load %arg17[%c0_107, %c0_108, %c0_109] : memref<2x1x32xf32, #tpu.memory_space<vmem>>, vector<1x1x32xf32>
    %259 = vector.shape_cast %258 : vector<1x1x32xf32> to vector<1x32xf32>
    %260 = vector.broadcast %259 : vector<1x32xf32> to vector<8x32xf32>
    %261 = arith.addf %257, %260 : vector<8x32xf32>
    %c0_110 = arith.constant 0 : index
    %c0_111 = arith.constant 0 : index
    %c0_112 = arith.constant 0 : index
    %262 = vector.load %arg24[%c0_110, %c0_111, %c0_112] : memref<2x1x32xf32, #tpu.memory_space<vmem>>, vector<1x1x32xf32>
    %263 = vector.shape_cast %262 : vector<1x1x32xf32> to vector<1x32xf32>
    %c0_113 = arith.constant 0 : index
    %c0_114 = arith.constant 0 : index
    %c0_115 = arith.constant 0 : index
    %264 = vector.load %arg25[%c0_113, %c0_114, %c0_115] : memref<2x1x32xf32, #tpu.memory_space<vmem>>, vector<1x1x32xf32>
    %265 = vector.shape_cast %264 : vector<1x1x32xf32> to vector<1x32xf32>
    %cst_116 = arith.constant dense<0.000000e+00> : vector<8xf32>
    %266 = vector.multi_reduction <add>, %261, %cst_116 [1] : vector<8x32xf32> to vector<8xf32>
    %267 = vector.shape_cast %266 : vector<8xf32> to vector<8x1xf32>
    %cst_117 = arith.constant 3.200000e+01 : f32
    %268 = vector.broadcast %cst_117 : f32 to vector<8x1xf32>
    %269 = arith.divf %267, %268 : vector<8x1xf32>
    %270 = vector.broadcast %269 : vector<8x1xf32> to vector<8x32xf32>
    %271 = arith.subf %261, %270 : vector<8x32xf32>
    %272 = arith.mulf %271, %271 : vector<8x32xf32>
    %cst_118 = arith.constant dense<0.000000e+00> : vector<8xf32>
    %273 = vector.multi_reduction <add>, %272, %cst_118 [1] : vector<8x32xf32> to vector<8xf32>
    %274 = vector.shape_cast %273 : vector<8xf32> to vector<8x1xf32>
    %cst_119 = arith.constant 0.0322580636 : f32
    %275 = vector.broadcast %cst_119 : f32 to vector<8x1xf32>
    %276 = arith.mulf %274, %275 : vector<8x1xf32>
    %277 = math.sqrt %276 : vector<8x1xf32>
    %cst_120 = arith.constant 9.99999997E-7 : f32
    %278 = vector.broadcast %cst_120 : f32 to vector<8x1xf32>
    %279 = arith.addf %277, %278 : vector<8x1xf32>
    %280 = tpu.reciprocal %279 {approx = true} : vector<8x1xf32> -> vector<8x1xf32>
    %281 = vector.broadcast %269 : vector<8x1xf32> to vector<8x32xf32>
    %282 = arith.subf %261, %281 : vector<8x32xf32>
    %283 = vector.broadcast %263 : vector<1x32xf32> to vector<8x32xf32>
    %284 = arith.mulf %283, %282 : vector<8x32xf32>
    %285 = vector.broadcast %280 : vector<8x1xf32> to vector<8x32xf32>
    %286 = arith.mulf %284, %285 : vector<8x32xf32>
    %287 = vector.broadcast %265 : vector<1x32xf32> to vector<8x32xf32>
    %288 = arith.addf %286, %287 : vector<8x32xf32>
    %c0_121 = arith.constant 0 : index
    %c0_122 = arith.constant 0 : index
    %c0_123 = arith.constant 0 : index
    %289 = vector.load %arg20[%c0_121, %c0_122, %c0_123] : memref<2x32x64xf32, #tpu.memory_space<vmem>>, vector<1x32x64xf32>
    %290 = vector.shape_cast %289 : vector<1x32x64xf32> to vector<32x64xf32>
    %cst_124 = arith.constant dense<0.000000e+00> : vector<8x64xf32>
    %291 = tpu.matmul %288, %290, %cst_124 {dimension_numbers = #tpu.dot_dimension_numbers<[1], [0], [0], [1], [0, 0, 1, 1], [], []>} : vector<8x32xf32>, vector<32x64xf32>, vector<8x64xf32> -> vector<8x64xf32>
    %c0_125 = arith.constant 0 : index
    %c0_126 = arith.constant 0 : index
    %c0_127 = arith.constant 0 : index
    %292 = vector.load %arg21[%c0_125, %c0_126, %c0_127] : memref<2x1x64xf32, #tpu.memory_space<vmem>>, vector<1x1x64xf32>
    %293 = vector.shape_cast %292 : vector<1x1x64xf32> to vector<1x64xf32>
    %294 = vector.broadcast %293 : vector<1x64xf32> to vector<8x64xf32>
    %295 = arith.addf %291, %294 : vector<8x64xf32>
    %cst_128 = arith.constant 0.000000e+00 : f32
    %296 = vector.broadcast %cst_128 : f32 to vector<8x64xf32>
    %297 = arith.maximumf %295, %296 : vector<8x64xf32>
    %c0_129 = arith.constant 0 : index
    %c0_130 = arith.constant 0 : index
    %c0_131 = arith.constant 0 : index
    %298 = vector.load %arg22[%c0_129, %c0_130, %c0_131] : memref<2x64x32xf32, #tpu.memory_space<vmem>>, vector<1x64x32xf32>
    %299 = vector.shape_cast %298 : vector<1x64x32xf32> to vector<64x32xf32>
    %cst_132 = arith.constant dense<0.000000e+00> : vector<8x32xf32>
    %300 = tpu.matmul %297, %299, %cst_132 {dimension_numbers = #tpu.dot_dimension_numbers<[1], [0], [0], [1], [0, 0, 1, 1], [], []>} : vector<8x64xf32>, vector<64x32xf32>, vector<8x32xf32> -> vector<8x32xf32>
    %301 = arith.addf %261, %300 : vector<8x32xf32>
    %c0_133 = arith.constant 0 : index
    %c0_134 = arith.constant 0 : index
    %c0_135 = arith.constant 0 : index
    %302 = vector.load %arg23[%c0_133, %c0_134, %c0_135] : memref<2x1x32xf32, #tpu.memory_space<vmem>>, vector<1x1x32xf32>
    %303 = vector.shape_cast %302 : vector<1x1x32xf32> to vector<1x32xf32>
    %304 = vector.broadcast %303 : vector<1x32xf32> to vector<8x32xf32>
    %305 = arith.addf %301, %304 : vector<8x32xf32>
    %c1 = arith.constant 1 : index
    %c0_136 = arith.constant 0 : index
    %c0_137 = arith.constant 0 : index
    %306 = vector.load %arg10[%c1, %c0_136, %c0_137] : memref<2x1x32xf32, #tpu.memory_space<vmem>>, vector<1x1x32xf32>
    %307 = vector.shape_cast %306 : vector<1x1x32xf32> to vector<1x32xf32>
    %c1_138 = arith.constant 1 : index
    %c0_139 = arith.constant 0 : index
    %c0_140 = arith.constant 0 : index
    %308 = vector.load %arg11[%c1_138, %c0_139, %c0_140] : memref<2x1x32xf32, #tpu.memory_space<vmem>>, vector<1x1x32xf32>
    %309 = vector.shape_cast %308 : vector<1x1x32xf32> to vector<1x32xf32>
    %cst_141 = arith.constant dense<0.000000e+00> : vector<8xf32>
    %310 = vector.multi_reduction <add>, %305, %cst_141 [1] : vector<8x32xf32> to vector<8xf32>
    %311 = vector.shape_cast %310 : vector<8xf32> to vector<8x1xf32>
    %cst_142 = arith.constant 3.200000e+01 : f32
    %312 = vector.broadcast %cst_142 : f32 to vector<8x1xf32>
    %313 = arith.divf %311, %312 : vector<8x1xf32>
    %314 = vector.broadcast %313 : vector<8x1xf32> to vector<8x32xf32>
    %315 = arith.subf %305, %314 : vector<8x32xf32>
    %316 = arith.mulf %315, %315 : vector<8x32xf32>
    %cst_143 = arith.constant dense<0.000000e+00> : vector<8xf32>
    %317 = vector.multi_reduction <add>, %316, %cst_143 [1] : vector<8x32xf32> to vector<8xf32>
    %318 = vector.shape_cast %317 : vector<8xf32> to vector<8x1xf32>
    %cst_144 = arith.constant 0.0322580636 : f32
    %319 = vector.broadcast %cst_144 : f32 to vector<8x1xf32>
    %320 = arith.mulf %318, %319 : vector<8x1xf32>
    %321 = math.sqrt %320 : vector<8x1xf32>
    %cst_145 = arith.constant 9.99999997E-7 : f32
    %322 = vector.broadcast %cst_145 : f32 to vector<8x1xf32>
    %323 = arith.addf %321, %322 : vector<8x1xf32>
    %324 = tpu.reciprocal %323 {approx = true} : vector<8x1xf32> -> vector<8x1xf32>
    %325 = vector.broadcast %313 : vector<8x1xf32> to vector<8x32xf32>
    %326 = arith.subf %305, %325 : vector<8x32xf32>
    %327 = vector.broadcast %307 : vector<1x32xf32> to vector<8x32xf32>
    %328 = arith.mulf %327, %326 : vector<8x32xf32>
    %329 = vector.broadcast %324 : vector<8x1xf32> to vector<8x32xf32>
    %330 = arith.mulf %328, %329 : vector<8x32xf32>
    %331 = vector.broadcast %309 : vector<1x32xf32> to vector<8x32xf32>
    %332 = arith.addf %330, %331 : vector<8x32xf32>
    %c1_146 = arith.constant 1 : index
    %c0_147 = arith.constant 0 : index
    %c0_148 = arith.constant 0 : index
    %333 = vector.load %arg6[%c1_146, %c0_147, %c0_148] : memref<2x32x96xf32, #tpu.memory_space<vmem>>, vector<1x32x96xf32>
    %334 = vector.shape_cast %333 : vector<1x32x96xf32> to vector<32x96xf32>
    %cst_149 = arith.constant dense<0.000000e+00> : vector<8x96xf32>
    %335 = tpu.matmul %332, %334, %cst_149 {dimension_numbers = #tpu.dot_dimension_numbers<[1], [0], [0], [1], [0, 0, 1, 1], [], []>} : vector<8x32xf32>, vector<32x96xf32>, vector<8x96xf32> -> vector<8x96xf32>
    %c1_150 = arith.constant 1 : index
    %c0_151 = arith.constant 0 : index
    %c0_152 = arith.constant 0 : index
    %336 = vector.load %arg7[%c1_150, %c0_151, %c0_152] : memref<2x1x96xf32, #tpu.memory_space<vmem>>, vector<1x1x96xf32>
    %337 = vector.shape_cast %336 : vector<1x1x96xf32> to vector<1x96xf32>
    %338 = vector.broadcast %337 : vector<1x96xf32> to vector<8x96xf32>
    %339 = arith.addf %335, %338 : vector<8x96xf32>
    %340 = vector.extract_strided_slice %339 {offsets = [0, 0], sizes = [8, 32], strides = [1, 1]} : vector<8x96xf32> to vector<8x32xf32>
    %341 = vector.extract_strided_slice %339 {offsets = [0, 32], sizes = [8, 32], strides = [1, 1]} : vector<8x96xf32> to vector<8x32xf32>
    %342 = vector.extract_strided_slice %339 {offsets = [0, 64], sizes = [8, 32], strides = [1, 1]} : vector<8x96xf32> to vector<8x32xf32>
    %343 = vector.extract_strided_slice %340 {offsets = [0, 0], sizes = [8, 8], strides = [1, 1]} : vector<8x32xf32> to vector<8x8xf32>
    %344 = vector.extract_strided_slice %341 {offsets = [0, 0], sizes = [8, 8], strides = [1, 1]} : vector<8x32xf32> to vector<8x8xf32>
    %345 = vector.extract_strided_slice %342 {offsets = [0, 0], sizes = [8, 8], strides = [1, 1]} : vector<8x32xf32> to vector<8x8xf32>
    %346 = tpu.transpose %344, [1, 0] : vector<8x8xf32> -> vector<8x8xf32>
    %cst_153 = arith.constant dense<0.000000e+00> : vector<8x8xf32>
    %347 = tpu.matmul %343, %346, %cst_153 {dimension_numbers = #tpu.dot_dimension_numbers<[1], [0], [0], [1], [0, 0, 1, 1], [], []>} : vector<8x8xf32>, vector<8x8xf32>, vector<8x8xf32> -> vector<8x8xf32>
    %cst_154 = arith.constant 0.353553385 : f32
    %348 = vector.broadcast %cst_154 : f32 to vector<8x8xf32>
    %349 = arith.mulf %347, %348 : vector<8x8xf32>
    %350 = arith.addf %349, %9 : vector<8x8xf32>
    %cst_155 = arith.constant dense<0xFF800000> : vector<8xf32>
    %351 = vector.multi_reduction <maximumf>, %350, %cst_155 [1] : vector<8x8xf32> to vector<8xf32>
    %352 = vector.shape_cast %351 : vector<8xf32> to vector<8x1xf32>
    %353 = vector.broadcast %352 : vector<8x1xf32> to vector<8x8xf32>
    %354 = arith.subf %350, %353 : vector<8x8xf32>
    %355 = math.exp %354 : vector<8x8xf32>
    %cst_156 = arith.constant dense<0.000000e+00> : vector<8xf32>
    %356 = vector.multi_reduction <add>, %355, %cst_156 [1] : vector<8x8xf32> to vector<8xf32>
    %357 = vector.shape_cast %356 : vector<8xf32> to vector<8x1xf32>
    %358 = tpu.reciprocal %357 {approx = true} : vector<8x1xf32> -> vector<8x1xf32>
    %359 = vector.broadcast %358 : vector<8x1xf32> to vector<8x8xf32>
    %360 = arith.mulf %355, %359 : vector<8x8xf32>
    %cst_157 = arith.constant dense<0.000000e+00> : vector<8x8xf32>
    %361 = tpu.matmul %360, %345, %cst_157 {dimension_numbers = #tpu.dot_dimension_numbers<[1], [0], [0], [1], [0, 0, 1, 1], [], []>} : vector<8x8xf32>, vector<8x8xf32>, vector<8x8xf32> -> vector<8x8xf32>
    %362 = vector.extract_strided_slice %340 {offsets = [0, 8], sizes = [8, 8], strides = [1, 1]} : vector<8x32xf32> to vector<8x8xf32>
    %363 = vector.extract_strided_slice %341 {offsets = [0, 8], sizes = [8, 8], strides = [1, 1]} : vector<8x32xf32> to vector<8x8xf32>
    %364 = vector.extract_strided_slice %342 {offsets = [0, 8], sizes = [8, 8], strides = [1, 1]} : vector<8x32xf32> to vector<8x8xf32>
    %365 = tpu.transpose %363, [1, 0] : vector<8x8xf32> -> vector<8x8xf32>
    %cst_158 = arith.constant dense<0.000000e+00> : vector<8x8xf32>
    %366 = tpu.matmul %362, %365, %cst_158 {dimension_numbers = #tpu.dot_dimension_numbers<[1], [0], [0], [1], [0, 0, 1, 1], [], []>} : vector<8x8xf32>, vector<8x8xf32>, vector<8x8xf32> -> vector<8x8xf32>
    %cst_159 = arith.constant 0.353553385 : f32
    %367 = vector.broadcast %cst_159 : f32 to vector<8x8xf32>
    %368 = arith.mulf %366, %367 : vector<8x8xf32>
    %369 = arith.addf %368, %9 : vector<8x8xf32>
    %cst_160 = arith.constant dense<0xFF800000> : vector<8xf32>
    %370 = vector.multi_reduction <maximumf>, %369, %cst_160 [1] : vector<8x8xf32> to vector<8xf32>
    %371 = vector.shape_cast %370 : vector<8xf32> to vector<8x1xf32>
    %372 = vector.broadcast %371 : vector<8x1xf32> to vector<8x8xf32>
    %373 = arith.subf %369, %372 : vector<8x8xf32>
    %374 = math.exp %373 : vector<8x8xf32>
    %cst_161 = arith.constant dense<0.000000e+00> : vector<8xf32>
    %375 = vector.multi_reduction <add>, %374, %cst_161 [1] : vector<8x8xf32> to vector<8xf32>
    %376 = vector.shape_cast %375 : vector<8xf32> to vector<8x1xf32>
    %377 = tpu.reciprocal %376 {approx = true} : vector<8x1xf32> -> vector<8x1xf32>
    %378 = vector.broadcast %377 : vector<8x1xf32> to vector<8x8xf32>
    %379 = arith.mulf %374, %378 : vector<8x8xf32>
    %cst_162 = arith.constant dense<0.000000e+00> : vector<8x8xf32>
    %380 = tpu.matmul %379, %364, %cst_162 {dimension_numbers = #tpu.dot_dimension_numbers<[1], [0], [0], [1], [0, 0, 1, 1], [], []>} : vector<8x8xf32>, vector<8x8xf32>, vector<8x8xf32> -> vector<8x8xf32>
    %381 = vector.extract_strided_slice %340 {offsets = [0, 16], sizes = [8, 8], strides = [1, 1]} : vector<8x32xf32> to vector<8x8xf32>
    %382 = vector.extract_strided_slice %341 {offsets = [0, 16], sizes = [8, 8], strides = [1, 1]} : vector<8x32xf32> to vector<8x8xf32>
    %383 = vector.extract_strided_slice %342 {offsets = [0, 16], sizes = [8, 8], strides = [1, 1]} : vector<8x32xf32> to vector<8x8xf32>
    %384 = tpu.transpose %382, [1, 0] : vector<8x8xf32> -> vector<8x8xf32>
    %cst_163 = arith.constant dense<0.000000e+00> : vector<8x8xf32>
    %385 = tpu.matmul %381, %384, %cst_163 {dimension_numbers = #tpu.dot_dimension_numbers<[1], [0], [0], [1], [0, 0, 1, 1], [], []>} : vector<8x8xf32>, vector<8x8xf32>, vector<8x8xf32> -> vector<8x8xf32>
    %cst_164 = arith.constant 0.353553385 : f32
    %386 = vector.broadcast %cst_164 : f32 to vector<8x8xf32>
    %387 = arith.mulf %385, %386 : vector<8x8xf32>
    %388 = arith.addf %387, %9 : vector<8x8xf32>
    %cst_165 = arith.constant dense<0xFF800000> : vector<8xf32>
    %389 = vector.multi_reduction <maximumf>, %388, %cst_165 [1] : vector<8x8xf32> to vector<8xf32>
    %390 = vector.shape_cast %389 : vector<8xf32> to vector<8x1xf32>
    %391 = vector.broadcast %390 : vector<8x1xf32> to vector<8x8xf32>
    %392 = arith.subf %388, %391 : vector<8x8xf32>
    %393 = math.exp %392 : vector<8x8xf32>
    %cst_166 = arith.constant dense<0.000000e+00> : vector<8xf32>
    %394 = vector.multi_reduction <add>, %393, %cst_166 [1] : vector<8x8xf32> to vector<8xf32>
    %395 = vector.shape_cast %394 : vector<8xf32> to vector<8x1xf32>
    %396 = tpu.reciprocal %395 {approx = true} : vector<8x1xf32> -> vector<8x1xf32>
    %397 = vector.broadcast %396 : vector<8x1xf32> to vector<8x8xf32>
    %398 = arith.mulf %393, %397 : vector<8x8xf32>
    %cst_167 = arith.constant dense<0.000000e+00> : vector<8x8xf32>
    %399 = tpu.matmul %398, %383, %cst_167 {dimension_numbers = #tpu.dot_dimension_numbers<[1], [0], [0], [1], [0, 0, 1, 1], [], []>} : vector<8x8xf32>, vector<8x8xf32>, vector<8x8xf32> -> vector<8x8xf32>
    %400 = vector.extract_strided_slice %340 {offsets = [0, 24], sizes = [8, 8], strides = [1, 1]} : vector<8x32xf32> to vector<8x8xf32>
    %401 = vector.extract_strided_slice %341 {offsets = [0, 24], sizes = [8, 8], strides = [1, 1]} : vector<8x32xf32> to vector<8x8xf32>
    %402 = vector.extract_strided_slice %342 {offsets = [0, 24], sizes = [8, 8], strides = [1, 1]} : vector<8x32xf32> to vector<8x8xf32>
    %403 = tpu.transpose %401, [1, 0] : vector<8x8xf32> -> vector<8x8xf32>
    %cst_168 = arith.constant dense<0.000000e+00> : vector<8x8xf32>
    %404 = tpu.matmul %400, %403, %cst_168 {dimension_numbers = #tpu.dot_dimension_numbers<[1], [0], [0], [1], [0, 0, 1, 1], [], []>} : vector<8x8xf32>, vector<8x8xf32>, vector<8x8xf32> -> vector<8x8xf32>
    %cst_169 = arith.constant 0.353553385 : f32
    %405 = vector.broadcast %cst_169 : f32 to vector<8x8xf32>
    %406 = arith.mulf %404, %405 : vector<8x8xf32>
    %407 = arith.addf %406, %9 : vector<8x8xf32>
    %cst_170 = arith.constant dense<0xFF800000> : vector<8xf32>
    %408 = vector.multi_reduction <maximumf>, %407, %cst_170 [1] : vector<8x8xf32> to vector<8xf32>
    %409 = vector.shape_cast %408 : vector<8xf32> to vector<8x1xf32>
    %410 = vector.broadcast %409 : vector<8x1xf32> to vector<8x8xf32>
    %411 = arith.subf %407, %410 : vector<8x8xf32>
    %412 = math.exp %411 : vector<8x8xf32>
    %cst_171 = arith.constant dense<0.000000e+00> : vector<8xf32>
    %413 = vector.multi_reduction <add>, %412, %cst_171 [1] : vector<8x8xf32> to vector<8xf32>
    %414 = vector.shape_cast %413 : vector<8xf32> to vector<8x1xf32>
    %415 = tpu.reciprocal %414 {approx = true} : vector<8x1xf32> -> vector<8x1xf32>
    %416 = vector.broadcast %415 : vector<8x1xf32> to vector<8x8xf32>
    %417 = arith.mulf %412, %416 : vector<8x8xf32>
    %cst_172 = arith.constant dense<0.000000e+00> : vector<8x8xf32>
    %418 = tpu.matmul %417, %402, %cst_172 {dimension_numbers = #tpu.dot_dimension_numbers<[1], [0], [0], [1], [0, 0, 1, 1], [], []>} : vector<8x8xf32>, vector<8x8xf32>, vector<8x8xf32> -> vector<8x8xf32>
    %419 = tpu.concatenate %361, %380, %399, %418 in 1 : vector<8x8xf32>, vector<8x8xf32>, vector<8x8xf32>, vector<8x8xf32> -> vector<8x32xf32>
    %c1_173 = arith.constant 1 : index
    %c0_174 = arith.constant 0 : index
    %c0_175 = arith.constant 0 : index
    %420 = vector.load %arg8[%c1_173, %c0_174, %c0_175] : memref<2x32x32xf32, #tpu.memory_space<vmem>>, vector<1x32x32xf32>
    %421 = vector.shape_cast %420 : vector<1x32x32xf32> to vector<32x32xf32>
    %cst_176 = arith.constant dense<0.000000e+00> : vector<8x32xf32>
    %422 = tpu.matmul %419, %421, %cst_176 {dimension_numbers = #tpu.dot_dimension_numbers<[1], [0], [0], [1], [0, 0, 1, 1], [], []>} : vector<8x32xf32>, vector<32x32xf32>, vector<8x32xf32> -> vector<8x32xf32>
    %423 = arith.addf %305, %422 : vector<8x32xf32>
    %c1_177 = arith.constant 1 : index
    %c0_178 = arith.constant 0 : index
    %c0_179 = arith.constant 0 : index
    %424 = vector.load %arg9[%c1_177, %c0_178, %c0_179] : memref<2x1x32xf32, #tpu.memory_space<vmem>>, vector<1x1x32xf32>
    %425 = vector.shape_cast %424 : vector<1x1x32xf32> to vector<1x32xf32>
    %426 = vector.broadcast %425 : vector<1x32xf32> to vector<8x32xf32>
    %427 = arith.addf %423, %426 : vector<8x32xf32>
    %c1_180 = arith.constant 1 : index
    %c0_181 = arith.constant 0 : index
    %c0_182 = arith.constant 0 : index
    %428 = vector.load %arg18[%c1_180, %c0_181, %c0_182] : memref<2x1x32xf32, #tpu.memory_space<vmem>>, vector<1x1x32xf32>
    %429 = vector.shape_cast %428 : vector<1x1x32xf32> to vector<1x32xf32>
    %c1_183 = arith.constant 1 : index
    %c0_184 = arith.constant 0 : index
    %c0_185 = arith.constant 0 : index
    %430 = vector.load %arg19[%c1_183, %c0_184, %c0_185] : memref<2x1x32xf32, #tpu.memory_space<vmem>>, vector<1x1x32xf32>
    %431 = vector.shape_cast %430 : vector<1x1x32xf32> to vector<1x32xf32>
    %cst_186 = arith.constant dense<0.000000e+00> : vector<8xf32>
    %432 = vector.multi_reduction <add>, %427, %cst_186 [1] : vector<8x32xf32> to vector<8xf32>
    %433 = vector.shape_cast %432 : vector<8xf32> to vector<8x1xf32>
    %cst_187 = arith.constant 3.200000e+01 : f32
    %434 = vector.broadcast %cst_187 : f32 to vector<8x1xf32>
    %435 = arith.divf %433, %434 : vector<8x1xf32>
    %436 = vector.broadcast %435 : vector<8x1xf32> to vector<8x32xf32>
    %437 = arith.subf %427, %436 : vector<8x32xf32>
    %438 = arith.mulf %437, %437 : vector<8x32xf32>
    %cst_188 = arith.constant dense<0.000000e+00> : vector<8xf32>
    %439 = vector.multi_reduction <add>, %438, %cst_188 [1] : vector<8x32xf32> to vector<8xf32>
    %440 = vector.shape_cast %439 : vector<8xf32> to vector<8x1xf32>
    %cst_189 = arith.constant 0.0322580636 : f32
    %441 = vector.broadcast %cst_189 : f32 to vector<8x1xf32>
    %442 = arith.mulf %440, %441 : vector<8x1xf32>
    %443 = math.sqrt %442 : vector<8x1xf32>
    %cst_190 = arith.constant 9.99999997E-7 : f32
    %444 = vector.broadcast %cst_190 : f32 to vector<8x1xf32>
    %445 = arith.addf %443, %444 : vector<8x1xf32>
    %446 = tpu.reciprocal %445 {approx = true} : vector<8x1xf32> -> vector<8x1xf32>
    %447 = vector.broadcast %435 : vector<8x1xf32> to vector<8x32xf32>
    %448 = arith.subf %427, %447 : vector<8x32xf32>
    %449 = vector.broadcast %429 : vector<1x32xf32> to vector<8x32xf32>
    %450 = arith.mulf %449, %448 : vector<8x32xf32>
    %451 = vector.broadcast %446 : vector<8x1xf32> to vector<8x32xf32>
    %452 = arith.mulf %450, %451 : vector<8x32xf32>
    %453 = vector.broadcast %431 : vector<1x32xf32> to vector<8x32xf32>
    %454 = arith.addf %452, %453 : vector<8x32xf32>
    %c1_191 = arith.constant 1 : index
    %c0_192 = arith.constant 0 : index
    %c0_193 = arith.constant 0 : index
    %455 = vector.load %arg12[%c1_191, %c0_192, %c0_193] : memref<2x32x32xf32, #tpu.memory_space<vmem>>, vector<1x32x32xf32>
    %456 = vector.shape_cast %455 : vector<1x32x32xf32> to vector<32x32xf32>
    %cst_194 = arith.constant dense<0.000000e+00> : vector<8x32xf32>
    %457 = tpu.matmul %454, %456, %cst_194 {dimension_numbers = #tpu.dot_dimension_numbers<[1], [0], [0], [1], [0, 0, 1, 1], [], []>} : vector<8x32xf32>, vector<32x32xf32>, vector<8x32xf32> -> vector<8x32xf32>
    %c1_195 = arith.constant 1 : index
    %c0_196 = arith.constant 0 : index
    %c0_197 = arith.constant 0 : index
    %458 = vector.load %arg13[%c1_195, %c0_196, %c0_197] : memref<2x1x32xf32, #tpu.memory_space<vmem>>, vector<1x1x32xf32>
    %459 = vector.shape_cast %458 : vector<1x1x32xf32> to vector<1x32xf32>
    %460 = vector.broadcast %459 : vector<1x32xf32> to vector<8x32xf32>
    %461 = arith.addf %457, %460 : vector<8x32xf32>
    %c1_198 = arith.constant 1 : index
    %c0_199 = arith.constant 0 : index
    %c0_200 = arith.constant 0 : index
    %462 = vector.load %arg14[%c1_198, %c0_199, %c0_200] : memref<2x32x64xf32, #tpu.memory_space<vmem>>, vector<1x32x64xf32>
    %463 = vector.shape_cast %462 : vector<1x32x64xf32> to vector<32x64xf32>
    %cst_201 = arith.constant dense<0.000000e+00> : vector<8x64xf32>
    %464 = tpu.matmul %7, %463, %cst_201 {dimension_numbers = #tpu.dot_dimension_numbers<[1], [0], [0], [1], [0, 0, 1, 1], [], []>} : vector<8x32xf32>, vector<32x64xf32>, vector<8x64xf32> -> vector<8x64xf32>
    %c1_202 = arith.constant 1 : index
    %c0_203 = arith.constant 0 : index
    %c0_204 = arith.constant 0 : index
    %465 = vector.load %arg15[%c1_202, %c0_203, %c0_204] : memref<2x1x64xf32, #tpu.memory_space<vmem>>, vector<1x1x64xf32>
    %466 = vector.shape_cast %465 : vector<1x1x64xf32> to vector<1x64xf32>
    %467 = vector.broadcast %466 : vector<1x64xf32> to vector<8x64xf32>
    %468 = arith.addf %464, %467 : vector<8x64xf32>
    %469 = vector.extract_strided_slice %468 {offsets = [0, 0], sizes = [8, 32], strides = [1, 1]} : vector<8x64xf32> to vector<8x32xf32>
    %470 = vector.extract_strided_slice %468 {offsets = [0, 32], sizes = [8, 32], strides = [1, 1]} : vector<8x64xf32> to vector<8x32xf32>
    %471 = vector.extract_strided_slice %461 {offsets = [0, 0], sizes = [8, 8], strides = [1, 1]} : vector<8x32xf32> to vector<8x8xf32>
    %472 = vector.extract_strided_slice %469 {offsets = [0, 0], sizes = [8, 8], strides = [1, 1]} : vector<8x32xf32> to vector<8x8xf32>
    %473 = vector.extract_strided_slice %470 {offsets = [0, 0], sizes = [8, 8], strides = [1, 1]} : vector<8x32xf32> to vector<8x8xf32>
    %474 = tpu.transpose %472, [1, 0] : vector<8x8xf32> -> vector<8x8xf32>
    %cst_205 = arith.constant dense<0.000000e+00> : vector<8x8xf32>
    %475 = tpu.matmul %471, %474, %cst_205 {dimension_numbers = #tpu.dot_dimension_numbers<[1], [0], [0], [1], [0, 0, 1, 1], [], []>} : vector<8x8xf32>, vector<8x8xf32>, vector<8x8xf32> -> vector<8x8xf32>
    %cst_206 = arith.constant 0.353553385 : f32
    %476 = vector.broadcast %cst_206 : f32 to vector<8x8xf32>
    %477 = arith.mulf %475, %476 : vector<8x8xf32>
    %478 = arith.addf %477, %11 : vector<8x8xf32>
    %cst_207 = arith.constant dense<0xFF800000> : vector<8xf32>
    %479 = vector.multi_reduction <maximumf>, %478, %cst_207 [1] : vector<8x8xf32> to vector<8xf32>
    %480 = vector.shape_cast %479 : vector<8xf32> to vector<8x1xf32>
    %481 = vector.broadcast %480 : vector<8x1xf32> to vector<8x8xf32>
    %482 = arith.subf %478, %481 : vector<8x8xf32>
    %483 = math.exp %482 : vector<8x8xf32>
    %cst_208 = arith.constant dense<0.000000e+00> : vector<8xf32>
    %484 = vector.multi_reduction <add>, %483, %cst_208 [1] : vector<8x8xf32> to vector<8xf32>
    %485 = vector.shape_cast %484 : vector<8xf32> to vector<8x1xf32>
    %486 = tpu.reciprocal %485 {approx = true} : vector<8x1xf32> -> vector<8x1xf32>
    %487 = vector.broadcast %486 : vector<8x1xf32> to vector<8x8xf32>
    %488 = arith.mulf %483, %487 : vector<8x8xf32>
    %cst_209 = arith.constant dense<0.000000e+00> : vector<8x8xf32>
    %489 = tpu.matmul %488, %473, %cst_209 {dimension_numbers = #tpu.dot_dimension_numbers<[1], [0], [0], [1], [0, 0, 1, 1], [], []>} : vector<8x8xf32>, vector<8x8xf32>, vector<8x8xf32> -> vector<8x8xf32>
    %490 = vector.extract_strided_slice %461 {offsets = [0, 8], sizes = [8, 8], strides = [1, 1]} : vector<8x32xf32> to vector<8x8xf32>
    %491 = vector.extract_strided_slice %469 {offsets = [0, 8], sizes = [8, 8], strides = [1, 1]} : vector<8x32xf32> to vector<8x8xf32>
    %492 = vector.extract_strided_slice %470 {offsets = [0, 8], sizes = [8, 8], strides = [1, 1]} : vector<8x32xf32> to vector<8x8xf32>
    %493 = tpu.transpose %491, [1, 0] : vector<8x8xf32> -> vector<8x8xf32>
    %cst_210 = arith.constant dense<0.000000e+00> : vector<8x8xf32>
    %494 = tpu.matmul %490, %493, %cst_210 {dimension_numbers = #tpu.dot_dimension_numbers<[1], [0], [0], [1], [0, 0, 1, 1], [], []>} : vector<8x8xf32>, vector<8x8xf32>, vector<8x8xf32> -> vector<8x8xf32>
    %cst_211 = arith.constant 0.353553385 : f32
    %495 = vector.broadcast %cst_211 : f32 to vector<8x8xf32>
    %496 = arith.mulf %494, %495 : vector<8x8xf32>
    %497 = arith.addf %496, %11 : vector<8x8xf32>
    %cst_212 = arith.constant dense<0xFF800000> : vector<8xf32>
    %498 = vector.multi_reduction <maximumf>, %497, %cst_212 [1] : vector<8x8xf32> to vector<8xf32>
    %499 = vector.shape_cast %498 : vector<8xf32> to vector<8x1xf32>
    %500 = vector.broadcast %499 : vector<8x1xf32> to vector<8x8xf32>
    %501 = arith.subf %497, %500 : vector<8x8xf32>
    %502 = math.exp %501 : vector<8x8xf32>
    %cst_213 = arith.constant dense<0.000000e+00> : vector<8xf32>
    %503 = vector.multi_reduction <add>, %502, %cst_213 [1] : vector<8x8xf32> to vector<8xf32>
    %504 = vector.shape_cast %503 : vector<8xf32> to vector<8x1xf32>
    %505 = tpu.reciprocal %504 {approx = true} : vector<8x1xf32> -> vector<8x1xf32>
    %506 = vector.broadcast %505 : vector<8x1xf32> to vector<8x8xf32>
    %507 = arith.mulf %502, %506 : vector<8x8xf32>
    %cst_214 = arith.constant dense<0.000000e+00> : vector<8x8xf32>
    %508 = tpu.matmul %507, %492, %cst_214 {dimension_numbers = #tpu.dot_dimension_numbers<[1], [0], [0], [1], [0, 0, 1, 1], [], []>} : vector<8x8xf32>, vector<8x8xf32>, vector<8x8xf32> -> vector<8x8xf32>
    %509 = vector.extract_strided_slice %461 {offsets = [0, 16], sizes = [8, 8], strides = [1, 1]} : vector<8x32xf32> to vector<8x8xf32>
    %510 = vector.extract_strided_slice %469 {offsets = [0, 16], sizes = [8, 8], strides = [1, 1]} : vector<8x32xf32> to vector<8x8xf32>
    %511 = vector.extract_strided_slice %470 {offsets = [0, 16], sizes = [8, 8], strides = [1, 1]} : vector<8x32xf32> to vector<8x8xf32>
    %512 = tpu.transpose %510, [1, 0] : vector<8x8xf32> -> vector<8x8xf32>
    %cst_215 = arith.constant dense<0.000000e+00> : vector<8x8xf32>
    %513 = tpu.matmul %509, %512, %cst_215 {dimension_numbers = #tpu.dot_dimension_numbers<[1], [0], [0], [1], [0, 0, 1, 1], [], []>} : vector<8x8xf32>, vector<8x8xf32>, vector<8x8xf32> -> vector<8x8xf32>
    %cst_216 = arith.constant 0.353553385 : f32
    %514 = vector.broadcast %cst_216 : f32 to vector<8x8xf32>
    %515 = arith.mulf %513, %514 : vector<8x8xf32>
    %516 = arith.addf %515, %11 : vector<8x8xf32>
    %cst_217 = arith.constant dense<0xFF800000> : vector<8xf32>
    %517 = vector.multi_reduction <maximumf>, %516, %cst_217 [1] : vector<8x8xf32> to vector<8xf32>
    %518 = vector.shape_cast %517 : vector<8xf32> to vector<8x1xf32>
    %519 = vector.broadcast %518 : vector<8x1xf32> to vector<8x8xf32>
    %520 = arith.subf %516, %519 : vector<8x8xf32>
    %521 = math.exp %520 : vector<8x8xf32>
    %cst_218 = arith.constant dense<0.000000e+00> : vector<8xf32>
    %522 = vector.multi_reduction <add>, %521, %cst_218 [1] : vector<8x8xf32> to vector<8xf32>
    %523 = vector.shape_cast %522 : vector<8xf32> to vector<8x1xf32>
    %524 = tpu.reciprocal %523 {approx = true} : vector<8x1xf32> -> vector<8x1xf32>
    %525 = vector.broadcast %524 : vector<8x1xf32> to vector<8x8xf32>
    %526 = arith.mulf %521, %525 : vector<8x8xf32>
    %cst_219 = arith.constant dense<0.000000e+00> : vector<8x8xf32>
    %527 = tpu.matmul %526, %511, %cst_219 {dimension_numbers = #tpu.dot_dimension_numbers<[1], [0], [0], [1], [0, 0, 1, 1], [], []>} : vector<8x8xf32>, vector<8x8xf32>, vector<8x8xf32> -> vector<8x8xf32>
    %528 = vector.extract_strided_slice %461 {offsets = [0, 24], sizes = [8, 8], strides = [1, 1]} : vector<8x32xf32> to vector<8x8xf32>
    %529 = vector.extract_strided_slice %469 {offsets = [0, 24], sizes = [8, 8], strides = [1, 1]} : vector<8x32xf32> to vector<8x8xf32>
    %530 = vector.extract_strided_slice %470 {offsets = [0, 24], sizes = [8, 8], strides = [1, 1]} : vector<8x32xf32> to vector<8x8xf32>
    %531 = tpu.transpose %529, [1, 0] : vector<8x8xf32> -> vector<8x8xf32>
    %cst_220 = arith.constant dense<0.000000e+00> : vector<8x8xf32>
    %532 = tpu.matmul %528, %531, %cst_220 {dimension_numbers = #tpu.dot_dimension_numbers<[1], [0], [0], [1], [0, 0, 1, 1], [], []>} : vector<8x8xf32>, vector<8x8xf32>, vector<8x8xf32> -> vector<8x8xf32>
    %cst_221 = arith.constant 0.353553385 : f32
    %533 = vector.broadcast %cst_221 : f32 to vector<8x8xf32>
    %534 = arith.mulf %532, %533 : vector<8x8xf32>
    %535 = arith.addf %534, %11 : vector<8x8xf32>
    %cst_222 = arith.constant dense<0xFF800000> : vector<8xf32>
    %536 = vector.multi_reduction <maximumf>, %535, %cst_222 [1] : vector<8x8xf32> to vector<8xf32>
    %537 = vector.shape_cast %536 : vector<8xf32> to vector<8x1xf32>
    %538 = vector.broadcast %537 : vector<8x1xf32> to vector<8x8xf32>
    %539 = arith.subf %535, %538 : vector<8x8xf32>
    %540 = math.exp %539 : vector<8x8xf32>
    %cst_223 = arith.constant dense<0.000000e+00> : vector<8xf32>
    %541 = vector.multi_reduction <add>, %540, %cst_223 [1] : vector<8x8xf32> to vector<8xf32>
    %542 = vector.shape_cast %541 : vector<8xf32> to vector<8x1xf32>
    %543 = tpu.reciprocal %542 {approx = true} : vector<8x1xf32> -> vector<8x1xf32>
    %544 = vector.broadcast %543 : vector<8x1xf32> to vector<8x8xf32>
    %545 = arith.mulf %540, %544 : vector<8x8xf32>
    %cst_224 = arith.constant dense<0.000000e+00> : vector<8x8xf32>
    %546 = tpu.matmul %545, %530, %cst_224 {dimension_numbers = #tpu.dot_dimension_numbers<[1], [0], [0], [1], [0, 0, 1, 1], [], []>} : vector<8x8xf32>, vector<8x8xf32>, vector<8x8xf32> -> vector<8x8xf32>
    %547 = tpu.concatenate %489, %508, %527, %546 in 1 : vector<8x8xf32>, vector<8x8xf32>, vector<8x8xf32>, vector<8x8xf32> -> vector<8x32xf32>
    %c1_225 = arith.constant 1 : index
    %c0_226 = arith.constant 0 : index
    %c0_227 = arith.constant 0 : index
    %548 = vector.load %arg16[%c1_225, %c0_226, %c0_227] : memref<2x32x32xf32, #tpu.memory_space<vmem>>, vector<1x32x32xf32>
    %549 = vector.shape_cast %548 : vector<1x32x32xf32> to vector<32x32xf32>
    %cst_228 = arith.constant dense<0.000000e+00> : vector<8x32xf32>
    %550 = tpu.matmul %547, %549, %cst_228 {dimension_numbers = #tpu.dot_dimension_numbers<[1], [0], [0], [1], [0, 0, 1, 1], [], []>} : vector<8x32xf32>, vector<32x32xf32>, vector<8x32xf32> -> vector<8x32xf32>
    %551 = arith.addf %427, %550 : vector<8x32xf32>
    %c1_229 = arith.constant 1 : index
    %c0_230 = arith.constant 0 : index
    %c0_231 = arith.constant 0 : index
    %552 = vector.load %arg17[%c1_229, %c0_230, %c0_231] : memref<2x1x32xf32, #tpu.memory_space<vmem>>, vector<1x1x32xf32>
    %553 = vector.shape_cast %552 : vector<1x1x32xf32> to vector<1x32xf32>
    %554 = vector.broadcast %553 : vector<1x32xf32> to vector<8x32xf32>
    %555 = arith.addf %551, %554 : vector<8x32xf32>
    %c1_232 = arith.constant 1 : index
    %c0_233 = arith.constant 0 : index
    %c0_234 = arith.constant 0 : index
    %556 = vector.load %arg24[%c1_232, %c0_233, %c0_234] : memref<2x1x32xf32, #tpu.memory_space<vmem>>, vector<1x1x32xf32>
    %557 = vector.shape_cast %556 : vector<1x1x32xf32> to vector<1x32xf32>
    %c1_235 = arith.constant 1 : index
    %c0_236 = arith.constant 0 : index
    %c0_237 = arith.constant 0 : index
    %558 = vector.load %arg25[%c1_235, %c0_236, %c0_237] : memref<2x1x32xf32, #tpu.memory_space<vmem>>, vector<1x1x32xf32>
    %559 = vector.shape_cast %558 : vector<1x1x32xf32> to vector<1x32xf32>
    %cst_238 = arith.constant dense<0.000000e+00> : vector<8xf32>
    %560 = vector.multi_reduction <add>, %555, %cst_238 [1] : vector<8x32xf32> to vector<8xf32>
    %561 = vector.shape_cast %560 : vector<8xf32> to vector<8x1xf32>
    %cst_239 = arith.constant 3.200000e+01 : f32
    %562 = vector.broadcast %cst_239 : f32 to vector<8x1xf32>
    %563 = arith.divf %561, %562 : vector<8x1xf32>
    %564 = vector.broadcast %563 : vector<8x1xf32> to vector<8x32xf32>
    %565 = arith.subf %555, %564 : vector<8x32xf32>
    %566 = arith.mulf %565, %565 : vector<8x32xf32>
    %cst_240 = arith.constant dense<0.000000e+00> : vector<8xf32>
    %567 = vector.multi_reduction <add>, %566, %cst_240 [1] : vector<8x32xf32> to vector<8xf32>
    %568 = vector.shape_cast %567 : vector<8xf32> to vector<8x1xf32>
    %cst_241 = arith.constant 0.0322580636 : f32
    %569 = vector.broadcast %cst_241 : f32 to vector<8x1xf32>
    %570 = arith.mulf %568, %569 : vector<8x1xf32>
    %571 = math.sqrt %570 : vector<8x1xf32>
    %cst_242 = arith.constant 9.99999997E-7 : f32
    %572 = vector.broadcast %cst_242 : f32 to vector<8x1xf32>
    %573 = arith.addf %571, %572 : vector<8x1xf32>
    %574 = tpu.reciprocal %573 {approx = true} : vector<8x1xf32> -> vector<8x1xf32>
    %575 = vector.broadcast %563 : vector<8x1xf32> to vector<8x32xf32>
    %576 = arith.subf %555, %575 : vector<8x32xf32>
    %577 = vector.broadcast %557 : vector<1x32xf32> to vector<8x32xf32>
    %578 = arith.mulf %577, %576 : vector<8x32xf32>
    %579 = vector.broadcast %574 : vector<8x1xf32> to vector<8x32xf32>
    %580 = arith.mulf %578, %579 : vector<8x32xf32>
    %581 = vector.broadcast %559 : vector<1x32xf32> to vector<8x32xf32>
    %582 = arith.addf %580, %581 : vector<8x32xf32>
    %c1_243 = arith.constant 1 : index
    %c0_244 = arith.constant 0 : index
    %c0_245 = arith.constant 0 : index
    %583 = vector.load %arg20[%c1_243, %c0_244, %c0_245] : memref<2x32x64xf32, #tpu.memory_space<vmem>>, vector<1x32x64xf32>
    %584 = vector.shape_cast %583 : vector<1x32x64xf32> to vector<32x64xf32>
    %cst_246 = arith.constant dense<0.000000e+00> : vector<8x64xf32>
    %585 = tpu.matmul %582, %584, %cst_246 {dimension_numbers = #tpu.dot_dimension_numbers<[1], [0], [0], [1], [0, 0, 1, 1], [], []>} : vector<8x32xf32>, vector<32x64xf32>, vector<8x64xf32> -> vector<8x64xf32>
    %c1_247 = arith.constant 1 : index
    %c0_248 = arith.constant 0 : index
    %c0_249 = arith.constant 0 : index
    %586 = vector.load %arg21[%c1_247, %c0_248, %c0_249] : memref<2x1x64xf32, #tpu.memory_space<vmem>>, vector<1x1x64xf32>
    %587 = vector.shape_cast %586 : vector<1x1x64xf32> to vector<1x64xf32>
    %588 = vector.broadcast %587 : vector<1x64xf32> to vector<8x64xf32>
    %589 = arith.addf %585, %588 : vector<8x64xf32>
    %cst_250 = arith.constant 0.000000e+00 : f32
    %590 = vector.broadcast %cst_250 : f32 to vector<8x64xf32>
    %591 = arith.maximumf %589, %590 : vector<8x64xf32>
    %c1_251 = arith.constant 1 : index
    %c0_252 = arith.constant 0 : index
    %c0_253 = arith.constant 0 : index
    %592 = vector.load %arg22[%c1_251, %c0_252, %c0_253] : memref<2x64x32xf32, #tpu.memory_space<vmem>>, vector<1x64x32xf32>
    %593 = vector.shape_cast %592 : vector<1x64x32xf32> to vector<64x32xf32>
    %cst_254 = arith.constant dense<0.000000e+00> : vector<8x32xf32>
    %594 = tpu.matmul %591, %593, %cst_254 {dimension_numbers = #tpu.dot_dimension_numbers<[1], [0], [0], [1], [0, 0, 1, 1], [], []>} : vector<8x64xf32>, vector<64x32xf32>, vector<8x32xf32> -> vector<8x32xf32>
    %595 = arith.addf %555, %594 : vector<8x32xf32>
    %c1_255 = arith.constant 1 : index
    %c0_256 = arith.constant 0 : index
    %c0_257 = arith.constant 0 : index
    %596 = vector.load %arg23[%c1_255, %c0_256, %c0_257] : memref<2x1x32xf32, #tpu.memory_space<vmem>>, vector<1x1x32xf32>
    %597 = vector.shape_cast %596 : vector<1x1x32xf32> to vector<1x32xf32>
    %598 = vector.broadcast %597 : vector<1x32xf32> to vector<8x32xf32>
    %599 = arith.addf %595, %598 : vector<8x32xf32>
    %c0_258 = arith.constant 0 : index
    %c0_259 = arith.constant 0 : index
    %600 = vector.load %arg26[%c0_258, %c0_259] : memref<1x32xf32, #tpu.memory_space<vmem>>, vector<1x32xf32>
    %c0_260 = arith.constant 0 : index
    %c0_261 = arith.constant 0 : index
    %601 = vector.load %arg27[%c0_260, %c0_261] : memref<1x32xf32, #tpu.memory_space<vmem>>, vector<1x32xf32>
    %cst_262 = arith.constant dense<0.000000e+00> : vector<8xf32>
    %602 = vector.multi_reduction <add>, %599, %cst_262 [1] : vector<8x32xf32> to vector<8xf32>
    %603 = vector.shape_cast %602 : vector<8xf32> to vector<8x1xf32>
    %cst_263 = arith.constant 3.200000e+01 : f32
    %604 = vector.broadcast %cst_263 : f32 to vector<8x1xf32>
    %605 = arith.divf %603, %604 : vector<8x1xf32>
    %606 = vector.broadcast %605 : vector<8x1xf32> to vector<8x32xf32>
    %607 = arith.subf %599, %606 : vector<8x32xf32>
    %608 = arith.mulf %607, %607 : vector<8x32xf32>
    %cst_264 = arith.constant dense<0.000000e+00> : vector<8xf32>
    %609 = vector.multi_reduction <add>, %608, %cst_264 [1] : vector<8x32xf32> to vector<8xf32>
    %610 = vector.shape_cast %609 : vector<8xf32> to vector<8x1xf32>
    %cst_265 = arith.constant 0.0322580636 : f32
    %611 = vector.broadcast %cst_265 : f32 to vector<8x1xf32>
    %612 = arith.mulf %610, %611 : vector<8x1xf32>
    %613 = math.sqrt %612 : vector<8x1xf32>
    %cst_266 = arith.constant 9.99999997E-7 : f32
    %614 = vector.broadcast %cst_266 : f32 to vector<8x1xf32>
    %615 = arith.addf %613, %614 : vector<8x1xf32>
    %616 = tpu.reciprocal %615 {approx = true} : vector<8x1xf32> -> vector<8x1xf32>
    %617 = vector.broadcast %605 : vector<8x1xf32> to vector<8x32xf32>
    %618 = arith.subf %599, %617 : vector<8x32xf32>
    %619 = vector.broadcast %600 : vector<1x32xf32> to vector<8x32xf32>
    %620 = arith.mulf %619, %618 : vector<8x32xf32>
    %621 = vector.broadcast %616 : vector<8x1xf32> to vector<8x32xf32>
    %622 = arith.mulf %620, %621 : vector<8x32xf32>
    %623 = vector.broadcast %601 : vector<1x32xf32> to vector<8x32xf32>
    %624 = arith.addf %622, %623 : vector<8x32xf32>
    %c0_267 = arith.constant 0 : index
    %c0_268 = arith.constant 0 : index
    %c0_269 = arith.constant 0 : index
    %625 = vector.load %arg28[%c0_267, %c0_268, %c0_269] : memref<1x8x32xf32, #tpu.memory_space<vmem>>, vector<1x8x32xf32>
    %626 = vector.shape_cast %625 : vector<1x8x32xf32> to vector<8x32xf32>
    %627 = vector.shape_cast %624 : vector<8x32xf32> to vector<1x8x32xf32>
    tpu.vector_store %arg28[%c0_267, %c0_268, %c0_269], %627 {strides = array<i32>} : memref<1x8x32xf32, #tpu.memory_space<vmem>>, vector<1x8x32xf32>,
    return
  }
  func.func @transform_0(%arg0: i32) -> (i32, i32, i32) {
    %c0_i32 = arith.constant 0 : i32
    %c0_i32_0 = arith.constant 0 : i32
    %c0_i32_1 = arith.constant 0 : i32
    return %arg0, %c0_i32, %c0_i32_0 : i32, i32, i32
  }
  func.func @transform_1(%arg0: i32) -> (i32, i32) {
    %c0_i32 = arith.constant 0 : i32
    %c0_i32_0 = arith.constant 0 : i32
    %c0_i32_1 = arith.constant 0 : i32
    return %c0_i32, %c0_i32_0 : i32, i32
  }
  func.func @transform_2(%arg0: i32) -> (i32, i32, i32) {
    %c0_i32 = arith.constant 0 : i32
    %c0_i32_0 = arith.constant 0 : i32
    %c0_i32_1 = arith.constant 0 : i32
    return %arg0, %c0_i32, %c0_i32_0 : i32, i32, i32
  }
  func.func @transform_3(%arg0: i32) -> (i32, i32, i32) {
    %c0_i32 = arith.constant 0 : i32
    %c0_i32_0 = arith.constant 0 : i32
    %c0_i32_1 = arith.constant 0 : i32
    return %arg0, %c0_i32, %c0_i32_0 : i32, i32, i32
  }
  func.func @transform_4(%arg0: i32) -> (i32, i32, i32) {
    %c0_i32 = arith.constant 0 : i32
    %c0_i32_0 = arith.constant 0 : i32
    %c0_i32_1 = arith.constant 0 : i32
    return %arg0, %c0_i32, %c0_i32_0 : i32, i32, i32
  }
  func.func @transform_5(%arg0: i32) -> (i32, i32, i32) {
    %c0_i32 = arith.constant 0 : i32
    %c0_i32_0 = arith.constant 0 : i32
    %c0_i32_1 = arith.constant 0 : i32
    %c0_i32_2 = arith.constant 0 : i32
    return %c0_i32, %c0_i32_0, %c0_i32_1 : i32, i32, i32
  }
  func.func @transform_6(%arg0: i32) -> (i32, i32, i32) {
    %c0_i32 = arith.constant 0 : i32
    %c0_i32_0 = arith.constant 0 : i32
    %c0_i32_1 = arith.constant 0 : i32
    %c0_i32_2 = arith.constant 0 : i32
    return %c0_i32, %c0_i32_0, %c0_i32_1 : i32, i32, i32
  }
  func.func @transform_7(%arg0: i32) -> (i32, i32, i32) {
    %c0_i32 = arith.constant 0 : i32
    %c0_i32_0 = arith.constant 0 : i32
    %c0_i32_1 = arith.constant 0 : i32
    %c0_i32_2 = arith.constant 0 : i32
    return %c0_i32, %c0_i32_0, %c0_i32_1 : i32, i32, i32
  }
  func.func @transform_8(%arg0: i32) -> (i32, i32, i32) {
    %c0_i32 = arith.constant 0 : i32
    %c0_i32_0 = arith.constant 0 : i32
    %c0_i32_1 = arith.constant 0 : i32
    %c0_i32_2 = arith.constant 0 : i32
    return %c0_i32, %c0_i32_0, %c0_i32_1 : i32, i32, i32
  }
  func.func @transform_9(%arg0: i32) -> (i32, i32, i32) {
    %c0_i32 = arith.constant 0 : i32
    %c0_i32_0 = arith.constant 0 : i32
    %c0_i32_1 = arith.constant 0 : i32
    %c0_i32_2 = arith.constant 0 : i32
    return %c0_i32, %c0_i32_0, %c0_i32_1 : i32, i32, i32
  }
  func.func @transform_10(%arg0: i32) -> (i32, i32, i32) {
    %c0_i32 = arith.constant 0 : i32
    %c0_i32_0 = arith.constant 0 : i32
    %c0_i32_1 = arith.constant 0 : i32
    %c0_i32_2 = arith.constant 0 : i32
    return %c0_i32, %c0_i32_0, %c0_i32_1 : i32, i32, i32
  }
  func.func @transform_11(%arg0: i32) -> (i32, i32, i32) {
    %c0_i32 = arith.constant 0 : i32
    %c0_i32_0 = arith.constant 0 : i32
    %c0_i32_1 = arith.constant 0 : i32
    %c0_i32_2 = arith.constant 0 : i32
    return %c0_i32, %c0_i32_0, %c0_i32_1 : i32, i32, i32
  }
  func.func @transform_12(%arg0: i32) -> (i32, i32, i32) {
    %c0_i32 = arith.constant 0 : i32
    %c0_i32_0 = arith.constant 0 : i32
    %c0_i32_1 = arith.constant 0 : i32
    %c0_i32_2 = arith.constant 0 : i32
    return %c0_i32, %c0_i32_0, %c0_i32_1 : i32, i32, i32
  }
  func.func @transform_13(%arg0: i32) -> (i32, i32, i32) {
    %c0_i32 = arith.constant 0 : i32
    %c0_i32_0 = arith.constant 0 : i32
    %c0_i32_1 = arith.constant 0 : i32
    %c0_i32_2 = arith.constant 0 : i32
    return %c0_i32, %c0_i32_0, %c0_i32_1 : i32, i32, i32
  }
  func.func @transform_14(%arg0: i32) -> (i32, i32, i32) {
    %c0_i32 = arith.constant 0 : i32
    %c0_i32_0 = arith.constant 0 : i32
    %c0_i32_1 = arith.constant 0 : i32
    %c0_i32_2 = arith.constant 0 : i32
    return %c0_i32, %c0_i32_0, %c0_i32_1 : i32, i32, i32
  }
  func.func @transform_15(%arg0: i32) -> (i32, i32, i32) {
    %c0_i32 = arith.constant 0 : i32
    %c0_i32_0 = arith.constant 0 : i32
    %c0_i32_1 = arith.constant 0 : i32
    %c0_i32_2 = arith.constant 0 : i32
    return %c0_i32, %c0_i32_0, %c0_i32_1 : i32, i32, i32
  }
  func.func @transform_16(%arg0: i32) -> (i32, i32, i32) {
    %c0_i32 = arith.constant 0 : i32
    %c0_i32_0 = arith.constant 0 : i32
    %c0_i32_1 = arith.constant 0 : i32
    %c0_i32_2 = arith.constant 0 : i32
    return %c0_i32, %c0_i32_0, %c0_i32_1 : i32, i32, i32
  }
  func.func @transform_17(%arg0: i32) -> (i32, i32, i32) {
    %c0_i32 = arith.constant 0 : i32
    %c0_i32_0 = arith.constant 0 : i32
    %c0_i32_1 = arith.constant 0 : i32
    %c0_i32_2 = arith.constant 0 : i32
    return %c0_i32, %c0_i32_0, %c0_i32_1 : i32, i32, i32
  }
  func.func @transform_18(%arg0: i32) -> (i32, i32, i32) {
    %c0_i32 = arith.constant 0 : i32
    %c0_i32_0 = arith.constant 0 : i32
    %c0_i32_1 = arith.constant 0 : i32
    %c0_i32_2 = arith.constant 0 : i32
    return %c0_i32, %c0_i32_0, %c0_i32_1 : i32, i32, i32
  }
  func.func @transform_19(%arg0: i32) -> (i32, i32, i32) {
    %c0_i32 = arith.constant 0 : i32
    %c0_i32_0 = arith.constant 0 : i32
    %c0_i32_1 = arith.constant 0 : i32
    %c0_i32_2 = arith.constant 0 : i32
    return %c0_i32, %c0_i32_0, %c0_i32_1 : i32, i32, i32
  }
  func.func @transform_20(%arg0: i32) -> (i32, i32, i32) {
    %c0_i32 = arith.constant 0 : i32
    %c0_i32_0 = arith.constant 0 : i32
    %c0_i32_1 = arith.constant 0 : i32
    %c0_i32_2 = arith.constant 0 : i32
    return %c0_i32, %c0_i32_0, %c0_i32_1 : i32, i32, i32
  }
  func.func @transform_21(%arg0: i32) -> (i32, i32, i32) {
    %c0_i32 = arith.constant 0 : i32
    %c0_i32_0 = arith.constant 0 : i32
    %c0_i32_1 = arith.constant 0 : i32
    %c0_i32_2 = arith.constant 0 : i32
    return %c0_i32, %c0_i32_0, %c0_i32_1 : i32, i32, i32
  }
  func.func @transform_22(%arg0: i32) -> (i32, i32, i32) {
    %c0_i32 = arith.constant 0 : i32
    %c0_i32_0 = arith.constant 0 : i32
    %c0_i32_1 = arith.constant 0 : i32
    %c0_i32_2 = arith.constant 0 : i32
    return %c0_i32, %c0_i32_0, %c0_i32_1 : i32, i32, i32
  }
  func.func @transform_23(%arg0: i32) -> (i32, i32, i32) {
    %c0_i32 = arith.constant 0 : i32
    %c0_i32_0 = arith.constant 0 : i32
    %c0_i32_1 = arith.constant 0 : i32
    %c0_i32_2 = arith.constant 0 : i32
    return %c0_i32, %c0_i32_0, %c0_i32_1 : i32, i32, i32
  }
  func.func @transform_24(%arg0: i32) -> (i32, i32, i32) {
    %c0_i32 = arith.constant 0 : i32
    %c0_i32_0 = arith.constant 0 : i32
    %c0_i32_1 = arith.constant 0 : i32
    %c0_i32_2 = arith.constant 0 : i32
    return %c0_i32, %c0_i32_0, %c0_i32_1 : i32, i32, i32
  }
  func.func @transform_25(%arg0: i32) -> (i32, i32) {
    %c0_i32 = arith.constant 0 : i32
    %c0_i32_0 = arith.constant 0 : i32
    %c0_i32_1 = arith.constant 0 : i32
    return %c0_i32, %c0_i32_0 : i32, i32
  }
  func.func @transform_26(%arg0: i32) -> (i32, i32) {
    %c0_i32 = arith.constant 0 : i32
    %c0_i32_0 = arith.constant 0 : i32
    %c0_i32_1 = arith.constant 0 : i32
    return %c0_i32, %c0_i32_0 : i32, i32
  }
  func.func @transform_27(%arg0: i32) -> (i32, i32, i32) {
    %c0_i32 = arith.constant 0 : i32
    %c0_i32_0 = arith.constant 0 : i32
    %c0_i32_1 = arith.constant 0 : i32
    return %arg0, %c0_i32, %c0_i32_0 : i32, i32, i32
  }
}

</mosaic_0001>

<llo_original>
// kernel: transformer_forward.2
$region0: #{transformer_forward.2}
  #allocation0 [shape = 'u32[]', space=smem, size = 0x4, offset = 0x4, fixed_abs, tag = 'smem constant byte address 0x4 - core index']
  #allocation1 [shape = 'u32[72,128]{1,0:T(1,128)}', space=vmem, size = 0x9000, scoped, tag = 'internal scratch']
  %s0 = inlined_call_operand.vmem [shape: f32[2,8,32], index: 0, kind: input, shape index: {}]
  %s1 = inlined_call_operand.vmem [shape: f32[8,32], index: 1, kind: input, shape index: {}]
  %s2 = inlined_call_operand.vmem [shape: f32[2,8,8], index: 2, kind: input, shape index: {}]
  %s3 = inlined_call_operand.vmem [shape: f32[2,32,96], index: 3, kind: input, shape index: {}]
  %s4 = inlined_call_operand.vmem [shape: f32[2,1,96], index: 4, kind: input, shape index: {}]
  %s5 = inlined_call_operand.vmem [shape: f32[2,32,32], index: 5, kind: input, shape index: {}]
  %s6 = inlined_call_operand.vmem [shape: f32[2,1,32], index: 6, kind: input, shape index: {}]
  %s7 = inlined_call_operand.vmem [shape: f32[2,1,32], index: 7, kind: input, shape index: {}]
  %s8 = inlined_call_operand.vmem [shape: f32[2,1,32], index: 8, kind: input, shape index: {}]
  %s9 = inlined_call_operand.vmem [shape: f32[2,32,64], index: 9, kind: input, shape index: {}]
  %s10 = inlined_call_operand.vmem [shape: f32[2,1,64], index: 10, kind: input, shape index: {}]
  %s11 = inlined_call_operand.vmem [shape: f32[2,64,32], index: 11, kind: input, shape index: {}]
  %s12 = inlined_call_operand.vmem [shape: f32[2,1,32], index: 12, kind: input, shape index: {}]
  %s13 = inlined_call_operand.vmem [shape: f32[2,1,32], index: 13, kind: input, shape index: {}]
  %s14 = inlined_call_operand.vmem [shape: f32[2,1,32], index: 14, kind: input, shape index: {}]
  %s15 = inlined_call_operand.vmem [shape: f32[1,32], index: 15, kind: input, shape index: {}]
  %s16 = inlined_call_operand.vmem [shape: f32[1,32], index: 16, kind: input, shape index: {}]
  %s17 = inlined_call_operand.vmem [shape: f32[2,8,32], index: 17, kind: output, shape index: {}]
  %s18 = sld [smem:[#allocation0]]
  $region101: #{transformer_forward.2} parent=0
    _
  %s20 = ssub.s32 1, %s18
  %s21 = scalar_select 0, %s20, %s18
  loop: start=0, step=1, limit=4
  $region2: #{transformer_forward.2} parent=0 // loop_pre_header
    _
  $region3: #{transformer_forward.2} parent=0 // loop_header
    %s23 = sphi 0, %s27
    %p24 = scmp.ge.s32.totalorder %s23, 4
    %s33 = sphi 0, %s35
    %s36 = sphi 0, %s33
    %s37 = sphi 0, %s36
    %s53 = sphi 0, %s37
    %s57 = sphi 0, %s57
    %s59 = sphi 0, %s57
    %s60 = sphi 0, %s59
    %s74 = sphi 0, %s60
    %s80 = sphi 0, %s82
    %s83 = sphi 0, %s80
    %s84 = sphi 0, %s83
    %s100 = sphi 0, %s84
    %s104 = sphi 0, %s104
    %s106 = sphi 0, %s104
    %s107 = sphi 0, %s106
    %s121 = sphi 0, %s107
    %s125 = sphi 0, %s125
    %s127 = sphi 0, %s125
    %s128 = sphi 0, %s127
    %s142 = sphi 0, %s128
    %s146 = sphi 0, %s146
    %s148 = sphi 0, %s146
    %s149 = sphi 0, %s148
    %s163 = sphi 0, %s149
    %s167 = sphi 0, %s167
    %s169 = sphi 0, %s167
    %s170 = sphi 0, %s169
    %s184 = sphi 0, %s170
    %s188 = sphi 0, %s188
    %s190 = sphi 0, %s188
    %s191 = sphi 0, %s190
    %s205 = sphi 0, %s191
    %s209 = sphi 0, %s209
    %s211 = sphi 0, %s209
    %s212 = sphi 0, %s211
    %s226 = sphi 0, %s212
    %s230 = sphi 0, %s230
    %s232 = sphi 0, %s230
    %s233 = sphi 0, %s232
    %s247 = sphi 0, %s233
    %s251 = sphi 0, %s251
    %s253 = sphi 0, %s251
    %s254 = sphi 0, %s253
    %s268 = sphi 0, %s254
    %s272 = sphi 0, %s272
    %s274 = sphi 0, %s272
    %s275 = sphi 0, %s274
    %s289 = sphi 0, %s275
    %s293 = sphi 0, %s293
    %s295 = sphi 0, %s293
    %s296 = sphi 0, %s295
    %s310 = sphi 0, %s296
    %s314 = sphi 0, %s314
    %s316 = sphi 0, %s314
    %s317 = sphi 0, %s316
    %s331 = sphi 0, %s317
    %s335 = sphi 0, %s335
    %s337 = sphi 0, %s335
    %s338 = sphi 0, %s337
    %s352 = sphi 0, %s338
    %s356 = sphi 0, %s356
    %s358 = sphi 0, %s356
    %s359 = sphi 0, %s358
    %s373 = sphi 0, %s359
    %s377 = sphi 0, %s377
    %s379 = sphi 0, %s377
    %s380 = sphi 0, %s379
    %s394 = sphi 0, %s380
    %s400 = sphi 0, %s402
    %s403 = sphi 0, %s400
    %s404 = sphi 0, %s403
    %s420 = sphi 0, %s404
  $region4: #{transformer_forward.2} parent=0 // loop_header_branch
    %26 = sbr.rel (%p24) target = $region8
  $region5: #{transformer_forward.2} parent=0 // loop_body
    %s28 = ssub.s32 %s23, 1
    %s29 = ssub.s32 %s23, 2
    %s30 = sadd.s32 %s23, 1
    %s31 = ssub.s32 %s23, %s30
    %p32 = scmp.eq.s32.totalorder %s31, 0
    %s34 = sadd.s32 %s33, 1
    %s35 = scalar_select %p32, %s33, %s34
    %p38 = pneg %p32
    %p39 = scmp.eq.s32.totalorder %s23, 1
    %p40 = por %p38, %p39
    %p41 = scmp.ne.s32.totalorder %s33, %s36
    %p42 = scmp.eq.s32.totalorder %s23, 0
    %p43 = por %p41, %p42
    %p44 = scmp.ne.s32.totalorder %s33, %s36
    %p45 = scmp.eq.s32.totalorder %s28, 1
    %p46 = por %p44, %p45
    %p47 = scmp.ne.s32.totalorder %s36, %s37
    %p48 = scmp.eq.s32.totalorder %s28, 0
    %p49 = por %p47, %p48
    %p50 = scmp.ne.s32.totalorder %s36, %s37
    %p51 = scmp.eq.s32.totalorder %s29, 1
    %p52 = por %p50, %p51
    %p54 = scmp.ne.s32.totalorder %s37, %s53
    %p55 = scmp.eq.s32.totalorder %s29, 0
    %p56 = por %p54, %p55
    %s58 = sadd.s32 %s57, 1
    %p61 = scmp.eq.s32.totalorder %s23, 1
    %p62 = scmp.ne.s32.totalorder %s57, %s59
    %p63 = scmp.eq.s32.totalorder %s23, 0
    %p64 = por %p62, %p63
    %p65 = scmp.ne.s32.totalorder %s57, %s59
    %p66 = scmp.eq.s32.totalorder %s28, 1
    %p67 = por %p65, %p66
    %p68 = scmp.ne.s32.totalorder %s59, %s60
    %p69 = scmp.eq.s32.totalorder %s28, 0
    %p70 = por %p68, %p69
    %p71 = scmp.ne.s32.totalorder %s59, %s60
    %p72 = scmp.eq.s32.totalorder %s29, 1
    %p73 = por %p71, %p72
    %p75 = scmp.ne.s32.totalorder %s60, %s74
    %p76 = scmp.eq.s32.totalorder %s29, 0
    %p77 = por %p75, %p76
    %s78 = ssub.s32 %s23, %s30
    %p79 = scmp.eq.s32.totalorder %s78, 0
    %s81 = sadd.s32 %s80, 1
    %s82 = scalar_select %p79, %s80, %s81
    %p85 = pneg %p79
    %p86 = scmp.eq.s32.totalorder %s23, 1
    %p87 = por %p85, %p86
    %p88 = scmp.ne.s32.totalorder %s80, %s83
    %p89 = scmp.eq.s32.totalorder %s23, 0
    %p90 = por %p88, %p89
    %p91 = scmp.ne.s32.totalorder %s80, %s83
    %p92 = scmp.eq.s32.totalorder %s28, 1
    %p93 = por %p91, %p92
    %p94 = scmp.ne.s32.totalorder %s83, %s84
    %p95 = scmp.eq.s32.totalorder %s28, 0
    %p96 = por %p94, %p95
    %p97 = scmp.ne.s32.totalorder %s83, %s84
    %p98 = scmp.eq.s32.totalorder %s29, 1
    %p99 = por %p97, %p98
    %p101 = scmp.ne.s32.totalorder %s84, %s100
    %p102 = scmp.eq.s32.totalorder %s29, 0
    %p103 = por %p101, %p102
    %s105 = sadd.s32 %s104, 1
    %p108 = scmp.eq.s32.totalorder %s23, 1
    %p109 = scmp.ne.s32.totalorder %s104, %s106
    %p110 = scmp.eq.s32.totalorder %s23, 0
    %p111 = por %p109, %p110
    %p112 = scmp.ne.s32.totalorder %s104, %s106
    %p113 = scmp.eq.s32.totalorder %s28, 1
    %p114 = por %p112, %p113
    %p115 = scmp.ne.s32.totalorder %s106, %s107
    %p116 = scmp.eq.s32.totalorder %s28, 0
    %p117 = por %p115, %p116
    %p118 = scmp.ne.s32.totalorder %s106, %s107
    %p119 = scmp.eq.s32.totalorder %s29, 1
    %p120 = por %p118, %p119
    %p122 = scmp.ne.s32.totalorder %s107, %s121
    %p123 = scmp.eq.s32.totalorder %s29, 0
    %p124 = por %p122, %p123
    %s126 = sadd.s32 %s125, 1
    %p129 = scmp.eq.s32.totalorder %s23, 1
    %p130 = scmp.ne.s32.totalorder %s125, %s127
    %p131 = scmp.eq.s32.totalorder %s23, 0
    %p132 = por %p130, %p131
    %p133 = scmp.ne.s32.totalorder %s125, %s127
    %p134 = scmp.eq.s32.totalorder %s28, 1
    %p135 = por %p133, %p134
    %p136 = scmp.ne.s32.totalorder %s127, %s128
    %p137 = scmp.eq.s32.totalorder %s28, 0
    %p138 = por %p136, %p137
    %p139 = scmp.ne.s32.totalorder %s127, %s128
    %p140 = scmp.eq.s32.totalorder %s29, 1
    %p141 = por %p139, %p140
    %p143 = scmp.ne.s32.totalorder %s128, %s142
    %p144 = scmp.eq.s32.totalorder %s29, 0
    %p145 = por %p143, %p144
    %s147 = sadd.s32 %s146, 1
    %p150 = scmp.eq.s32.totalorder %s23, 1
    %p151 = scmp.ne.s32.totalorder %s146, %s148
    %p152 = scmp.eq.s32.totalorder %s23, 0
    %p153 = por %p151, %p152
    %p154 = scmp.ne.s32.totalorder %s146, %s148
    %p155 = scmp.eq.s32.totalorder %s28, 1
    %p156 = por %p154, %p155
    %p157 = scmp.ne.s32.totalorder %s148, %s149
    %p158 = scmp.eq.s32.totalorder %s28, 0
    %p159 = por %p157, %p158
    %p160 = scmp.ne.s32.totalorder %s148, %s149
    %p161 = scmp.eq.s32.totalorder %s29, 1
    %p162 = por %p160, %p161
    %p164 = scmp.ne.s32.totalorder %s149, %s163
    %p165 = scmp.eq.s32.totalorder %s29, 0
    %p166 = por %p164, %p165
    %s168 = sadd.s32 %s167, 1
    %p171 = scmp.eq.s32.totalorder %s23, 1
    %p172 = scmp.ne.s32.totalorder %s167, %s169
    %p173 = scmp.eq.s32.totalorder %s23, 0
    %p174 = por %p172, %p173
    %p175 = scmp.ne.s32.totalorder %s167, %s169
    %p176 = scmp.eq.s32.totalorder %s28, 1
    %p177 = por %p175, %p176
    %p178 = scmp.ne.s32.totalorder %s169, %s170
    %p179 = scmp.eq.s32.totalorder %s28, 0
    %p180 = por %p178, %p179
    %p181 = scmp.ne.s32.totalorder %s169, %s170
    %p182 = scmp.eq.s32.totalorder %s29, 1
    %p183 = por %p181, %p182
    %p185 = scmp.ne.s32.totalorder %s170, %s184
    %p186 = scmp.eq.s32.totalorder %s29, 0
    %p187 = por %p185, %p186
    %s189 = sadd.s32 %s188, 1
    %p192 = scmp.eq.s32.totalorder %s23, 1
    %p193 = scmp.ne.s32.totalorder %s188, %s190
    %p194 = scmp.eq.s32.totalorder %s23, 0
    %p195 = por %p193, %p194
    %p196 = scmp.ne.s32.totalorder %s188, %s190
    %p197 = scmp.eq.s32.totalorder %s28, 1
    %p198 = por %p196, %p197
    %p199 = scmp.ne.s32.totalorder %s190, %s191
    %p200 = scmp.eq.s32.totalorder %s28, 0
    %p201 = por %p199, %p200
    %p202 = scmp.ne.s32.totalorder %s190, %s191
    %p203 = scmp.eq.s32.totalorder %s29, 1
    %p204 = por %p202, %p203
    %p206 = scmp.ne.s32.totalorder %s191, %s205
    %p207 = scmp.eq.s32.totalorder %s29, 0
    %p208 = por %p206, %p207
    %s210 = sadd.s32 %s209, 1
    %p213 = scmp.eq.s32.totalorder %s23, 1
    %p214 = scmp.ne.s32.totalorder %s209, %s211
    %p215 = scmp.eq.s32.totalorder %s23, 0
    %p216 = por %p214, %p215
    %p217 = scmp.ne.s32.totalorder %s209, %s211
    %p218 = scmp.eq.s32.totalorder %s28, 1
    %p219 = por %p217, %p218
    %p220 = scmp.ne.s32.totalorder %s211, %s212
    %p221 = scmp.eq.s32.totalorder %s28, 0
    %p222 = por %p220, %p221
    %p223 = scmp.ne.s32.totalorder %s211, %s212
    %p224 = scmp.eq.s32.totalorder %s29, 1
    %p225 = por %p223, %p224
    %p227 = scmp.ne.s32.totalorder %s212, %s226
    %p228 = scmp.eq.s32.totalorder %s29, 0
    %p229 = por %p227, %p228
    %s231 = sadd.s32 %s230, 1
    %p234 = scmp.eq.s32.totalorder %s23, 1
    %p235 = scmp.ne.s32.totalorder %s230, %s232
    %p236 = scmp.eq.s32.totalorder %s23, 0
    %p237 = por %p235, %p236
    %p238 = scmp.ne.s32.totalorder %s230, %s232
    %p239 = scmp.eq.s32.totalorder %s28, 1
    %p240 = por %p238, %p239
    %p241 = scmp.ne.s32.totalorder %s232, %s233
    %p242 = scmp.eq.s32.totalorder %s28, 0
    %p243 = por %p241, %p242
    %p244 = scmp.ne.s32.totalorder %s232, %s233
    %p245 = scmp.eq.s32.totalorder %s29, 1
    %p246 = por %p244, %p245
    %p248 = scmp.ne.s32.totalorder %s233, %s247
    %p249 = scmp.eq.s32.totalorder %s29, 0
    %p250 = por %p248, %p249
    %s252 = sadd.s32 %s251, 1
    %p255 = scmp.eq.s32.totalorder %s23, 1
    %p256 = scmp.ne.s32.totalorder %s251, %s253
    %p257 = scmp.eq.s32.totalorder %s23, 0
    %p258 = por %p256, %p257
    %p259 = scmp.ne.s32.totalorder %s251, %s253
    %p260 = scmp.eq.s32.totalorder %s28, 1
    %p261 = por %p259, %p260
    %p262 = scmp.ne.s32.totalorder %s253, %s254
    %p263 = scmp.eq.s32.totalorder %s28, 0
    %p264 = por %p262, %p263
    %p265 = scmp.ne.s32.totalorder %s253, %s254
    %p266 = scmp.eq.s32.totalorder %s29, 1
    %p267 = por %p265, %p266
    %p269 = scmp.ne.s32.totalorder %s254, %s268
    %p270 = scmp.eq.s32.totalorder %s29, 0
    %p271 = por %p269, %p270
    %s273 = sadd.s32 %s272, 1
    %p276 = scmp.eq.s32.totalorder %s23, 1
    %p277 = scmp.ne.s32.totalorder %s272, %s274
    %p278 = scmp.eq.s32.totalorder %s23, 0
    %p279 = por %p277, %p278
    %p280 = scmp.ne.s32.totalorder %s272, %s274
    %p281 = scmp.eq.s32.totalorder %s28, 1
    %p282 = por %p280, %p281
    %p283 = scmp.ne.s32.totalorder %s274, %s275
    %p284 = scmp.eq.s32.totalorder %s28, 0
    %p285 = por %p283, %p284
    %p286 = scmp.ne.s32.totalorder %s274, %s275
    %p287 = scmp.eq.s32.totalorder %s29, 1
    %p288 = por %p286, %p287
    %p290 = scmp.ne.s32.totalorder %s275, %s289
    %p291 = scmp.eq.s32.totalorder %s29, 0
    %p292 = por %p290, %p291
    %s294 = sadd.s32 %s293, 1
    %p297 = scmp.eq.s32.totalorder %s23, 1
    %p298 = scmp.ne.s32.totalorder %s293, %s295
    %p299 = scmp.eq.s32.totalorder %s23, 0
    %p300 = por %p298, %p299
    %p301 = scmp.ne.s32.totalorder %s293, %s295
    %p302 = scmp.eq.s32.totalorder %s28, 1
    %p303 = por %p301, %p302
    %p304 = scmp.ne.s32.totalorder %s295, %s296
    %p305 = scmp.eq.s32.totalorder %s28, 0
    %p306 = por %p304, %p305
    %p307 = scmp.ne.s32.totalorder %s295, %s296
    %p308 = scmp.eq.s32.totalorder %s29, 1
    %p309 = por %p307, %p308
    %p311 = scmp.ne.s32.totalorder %s296, %s310
    %p312 = scmp.eq.s32.totalorder %s29, 0
    %p313 = por %p311, %p312
    %s315 = sadd.s32 %s314, 1
    %p318 = scmp.eq.s32.totalorder %s23, 1
    %p319 = scmp.ne.s32.totalorder %s314, %s316
    %p320 = scmp.eq.s32.totalorder %s23, 0
    %p321 = por %p319, %p320
    %p322 = scmp.ne.s32.totalorder %s314, %s316
    %p323 = scmp.eq.s32.totalorder %s28, 1
    %p324 = por %p322, %p323
    %p325 = scmp.ne.s32.totalorder %s316, %s317
    %p326 = scmp.eq.s32.totalorder %s28, 0
    %p327 = por %p325, %p326
    %p328 = scmp.ne.s32.totalorder %s316, %s317
    %p329 = scmp.eq.s32.totalorder %s29, 1
    %p330 = por %p328, %p329
    %p332 = scmp.ne.s32.totalorder %s317, %s331
    %p333 = scmp.eq.s32.totalorder %s29, 0
    %p334 = por %p332, %p333
    %s336 = sadd.s32 %s335, 1
    %p339 = scmp.eq.s32.totalorder %s23, 1
    %p340 = scmp.ne.s32.totalorder %s335, %s337
    %p341 = scmp.eq.s32.totalorder %s23, 0
    %p342 = por %p340, %p341
    %p343 = scmp.ne.s32.totalorder %s335, %s337
    %p344 = scmp.eq.s32.totalorder %s28, 1
    %p345 = por %p343, %p344
    %p346 = scmp.ne.s32.totalorder %s337, %s338
    %p347 = scmp.eq.s32.totalorder %s28, 0
    %p348 = por %p346, %p347
    %p349 = scmp.ne.s32.totalorder %s337, %s338
    %p350 = scmp.eq.s32.totalorder %s29, 1
    %p351 = por %p349, %p350
    %p353 = scmp.ne.s32.totalorder %s338, %s352
    %p354 = scmp.eq.s32.totalorder %s29, 0
    %p355 = por %p353, %p354
    %s357 = sadd.s32 %s356, 1
    %p360 = scmp.eq.s32.totalorder %s23, 1
    %p361 = scmp.ne.s32.totalorder %s356, %s358
    %p362 = scmp.eq.s32.totalorder %s23, 0
    %p363 = por %p361, %p362
    %p364 = scmp.ne.s32.totalorder %s356, %s358
    %p365 = scmp.eq.s32.totalorder %s28, 1
    %p366 = por %p364, %p365
    %p367 = scmp.ne.s32.totalorder %s358, %s359
    %p368 = scmp.eq.s32.totalorder %s28, 0
    %p369 = por %p367, %p368
    %p370 = scmp.ne.s32.totalorder %s358, %s359
    %p371 = scmp.eq.s32.totalorder %s29, 1
    %p372 = por %p370, %p371
    %p374 = scmp.ne.s32.totalorder %s359, %s373
    %p375 = scmp.eq.s32.totalorder %s29, 0
    %p376 = por %p374, %p375
    %s378 = sadd.s32 %s377, 1
    %p381 = scmp.eq.s32.totalorder %s23, 1
    %p382 = scmp.ne.s32.totalorder %s377, %s379
    %p383 = scmp.eq.s32.totalorder %s23, 0
    %p384 = por %p382, %p383
    %p385 = scmp.ne.s32.totalorder %s377, %s379
    %p386 = scmp.eq.s32.totalorder %s28, 1
    %p387 = por %p385, %p386
    %p388 = scmp.ne.s32.totalorder %s379, %s380
    %p389 = scmp.eq.s32.totalorder %s28, 0
    %p390 = por %p388, %p389
    %p391 = scmp.ne.s32.totalorder %s379, %s380
    %p392 = scmp.eq.s32.totalorder %s29, 1
    %p393 = por %p391, %p392
    %p395 = scmp.ne.s32.totalorder %s380, %s394
    %p396 = scmp.eq.s32.totalorder %s29, 0
    %p397 = por %p395, %p396
    %s398 = ssub.s32 %s23, %s30
    %p399 = scmp.eq.s32.totalorder %s398, 0
    %s401 = sadd.s32 %s400, 1
    %s402 = scalar_select %p399, %s400, %s401
    %p405 = pneg %p399
    %p406 = scmp.eq.s32.totalorder %s23, 1
    %p407 = por %p405, %p406
    %p408 = scmp.ne.s32.totalorder %s400, %s403
    %p409 = scmp.eq.s32.totalorder %s23, 0
    %p410 = por %p408, %p409
    %p411 = scmp.ne.s32.totalorder %s400, %s403
    %p412 = scmp.eq.s32.totalorder %s28, 1
    %p413 = por %p411, %p412
    %p414 = scmp.ne.s32.totalorder %s403, %s404
    %p415 = scmp.eq.s32.totalorder %s28, 0
    %p416 = por %p414, %p415
    %p417 = scmp.ne.s32.totalorder %s403, %s404
    %p418 = scmp.eq.s32.totalorder %s29, 1
    %p419 = por %p417, %p418
    %p421 = scmp.ne.s32.totalorder %s404, %s420
    %p422 = scmp.eq.s32.totalorder %s29, 0
    %p423 = por %p421, %p422
    %p424 = scmp.le.s32.totalorder 1, %s23
    %p425 = scmp.lt.s32.totalorder %s23, 3
    %p426 = pnand %p424, %p425
    %p427 = pneg %p426
    // Predicated region
    $region9: #{transformer_forward.2} parent=5 // pred_check
      _
    $region10: #{transformer_forward.2} parent=5 // pred_check_branch
      %429 = sbr.rel (%p426) target = $region12
    $region11: #{transformer_forward.2} parent=5 // pred_region
      %s430 = ssub.s32 %s23, 1
      // Predicated region
      $region13: #{transformer_forward.2} parent=11 // pred_check
        %p431 = pneg %p70
      $region14: #{transformer_forward.2} parent=11 // pred_check_branch
        %433 = sbr.rel (%p431) target = $region16
      $region15: #{transformer_forward.2} parent=11 // pred_region
        _
      $region16: #{transformer_forward.2} parent=11 // pred_fallthru
        _
      // Predicated region
      $region17: #{transformer_forward.2} parent=11 // pred_check
        %p434 = pneg %p117
      $region18: #{transformer_forward.2} parent=11 // pred_check_branch
        %436 = sbr.rel (%p434) target = $region20
      $region19: #{transformer_forward.2} parent=11 // pred_region
        _
      $region20: #{transformer_forward.2} parent=11 // pred_fallthru
        _
      // Predicated region
      $region21: #{transformer_forward.2} parent=11 // pred_check
        %p437 = pneg %p138
      $region22: #{transformer_forward.2} parent=11 // pred_check_branch
        %439 = sbr.rel (%p437) target = $region24
      $region23: #{transformer_forward.2} parent=11 // pred_region
        _
      $region24: #{transformer_forward.2} parent=11 // pred_fallthru
        _
      // Predicated region
      $region25: #{transformer_forward.2} parent=11 // pred_check
        %p440 = pneg %p159
      $region26: #{transformer_forward.2} parent=11 // pred_check_branch
        %442 = sbr.rel (%p440) target = $region28
      $region27: #{transformer_forward.2} parent=11 // pred_region
        _
      $region28: #{transformer_forward.2} parent=11 // pred_fallthru
        _
      // Predicated region
      $region29: #{transformer_forward.2} parent=11 // pred_check
        %p443 = pneg %p180
      $region30: #{transformer_forward.2} parent=11 // pred_check_branch
        %445 = sbr.rel (%p443) target = $region32
      $region31: #{transformer_forward.2} parent=11 // pred_region
        _
      $region32: #{transformer_forward.2} parent=11 // pred_fallthru
        _
      // Predicated region
      $region33: #{transformer_forward.2} parent=11 // pred_check
        %p446 = pneg %p201
      $region34: #{transformer_forward.2} parent=11 // pred_check_branch
        %448 = sbr.rel (%p446) target = $region36
      $region35: #{transformer_forward.2} parent=11 // pred_region
        _
      $region36: #{transformer_forward.2} parent=11 // pred_fallthru
        _
      // Predicated region
      $region37: #{transformer_forward.2} parent=11 // pred_check
        %p449 = pneg %p222
      $region38: #{transformer_forward.2} parent=11 // pred_check_branch
        %451 = sbr.rel (%p449) target = $region40
      $region39: #{transformer_forward.2} parent=11 // pred_region
        _
      $region40: #{transformer_forward.2} parent=11 // pred_fallthru
        _
      // Predicated region
      $region41: #{transformer_forward.2} parent=11 // pred_check
        %p452 = pneg %p243
      $region42: #{transformer_forward.2} parent=11 // pred_check_branch
        %454 = sbr.rel (%p452) target = $region44
      $region43: #{transformer_forward.2} parent=11 // pred_region
        _
      $region44: #{transformer_forward.2} parent=11 // pred_fallthru
        _
      // Predicated region
      $region45: #{transformer_forward.2} parent=11 // pred_check
        %p455 = pneg %p264
      $region46: #{transformer_forward.2} parent=11 // pred_check_branch
        %457 = sbr.rel (%p455) target = $region48
      $region47: #{transformer_forward.2} parent=11 // pred_region
        _
      $region48: #{transformer_forward.2} parent=11 // pred_fallthru
        _
      // Predicated region
      $region49: #{transformer_forward.2} parent=11 // pred_check
        %p458 = pneg %p285
      $region50: #{transformer_forward.2} parent=11 // pred_check_branch
        %460 = sbr.rel (%p458) target = $region52
      $region51: #{transformer_forward.2} parent=11 // pred_region
        _
      $region52: #{transformer_forward.2} parent=11 // pred_fallthru
        _
      // Predicated region
      $region53: #{transformer_forward.2} parent=11 // pred_check
        %p461 = pneg %p306
      $region54: #{transformer_forward.2} parent=11 // pred_check_branch
        %463 = sbr.rel (%p461) target = $region56
      $region55: #{transformer_forward.2} parent=11 // pred_region
        _
      $region56: #{transformer_forward.2} parent=11 // pred_fallthru
        _
      // Predicated region
      $region57: #{transformer_forward.2} parent=11 // pred_check
        %p464 = pneg %p327
      $region58: #{transformer_forward.2} parent=11 // pred_check_branch
        %466 = sbr.rel (%p464) target = $region60
      $region59: #{transformer_forward.2} parent=11 // pred_region
        _
      $region60: #{transformer_forward.2} parent=11 // pred_fallthru
        _
      // Predicated region
      $region61: #{transformer_forward.2} parent=11 // pred_check
        %p467 = pneg %p348
      $region62: #{transformer_forward.2} parent=11 // pred_check_branch
        %469 = sbr.rel (%p467) target = $region64
      $region63: #{transformer_forward.2} parent=11 // pred_region
        _
      $region64: #{transformer_forward.2} parent=11 // pred_fallthru
        _
      // Predicated region
      $region65: #{transformer_forward.2} parent=11 // pred_check
        %p470 = pneg %p369
      $region66: #{transformer_forward.2} parent=11 // pred_check_branch
        %472 = sbr.rel (%p470) target = $region68
      $region67: #{transformer_forward.2} parent=11 // pred_region
        _
      $region68: #{transformer_forward.2} parent=11 // pred_fallthru
        _
      // Predicated region
      $region69: #{transformer_forward.2} parent=11 // pred_check
        %p473 = pneg %p390
      $region70: #{transformer_forward.2} parent=11 // pred_check_branch
        %475 = sbr.rel (%p473) target = $region72
      $region71: #{transformer_forward.2} parent=11 // pred_region
        _
      $region72: #{transformer_forward.2} parent=11 // pred_fallthru
        _
    $region12: #{transformer_forward.2} parent=5 // pred_fallthru
      _
    %p476 = scmp.lt.s32.totalorder %s23, 2
    // Predicated region
    $region73: #{transformer_forward.2} parent=5 // pred_check
      %p477 = pneg %p476
    $region74: #{transformer_forward.2} parent=5 // pred_check_branch
      %479 = sbr.rel (%p477) target = $region76
    $region75: #{transformer_forward.2} parent=5 // pred_region
      // Predicated region
      $region77: #{transformer_forward.2} parent=75 // pred_check
        %p480 = pneg %p43
      $region78: #{transformer_forward.2} parent=75 // pred_check_branch
        %482 = sbr.rel (%p480) target = $region80
      $region79: #{transformer_forward.2} parent=75 // pred_region
        %p483 = scmp.lt.s32.totalorder %s23, 1
        %s484 = scalar_select %p483, %s23, 1
        %s485 = smul.addr %s484, 8
        %s486 = scalar_lea.vmem %s0, %s485
      $region80: #{transformer_forward.2} parent=75 // pred_fallthru
        _
      // Predicated region
      $region81: #{transformer_forward.2} parent=75 // pred_check
        %p487 = pneg %p90
      $region82: #{transformer_forward.2} parent=75 // pred_check_branch
        %489 = sbr.rel (%p487) target = $region84
      $region83: #{transformer_forward.2} parent=75 // pred_region
        %p490 = scmp.lt.s32.totalorder %s23, 1
        %s491 = scalar_select %p490, %s23, 1
        %s492 = smul.addr %s491, 8
        %s493 = scalar_lea.vmem %s2, %s492
      $region84: #{transformer_forward.2} parent=75 // pred_fallthru
        _
    $region76: #{transformer_forward.2} parent=5 // pred_fallthru
      _
    %p494 = scmp.le.s32.totalorder 1, %s23
    %p495 = scmp.lt.s32.totalorder %s23, 3
    %p496 = pnand %p494, %p495
    %p497 = pneg %p496
    // Predicated region
    $region85: #{transformer_forward.2} parent=5 // pred_check
      _
    $region86: #{transformer_forward.2} parent=5 // pred_check_branch
      %499 = sbr.rel (%p496) target = $region88
    $region87: #{transformer_forward.2} parent=5 // pred_region
      %s500 = ssub.s32 %s23, 1
      %p501 = scmp.lt.s32.totalorder %s28, 1
      %s502 = scalar_select %p501, %s28, 1
      %s503 = smul.addr %s502, 8
      %s504 = scalar_lea.vmem %s0, %s503
      %p505 = pneg %p49
      %p506 = pneg %p46
      %p507 = pneg %p70
      %p508 = pneg %p67
      %p509 = scmp.lt.s32.totalorder %s28, 1
      %s510 = scalar_select %p509, %s28, 1
      %s511 = smul.addr %s510, 8
      %s512 = scalar_lea.vmem %s2, %s511
      %p513 = pneg %p96
      %p514 = pneg %p93
      %p515 = pneg %p117
      %p516 = pneg %p114
      %p517 = pneg %p138
      %p518 = pneg %p135
      %p519 = pneg %p159
      %p520 = pneg %p156
      %p521 = pneg %p180
      %p522 = pneg %p177
      %p523 = pneg %p201
      %p524 = pneg %p198
      %p525 = pneg %p222
      %p526 = pneg %p219
      %p527 = pneg %p243
      %p528 = pneg %p240
      %p529 = pneg %p264
      %p530 = pneg %p261
      %p531 = pneg %p285
      %p532 = pneg %p282
      %p533 = pneg %p306
      %p534 = pneg %p303
      %p535 = pneg %p327
      %p536 = pneg %p324
      %p537 = pneg %p348
      %p538 = pneg %p345
      %p539 = pneg %p369
      %p540 = pneg %p366
      %p541 = pneg %p390
      %p542 = pneg %p387
      %p543 = pneg %p416
      %p544 = pneg %p413
      %p545 = scmp.lt.s32.totalorder %s28, 1
      %s546 = scalar_select %p545, %s28, 1
      %s547 = smul.addr %s546, 8
      %s548 = scalar_lea.vmem %s17, %s547
      %p549 = scmp.lt.s32.totalorder %s28, 1
      %s550 = scalar_select %p549, %s28, 1
      %s551 = smul.addr %s550, 8
      %s552 = scalar_lea.vmem %s0, %s551
      %p553 = scmp.lt.s32.totalorder %s28, 1
      %s554 = scalar_select %p553, %s28, 1
      %s555 = smul.addr %s554, 8
      %s556 = scalar_lea.vmem %s2, %s555
      %p557 = scmp.lt.s32.totalorder %s28, 1
      %s558 = scalar_select %p557, %s28, 1
      %s559 = smul.addr %s558, 8
      %s560 = scalar_lea.vmem %s17, %s559
      %v561 = vld [vmem:[%s552] sm:$0xff]
      %v562 = vmul.f32 %v561, 5.656854
      %v563 = vld [vmem:[%s1] sm:$0xff]
      %v564 = vadd.f32 %v562, %v563
      %v565 = vld [vmem:[%s556] sm:$0xff]
      %v566 = vld [vmem:[%s7] sm:$0x1]
      %v567 = vld [vmem:[%s8] sm:$0x1]
      %vm568 = vcmask 261120
      %v569 = vsel %vm568, %v564, 0.0
      %570 = vadd.xlane.f32.xlu0 %v569
      %v571 = vpop.xlane.xlu0 %570
      %v572 = vrcp.pop 32.0
      %v573 = vmul.f32 32.0, %v572
      %v574 = vsub.f32 1.0, %v573
      %v575 = vmul.f32 %v572, %v574
      %v576 = vadd.f32 %v572, %v575
      %vm577 = vweird.f32 %v572
      %v578 = vsel %vm577, %v572, %v576
      %v579 = vmul.f32 %v571, %v578
      %v580 = vsub.f32 %v564, %v579
      %v581 = vmul.f32 %v580, %v580
      %v582 = vsel %vm568, %v581, 0.0
      %583 = vadd.xlane.f32.xlu0 %v582
      %v584 = vpop.xlane.xlu0 %583
      %v585 = vmul.f32 %v584, 0.032258064
      %v586 = vrsqrt.pop %v585
      %v587 = vmul.f32 %v586, %v585
      %v588 = vmul.f32 %v587, %v586
      %v589 = vmul.f32 0.5, %v588
      %v590 = vsub.f32 1.5, %v589
      %v591 = vmul.f32 %v586, %v590
      %v592 = vmul.f32 %v585, %v591
      %vm593 = vcmp.eq.f32.partialorder %v585, inf
      %v594 = vsel %vm593, %v585, %v592
      %vm595 = vcmp.eq.f32.partialorder %v585, 0.0
      %v596 = vand.u32 %v585, 2147483648
      %v597 = vsel %vm595, %v596, %v594
      %v598 = vadd.f32 %v597, 1e-06
      %v599 = vrcp.pop %v598
      %v601 = vperm.slane %v566, 0
      %v603 = vmul.f32 %v601, %v580
      %v604 = vmul.f32 %v603, %v599
      %v606 = vperm.slane %v567, 0
      %v608 = vadd.f32 %v604, %v606
      %v609 = vld [vmem:[%s3] sm:$0xff]
      %v610 = vld [vmem:[%s3 + $0x8] sm:$0xff]
      %v611 = vld [vmem:[%s3 + $0x10] sm:$0xff]
      %v612 = vld [vmem:[%s3 + $0x18] sm:$0xff]
      %v613 = vld [vmem:[%s4] sm:$0x1]
      %v615 = vperm.slane %v613, 0
      %v618 = vsel %vm568, %v608, 0
      %620 = vmatpush.msra.mxu0 0.0
      %621 = vmatpush.msra.mxu0 0.0
      %622 = vmatpush.msra.mxu0 0.0
      %623 = vmatpush.msra.mxu0 0.0
      %624 = vmatpush.msra.mxu0 0.0
      %625 = vmatpush.msra.mxu0 0.0
      %626 = vmatpush.msra.mxu0 0.0
      %627 = vmatpush.msra.mxu0 0.0
      %628 = vmatpush.msra.mxu0 0.0
      %629 = vmatpush.msra.mxu0 0.0
      %630 = vmatpush.msra.mxu0 0.0
      %631 = vmatpush.msra.mxu0 0.0
      %632 = vmatpush.msra.mxu0 %v612
      %633 = vmatpush.msra.mxu0 %v611
      %634 = vmatpush.msra.mxu0 %v610
      %635 = vmatpush.msra.mxu0 %v609
      %636 = vmatmul.f32.gmra.mxu0 %v618
      %v637 = vpop.f32.mrf.mxu0
      %v638 = vadd.f32 %v615, %v637
      %639 = vdwg.mxu0
      %641 = vrot.lane.b32.xlu0 %v638, 96
      %v642 = vpop.permute.xlu0 %641
      %vm643 = vcmask 64512
      %v644 = vsel %vm643, %v638, 0
      %v646 = vsel %vm643, %v642, 0
      %648 = vmatpush.xpose.msra.mxu0 0.0
      %649 = vmatpush.xpose.msra.mxu0 0.0
      %650 = vmatpush.xpose.msra.mxu0 0.0
      %651 = vmatpush.xpose.msra.mxu0 0.0
      %652 = vmatpush.xpose.msra.mxu0 0.0
      %653 = vmatpush.xpose.msra.mxu0 0.0
      %654 = vmatpush.xpose.msra.mxu0 0.0
      %655 = vmatpush.xpose.msra.mxu0 0.0
      %656 = vmatpush.xpose.msra.mxu0 0.0
      %657 = vmatpush.xpose.msra.mxu0 0.0
      %658 = vmatpush.xpose.msra.mxu0 0.0
      %659 = vmatpush.xpose.msra.mxu0 0.0
      %660 = vmatpush.xpose.msra.mxu0 0.0
      %661 = vmatpush.xpose.msra.mxu0 0.0
      %662 = vmatpush.xpose.msra.mxu0 0.0
      %663 = vmatpush.xpose.msra.mxu0 %v646
      %664 = vmatmul.f32.gmra.mxu0 %v644
      %v665 = vpop.f32.mrf.mxu0
      %v666 = vadd.f32 0.0, %v665
      %667 = vdwg.mxu0
      %v668 = vmul.f32 %v666, 0.35355338
      %v669 = vadd.f32 %v668, %v565
      %v670 = vsel %vm643, %v669, -inf
      %671 = vmax.xlane.f32.xlu0 %v670
      %v672 = vpop.xlane.xlu0 %671
      %v673 = vsub.f32 %v669, %v672
      %v674 = vmul.f32 %v673, 1.442695
      %v675 = vpow.pop %v674
      %v676 = vsel %vm643, %v675, 0.0
      %677 = vadd.xlane.f32.xlu0 %v676
      %v678 = vpop.xlane.xlu0 %677
      %v679 = vrcp.pop %v678
      %v680 = vmul.f32 %v675, %v679
      %681 = vrot.lane.b32.xlu0 %v638, 64
      %v682 = vpop.permute.xlu0 %681
      %v685 = vsel %vm643, %v680, 0
      %687 = vmatpush.msra.mxu0 0.0
      %688 = vmatpush.msra.mxu0 0.0
      %689 = vmatpush.msra.mxu0 0.0
      %690 = vmatpush.msra.mxu0 0.0
      %691 = vmatpush.msra.mxu0 0.0
      %692 = vmatpush.msra.mxu0 0.0
      %693 = vmatpush.msra.mxu0 0.0
      %694 = vmatpush.msra.mxu0 0.0
      %695 = vmatpush.msra.mxu0 0.0
      %696 = vmatpush.msra.mxu0 0.0
      %697 = vmatpush.msra.mxu0 0.0
      %698 = vmatpush.msra.mxu0 0.0
      %699 = vmatpush.msra.mxu0 0.0
      %700 = vmatpush.msra.mxu0 0.0
      %701 = vmatpush.msra.mxu0 0.0
      %702 = vmatpush.msra.mxu0 %v682
      %703 = vmatmul.f32.gmra.mxu0 %v685
      %v704 = vpop.f32.mrf.mxu0
      %v705 = vadd.f32 0.0, %v704
      %706 = vdwg.mxu0
      %707 = vrot.lane.b32.xlu0 %v638, 120
      %v708 = vpop.permute.xlu0 %707
      %709 = vrot.lane.b32.xlu0 %v638, 88
      %v710 = vpop.permute.xlu0 %709
      %v711 = vsel %vm643, %v708, 0
      %v713 = vsel %vm643, %v710, 0
      %715 = vmatpush.xpose.msra.mxu0 0.0
      %716 = vmatpush.xpose.msra.mxu0 0.0
      %717 = vmatpush.xpose.msra.mxu0 0.0
      %718 = vmatpush.xpose.msra.mxu0 0.0
      %719 = vmatpush.xpose.msra.mxu0 0.0
      %720 = vmatpush.xpose.msra.mxu0 0.0
      %721 = vmatpush.xpose.msra.mxu0 0.0
      %722 = vmatpush.xpose.msra.mxu0 0.0
      %723 = vmatpush.xpose.msra.mxu0 0.0
      %724 = vmatpush.xpose.msra.mxu0 0.0
      %725 = vmatpush.xpose.msra.mxu0 0.0
      %726 = vmatpush.xpose.msra.mxu0 0.0
      %727 = vmatpush.xpose.msra.mxu0 0.0
      %728 = vmatpush.xpose.msra.mxu0 0.0
      %729 = vmatpush.xpose.msra.mxu0 0.0
      %730 = vmatpush.xpose.msra.mxu0 %v713
      %731 = vmatmul.f32.gmra.mxu0 %v711
      %v732 = vpop.f32.mrf.mxu0
      %v733 = vadd.f32 0.0, %v732
      %734 = vdwg.mxu0
      %v735 = vmul.f32 %v733, 0.35355338
      %v736 = vadd.f32 %v735, %v565
      %v737 = vsel %vm643, %v736, -inf
      %738 = vmax.xlane.f32.xlu0 %v737
      %v739 = vpop.xlane.xlu0 %738
      %v740 = vsub.f32 %v736, %v739
      %v741 = vmul.f32 %v740, 1.442695
      %v742 = vpow.pop %v741
      %v743 = vsel %vm643, %v742, 0.0
      %744 = vadd.xlane.f32.xlu0 %v743
      %v745 = vpop.xlane.xlu0 %744
      %v746 = vrcp.pop %v745
      %v747 = vmul.f32 %v742, %v746
      %748 = vrot.lane.b32.xlu0 %v638, 56
      %v749 = vpop.permute.xlu0 %748
      %v752 = vsel %vm643, %v747, 0
      %754 = vmatpush.msra.mxu0 0.0
      %755 = vmatpush.msra.mxu0 0.0
      %756 = vmatpush.msra.mxu0 0.0
      %757 = vmatpush.msra.mxu0 0.0
      %758 = vmatpush.msra.mxu0 0.0
      %759 = vmatpush.msra.mxu0 0.0
      %760 = vmatpush.msra.mxu0 0.0
      %761 = vmatpush.msra.mxu0 0.0
      %762 = vmatpush.msra.mxu0 0.0
      %763 = vmatpush.msra.mxu0 0.0
      %764 = vmatpush.msra.mxu0 0.0
      %765 = vmatpush.msra.mxu0 0.0
      %766 = vmatpush.msra.mxu0 0.0
      %767 = vmatpush.msra.mxu0 0.0
      %768 = vmatpush.msra.mxu0 0.0
      %769 = vmatpush.msra.mxu0 %v749
      %770 = vmatmul.f32.gmra.mxu0 %v752
      %v771 = vpop.f32.mrf.mxu0
      %v772 = vadd.f32 0.0, %v771
      %773 = vdwg.mxu0
      %774 = vrot.lane.b32.xlu0 %v638, 112
      %v775 = vpop.permute.xlu0 %774
      %776 = vrot.lane.b32.xlu0 %v638, 80
      %v777 = vpop.permute.xlu0 %776
      %v778 = vsel %vm643, %v775, 0
      %v780 = vsel %vm643, %v777, 0
      %782 = vmatpush.xpose.msra.mxu0 0.0
      %783 = vmatpush.xpose.msra.mxu0 0.0
      %784 = vmatpush.xpose.msra.mxu0 0.0
      %785 = vmatpush.xpose.msra.mxu0 0.0
      %786 = vmatpush.xpose.msra.mxu0 0.0
      %787 = vmatpush.xpose.msra.mxu0 0.0
      %788 = vmatpush.xpose.msra.mxu0 0.0
      %789 = vmatpush.xpose.msra.mxu0 0.0
      %790 = vmatpush.xpose.msra.mxu0 0.0
      %791 = vmatpush.xpose.msra.mxu0 0.0
      %792 = vmatpush.xpose.msra.mxu0 0.0
      %793 = vmatpush.xpose.msra.mxu0 0.0
      %794 = vmatpush.xpose.msra.mxu0 0.0
      %795 = vmatpush.xpose.msra.mxu0 0.0
      %796 = vmatpush.xpose.msra.mxu0 0.0
      %797 = vmatpush.xpose.msra.mxu0 %v780
      %798 = vmatmul.f32.gmra.mxu0 %v778
      %v799 = vpop.f32.mrf.mxu0
      %v800 = vadd.f32 0.0, %v799
      %801 = vdwg.mxu0
      %v802 = vmul.f32 %v800, 0.35355338
      %v803 = vadd.f32 %v802, %v565
      %v804 = vsel %vm643, %v803, -inf
      %805 = vmax.xlane.f32.xlu0 %v804
      %v806 = vpop.xlane.xlu0 %805
      %v807 = vsub.f32 %v803, %v806
      %v808 = vmul.f32 %v807, 1.442695
      %v809 = vpow.pop %v808
      %v810 = vsel %vm643, %v809, 0.0
      %811 = vadd.xlane.f32.xlu0 %v810
      %v812 = vpop.xlane.xlu0 %811
      %v813 = vrcp.pop %v812
      %v814 = vmul.f32 %v809, %v813
      %815 = vrot.lane.b32.xlu0 %v638, 48
      %v816 = vpop.permute.xlu0 %815
      %v819 = vsel %vm643, %v814, 0
      %821 = vmatpush.msra.mxu0 0.0
      %822 = vmatpush.msra.mxu0 0.0
      %823 = vmatpush.msra.mxu0 0.0
      %824 = vmatpush.msra.mxu0 0.0
      %825 = vmatpush.msra.mxu0 0.0
      %826 = vmatpush.msra.mxu0 0.0
      %827 = vmatpush.msra.mxu0 0.0
      %828 = vmatpush.msra.mxu0 0.0
      %829 = vmatpush.msra.mxu0 0.0
      %830 = vmatpush.msra.mxu0 0.0
      %831 = vmatpush.msra.mxu0 0.0
      %832 = vmatpush.msra.mxu0 0.0
      %833 = vmatpush.msra.mxu0 0.0
      %834 = vmatpush.msra.mxu0 0.0
      %835 = vmatpush.msra.mxu0 0.0
      %836 = vmatpush.msra.mxu0 %v816
      %837 = vmatmul.f32.gmra.mxu0 %v819
      %v838 = vpop.f32.mrf.mxu0
      %v839 = vadd.f32 0.0, %v838
      %840 = vdwg.mxu0
      %841 = vrot.lane.b32.xlu0 %v638, 104
      %v842 = vpop.permute.xlu0 %841
      %843 = vrot.lane.b32.xlu0 %v638, 72
      %v844 = vpop.permute.xlu0 %843
      %v845 = vsel %vm643, %v842, 0
      %v847 = vsel %vm643, %v844, 0
      %849 = vmatpush.xpose.msra.mxu0 0.0
      %850 = vmatpush.xpose.msra.mxu0 0.0
      %851 = vmatpush.xpose.msra.mxu0 0.0
      %852 = vmatpush.xpose.msra.mxu0 0.0
      %853 = vmatpush.xpose.msra.mxu0 0.0
      %854 = vmatpush.xpose.msra.mxu0 0.0
      %855 = vmatpush.xpose.msra.mxu0 0.0
      %856 = vmatpush.xpose.msra.mxu0 0.0
      %857 = vmatpush.xpose.msra.mxu0 0.0
      %858 = vmatpush.xpose.msra.mxu0 0.0
      %859 = vmatpush.xpose.msra.mxu0 0.0
      %860 = vmatpush.xpose.msra.mxu0 0.0
      %861 = vmatpush.xpose.msra.mxu0 0.0
      %862 = vmatpush.xpose.msra.mxu0 0.0
      %863 = vmatpush.xpose.msra.mxu0 0.0
      %864 = vmatpush.xpose.msra.mxu0 %v847
      %865 = vmatmul.f32.gmra.mxu0 %v845
      %v866 = vpop.f32.mrf.mxu0
      %v867 = vadd.f32 0.0, %v866
      %868 = vdwg.mxu0
      %v869 = vmul.f32 %v867, 0.35355338
      %v870 = vadd.f32 %v869, %v565
      %v871 = vsel %vm643, %v870, -inf
      %872 = vmax.xlane.f32.xlu0 %v871
      %v873 = vpop.xlane.xlu0 %872
      %v874 = vsub.f32 %v870, %v873
      %v875 = vmul.f32 %v874, 1.442695
      %v876 = vpow.pop %v875
      %v877 = vsel %vm643, %v876, 0.0
      %878 = vadd.xlane.f32.xlu0 %v877
      %v879 = vpop.xlane.xlu0 %878
      %v880 = vrcp.pop %v879
      %v881 = vmul.f32 %v876, %v880
      %882 = vrot.lane.b32.xlu0 %v638, 40
      %v883 = vpop.permute.xlu0 %882
      %v886 = vsel %vm643, %v881, 0
      %888 = vmatpush.msra.mxu0 0.0
      %889 = vmatpush.msra.mxu0 0.0
      %890 = vmatpush.msra.mxu0 0.0
      %891 = vmatpush.msra.mxu0 0.0
      %892 = vmatpush.msra.mxu0 0.0
      %893 = vmatpush.msra.mxu0 0.0
      %894 = vmatpush.msra.mxu0 0.0
      %895 = vmatpush.msra.mxu0 0.0
      %896 = vmatpush.msra.mxu0 0.0
      %897 = vmatpush.msra.mxu0 0.0
      %898 = vmatpush.msra.mxu0 0.0
      %899 = vmatpush.msra.mxu0 0.0
      %900 = vmatpush.msra.mxu0 0.0
      %901 = vmatpush.msra.mxu0 0.0
      %902 = vmatpush.msra.mxu0 0.0
      %903 = vmatpush.msra.mxu0 %v883
      %904 = vmatmul.f32.gmra.mxu0 %v886
      %v905 = vpop.f32.mrf.mxu0
      %v906 = vadd.f32 0.0, %v905
      %907 = vdwg.mxu0
      %909 = vrot.lane.b32.xlu0 %v772, 8
      %v910 = vpop.permute.xlu0 %909
      %913 = vrot.lane.b32.xlu0 %v839, 16
      %v914 = vpop.permute.xlu0 %913
      %917 = vrot.lane.b32.xlu0 %v906, 24
      %v918 = vpop.permute.xlu0 %917
      %v920 = vsel %vm643, %v705, %v910
      %vm921 = vcmask 130048
      %v922 = vsel %vm921, %v920, %v914
      %vm923 = vcmask 195584
      %v924 = vsel %vm923, %v922, %v918
      %v925 = vld [vmem:[%s5] sm:$0xff]
      %v926 = vld [vmem:[%s5 + $0x8] sm:$0xff]
      %v927 = vld [vmem:[%s5 + $0x10] sm:$0xff]
      %v928 = vld [vmem:[%s5 + $0x18] sm:$0xff]
      %v930 = vsel %vm568, %v924, 0
      %932 = vmatpush.msra.mxu0 0.0
      %933 = vmatpush.msra.mxu0 0.0
      %934 = vmatpush.msra.mxu0 0.0
      %935 = vmatpush.msra.mxu0 0.0
      %936 = vmatpush.msra.mxu0 0.0
      %937 = vmatpush.msra.mxu0 0.0
      %938 = vmatpush.msra.mxu0 0.0
      %939 = vmatpush.msra.mxu0 0.0
      %940 = vmatpush.msra.mxu0 0.0
      %941 = vmatpush.msra.mxu0 0.0
      %942 = vmatpush.msra.mxu0 0.0
      %943 = vmatpush.msra.mxu0 0.0
      %944 = vmatpush.msra.mxu0 %v928
      %945 = vmatpush.msra.mxu0 %v927
      %946 = vmatpush.msra.mxu0 %v926
      %947 = vmatpush.msra.mxu0 %v925
      %948 = vmatmul.f32.gmra.mxu0 %v930
      %v949 = vpop.f32.mrf.mxu0
      %v950 = vadd.f32 0.0, %v949
      %951 = vdwg.mxu0
      %v952 = vadd.f32 %v564, %v950
      %v953 = vld [vmem:[%s6] sm:$0x1]
      %v955 = vperm.slane %v953, 0
      %v957 = vadd.f32 %v952, %v955
      %v958 = vld [vmem:[%s13] sm:$0x1]
      %v959 = vld [vmem:[%s14] sm:$0x1]
      %v960 = vsel %vm568, %v957, 0.0
      %961 = vadd.xlane.f32.xlu0 %v960
      %v962 = vpop.xlane.xlu0 %961
      %v963 = vmul.f32 %v962, %v578
      %v964 = vsub.f32 %v957, %v963
      %v965 = vmul.f32 %v964, %v964
      %v966 = vsel %vm568, %v965, 0.0
      %967 = vadd.xlane.f32.xlu0 %v966
      %v968 = vpop.xlane.xlu0 %967
      %v969 = vmul.f32 %v968, 0.032258064
      %v970 = vrsqrt.pop %v969
      %v971 = vmul.f32 %v970, %v969
      %v972 = vmul.f32 %v971, %v970
      %v973 = vmul.f32 0.5, %v972
      %v974 = vsub.f32 1.5, %v973
      %v975 = vmul.f32 %v970, %v974
      %v976 = vmul.f32 %v969, %v975
      %vm977 = vcmp.eq.f32.partialorder %v969, inf
      %v978 = vsel %vm977, %v969, %v976
      %vm979 = vcmp.eq.f32.partialorder %v969, 0.0
      %v980 = vand.u32 %v969, 2147483648
      %v981 = vsel %vm979, %v980, %v978
      %v982 = vadd.f32 %v981, 1e-06
      %v983 = vrcp.pop %v982
      %v985 = vperm.slane %v958, 0
      %v987 = vmul.f32 %v985, %v964
      %v988 = vmul.f32 %v987, %v983
      %v990 = vperm.slane %v959, 0
      %v992 = vadd.f32 %v988, %v990
      %v993 = vld [vmem:[%s9] sm:$0xff]
      %v994 = vld [vmem:[%s9 + $0x8] sm:$0xff]
      %v995 = vld [vmem:[%s9 + $0x10] sm:$0xff]
      %v996 = vld [vmem:[%s9 + $0x18] sm:$0xff]
      %v997 = vld [vmem:[%s10] sm:$0x1]
      %v999 = vperm.slane %v997, 0
      %v1002 = vsel %vm568, %v992, 0
      %1004 = vmatpush.msra.mxu0 0.0
      %1005 = vmatpush.msra.mxu0 0.0
      %1006 = vmatpush.msra.mxu0 0.0
      %1007 = vmatpush.msra.mxu0 0.0
      %1008 = vmatpush.msra.mxu0 0.0
      %1009 = vmatpush.msra.mxu0 0.0
      %1010 = vmatpush.msra.mxu0 0.0
      %1011 = vmatpush.msra.mxu0 0.0
      %1012 = vmatpush.msra.mxu0 0.0
      %1013 = vmatpush.msra.mxu0 0.0
      %1014 = vmatpush.msra.mxu0 0.0
      %1015 = vmatpush.msra.mxu0 0.0
      %1016 = vmatpush.msra.mxu0 %v996
      %1017 = vmatpush.msra.mxu0 %v995
      %1018 = vmatpush.msra.mxu0 %v994
      %1019 = vmatpush.msra.mxu0 %v993
      %1020 = vmatmul.f32.gmra.mxu0 %v1002
      %v1021 = vpop.f32.mrf.mxu0
      %v1022 = vadd.f32 %v999, %v1021
      %1023 = vdwg.mxu0
      %v1024 = vmax.f32 %v1022, 0.0
      %v1025 = vld [vmem:[%s11] sm:$0xff]
      %v1026 = vld [vmem:[%s11 + $0x8] sm:$0xff]
      %v1027 = vld [vmem:[%s11 + $0x10] sm:$0xff]
      %v1028 = vld [vmem:[%s11 + $0x18] sm:$0xff]
      %v1029 = vld [vmem:[%s11 + $0x20] sm:$0xff]
      %v1030 = vld [vmem:[%s11 + $0x28] sm:$0xff]
      %v1031 = vld [vmem:[%s11 + $0x30] sm:$0xff]
      %v1032 = vld [vmem:[%s11 + $0x38] sm:$0xff]
      %vm1033 = vcmask 523264
      %v1035 = vsel %vm1033, %v1024, 0
      %1037 = vmatpush.msra.mxu0 0.0
      %1038 = vmatpush.msra.mxu0 0.0
      %1039 = vmatpush.msra.mxu0 0.0
      %1040 = vmatpush.msra.mxu0 0.0
      %1041 = vmatpush.msra.mxu0 0.0
      %1042 = vmatpush.msra.mxu0 0.0
      %1043 = vmatpush.msra.mxu0 0.0
      %1044 = vmatpush.msra.mxu0 0.0
      %1045 = vmatpush.msra.mxu0 %v1032
      %1046 = vmatpush.msra.mxu0 %v1031
      %1047 = vmatpush.msra.mxu0 %v1030
      %1048 = vmatpush.msra.mxu0 %v1029
      %1049 = vmatpush.msra.mxu0 %v1028
      %1050 = vmatpush.msra.mxu0 %v1027
      %1051 = vmatpush.msra.mxu0 %v1026
      %1052 = vmatpush.msra.mxu0 %v1025
      %1053 = vmatmul.f32.gmra.mxu0 %v1035
      %v1054 = vpop.f32.mrf.mxu0
      %v1055 = vadd.f32 0.0, %v1054
      %1056 = vdwg.mxu0
      %v1057 = vadd.f32 %v957, %v1055
      %v1058 = vld [vmem:[%s12] sm:$0x1]
      %v1060 = vperm.slane %v1058, 0
      %v1062 = vadd.f32 %v1057, %v1060
      %s1063 = scalar_lea.vmem %s7, 1
      %v1064 = vld [vmem:[%s1063] sm:$0x1]
      %s1065 = scalar_lea.vmem %s8, 1
      %v1066 = vld [vmem:[%s1065] sm:$0x1]
      %v1067 = vsel %vm568, %v1062, 0.0
      %1068 = vadd.xlane.f32.xlu0 %v1067
      %v1069 = vpop.xlane.xlu0 %1068
      %v1070 = vmul.f32 %v1069, %v578
      %v1071 = vsub.f32 %v1062, %v1070
      %v1072 = vmul.f32 %v1071, %v1071
      %v1073 = vsel %vm568, %v1072, 0.0
      %1074 = vadd.xlane.f32.xlu0 %v1073
      %v1075 = vpop.xlane.xlu0 %1074
      %v1076 = vmul.f32 %v1075, 0.032258064
      %v1077 = vrsqrt.pop %v1076
      %v1078 = vmul.f32 %v1077, %v1076
      %v1079 = vmul.f32 %v1078, %v1077
      %v1080 = vmul.f32 0.5, %v1079
      %v1081 = vsub.f32 1.5, %v1080
      %v1082 = vmul.f32 %v1077, %v1081
      %v1083 = vmul.f32 %v1076, %v1082
      %vm1084 = vcmp.eq.f32.partialorder %v1076, inf
      %v1085 = vsel %vm1084, %v1076, %v1083
      %vm1086 = vcmp.eq.f32.partialorder %v1076, 0.0
      %v1087 = vand.u32 %v1076, 2147483648
      %v1088 = vsel %vm1086, %v1087, %v1085
      %v1089 = vadd.f32 %v1088, 1e-06
      %v1090 = vrcp.pop %v1089
      %v1092 = vperm.slane %v1064, 0
      %v1094 = vmul.f32 %v1092, %v1071
      %v1095 = vmul.f32 %v1094, %v1090
      %v1097 = vperm.slane %v1066, 0
      %v1099 = vadd.f32 %v1095, %v1097
      %s1100 = scalar_lea.vmem %s3, 32
      %v1101 = vld [vmem:[%s1100] sm:$0xff]
      %v1102 = vld [vmem:[%s1100 + $0x8] sm:$0xff]
      %v1103 = vld [vmem:[%s1100 + $0x10] sm:$0xff]
      %v1104 = vld [vmem:[%s1100 + $0x18] sm:$0xff]
      %s1105 = scalar_lea.vmem %s4, 1
      %v1106 = vld [vmem:[%s1105] sm:$0x1]
      %v1108 = vperm.slane %v1106, 0
      %v1111 = vsel %vm568, %v1099, 0
      %1113 = vmatpush.msra.mxu0 0.0
      %1114 = vmatpush.msra.mxu0 0.0
      %1115 = vmatpush.msra.mxu0 0.0
      %1116 = vmatpush.msra.mxu0 0.0
      %1117 = vmatpush.msra.mxu0 0.0
      %1118 = vmatpush.msra.mxu0 0.0
      %1119 = vmatpush.msra.mxu0 0.0
      %1120 = vmatpush.msra.mxu0 0.0
      %1121 = vmatpush.msra.mxu0 0.0
      %1122 = vmatpush.msra.mxu0 0.0
      %1123 = vmatpush.msra.mxu0 0.0
      %1124 = vmatpush.msra.mxu0 0.0
      %1125 = vmatpush.msra.mxu0 %v1104
      %1126 = vmatpush.msra.mxu0 %v1103
      %1127 = vmatpush.msra.mxu0 %v1102
      %1128 = vmatpush.msra.mxu0 %v1101
      %1129 = vmatmul.f32.gmra.mxu0 %v1111
      %v1130 = vpop.f32.mrf.mxu0
      %v1131 = vadd.f32 %v1108, %v1130
      %1132 = vdwg.mxu0
      %1134 = vrot.lane.b32.xlu0 %v1131, 96
      %v1135 = vpop.permute.xlu0 %1134
      %v1136 = vsel %vm643, %v1131, 0
      %v1138 = vsel %vm643, %v1135, 0
      %1140 = vmatpush.xpose.msra.mxu0 0.0
      %1141 = vmatpush.xpose.msra.mxu0 0.0
      %1142 = vmatpush.xpose.msra.mxu0 0.0
      %1143 = vmatpush.xpose.msra.mxu0 0.0
      %1144 = vmatpush.xpose.msra.mxu0 0.0
      %1145 = vmatpush.xpose.msra.mxu0 0.0
      %1146 = vmatpush.xpose.msra.mxu0 0.0
      %1147 = vmatpush.xpose.msra.mxu0 0.0
      %1148 = vmatpush.xpose.msra.mxu0 0.0
      %1149 = vmatpush.xpose.msra.mxu0 0.0
      %1150 = vmatpush.xpose.msra.mxu0 0.0
      %1151 = vmatpush.xpose.msra.mxu0 0.0
      %1152 = vmatpush.xpose.msra.mxu0 0.0
      %1153 = vmatpush.xpose.msra.mxu0 0.0
      %1154 = vmatpush.xpose.msra.mxu0 0.0
      %1155 = vmatpush.xpose.msra.mxu0 %v1138
      %1156 = vmatmul.f32.gmra.mxu0 %v1136
      %v1157 = vpop.f32.mrf.mxu0
      %v1158 = vadd.f32 0.0, %v1157
      %1159 = vdwg.mxu0
      %v1160 = vmul.f32 %v1158, 0.35355338
      %v1161 = vadd.f32 %v1160, %v565
      %v1162 = vsel %vm643, %v1161, -inf
      %1163 = vmax.xlane.f32.xlu0 %v1162
      %v1164 = vpop.xlane.xlu0 %1163
      %v1165 = vsub.f32 %v1161, %v1164
      %v1166 = vmul.f32 %v1165, 1.442695
      %v1167 = vpow.pop %v1166
      %v1168 = vsel %vm643, %v1167, 0.0
      %1169 = vadd.xlane.f32.xlu0 %v1168
      %v1170 = vpop.xlane.xlu0 %1169
      %v1171 = vrcp.pop %v1170
      %v1172 = vmul.f32 %v1167, %v1171
      %1173 = vrot.lane.b32.xlu0 %v1131, 64
      %v1174 = vpop.permute.xlu0 %1173
      %v1177 = vsel %vm643, %v1172, 0
      %1179 = vmatpush.msra.mxu0 0.0
      %1180 = vmatpush.msra.mxu0 0.0
      %1181 = vmatpush.msra.mxu0 0.0
      %1182 = vmatpush.msra.mxu0 0.0
      %1183 = vmatpush.msra.mxu0 0.0
      %1184 = vmatpush.msra.mxu0 0.0
      %1185 = vmatpush.msra.mxu0 0.0
      %1186 = vmatpush.msra.mxu0 0.0
      %1187 = vmatpush.msra.mxu0 0.0
      %1188 = vmatpush.msra.mxu0 0.0
      %1189 = vmatpush.msra.mxu0 0.0
      %1190 = vmatpush.msra.mxu0 0.0
      %1191 = vmatpush.msra.mxu0 0.0
      %1192 = vmatpush.msra.mxu0 0.0
      %1193 = vmatpush.msra.mxu0 0.0
      %1194 = vmatpush.msra.mxu0 %v1174
      %1195 = vmatmul.f32.gmra.mxu0 %v1177
      %v1196 = vpop.f32.mrf.mxu0
      %v1197 = vadd.f32 0.0, %v1196
      %1198 = vdwg.mxu0
      %1199 = vrot.lane.b32.xlu0 %v1131, 120
      %v1200 = vpop.permute.xlu0 %1199
      %1201 = vrot.lane.b32.xlu0 %v1131, 88
      %v1202 = vpop.permute.xlu0 %1201
      %v1203 = vsel %vm643, %v1200, 0
      %v1205 = vsel %vm643, %v1202, 0
      %1207 = vmatpush.xpose.msra.mxu0 0.0
      %1208 = vmatpush.xpose.msra.mxu0 0.0
      %1209 = vmatpush.xpose.msra.mxu0 0.0
      %1210 = vmatpush.xpose.msra.mxu0 0.0
      %1211 = vmatpush.xpose.msra.mxu0 0.0
      %1212 = vmatpush.xpose.msra.mxu0 0.0
      %1213 = vmatpush.xpose.msra.mxu0 0.0
      %1214 = vmatpush.xpose.msra.mxu0 0.0
      %1215 = vmatpush.xpose.msra.mxu0 0.0
      %1216 = vmatpush.xpose.msra.mxu0 0.0
      %1217 = vmatpush.xpose.msra.mxu0 0.0
      %1218 = vmatpush.xpose.msra.mxu0 0.0
      %1219 = vmatpush.xpose.msra.mxu0 0.0
      %1220 = vmatpush.xpose.msra.mxu0 0.0
      %1221 = vmatpush.xpose.msra.mxu0 0.0
      %1222 = vmatpush.xpose.msra.mxu0 %v1205
      %1223 = vmatmul.f32.gmra.mxu0 %v1203
      %v1224 = vpop.f32.mrf.mxu0
      %v1225 = vadd.f32 0.0, %v1224
      %1226 = vdwg.mxu0
      %v1227 = vmul.f32 %v1225, 0.35355338
      %v1228 = vadd.f32 %v1227, %v565
      %v1229 = vsel %vm643, %v1228, -inf
      %1230 = vmax.xlane.f32.xlu0 %v1229
      %v1231 = vpop.xlane.xlu0 %1230
      %v1232 = vsub.f32 %v1228, %v1231
      %v1233 = vmul.f32 %v1232, 1.442695
      %v1234 = vpow.pop %v1233
      %v1235 = vsel %vm643, %v1234, 0.0
      %1236 = vadd.xlane.f32.xlu0 %v1235
      %v1237 = vpop.xlane.xlu0 %1236
      %v1238 = vrcp.pop %v1237
      %v1239 = vmul.f32 %v1234, %v1238
      %1240 = vrot.lane.b32.xlu0 %v1131, 56
      %v1241 = vpop.permute.xlu0 %1240
      %v1244 = vsel %vm643, %v1239, 0
      %1246 = vmatpush.msra.mxu0 0.0
      %1247 = vmatpush.msra.mxu0 0.0
      %1248 = vmatpush.msra.mxu0 0.0
      %1249 = vmatpush.msra.mxu0 0.0
      %1250 = vmatpush.msra.mxu0 0.0
      %1251 = vmatpush.msra.mxu0 0.0
      %1252 = vmatpush.msra.mxu0 0.0
      %1253 = vmatpush.msra.mxu0 0.0
      %1254 = vmatpush.msra.mxu0 0.0
      %1255 = vmatpush.msra.mxu0 0.0
      %1256 = vmatpush.msra.mxu0 0.0
      %1257 = vmatpush.msra.mxu0 0.0
      %1258 = vmatpush.msra.mxu0 0.0
      %1259 = vmatpush.msra.mxu0 0.0
      %1260 = vmatpush.msra.mxu0 0.0
      %1261 = vmatpush.msra.mxu0 %v1241
      %1262 = vmatmul.f32.gmra.mxu0 %v1244
      %v1263 = vpop.f32.mrf.mxu0
      %v1264 = vadd.f32 0.0, %v1263
      %1265 = vdwg.mxu0
      %1266 = vrot.lane.b32.xlu0 %v1131, 112
      %v1267 = vpop.permute.xlu0 %1266
      %1268 = vrot.lane.b32.xlu0 %v1131, 80
      %v1269 = vpop.permute.xlu0 %1268
      %v1270 = vsel %vm643, %v1267, 0
      %v1272 = vsel %vm643, %v1269, 0
      %1274 = vmatpush.xpose.msra.mxu0 0.0
      %1275 = vmatpush.xpose.msra.mxu0 0.0
      %1276 = vmatpush.xpose.msra.mxu0 0.0
      %1277 = vmatpush.xpose.msra.mxu0 0.0
      %1278 = vmatpush.xpose.msra.mxu0 0.0
      %1279 = vmatpush.xpose.msra.mxu0 0.0
      %1280 = vmatpush.xpose.msra.mxu0 0.0
      %1281 = vmatpush.xpose.msra.mxu0 0.0
      %1282 = vmatpush.xpose.msra.mxu0 0.0
      %1283 = vmatpush.xpose.msra.mxu0 0.0
      %1284 = vmatpush.xpose.msra.mxu0 0.0
      %1285 = vmatpush.xpose.msra.mxu0 0.0
      %1286 = vmatpush.xpose.msra.mxu0 0.0
      %1287 = vmatpush.xpose.msra.mxu0 0.0
      %1288 = vmatpush.xpose.msra.mxu0 0.0
      %1289 = vmatpush.xpose.msra.mxu0 %v1272
      %1290 = vmatmul.f32.gmra.mxu0 %v1270
      %v1291 = vpop.f32.mrf.mxu0
      %v1292 = vadd.f32 0.0, %v1291
      %1293 = vdwg.mxu0
      %v1294 = vmul.f32 %v1292, 0.35355338
      %v1295 = vadd.f32 %v1294, %v565
      %v1296 = vsel %vm643, %v1295, -inf
      %1297 = vmax.xlane.f32.xlu0 %v1296
      %v1298 = vpop.xlane.xlu0 %1297
      %v1299 = vsub.f32 %v1295, %v1298
      %v1300 = vmul.f32 %v1299, 1.442695
      %v1301 = vpow.pop %v1300
      %v1302 = vsel %vm643, %v1301, 0.0
      %1303 = vadd.xlane.f32.xlu0 %v1302
      %v1304 = vpop.xlane.xlu0 %1303
      %v1305 = vrcp.pop %v1304
      %v1306 = vmul.f32 %v1301, %v1305
      %1307 = vrot.lane.b32.xlu0 %v1131, 48
      %v1308 = vpop.permute.xlu0 %1307
      %v1311 = vsel %vm643, %v1306, 0
      %1313 = vmatpush.msra.mxu0 0.0
      %1314 = vmatpush.msra.mxu0 0.0
      %1315 = vmatpush.msra.mxu0 0.0
      %1316 = vmatpush.msra.mxu0 0.0
      %1317 = vmatpush.msra.mxu0 0.0
      %1318 = vmatpush.msra.mxu0 0.0
      %1319 = vmatpush.msra.mxu0 0.0
      %1320 = vmatpush.msra.mxu0 0.0
      %1321 = vmatpush.msra.mxu0 0.0
      %1322 = vmatpush.msra.mxu0 0.0
      %1323 = vmatpush.msra.mxu0 0.0
      %1324 = vmatpush.msra.mxu0 0.0
      %1325 = vmatpush.msra.mxu0 0.0
      %1326 = vmatpush.msra.mxu0 0.0
      %1327 = vmatpush.msra.mxu0 0.0
      %1328 = vmatpush.msra.mxu0 %v1308
      %1329 = vmatmul.f32.gmra.mxu0 %v1311
      %v1330 = vpop.f32.mrf.mxu0
      %v1331 = vadd.f32 0.0, %v1330
      %1332 = vdwg.mxu0
      %1333 = vrot.lane.b32.xlu0 %v1131, 104
      %v1334 = vpop.permute.xlu0 %1333
      %1335 = vrot.lane.b32.xlu0 %v1131, 72
      %v1336 = vpop.permute.xlu0 %1335
      %v1337 = vsel %vm643, %v1334, 0
      %v1339 = vsel %vm643, %v1336, 0
      %1341 = vmatpush.xpose.msra.mxu0 0.0
      %1342 = vmatpush.xpose.msra.mxu0 0.0
      %1343 = vmatpush.xpose.msra.mxu0 0.0
      %1344 = vmatpush.xpose.msra.mxu0 0.0
      %1345 = vmatpush.xpose.msra.mxu0 0.0
      %1346 = vmatpush.xpose.msra.mxu0 0.0
      %1347 = vmatpush.xpose.msra.mxu0 0.0
      %1348 = vmatpush.xpose.msra.mxu0 0.0
      %1349 = vmatpush.xpose.msra.mxu0 0.0
      %1350 = vmatpush.xpose.msra.mxu0 0.0
      %1351 = vmatpush.xpose.msra.mxu0 0.0
      %1352 = vmatpush.xpose.msra.mxu0 0.0
      %1353 = vmatpush.xpose.msra.mxu0 0.0
      %1354 = vmatpush.xpose.msra.mxu0 0.0
      %1355 = vmatpush.xpose.msra.mxu0 0.0
      %1356 = vmatpush.xpose.msra.mxu0 %v1339
      %1357 = vmatmul.f32.gmra.mxu0 %v1337
      %v1358 = vpop.f32.mrf.mxu0
      %v1359 = vadd.f32 0.0, %v1358
      %1360 = vdwg.mxu0
      %v1361 = vmul.f32 %v1359, 0.35355338
      %v1362 = vadd.f32 %v1361, %v565
      %v1363 = vsel %vm643, %v1362, -inf
      %1364 = vmax.xlane.f32.xlu0 %v1363
      %v1365 = vpop.xlane.xlu0 %1364
      %v1366 = vsub.f32 %v1362, %v1365
      %v1367 = vmul.f32 %v1366, 1.442695
      %v1368 = vpow.pop %v1367
      %v1369 = vsel %vm643, %v1368, 0.0
      %1370 = vadd.xlane.f32.xlu0 %v1369
      %v1371 = vpop.xlane.xlu0 %1370
      %v1372 = vrcp.pop %v1371
      %v1373 = vmul.f32 %v1368, %v1372
      %1374 = vrot.lane.b32.xlu0 %v1131, 40
      %v1375 = vpop.permute.xlu0 %1374
      %v1378 = vsel %vm643, %v1373, 0
      %1380 = vmatpush.msra.mxu0 0.0
      %1381 = vmatpush.msra.mxu0 0.0
      %1382 = vmatpush.msra.mxu0 0.0
      %1383 = vmatpush.msra.mxu0 0.0
      %1384 = vmatpush.msra.mxu0 0.0
      %1385 = vmatpush.msra.mxu0 0.0
      %1386 = vmatpush.msra.mxu0 0.0
      %1387 = vmatpush.msra.mxu0 0.0
      %1388 = vmatpush.msra.mxu0 0.0
      %1389 = vmatpush.msra.mxu0 0.0
      %1390 = vmatpush.msra.mxu0 0.0
      %1391 = vmatpush.msra.mxu0 0.0
      %1392 = vmatpush.msra.mxu0 0.0
      %1393 = vmatpush.msra.mxu0 0.0
      %1394 = vmatpush.msra.mxu0 0.0
      %1395 = vmatpush.msra.mxu0 %v1375
      %1396 = vmatmul.f32.gmra.mxu0 %v1378
      %v1397 = vpop.f32.mrf.mxu0
      %v1398 = vadd.f32 0.0, %v1397
      %1399 = vdwg.mxu0
      %1401 = vrot.lane.b32.xlu0 %v1264, 8
      %v1402 = vpop.permute.xlu0 %1401
      %1405 = vrot.lane.b32.xlu0 %v1331, 16
      %v1406 = vpop.permute.xlu0 %1405
      %1409 = vrot.lane.b32.xlu0 %v1398, 24
      %v1410 = vpop.permute.xlu0 %1409
      %v1412 = vsel %vm643, %v1197, %v1402
      %v1413 = vsel %vm921, %v1412, %v1406
      %v1414 = vsel %vm923, %v1413, %v1410
      %s1415 = scalar_lea.vmem %s5, 32
      %v1416 = vld [vmem:[%s1415] sm:$0xff]
      %v1417 = vld [vmem:[%s1415 + $0x8] sm:$0xff]
      %v1418 = vld [vmem:[%s1415 + $0x10] sm:$0xff]
      %v1419 = vld [vmem:[%s1415 + $0x18] sm:$0xff]
      %v1421 = vsel %vm568, %v1414, 0
      %1423 = vmatpush.msra.mxu0 0.0
      %1424 = vmatpush.msra.mxu0 0.0
      %1425 = vmatpush.msra.mxu0 0.0
      %1426 = vmatpush.msra.mxu0 0.0
      %1427 = vmatpush.msra.mxu0 0.0
      %1428 = vmatpush.msra.mxu0 0.0
      %1429 = vmatpush.msra.mxu0 0.0
      %1430 = vmatpush.msra.mxu0 0.0
      %1431 = vmatpush.msra.mxu0 0.0
      %1432 = vmatpush.msra.mxu0 0.0
      %1433 = vmatpush.msra.mxu0 0.0
      %1434 = vmatpush.msra.mxu0 0.0
      %1435 = vmatpush.msra.mxu0 %v1419
      %1436 = vmatpush.msra.mxu0 %v1418
      %1437 = vmatpush.msra.mxu0 %v1417
      %1438 = vmatpush.msra.mxu0 %v1416
      %1439 = vmatmul.f32.gmra.mxu0 %v1421
      %v1440 = vpop.f32.mrf.mxu0
      %v1441 = vadd.f32 0.0, %v1440
      %1442 = vdwg.mxu0
      %v1443 = vadd.f32 %v1062, %v1441
      %s1444 = scalar_lea.vmem %s6, 1
      %v1445 = vld [vmem:[%s1444] sm:$0x1]
      %v1447 = vperm.slane %v1445, 0
      %v1449 = vadd.f32 %v1443, %v1447
      %s1450 = scalar_lea.vmem %s13, 1
      %v1451 = vld [vmem:[%s1450] sm:$0x1]
      %s1452 = scalar_lea.vmem %s14, 1
      %v1453 = vld [vmem:[%s1452] sm:$0x1]
      %v1454 = vsel %vm568, %v1449, 0.0
      %1455 = vadd.xlane.f32.xlu0 %v1454
      %v1456 = vpop.xlane.xlu0 %1455
      %v1457 = vmul.f32 %v1456, %v578
      %v1458 = vsub.f32 %v1449, %v1457
      %v1459 = vmul.f32 %v1458, %v1458
      %v1460 = vsel %vm568, %v1459, 0.0
      %1461 = vadd.xlane.f32.xlu0 %v1460
      %v1462 = vpop.xlane.xlu0 %1461
      %v1463 = vmul.f32 %v1462, 0.032258064
      %v1464 = vrsqrt.pop %v1463
      %v1465 = vmul.f32 %v1464, %v1463
      %v1466 = vmul.f32 %v1465, %v1464
      %v1467 = vmul.f32 0.5, %v1466
      %v1468 = vsub.f32 1.5, %v1467
      %v1469 = vmul.f32 %v1464, %v1468
      %v1470 = vmul.f32 %v1463, %v1469
      %vm1471 = vcmp.eq.f32.partialorder %v1463, inf
      %v1472 = vsel %vm1471, %v1463, %v1470
      %vm1473 = vcmp.eq.f32.partialorder %v1463, 0.0
      %v1474 = vand.u32 %v1463, 2147483648
      %v1475 = vsel %vm1473, %v1474, %v1472
      %v1476 = vadd.f32 %v1475, 1e-06
      %v1477 = vrcp.pop %v1476
      %v1479 = vperm.slane %v1451, 0
      %v1481 = vmul.f32 %v1479, %v1458
      %v1482 = vmul.f32 %v1481, %v1477
      %v1484 = vperm.slane %v1453, 0
      %v1486 = vadd.f32 %v1482, %v1484
      %s1487 = scalar_lea.vmem %s9, 32
      %v1488 = vld [vmem:[%s1487] sm:$0xff]
      %v1489 = vld [vmem:[%s1487 + $0x8] sm:$0xff]
      %v1490 = vld [vmem:[%s1487 + $0x10] sm:$0xff]
      %v1491 = vld [vmem:[%s1487 + $0x18] sm:$0xff]
      %s1492 = scalar_lea.vmem %s10, 1
      %v1493 = vld [vmem:[%s1492] sm:$0x1]
      %v1495 = vperm.slane %v1493, 0
      %v1498 = vsel %vm568, %v1486, 0
      %1500 = vmatpush.msra.mxu0 0.0
      %1501 = vmatpush.msra.mxu0 0.0
      %1502 = vmatpush.msra.mxu0 0.0
      %1503 = vmatpush.msra.mxu0 0.0
      %1504 = vmatpush.msra.mxu0 0.0
      %1505 = vmatpush.msra.mxu0 0.0
      %1506 = vmatpush.msra.mxu0 0.0
      %1507 = vmatpush.msra.mxu0 0.0
      %1508 = vmatpush.msra.mxu0 0.0
      %1509 = vmatpush.msra.mxu0 0.0
      %1510 = vmatpush.msra.mxu0 0.0
      %1511 = vmatpush.msra.mxu0 0.0
      %1512 = vmatpush.msra.mxu0 %v1491
      %1513 = vmatpush.msra.mxu0 %v1490
      %1514 = vmatpush.msra.mxu0 %v1489
      %1515 = vmatpush.msra.mxu0 %v1488
      %1516 = vmatmul.f32.gmra.mxu0 %v1498
      %v1517 = vpop.f32.mrf.mxu0
      %v1518 = vadd.f32 %v1495, %v1517
      %1519 = vdwg.mxu0
      %v1520 = vmax.f32 %v1518, 0.0
      %s1521 = scalar_lea.vmem %s11, 64
      %v1522 = vld [vmem:[%s1521] sm:$0xff]
      %v1523 = vld [vmem:[%s1521 + $0x8] sm:$0xff]
      %v1524 = vld [vmem:[%s1521 + $0x10] sm:$0xff]
      %v1525 = vld [vmem:[%s1521 + $0x18] sm:$0xff]
      %v1526 = vld [vmem:[%s1521 + $0x20] sm:$0xff]
      %v1527 = vld [vmem:[%s1521 + $0x28] sm:$0xff]
      %v1528 = vld [vmem:[%s1521 + $0x30] sm:$0xff]
      %v1529 = vld [vmem:[%s1521 + $0x38] sm:$0xff]
      %v1531 = vsel %vm1033, %v1520, 0
      %1533 = vmatpush.msra.mxu0 0.0
      %1534 = vmatpush.msra.mxu0 0.0
      %1535 = vmatpush.msra.mxu0 0.0
      %1536 = vmatpush.msra.mxu0 0.0
      %1537 = vmatpush.msra.mxu0 0.0
      %1538 = vmatpush.msra.mxu0 0.0
      %1539 = vmatpush.msra.mxu0 0.0
      %1540 = vmatpush.msra.mxu0 0.0
      %1541 = vmatpush.msra.mxu0 %v1529
      %1542 = vmatpush.msra.mxu0 %v1528
      %1543 = vmatpush.msra.mxu0 %v1527
      %1544 = vmatpush.msra.mxu0 %v1526
      %1545 = vmatpush.msra.mxu0 %v1525
      %1546 = vmatpush.msra.mxu0 %v1524
      %1547 = vmatpush.msra.mxu0 %v1523
      %1548 = vmatpush.msra.mxu0 %v1522
      %1549 = vmatmul.f32.gmra.mxu0 %v1531
      %v1550 = vpop.f32.mrf.mxu0
      %v1551 = vadd.f32 0.0, %v1550
      %1552 = vdwg.mxu0
      %v1553 = vadd.f32 %v1449, %v1551
      %s1554 = scalar_lea.vmem %s12, 1
      %v1555 = vld [vmem:[%s1554] sm:$0x1]
      %v1557 = vperm.slane %v1555, 0
      %v1559 = vadd.f32 %v1553, %v1557
      %v1560 = vld [vmem:[%s15] sm:$0x1]
      %v1561 = vld [vmem:[%s16] sm:$0x1]
      %v1562 = vsel %vm568, %v1559, 0.0
      %1563 = vadd.xlane.f32.xlu0 %v1562
      %v1564 = vpop.xlane.xlu0 %1563
      %v1565 = vmul.f32 %v1564, %v578
      %v1566 = vsub.f32 %v1559, %v1565
      %v1567 = vmul.f32 %v1566, %v1566
      %v1568 = vsel %vm568, %v1567, 0.0
      %1569 = vadd.xlane.f32.xlu0 %v1568
      %v1570 = vpop.xlane.xlu0 %1569
      %v1571 = vmul.f32 %v1570, 0.032258064
      %v1572 = vrsqrt.pop %v1571
      %v1573 = vmul.f32 %v1572, %v1571
      %v1574 = vmul.f32 %v1573, %v1572
      %v1575 = vmul.f32 0.5, %v1574
      %v1576 = vsub.f32 1.5, %v1575
      %v1577 = vmul.f32 %v1572, %v1576
      %v1578 = vmul.f32 %v1571, %v1577
      %vm1579 = vcmp.eq.f32.partialorder %v1571, inf
      %v1580 = vsel %vm1579, %v1571, %v1578
      %vm1581 = vcmp.eq.f32.partialorder %v1571, 0.0
      %v1582 = vand.u32 %v1571, 2147483648
      %v1583 = vsel %vm1581, %v1582, %v1580
      %v1584 = vadd.f32 %v1583, 1e-06
      %v1585 = vrcp.pop %v1584
      %v1587 = vperm.slane %v1560, 0
      %v1589 = vmul.f32 %v1587, %v1566
      %v1590 = vmul.f32 %v1589, %v1585
      %v1592 = vperm.slane %v1561, 0
      %v1594 = vadd.f32 %v1590, %v1592
      %1595 = vst.msk [vmem:[%s560] sm:$0xff] %vm568, %v1594
      %p1596 = scmp.lt.s32.totalorder %s28, 1
      %s1597 = scalar_select %p1596, %s28, 1
      %s1598 = smul.addr %s1597, 8
      %s1599 = scalar_lea.vmem %s17, %s1598
      // Predicated region
      $region89: #{transformer_forward.2} parent=87 // pred_check
        %p1600 = pneg %p413
      $region90: #{transformer_forward.2} parent=87 // pred_check_branch
        %1602 = sbr.rel (%p1600) target = $region92
      $region91: #{transformer_forward.2} parent=87 // pred_region
        _
      $region92: #{transformer_forward.2} parent=87 // pred_fallthru
        _
    $region88: #{transformer_forward.2} parent=5 // pred_fallthru
      _
    %p1603 = scmp.le.s32.totalorder 2, %s23
    // Predicated region
    $region93: #{transformer_forward.2} parent=5 // pred_check
      %p1604 = pneg %p1603
    $region94: #{transformer_forward.2} parent=5 // pred_check_branch
      %1606 = sbr.rel (%p1604) target = $region96
    $region95: #{transformer_forward.2} parent=5 // pred_region
      %s1607 = ssub.s32 %s23, 2
      // Predicated region
      $region97: #{transformer_forward.2} parent=95 // pred_check
        %p1608 = pneg %p419
      $region98: #{transformer_forward.2} parent=95 // pred_check_branch
        %1610 = sbr.rel (%p1608) target = $region100
      $region99: #{transformer_forward.2} parent=95 // pred_region
        %p1611 = scmp.lt.s32.totalorder %s29, 1
        %s1612 = scalar_select %p1611, %s29, 1
        %s1613 = smul.addr %s1612, 8
        %s1614 = scalar_lea.vmem %s17, %s1613
      $region100: #{transformer_forward.2} parent=95 // pred_fallthru
        _
    $region96: #{transformer_forward.2} parent=5 // pred_fallthru
      _
  $region6: #{transformer_forward.2} parent=0 // loop_footer
    %s27 = sadd.s32 1, %s23
  $region7: #{transformer_forward.2} parent=0 // loop_footer_branch
    %22 = sbr.rel target = $region3
  $region8: #{transformer_forward.2} parent=0 // loop_exit
    _

// kernel: transformer_forward.3
$region0: #{transformer_forward.3}
  #allocation0 [shape = 'u32[]', space=smem, size = 0x4, offset = 0x4, fixed_abs, tag = 'smem constant byte address 0x4 - core index']
  #allocation1 [shape = 'u32[72,128]{1,0:T(1,128)}', space=vmem, size = 0x9000, scoped, tag = 'internal scratch']
  %s0 = inlined_call_operand.vmem [shape: f32[2,8,32], index: 0, kind: input, shape index: {}]
  %s1 = inlined_call_operand.vmem [shape: f32[8,32], index: 1, kind: input, shape index: {}]
  %s2 = inlined_call_operand.vmem [shape: f32[2,8,32], index: 2, kind: input, shape index: {}]
  %s3 = inlined_call_operand.vmem [shape: f32[2,8,8], index: 3, kind: input, shape index: {}]
  %s4 = inlined_call_operand.vmem [shape: f32[2,8,8], index: 4, kind: input, shape index: {}]
  %s5 = inlined_call_operand.vmem [shape: f32[2,32,96], index: 5, kind: input, shape index: {}]
  %s6 = inlined_call_operand.vmem [shape: f32[2,1,96], index: 6, kind: input, shape index: {}]
  %s7 = inlined_call_operand.vmem [shape: f32[2,32,32], index: 7, kind: input, shape index: {}]
  %s8 = inlined_call_operand.vmem [shape: f32[2,1,32], index: 8, kind: input, shape index: {}]
  %s9 = inlined_call_operand.vmem [shape: f32[2,1,32], index: 9, kind: input, shape index: {}]
  %s10 = inlined_call_operand.vmem [shape: f32[2,1,32], index: 10, kind: input, shape index: {}]
  %s11 = inlined_call_operand.vmem [shape: f32[2,32,32], index: 11, kind: input, shape index: {}]
  %s12 = inlined_call_operand.vmem [shape: f32[2,1,32], index: 12, kind: input, shape index: {}]
  %s13 = inlined_call_operand.vmem [shape: f32[2,32,64], index: 13, kind: input, shape index: {}]
  %s14 = inlined_call_operand.vmem [shape: f32[2,1,64], index: 14, kind: input, shape index: {}]
  %s15 = inlined_call_operand.vmem [shape: f32[2,32,32], index: 15, kind: input, shape index: {}]
  %s16 = inlined_call_operand.vmem [shape: f32[2,1,32], index: 16, kind: input, shape index: {}]
  %s17 = inlined_call_operand.vmem [shape: f32[2,1,32], index: 17, kind: input, shape index: {}]
  %s18 = inlined_call_operand.vmem [shape: f32[2,1,32], index: 18, kind: input, shape index: {}]
  %s19 = inlined_call_operand.vmem [shape: f32[2,32,64], index: 19, kind: input, shape index: {}]
  %s20 = inlined_call_operand.vmem [shape: f32[2,1,64], index: 20, kind: input, shape index: {}]
  %s21 = inlined_call_operand.vmem [shape: f32[2,64,32], index: 21, kind: input, shape index: {}]
  %s22 = inlined_call_operand.vmem [shape: f32[2,1,32], index: 22, kind: input, shape index: {}]
  %s23 = inlined_call_operand.vmem [shape: f32[2,1,32], index: 23, kind: input, shape index: {}]
  %s24 = inlined_call_operand.vmem [shape: f32[2,1,32], index: 24, kind: input, shape index: {}]
  %s25 = inlined_call_operand.vmem [shape: f32[1,32], index: 25, kind: input, shape index: {}]
  %s26 = inlined_call_operand.vmem [shape: f32[1,32], index: 26, kind: input, shape index: {}]
  %s27 = inlined_call_operand.hbm [shape: f32[2,8,32], index: 27, kind: output, shape index: {}]
  %s28 = sld [smem:[#allocation0]]
  $region141: #{transformer_forward.3} parent=0
    _
  %s30 = ssub.s32 1, %s28
  %s31 = scalar_select 0, %s30, %s28
  $region1: #{transformer_forward.3} parent=0
    #allocation2 [shape = 'u8[8192]{0}', space=vmem, size = 0x2000, scoped, tag = 'output window, operand 0']
    #allocation3 [shape = 's32[2]{0}', space=sflag, size = 0x8, scoped, tag = 'scoped memory for transformer_forward.3']
    %32 = vsyncpa [#allocation3], 0
    %s33 = scalar_lea.sflag [#allocation3], 1
    %34 = vsyncpa %s33, 0
    loop: start=0, step=1, limit=4
    $region2: #{transformer_forward.3} parent=1 // loop_pre_header
      _
    $region3: #{transformer_forward.3} parent=1 // loop_header
      %s36 = sphi 0, %s40
      %p37 = scmp.ge.s32.totalorder %s36, 4
      %s46 = sphi 0, %s48
      %s49 = sphi 0, %s46
      %s50 = sphi 0, %s49
      %s66 = sphi 0, %s50
      %s70 = sphi 0, %s70
      %s72 = sphi 0, %s70
      %s73 = sphi 0, %s72
      %s87 = sphi 0, %s73
      %s93 = sphi 0, %s95
      %s96 = sphi 0, %s93
      %s97 = sphi 0, %s96
      %s113 = sphi 0, %s97
      %s119 = sphi 0, %s121
      %s122 = sphi 0, %s119
      %s123 = sphi 0, %s122
      %s139 = sphi 0, %s123
      %s145 = sphi 0, %s147
      %s148 = sphi 0, %s145
      %s149 = sphi 0, %s148
      %s165 = sphi 0, %s149
      %s169 = sphi 0, %s169
      %s171 = sphi 0, %s169
      %s172 = sphi 0, %s171
      %s186 = sphi 0, %s172
      %s190 = sphi 0, %s190
      %s192 = sphi 0, %s190
      %s193 = sphi 0, %s192
      %s207 = sphi 0, %s193
      %s211 = sphi 0, %s211
      %s213 = sphi 0, %s211
      %s214 = sphi 0, %s213
      %s228 = sphi 0, %s214
      %s232 = sphi 0, %s232
      %s234 = sphi 0, %s232
      %s235 = sphi 0, %s234
      %s249 = sphi 0, %s235
      %s253 = sphi 0, %s253
      %s255 = sphi 0, %s253
      %s256 = sphi 0, %s255
      %s270 = sphi 0, %s256
      %s274 = sphi 0, %s274
      %s276 = sphi 0, %s274
      %s277 = sphi 0, %s276
      %s291 = sphi 0, %s277
      %s295 = sphi 0, %s295
      %s297 = sphi 0, %s295
      %s298 = sphi 0, %s297
      %s312 = sphi 0, %s298
      %s316 = sphi 0, %s316
      %s318 = sphi 0, %s316
      %s319 = sphi 0, %s318
      %s333 = sphi 0, %s319
      %s337 = sphi 0, %s337
      %s339 = sphi 0, %s337
      %s340 = sphi 0, %s339
      %s354 = sphi 0, %s340
      %s358 = sphi 0, %s358
      %s360 = sphi 0, %s358
      %s361 = sphi 0, %s360
      %s375 = sphi 0, %s361
      %s379 = sphi 0, %s379
      %s381 = sphi 0, %s379
      %s382 = sphi 0, %s381
      %s396 = sphi 0, %s382
      %s400 = sphi 0, %s400
      %s402 = sphi 0, %s400
      %s403 = sphi 0, %s402
      %s417 = sphi 0, %s403
      %s421 = sphi 0, %s421
      %s423 = sphi 0, %s421
      %s424 = sphi 0, %s423
      %s438 = sphi 0, %s424
      %s442 = sphi 0, %s442
      %s444 = sphi 0, %s442
      %s445 = sphi 0, %s444
      %s459 = sphi 0, %s445
      %s463 = sphi 0, %s463
      %s465 = sphi 0, %s463
      %s466 = sphi 0, %s465
      %s480 = sphi 0, %s466
      %s484 = sphi 0, %s484
      %s486 = sphi 0, %s484
      %s487 = sphi 0, %s486
      %s501 = sphi 0, %s487
      %s505 = sphi 0, %s505
      %s507 = sphi 0, %s505
      %s508 = sphi 0, %s507
      %s522 = sphi 0, %s508
      %s526 = sphi 0, %s526
      %s528 = sphi 0, %s526
      %s529 = sphi 0, %s528
      %s543 = sphi 0, %s529
      %s547 = sphi 0, %s547
      %s549 = sphi 0, %s547
      %s550 = sphi 0, %s549
      %s564 = sphi 0, %s550
      %s568 = sphi 0, %s568
      %s570 = sphi 0, %s568
      %s571 = sphi 0, %s570
      %s585 = sphi 0, %s571
      %s589 = sphi 0, %s589
      %s591 = sphi 0, %s589
      %s592 = sphi 0, %s591
      %s606 = sphi 0, %s592
      %s610 = sphi 0, %s610
      %s612 = sphi 0, %s610
      %s613 = sphi 0, %s612
      %s627 = sphi 0, %s613
      %s633 = sphi 0, %s635
      %s636 = sphi 0, %s633
      %s637 = sphi 0, %s636
      %s653 = sphi 0, %s637
    $region4: #{transformer_forward.3} parent=1 // loop_header_branch
      %39 = sbr.rel (%p37) target = $region8
    $region5: #{transformer_forward.3} parent=1 // loop_body
      %s41 = ssub.s32 %s36, 1
      %s42 = ssub.s32 %s36, 2
      %s43 = sadd.s32 %s36, 1
      %s44 = ssub.s32 %s36, %s43
      %p45 = scmp.eq.s32.totalorder %s44, 0
      %s47 = sadd.s32 %s46, 1
      %s48 = scalar_select %p45, %s46, %s47
      %p51 = pneg %p45
      %p52 = scmp.eq.s32.totalorder %s36, 1
      %p53 = por %p51, %p52
      %p54 = scmp.ne.s32.totalorder %s46, %s49
      %p55 = scmp.eq.s32.totalorder %s36, 0
      %p56 = por %p54, %p55
      %p57 = scmp.ne.s32.totalorder %s46, %s49
      %p58 = scmp.eq.s32.totalorder %s41, 1
      %p59 = por %p57, %p58
      %p60 = scmp.ne.s32.totalorder %s49, %s50
      %p61 = scmp.eq.s32.totalorder %s41, 0
      %p62 = por %p60, %p61
      %p63 = scmp.ne.s32.totalorder %s49, %s50
      %p64 = scmp.eq.s32.totalorder %s42, 1
      %p65 = por %p63, %p64
      %p67 = scmp.ne.s32.totalorder %s50, %s66
      %p68 = scmp.eq.s32.totalorder %s42, 0
      %p69 = por %p67, %p68
      %s71 = sadd.s32 %s70, 1
      %p74 = scmp.eq.s32.totalorder %s36, 1
      %p75 = scmp.ne.s32.totalorder %s70, %s72
      %p76 = scmp.eq.s32.totalorder %s36, 0
      %p77 = por %p75, %p76
      %p78 = scmp.ne.s32.totalorder %s70, %s72
      %p79 = scmp.eq.s32.totalorder %s41, 1
      %p80 = por %p78, %p79
      %p81 = scmp.ne.s32.totalorder %s72, %s73
      %p82 = scmp.eq.s32.totalorder %s41, 0
      %p83 = por %p81, %p82
      %p84 = scmp.ne.s32.totalorder %s72, %s73
      %p85 = scmp.eq.s32.totalorder %s42, 1
      %p86 = por %p84, %p85
      %p88 = scmp.ne.s32.totalorder %s73, %s87
      %p89 = scmp.eq.s32.totalorder %s42, 0
      %p90 = por %p88, %p89
      %s91 = ssub.s32 %s36, %s43
      %p92 = scmp.eq.s32.totalorder %s91, 0
      %s94 = sadd.s32 %s93, 1
      %s95 = scalar_select %p92, %s93, %s94
      %p98 = pneg %p92
      %p99 = scmp.eq.s32.totalorder %s36, 1
      %p100 = por %p98, %p99
      %p101 = scmp.ne.s32.totalorder %s93, %s96
      %p102 = scmp.eq.s32.totalorder %s36, 0
      %p103 = por %p101, %p102
      %p104 = scmp.ne.s32.totalorder %s93, %s96
      %p105 = scmp.eq.s32.totalorder %s41, 1
      %p106 = por %p104, %p105
      %p107 = scmp.ne.s32.totalorder %s96, %s97
      %p108 = scmp.eq.s32.totalorder %s41, 0
      %p109 = por %p107, %p108
      %p110 = scmp.ne.s32.totalorder %s96, %s97
      %p111 = scmp.eq.s32.totalorder %s42, 1
      %p112 = por %p110, %p111
      %p114 = scmp.ne.s32.totalorder %s97, %s113
      %p115 = scmp.eq.s32.totalorder %s42, 0
      %p116 = por %p114, %p115
      %s117 = ssub.s32 %s36, %s43
      %p118 = scmp.eq.s32.totalorder %s117, 0
      %s120 = sadd.s32 %s119, 1
      %s121 = scalar_select %p118, %s119, %s120
      %p124 = pneg %p118
      %p125 = scmp.eq.s32.totalorder %s36, 1
      %p126 = por %p124, %p125
      %p127 = scmp.ne.s32.totalorder %s119, %s122
      %p128 = scmp.eq.s32.totalorder %s36, 0
      %p129 = por %p127, %p128
      %p130 = scmp.ne.s32.totalorder %s119, %s122
      %p131 = scmp.eq.s32.totalorder %s41, 1
      %p132 = por %p130, %p131
      %p133 = scmp.ne.s32.totalorder %s122, %s123
      %p134 = scmp.eq.s32.totalorder %s41, 0
      %p135 = por %p133, %p134
      %p136 = scmp.ne.s32.totalorder %s122, %s123
      %p137 = scmp.eq.s32.totalorder %s42, 1
      %p138 = por %p136, %p137
      %p140 = scmp.ne.s32.totalorder %s123, %s139
      %p141 = scmp.eq.s32.totalorder %s42, 0
      %p142 = por %p140, %p141
      %s143 = ssub.s32 %s36, %s43
      %p144 = scmp.eq.s32.totalorder %s143, 0
      %s146 = sadd.s32 %s145, 1
      %s147 = scalar_select %p144, %s145, %s146
      %p150 = pneg %p144
      %p151 = scmp.eq.s32.totalorder %s36, 1
      %p152 = por %p150, %p151
      %p153 = scmp.ne.s32.totalorder %s145, %s148
      %p154 = scmp.eq.s32.totalorder %s36, 0
      %p155 = por %p153, %p154
      %p156 = scmp.ne.s32.totalorder %s145, %s148
      %p157 = scmp.eq.s32.totalorder %s41, 1
      %p158 = por %p156, %p157
      %p159 = scmp.ne.s32.totalorder %s148, %s149
      %p160 = scmp.eq.s32.totalorder %s41, 0
      %p161 = por %p159, %p160
      %p162 = scmp.ne.s32.totalorder %s148, %s149
      %p163 = scmp.eq.s32.totalorder %s42, 1
      %p164 = por %p162, %p163
      %p166 = scmp.ne.s32.totalorder %s149, %s165
      %p167 = scmp.eq.s32.totalorder %s42, 0
      %p168 = por %p166, %p167
      %s170 = sadd.s32 %s169, 1
      %p173 = scmp.eq.s32.totalorder %s36, 1
      %p174 = scmp.ne.s32.totalorder %s169, %s171
      %p175 = scmp.eq.s32.totalorder %s36, 0
      %p176 = por %p174, %p175
      %p177 = scmp.ne.s32.totalorder %s169, %s171
      %p178 = scmp.eq.s32.totalorder %s41, 1
      %p179 = por %p177, %p178
      %p180 = scmp.ne.s32.totalorder %s171, %s172
      %p181 = scmp.eq.s32.totalorder %s41, 0
      %p182 = por %p180, %p181
      %p183 = scmp.ne.s32.totalorder %s171, %s172
      %p184 = scmp.eq.s32.totalorder %s42, 1
      %p185 = por %p183, %p184
      %p187 = scmp.ne.s32.totalorder %s172, %s186
      %p188 = scmp.eq.s32.totalorder %s42, 0
      %p189 = por %p187, %p188
      %s191 = sadd.s32 %s190, 1
      %p194 = scmp.eq.s32.totalorder %s36, 1
      %p195 = scmp.ne.s32.totalorder %s190, %s192
      %p196 = scmp.eq.s32.totalorder %s36, 0
      %p197 = por %p195, %p196
      %p198 = scmp.ne.s32.totalorder %s190, %s192
      %p199 = scmp.eq.s32.totalorder %s41, 1
      %p200 = por %p198, %p199
      %p201 = scmp.ne.s32.totalorder %s192, %s193
      %p202 = scmp.eq.s32.totalorder %s41, 0
      %p203 = por %p201, %p202
      %p204 = scmp.ne.s32.totalorder %s192, %s193
      %p205 = scmp.eq.s32.totalorder %s42, 1
      %p206 = por %p204, %p205
      %p208 = scmp.ne.s32.totalorder %s193, %s207
      %p209 = scmp.eq.s32.totalorder %s42, 0
      %p210 = por %p208, %p209
      %s212 = sadd.s32 %s211, 1
      %p215 = scmp.eq.s32.totalorder %s36, 1
      %p216 = scmp.ne.s32.totalorder %s211, %s213
      %p217 = scmp.eq.s32.totalorder %s36, 0
      %p218 = por %p216, %p217
      %p219 = scmp.ne.s32.totalorder %s211, %s213
      %p220 = scmp.eq.s32.totalorder %s41, 1
      %p221 = por %p219, %p220
      %p222 = scmp.ne.s32.totalorder %s213, %s214
      %p223 = scmp.eq.s32.totalorder %s41, 0
      %p224 = por %p222, %p223
      %p225 = scmp.ne.s32.totalorder %s213, %s214
      %p226 = scmp.eq.s32.totalorder %s42, 1
      %p227 = por %p225, %p226
      %p229 = scmp.ne.s32.totalorder %s214, %s228
      %p230 = scmp.eq.s32.totalorder %s42, 0
      %p231 = por %p229, %p230
      %s233 = sadd.s32 %s232, 1
      %p236 = scmp.eq.s32.totalorder %s36, 1
      %p237 = scmp.ne.s32.totalorder %s232, %s234
      %p238 = scmp.eq.s32.totalorder %s36, 0
      %p239 = por %p237, %p238
      %p240 = scmp.ne.s32.totalorder %s232, %s234
      %p241 = scmp.eq.s32.totalorder %s41, 1
      %p242 = por %p240, %p241
      %p243 = scmp.ne.s32.totalorder %s234, %s235
      %p244 = scmp.eq.s32.totalorder %s41, 0
      %p245 = por %p243, %p244
      %p246 = scmp.ne.s32.totalorder %s234, %s235
      %p247 = scmp.eq.s32.totalorder %s42, 1
      %p248 = por %p246, %p247
      %p250 = scmp.ne.s32.totalorder %s235, %s249
      %p251 = scmp.eq.s32.totalorder %s42, 0
      %p252 = por %p250, %p251
      %s254 = sadd.s32 %s253, 1
      %p257 = scmp.eq.s32.totalorder %s36, 1
      %p258 = scmp.ne.s32.totalorder %s253, %s255
      %p259 = scmp.eq.s32.totalorder %s36, 0
      %p260 = por %p258, %p259
      %p261 = scmp.ne.s32.totalorder %s253, %s255
      %p262 = scmp.eq.s32.totalorder %s41, 1
      %p263 = por %p261, %p262
      %p264 = scmp.ne.s32.totalorder %s255, %s256
      %p265 = scmp.eq.s32.totalorder %s41, 0
      %p266 = por %p264, %p265
      %p267 = scmp.ne.s32.totalorder %s255, %s256
      %p268 = scmp.eq.s32.totalorder %s42, 1
      %p269 = por %p267, %p268
      %p271 = scmp.ne.s32.totalorder %s256, %s270
      %p272 = scmp.eq.s32.totalorder %s42, 0
      %p273 = por %p271, %p272
      %s275 = sadd.s32 %s274, 1
      %p278 = scmp.eq.s32.totalorder %s36, 1
      %p279 = scmp.ne.s32.totalorder %s274, %s276
      %p280 = scmp.eq.s32.totalorder %s36, 0
      %p281 = por %p279, %p280
      %p282 = scmp.ne.s32.totalorder %s274, %s276
      %p283 = scmp.eq.s32.totalorder %s41, 1
      %p284 = por %p282, %p283
      %p285 = scmp.ne.s32.totalorder %s276, %s277
      %p286 = scmp.eq.s32.totalorder %s41, 0
      %p287 = por %p285, %p286
      %p288 = scmp.ne.s32.totalorder %s276, %s277
      %p289 = scmp.eq.s32.totalorder %s42, 1
      %p290 = por %p288, %p289
      %p292 = scmp.ne.s32.totalorder %s277, %s291
      %p293 = scmp.eq.s32.totalorder %s42, 0
      %p294 = por %p292, %p293
      %s296 = sadd.s32 %s295, 1
      %p299 = scmp.eq.s32.totalorder %s36, 1
      %p300 = scmp.ne.s32.totalorder %s295, %s297
      %p301 = scmp.eq.s32.totalorder %s36, 0
      %p302 = por %p300, %p301
      %p303 = scmp.ne.s32.totalorder %s295, %s297
      %p304 = scmp.eq.s32.totalorder %s41, 1
      %p305 = por %p303, %p304
      %p306 = scmp.ne.s32.totalorder %s297, %s298
      %p307 = scmp.eq.s32.totalorder %s41, 0
      %p308 = por %p306, %p307
      %p309 = scmp.ne.s32.totalorder %s297, %s298
      %p310 = scmp.eq.s32.totalorder %s42, 1
      %p311 = por %p309, %p310
      %p313 = scmp.ne.s32.totalorder %s298, %s312
      %p314 = scmp.eq.s32.totalorder %s42, 0
      %p315 = por %p313, %p314
      %s317 = sadd.s32 %s316, 1
      %p320 = scmp.eq.s32.totalorder %s36, 1
      %p321 = scmp.ne.s32.totalorder %s316, %s318
      %p322 = scmp.eq.s32.totalorder %s36, 0
      %p323 = por %p321, %p322
      %p324 = scmp.ne.s32.totalorder %s316, %s318
      %p325 = scmp.eq.s32.totalorder %s41, 1
      %p326 = por %p324, %p325
      %p327 = scmp.ne.s32.totalorder %s318, %s319
      %p328 = scmp.eq.s32.totalorder %s41, 0
      %p329 = por %p327, %p328
      %p330 = scmp.ne.s32.totalorder %s318, %s319
      %p331 = scmp.eq.s32.totalorder %s42, 1
      %p332 = por %p330, %p331
      %p334 = scmp.ne.s32.totalorder %s319, %s333
      %p335 = scmp.eq.s32.totalorder %s42, 0
      %p336 = por %p334, %p335
      %s338 = sadd.s32 %s337, 1
      %p341 = scmp.eq.s32.totalorder %s36, 1
      %p342 = scmp.ne.s32.totalorder %s337, %s339
      %p343 = scmp.eq.s32.totalorder %s36, 0
      %p344 = por %p342, %p343
      %p345 = scmp.ne.s32.totalorder %s337, %s339
      %p346 = scmp.eq.s32.totalorder %s41, 1
      %p347 = por %p345, %p346
      %p348 = scmp.ne.s32.totalorder %s339, %s340
      %p349 = scmp.eq.s32.totalorder %s41, 0
      %p350 = por %p348, %p349
      %p351 = scmp.ne.s32.totalorder %s339, %s340
      %p352 = scmp.eq.s32.totalorder %s42, 1
      %p353 = por %p351, %p352
      %p355 = scmp.ne.s32.totalorder %s340, %s354
      %p356 = scmp.eq.s32.totalorder %s42, 0
      %p357 = por %p355, %p356
      %s359 = sadd.s32 %s358, 1
      %p362 = scmp.eq.s32.totalorder %s36, 1
      %p363 = scmp.ne.s32.totalorder %s358, %s360
      %p364 = scmp.eq.s32.totalorder %s36, 0
      %p365 = por %p363, %p364
      %p366 = scmp.ne.s32.totalorder %s358, %s360
      %p367 = scmp.eq.s32.totalorder %s41, 1
      %p368 = por %p366, %p367
      %p369 = scmp.ne.s32.totalorder %s360, %s361
      %p370 = scmp.eq.s32.totalorder %s41, 0
      %p371 = por %p369, %p370
      %p372 = scmp.ne.s32.totalorder %s360, %s361
      %p373 = scmp.eq.s32.totalorder %s42, 1
      %p374 = por %p372, %p373
      %p376 = scmp.ne.s32.totalorder %s361, %s375
      %p377 = scmp.eq.s32.totalorder %s42, 0
      %p378 = por %p376, %p377
      %s380 = sadd.s32 %s379, 1
      %p383 = scmp.eq.s32.totalorder %s36, 1
      %p384 = scmp.ne.s32.totalorder %s379, %s381
      %p385 = scmp.eq.s32.totalorder %s36, 0
      %p386 = por %p384, %p385
      %p387 = scmp.ne.s32.totalorder %s379, %s381
      %p388 = scmp.eq.s32.totalorder %s41, 1
      %p389 = por %p387, %p388
      %p390 = scmp.ne.s32.totalorder %s381, %s382
      %p391 = scmp.eq.s32.totalorder %s41, 0
      %p392 = por %p390, %p391
      %p393 = scmp.ne.s32.totalorder %s381, %s382
      %p394 = scmp.eq.s32.totalorder %s42, 1
      %p395 = por %p393, %p394
      %p397 = scmp.ne.s32.totalorder %s382, %s396
      %p398 = scmp.eq.s32.totalorder %s42, 0
      %p399 = por %p397, %p398
      %s401 = sadd.s32 %s400, 1
      %p404 = scmp.eq.s32.totalorder %s36, 1
      %p405 = scmp.ne.s32.totalorder %s400, %s402
      %p406 = scmp.eq.s32.totalorder %s36, 0
      %p407 = por %p405, %p406
      %p408 = scmp.ne.s32.totalorder %s400, %s402
      %p409 = scmp.eq.s32.totalorder %s41, 1
      %p410 = por %p408, %p409
      %p411 = scmp.ne.s32.totalorder %s402, %s403
      %p412 = scmp.eq.s32.totalorder %s41, 0
      %p413 = por %p411, %p412
      %p414 = scmp.ne.s32.totalorder %s402, %s403
      %p415 = scmp.eq.s32.totalorder %s42, 1
      %p416 = por %p414, %p415
      %p418 = scmp.ne.s32.totalorder %s403, %s417
      %p419 = scmp.eq.s32.totalorder %s42, 0
      %p420 = por %p418, %p419
      %s422 = sadd.s32 %s421, 1
      %p425 = scmp.eq.s32.totalorder %s36, 1
      %p426 = scmp.ne.s32.totalorder %s421, %s423
      %p427 = scmp.eq.s32.totalorder %s36, 0
      %p428 = por %p426, %p427
      %p429 = scmp.ne.s32.totalorder %s421, %s423
      %p430 = scmp.eq.s32.totalorder %s41, 1
      %p431 = por %p429, %p430
      %p432 = scmp.ne.s32.totalorder %s423, %s424
      %p433 = scmp.eq.s32.totalorder %s41, 0
      %p434 = por %p432, %p433
      %p435 = scmp.ne.s32.totalorder %s423, %s424
      %p436 = scmp.eq.s32.totalorder %s42, 1
      %p437 = por %p435, %p436
      %p439 = scmp.ne.s32.totalorder %s424, %s438
      %p440 = scmp.eq.s32.totalorder %s42, 0
      %p441 = por %p439, %p440
      %s443 = sadd.s32 %s442, 1
      %p446 = scmp.eq.s32.totalorder %s36, 1
      %p447 = scmp.ne.s32.totalorder %s442, %s444
      %p448 = scmp.eq.s32.totalorder %s36, 0
      %p449 = por %p447, %p448
      %p450 = scmp.ne.s32.totalorder %s442, %s444
      %p451 = scmp.eq.s32.totalorder %s41, 1
      %p452 = por %p450, %p451
      %p453 = scmp.ne.s32.totalorder %s444, %s445
      %p454 = scmp.eq.s32.totalorder %s41, 0
      %p455 = por %p453, %p454
      %p456 = scmp.ne.s32.totalorder %s444, %s445
      %p457 = scmp.eq.s32.totalorder %s42, 1
      %p458 = por %p456, %p457
      %p460 = scmp.ne.s32.totalorder %s445, %s459
      %p461 = scmp.eq.s32.totalorder %s42, 0
      %p462 = por %p460, %p461
      %s464 = sadd.s32 %s463, 1
      %p467 = scmp.eq.s32.totalorder %s36, 1
      %p468 = scmp.ne.s32.totalorder %s463, %s465
      %p469 = scmp.eq.s32.totalorder %s36, 0
      %p470 = por %p468, %p469
      %p471 = scmp.ne.s32.totalorder %s463, %s465
      %p472 = scmp.eq.s32.totalorder %s41, 1
      %p473 = por %p471, %p472
      %p474 = scmp.ne.s32.totalorder %s465, %s466
      %p475 = scmp.eq.s32.totalorder %s41, 0
      %p476 = por %p474, %p475
      %p477 = scmp.ne.s32.totalorder %s465, %s466
      %p478 = scmp.eq.s32.totalorder %s42, 1
      %p479 = por %p477, %p478
      %p481 = scmp.ne.s32.totalorder %s466, %s480
      %p482 = scmp.eq.s32.totalorder %s42, 0
      %p483 = por %p481, %p482
      %s485 = sadd.s32 %s484, 1
      %p488 = scmp.eq.s32.totalorder %s36, 1
      %p489 = scmp.ne.s32.totalorder %s484, %s486
      %p490 = scmp.eq.s32.totalorder %s36, 0
      %p491 = por %p489, %p490
      %p492 = scmp.ne.s32.totalorder %s484, %s486
      %p493 = scmp.eq.s32.totalorder %s41, 1
      %p494 = por %p492, %p493
      %p495 = scmp.ne.s32.totalorder %s486, %s487
      %p496 = scmp.eq.s32.totalorder %s41, 0
      %p497 = por %p495, %p496
      %p498 = scmp.ne.s32.totalorder %s486, %s487
      %p499 = scmp.eq.s32.totalorder %s42, 1
      %p500 = por %p498, %p499
      %p502 = scmp.ne.s32.totalorder %s487, %s501
      %p503 = scmp.eq.s32.totalorder %s42, 0
      %p504 = por %p502, %p503
      %s506 = sadd.s32 %s505, 1
      %p509 = scmp.eq.s32.totalorder %s36, 1
      %p510 = scmp.ne.s32.totalorder %s505, %s507
      %p511 = scmp.eq.s32.totalorder %s36, 0
      %p512 = por %p510, %p511
      %p513 = scmp.ne.s32.totalorder %s505, %s507
      %p514 = scmp.eq.s32.totalorder %s41, 1
      %p515 = por %p513, %p514
      %p516 = scmp.ne.s32.totalorder %s507, %s508
      %p517 = scmp.eq.s32.totalorder %s41, 0
      %p518 = por %p516, %p517
      %p519 = scmp.ne.s32.totalorder %s507, %s508
      %p520 = scmp.eq.s32.totalorder %s42, 1
      %p521 = por %p519, %p520
      %p523 = scmp.ne.s32.totalorder %s508, %s522
      %p524 = scmp.eq.s32.totalorder %s42, 0
      %p525 = por %p523, %p524
      %s527 = sadd.s32 %s526, 1
      %p530 = scmp.eq.s32.totalorder %s36, 1
      %p531 = scmp.ne.s32.totalorder %s526, %s528
      %p532 = scmp.eq.s32.totalorder %s36, 0
      %p533 = por %p531, %p532
      %p534 = scmp.ne.s32.totalorder %s526, %s528
      %p535 = scmp.eq.s32.totalorder %s41, 1
      %p536 = por %p534, %p535
      %p537 = scmp.ne.s32.totalorder %s528, %s529
      %p538 = scmp.eq.s32.totalorder %s41, 0
      %p539 = por %p537, %p538
      %p540 = scmp.ne.s32.totalorder %s528, %s529
      %p541 = scmp.eq.s32.totalorder %s42, 1
      %p542 = por %p540, %p541
      %p544 = scmp.ne.s32.totalorder %s529, %s543
      %p545 = scmp.eq.s32.totalorder %s42, 0
      %p546 = por %p544, %p545
      %s548 = sadd.s32 %s547, 1
      %p551 = scmp.eq.s32.totalorder %s36, 1
      %p552 = scmp.ne.s32.totalorder %s547, %s549
      %p553 = scmp.eq.s32.totalorder %s36, 0
      %p554 = por %p552, %p553
      %p555 = scmp.ne.s32.totalorder %s547, %s549
      %p556 = scmp.eq.s32.totalorder %s41, 1
      %p557 = por %p555, %p556
      %p558 = scmp.ne.s32.totalorder %s549, %s550
      %p559 = scmp.eq.s32.totalorder %s41, 0
      %p560 = por %p558, %p559
      %p561 = scmp.ne.s32.totalorder %s549, %s550
      %p562 = scmp.eq.s32.totalorder %s42, 1
      %p563 = por %p561, %p562
      %p565 = scmp.ne.s32.totalorder %s550, %s564
      %p566 = scmp.eq.s32.totalorder %s42, 0
      %p567 = por %p565, %p566
      %s569 = sadd.s32 %s568, 1
      %p572 = scmp.eq.s32.totalorder %s36, 1
      %p573 = scmp.ne.s32.totalorder %s568, %s570
      %p574 = scmp.eq.s32.totalorder %s36, 0
      %p575 = por %p573, %p574
      %p576 = scmp.ne.s32.totalorder %s568, %s570
      %p577 = scmp.eq.s32.totalorder %s41, 1
      %p578 = por %p576, %p577
      %p579 = scmp.ne.s32.totalorder %s570, %s571
      %p580 = scmp.eq.s32.totalorder %s41, 0
      %p581 = por %p579, %p580
      %p582 = scmp.ne.s32.totalorder %s570, %s571
      %p583 = scmp.eq.s32.totalorder %s42, 1
      %p584 = por %p582, %p583
      %p586 = scmp.ne.s32.totalorder %s571, %s585
      %p587 = scmp.eq.s32.totalorder %s42, 0
      %p588 = por %p586, %p587
      %s590 = sadd.s32 %s589, 1
      %p593 = scmp.eq.s32.totalorder %s36, 1
      %p594 = scmp.ne.s32.totalorder %s589, %s591
      %p595 = scmp.eq.s32.totalorder %s36, 0
      %p596 = por %p594, %p595
      %p597 = scmp.ne.s32.totalorder %s589, %s591
      %p598 = scmp.eq.s32.totalorder %s41, 1
      %p599 = por %p597, %p598
      %p600 = scmp.ne.s32.totalorder %s591, %s592
      %p601 = scmp.eq.s32.totalorder %s41, 0
      %p602 = por %p600, %p601
      %p603 = scmp.ne.s32.totalorder %s591, %s592
      %p604 = scmp.eq.s32.totalorder %s42, 1
      %p605 = por %p603, %p604
      %p607 = scmp.ne.s32.totalorder %s592, %s606
      %p608 = scmp.eq.s32.totalorder %s42, 0
      %p609 = por %p607, %p608
      %s611 = sadd.s32 %s610, 1
      %p614 = scmp.eq.s32.totalorder %s36, 1
      %p615 = scmp.ne.s32.totalorder %s610, %s612
      %p616 = scmp.eq.s32.totalorder %s36, 0
      %p617 = por %p615, %p616
      %p618 = scmp.ne.s32.totalorder %s610, %s612
      %p619 = scmp.eq.s32.totalorder %s41, 1
      %p620 = por %p618, %p619
      %p621 = scmp.ne.s32.totalorder %s612, %s613
      %p622 = scmp.eq.s32.totalorder %s41, 0
      %p623 = por %p621, %p622
      %p624 = scmp.ne.s32.totalorder %s612, %s613
      %p625 = scmp.eq.s32.totalorder %s42, 1
      %p626 = por %p624, %p625
      %p628 = scmp.ne.s32.totalorder %s613, %s627
      %p629 = scmp.eq.s32.totalorder %s42, 0
      %p630 = por %p628, %p629
      %s631 = ssub.s32 %s36, %s43
      %p632 = scmp.eq.s32.totalorder %s631, 0
      %s634 = sadd.s32 %s633, 1
      %s635 = scalar_select %p632, %s633, %s634
      %p638 = pneg %p632
      %p639 = scmp.eq.s32.totalorder %s36, 1
      %p640 = por %p638, %p639
      %p641 = scmp.ne.s32.totalorder %s633, %s636
      %p642 = scmp.eq.s32.totalorder %s36, 0
      %p643 = por %p641, %p642
      %p644 = scmp.ne.s32.totalorder %s633, %s636
      %p645 = scmp.eq.s32.totalorder %s41, 1
      %p646 = por %p644, %p645
      %p647 = scmp.ne.s32.totalorder %s636, %s637
      %p648 = scmp.eq.s32.totalorder %s41, 0
      %p649 = por %p647, %p648
      %p650 = scmp.ne.s32.totalorder %s636, %s637
      %p651 = scmp.eq.s32.totalorder %s42, 1
      %p652 = por %p650, %p651
      %p654 = scmp.ne.s32.totalorder %s637, %s653
      %p655 = scmp.eq.s32.totalorder %s42, 0
      %p656 = por %p654, %p655
      %p657 = scmp.le.s32.totalorder 1, %s36
      %p658 = scmp.lt.s32.totalorder %s36, 3
      %p659 = pnand %p657, %p658
      %p660 = pneg %p659
      // Predicated region
      $region9: #{transformer_forward.3} parent=5 // pred_check
        _
      $region10: #{transformer_forward.3} parent=5 // pred_check_branch
        %662 = sbr.rel (%p659) target = $region12
      $region11: #{transformer_forward.3} parent=5 // pred_region
        %s663 = ssub.s32 %s36, 1
        // Predicated region
        $region13: #{transformer_forward.3} parent=11 // pred_check
          %p664 = pneg %p83
        $region14: #{transformer_forward.3} parent=11 // pred_check_branch
          %666 = sbr.rel (%p664) target = $region16
        $region15: #{transformer_forward.3} parent=11 // pred_region
          _
        $region16: #{transformer_forward.3} parent=11 // pred_fallthru
          _
        // Predicated region
        $region17: #{transformer_forward.3} parent=11 // pred_check
          %p667 = pneg %p182
        $region18: #{transformer_forward.3} parent=11 // pred_check_branch
          %669 = sbr.rel (%p667) target = $region20
        $region19: #{transformer_forward.3} parent=11 // pred_region
          _
        $region20: #{transformer_forward.3} parent=11 // pred_fallthru
          _
        // Predicated region
        $region21: #{transformer_forward.3} parent=11 // pred_check
          %p670 = pneg %p203
        $region22: #{transformer_forward.3} parent=11 // pred_check_branch
          %672 = sbr.rel (%p670) target = $region24
        $region23: #{transformer_forward.3} parent=11 // pred_region
          _
        $region24: #{transformer_forward.3} parent=11 // pred_fallthru
          _
        // Predicated region
        $region25: #{transformer_forward.3} parent=11 // pred_check
          %p673 = pneg %p224
        $region26: #{transformer_forward.3} parent=11 // pred_check_branch
          %675 = sbr.rel (%p673) target = $region28
        $region27: #{transformer_forward.3} parent=11 // pred_region
          _
        $region28: #{transformer_forward.3} parent=11 // pred_fallthru
          _
        // Predicated region
        $region29: #{transformer_forward.3} parent=11 // pred_check
          %p676 = pneg %p245
        $region30: #{transformer_forward.3} parent=11 // pred_check_branch
          %678 = sbr.rel (%p676) target = $region32
        $region31: #{transformer_forward.3} parent=11 // pred_region
          _
        $region32: #{transformer_forward.3} parent=11 // pred_fallthru
          _
        // Predicated region
        $region33: #{transformer_forward.3} parent=11 // pred_check
          %p679 = pneg %p266
        $region34: #{transformer_forward.3} parent=11 // pred_check_branch
          %681 = sbr.rel (%p679) target = $region36
        $region35: #{transformer_forward.3} parent=11 // pred_region
          _
        $region36: #{transformer_forward.3} parent=11 // pred_fallthru
          _
        // Predicated region
        $region37: #{transformer_forward.3} parent=11 // pred_check
          %p682 = pneg %p287
        $region38: #{transformer_forward.3} parent=11 // pred_check_branch
          %684 = sbr.rel (%p682) target = $region40
        $region39: #{transformer_forward.3} parent=11 // pred_region
          _
        $region40: #{transformer_forward.3} parent=11 // pred_fallthru
          _
        // Predicated region
        $region41: #{transformer_forward.3} parent=11 // pred_check
          %p685 = pneg %p308
        $region42: #{transformer_forward.3} parent=11 // pred_check_branch
          %687 = sbr.rel (%p685) target = $region44
        $region43: #{transformer_forward.3} parent=11 // pred_region
          _
        $region44: #{transformer_forward.3} parent=11 // pred_fallthru
          _
        // Predicated region
        $region45: #{transformer_forward.3} parent=11 // pred_check
          %p688 = pneg %p329
        $region46: #{transformer_forward.3} parent=11 // pred_check_branch
          %690 = sbr.rel (%p688) target = $region48
        $region47: #{transformer_forward.3} parent=11 // pred_region
          _
        $region48: #{transformer_forward.3} parent=11 // pred_fallthru
          _
        // Predicated region
        $region49: #{transformer_forward.3} parent=11 // pred_check
          %p691 = pneg %p350
        $region50: #{transformer_forward.3} parent=11 // pred_check_branch
          %693 = sbr.rel (%p691) target = $region52
        $region51: #{transformer_forward.3} parent=11 // pred_region
          _
        $region52: #{transformer_forward.3} parent=11 // pred_fallthru
          _
        // Predicated region
        $region53: #{transformer_forward.3} parent=11 // pred_check
          %p694 = pneg %p371
        $region54: #{transformer_forward.3} parent=11 // pred_check_branch
          %696 = sbr.rel (%p694) target = $region56
        $region55: #{transformer_forward.3} parent=11 // pred_region
          _
        $region56: #{transformer_forward.3} parent=11 // pred_fallthru
          _
        // Predicated region
        $region57: #{transformer_forward.3} parent=11 // pred_check
          %p697 = pneg %p392
        $region58: #{transformer_forward.3} parent=11 // pred_check_branch
          %699 = sbr.rel (%p697) target = $region60
        $region59: #{transformer_forward.3} parent=11 // pred_region
          _
        $region60: #{transformer_forward.3} parent=11 // pred_fallthru
          _
        // Predicated region
        $region61: #{transformer_forward.3} parent=11 // pred_check
          %p700 = pneg %p413
        $region62: #{transformer_forward.3} parent=11 // pred_check_branch
          %702 = sbr.rel (%p700) target = $region64
        $region63: #{transformer_forward.3} parent=11 // pred_region
          _
        $region64: #{transformer_forward.3} parent=11 // pred_fallthru
          _
        // Predicated region
        $region65: #{transformer_forward.3} parent=11 // pred_check
          %p703 = pneg %p434
        $region66: #{transformer_forward.3} parent=11 // pred_check_branch
          %705 = sbr.rel (%p703) target = $region68
        $region67: #{transformer_forward.3} parent=11 // pred_region
          _
        $region68: #{transformer_forward.3} parent=11 // pred_fallthru
          _
        // Predicated region
        $region69: #{transformer_forward.3} parent=11 // pred_check
          %p706 = pneg %p455
        $region70: #{transformer_forward.3} parent=11 // pred_check_branch
          %708 = sbr.rel (%p706) target = $region72
        $region71: #{transformer_forward.3} parent=11 // pred_region
          _
        $region72: #{transformer_forward.3} parent=11 // pred_fallthru
          _
        // Predicated region
        $region73: #{transformer_forward.3} parent=11 // pred_check
          %p709 = pneg %p476
        $region74: #{transformer_forward.3} parent=11 // pred_check_branch
          %711 = sbr.rel (%p709) target = $region76
        $region75: #{transformer_forward.3} parent=11 // pred_region
          _
        $region76: #{transformer_forward.3} parent=11 // pred_fallthru
          _
        // Predicated region
        $region77: #{transformer_forward.3} parent=11 // pred_check
          %p712 = pneg %p497
        $region78: #{transformer_forward.3} parent=11 // pred_check_branch
          %714 = sbr.rel (%p712) target = $region80
        $region79: #{transformer_forward.3} parent=11 // pred_region
          _
        $region80: #{transformer_forward.3} parent=11 // pred_fallthru
          _
        // Predicated region
        $region81: #{transformer_forward.3} parent=11 // pred_check
          %p715 = pneg %p518
        $region82: #{transformer_forward.3} parent=11 // pred_check_branch
          %717 = sbr.rel (%p715) target = $region84
        $region83: #{transformer_forward.3} parent=11 // pred_region
          _
        $region84: #{transformer_forward.3} parent=11 // pred_fallthru
          _
        // Predicated region
        $region85: #{transformer_forward.3} parent=11 // pred_check
          %p718 = pneg %p539
        $region86: #{transformer_forward.3} parent=11 // pred_check_branch
          %720 = sbr.rel (%p718) target = $region88
        $region87: #{transformer_forward.3} parent=11 // pred_region
          _
        $region88: #{transformer_forward.3} parent=11 // pred_fallthru
          _
        // Predicated region
        $region89: #{transformer_forward.3} parent=11 // pred_check
          %p721 = pneg %p560
        $region90: #{transformer_forward.3} parent=11 // pred_check_branch
          %723 = sbr.rel (%p721) target = $region92
        $region91: #{transformer_forward.3} parent=11 // pred_region
          _
        $region92: #{transformer_forward.3} parent=11 // pred_fallthru
          _
        // Predicated region
        $region93: #{transformer_forward.3} parent=11 // pred_check
          %p724 = pneg %p581
        $region94: #{transformer_forward.3} parent=11 // pred_check_branch
          %726 = sbr.rel (%p724) target = $region96
        $region95: #{transformer_forward.3} parent=11 // pred_region
          _
        $region96: #{transformer_forward.3} parent=11 // pred_fallthru
          _
        // Predicated region
        $region97: #{transformer_forward.3} parent=11 // pred_check
          %p727 = pneg %p602
        $region98: #{transformer_forward.3} parent=11 // pred_check_branch
          %729 = sbr.rel (%p727) target = $region100
        $region99: #{transformer_forward.3} parent=11 // pred_region
          _
        $region100: #{transformer_forward.3} parent=11 // pred_fallthru
          _
        // Predicated region
        $region101: #{transformer_forward.3} parent=11 // pred_check
          %p730 = pneg %p623
        $region102: #{transformer_forward.3} parent=11 // pred_check_branch
          %732 = sbr.rel (%p730) target = $region104
        $region103: #{transformer_forward.3} parent=11 // pred_region
          _
        $region104: #{transformer_forward.3} parent=11 // pred_fallthru
          _
      $region12: #{transformer_forward.3} parent=5 // pred_fallthru
        _
      %p733 = scmp.lt.s32.totalorder %s36, 2
      // Predicated region
      $region105: #{transformer_forward.3} parent=5 // pred_check
        %p734 = pneg %p733
      $region106: #{transformer_forward.3} parent=5 // pred_check_branch
        %736 = sbr.rel (%p734) target = $region108
      $region107: #{transformer_forward.3} parent=5 // pred_region
        // Predicated region
        $region109: #{transformer_forward.3} parent=107 // pred_check
          %p737 = pneg %p56
        $region110: #{transformer_forward.3} parent=107 // pred_check_branch
          %739 = sbr.rel (%p737) target = $region112
        $region111: #{transformer_forward.3} parent=107 // pred_region
          %p740 = scmp.lt.s32.totalorder %s36, 1
          %s741 = scalar_select %p740, %s36, 1
          %s742 = smul.addr %s741, 8
          %s743 = scalar_lea.vmem %s0, %s742
        $region112: #{transformer_forward.3} parent=107 // pred_fallthru
          _
        // Predicated region
        $region113: #{transformer_forward.3} parent=107 // pred_check
          %p744 = pneg %p103
        $region114: #{transformer_forward.3} parent=107 // pred_check_branch
          %746 = sbr.rel (%p744) target = $region116
        $region115: #{transformer_forward.3} parent=107 // pred_region
          %p747 = scmp.lt.s32.totalorder %s36, 1
          %s748 = scalar_select %p747, %s36, 1
          %s749 = smul.addr %s748, 8
          %s750 = scalar_lea.vmem %s2, %s749
        $region116: #{transformer_forward.3} parent=107 // pred_fallthru
          _
        // Predicated region
        $region117: #{transformer_forward.3} parent=107 // pred_check
          %p751 = pneg %p129
        $region118: #{transformer_forward.3} parent=107 // pred_check_branch
          %753 = sbr.rel (%p751) target = $region120
        $region119: #{transformer_forward.3} parent=107 // pred_region
          %p754 = scmp.lt.s32.totalorder %s36, 1
          %s755 = scalar_select %p754, %s36, 1
          %s756 = smul.addr %s755, 8
          %s757 = scalar_lea.vmem %s3, %s756
        $region120: #{transformer_forward.3} parent=107 // pred_fallthru
          _
        // Predicated region
        $region121: #{transformer_forward.3} parent=107 // pred_check
          %p758 = pneg %p155
        $region122: #{transformer_forward.3} parent=107 // pred_check_branch
          %760 = sbr.rel (%p758) target = $region124
        $region123: #{transformer_forward.3} parent=107 // pred_region
          %p761 = scmp.lt.s32.totalorder %s36, 1
          %s762 = scalar_select %p761, %s36, 1
          %s763 = smul.addr %s762, 8
          %s764 = scalar_lea.vmem %s4, %s763
        $region124: #{transformer_forward.3} parent=107 // pred_fallthru
          _
      $region108: #{transformer_forward.3} parent=5 // pred_fallthru
        _
      %p765 = scmp.le.s32.totalorder 1, %s36
      %p766 = scmp.lt.s32.totalorder %s36, 3
      %p767 = pnand %p765, %p766
      %p768 = pneg %p767
      // Predicated region
      $region125: #{transformer_forward.3} parent=5 // pred_check
        _
      $region126: #{transformer_forward.3} parent=5 // pred_check_branch
        %770 = sbr.rel (%p767) target = $region128
      $region127: #{transformer_forward.3} parent=5 // pred_region
        %s771 = ssub.s32 %s36, 1
        %p772 = scmp.lt.s32.totalorder %s41, 1
        %s773 = scalar_select %p772, %s41, 1
        %s774 = smul.addr %s773, 8
        %s775 = scalar_lea.vmem %s0, %s774
        %p776 = pneg %p62
        %p777 = pneg %p59
        %p778 = pneg %p83
        %p779 = pneg %p80
        %p780 = scmp.lt.s32.totalorder %s41, 1
        %s781 = scalar_select %p780, %s41, 1
        %s782 = smul.addr %s781, 8
        %s783 = scalar_lea.vmem %s2, %s782
        %p784 = pneg %p109
        %p785 = pneg %p106
        %p786 = scmp.lt.s32.totalorder %s41, 1
        %s787 = scalar_select %p786, %s41, 1
        %s788 = smul.addr %s787, 8
        %s789 = scalar_lea.vmem %s3, %s788
        %p790 = pneg %p135
        %p791 = pneg %p132
        %p792 = scmp.lt.s32.totalorder %s41, 1
        %s793 = scalar_select %p792, %s41, 1
        %s794 = smul.addr %s793, 8
        %s795 = scalar_lea.vmem %s4, %s794
        %p796 = pneg %p161
        %p797 = pneg %p158
        %p798 = pneg %p182
        %p799 = pneg %p179
        %p800 = pneg %p203
        %p801 = pneg %p200
        %p802 = pneg %p224
        %p803 = pneg %p221
        %p804 = pneg %p245
        %p805 = pneg %p242
        %p806 = pneg %p266
        %p807 = pneg %p263
        %p808 = pneg %p287
        %p809 = pneg %p284
        %p810 = pneg %p308
        %p811 = pneg %p305
        %p812 = pneg %p329
        %p813 = pneg %p326
        %p814 = pneg %p350
        %p815 = pneg %p347
        %p816 = pneg %p371
        %p817 = pneg %p368
        %p818 = pneg %p392
        %p819 = pneg %p389
        %p820 = pneg %p413
        %p821 = pneg %p410
        %p822 = pneg %p434
        %p823 = pneg %p431
        %p824 = pneg %p455
        %p825 = pneg %p452
        %p826 = pneg %p476
        %p827 = pneg %p473
        %p828 = pneg %p497
        %p829 = pneg %p494
        %p830 = pneg %p518
        %p831 = pneg %p515
        %p832 = pneg %p539
        %p833 = pneg %p536
        %p834 = pneg %p560
        %p835 = pneg %p557
        %p836 = pneg %p581
        %p837 = pneg %p578
        %p838 = pneg %p602
        %p839 = pneg %p599
        %p840 = pneg %p623
        %p841 = pneg %p620
        %p842 = pneg %p649
        %p843 = pneg %p646
        %s844 = sand.u32 %s636, 1
        %s845 = scalar_lea.sflag [#allocation3], %s844
        %s846 = sand.u32 %s636, 1
        %s847 = smul.addr %s846, 8
        %s848 = scalar_lea.vmem [#allocation2], %s847
        %p849 = scmp.lt.s32.totalorder %s41, 1
        %s850 = scalar_select %p849, %s41, 1
        %s851 = smul.addr %s850, 8
        %s852 = scalar_lea.vmem %s0, %s851
        %p853 = scmp.lt.s32.totalorder %s41, 1
        %s854 = scalar_select %p853, %s41, 1
        %s855 = smul.addr %s854, 8
        %s856 = scalar_lea.vmem %s2, %s855
        %p857 = scmp.lt.s32.totalorder %s41, 1
        %s858 = scalar_select %p857, %s41, 1
        %s859 = smul.addr %s858, 8
        %s860 = scalar_lea.vmem %s3, %s859
        %p861 = scmp.lt.s32.totalorder %s41, 1
        %s862 = scalar_select %p861, %s41, 1
        %s863 = smul.addr %s862, 8
        %s864 = scalar_lea.vmem %s4, %s863
        %v865 = vld [vmem:[%s852] sm:$0xff]
        %v866 = vmul.f32 %v865, 5.656854
        %v867 = vld [vmem:[%s1] sm:$0xff]
        %v868 = vadd.f32 %v866, %v867
        %v869 = vld [vmem:[%s856] sm:$0xff]
        %v870 = vld [vmem:[%s860] sm:$0xff]
        %v871 = vld [vmem:[%s864] sm:$0xff]
        %v872 = vld [vmem:[%s9] sm:$0x1]
        %v873 = vld [vmem:[%s10] sm:$0x1]
        %vm874 = vcmask 261120
        %v875 = vsel %vm874, %v868, 0.0
        %876 = vadd.xlane.f32.xlu0 %v875
        %v877 = vpop.xlane.xlu0 %876
        %v878 = vrcp.pop 32.0
        %v879 = vmul.f32 32.0, %v878
        %v880 = vsub.f32 1.0, %v879
        %v881 = vmul.f32 %v878, %v880
        %v882 = vadd.f32 %v878, %v881
        %vm883 = vweird.f32 %v878
        %v884 = vsel %vm883, %v878, %v882
        %v885 = vmul.f32 %v877, %v884
        %v886 = vsub.f32 %v868, %v885
        %v887 = vmul.f32 %v886, %v886
        %v888 = vsel %vm874, %v887, 0.0
        %889 = vadd.xlane.f32.xlu0 %v888
        %v890 = vpop.xlane.xlu0 %889
        %v891 = vmul.f32 %v890, 0.032258064
        %v892 = vrsqrt.pop %v891
        %v893 = vmul.f32 %v892, %v891
        %v894 = vmul.f32 %v893, %v892
        %v895 = vmul.f32 0.5, %v894
        %v896 = vsub.f32 1.5, %v895
        %v897 = vmul.f32 %v892, %v896
        %v898 = vmul.f32 %v891, %v897
        %vm899 = vcmp.eq.f32.partialorder %v891, inf
        %v900 = vsel %vm899, %v891, %v898
        %vm901 = vcmp.eq.f32.partialorder %v891, 0.0
        %v902 = vand.u32 %v891, 2147483648
        %v903 = vsel %vm901, %v902, %v900
        %v904 = vadd.f32 %v903, 1e-06
        %v905 = vrcp.pop %v904
        %v907 = vperm.slane %v872, 0
        %v909 = vmul.f32 %v907, %v886
        %v910 = vmul.f32 %v909, %v905
        %v912 = vperm.slane %v873, 0
        %v914 = vadd.f32 %v910, %v912
        %v915 = vld [vmem:[%s5] sm:$0xff]
        %v916 = vld [vmem:[%s5 + $0x8] sm:$0xff]
        %v917 = vld [vmem:[%s5 + $0x10] sm:$0xff]
        %v918 = vld [vmem:[%s5 + $0x18] sm:$0xff]
        %v919 = vld [vmem:[%s6] sm:$0x1]
        %v921 = vperm.slane %v919, 0
        %v924 = vsel %vm874, %v914, 0
        %926 = vmatpush.msra.mxu0 0.0
        %927 = vmatpush.msra.mxu0 0.0
        %928 = vmatpush.msra.mxu0 0.0
        %929 = vmatpush.msra.mxu0 0.0
        %930 = vmatpush.msra.mxu0 0.0
        %931 = vmatpush.msra.mxu0 0.0
        %932 = vmatpush.msra.mxu0 0.0
        %933 = vmatpush.msra.mxu0 0.0
        %934 = vmatpush.msra.mxu0 0.0
        %935 = vmatpush.msra.mxu0 0.0
        %936 = vmatpush.msra.mxu0 0.0
        %937 = vmatpush.msra.mxu0 0.0
        %938 = vmatpush.msra.mxu0 %v918
        %939 = vmatpush.msra.mxu0 %v917
        %940 = vmatpush.msra.mxu0 %v916
        %941 = vmatpush.msra.mxu0 %v915
        %942 = vmatmul.f32.gmra.mxu0 %v924
        %v943 = vpop.f32.mrf.mxu0
        %v944 = vadd.f32 %v921, %v943
        %945 = vdwg.mxu0
        %947 = vrot.lane.b32.xlu0 %v944, 96
        %v948 = vpop.permute.xlu0 %947
        %vm949 = vcmask 64512
        %v950 = vsel %vm949, %v944, 0
        %v952 = vsel %vm949, %v948, 0
        %954 = vmatpush.xpose.msra.mxu0 0.0
        %955 = vmatpush.xpose.msra.mxu0 0.0
        %956 = vmatpush.xpose.msra.mxu0 0.0
        %957 = vmatpush.xpose.msra.mxu0 0.0
        %958 = vmatpush.xpose.msra.mxu0 0.0
        %959 = vmatpush.xpose.msra.mxu0 0.0
        %960 = vmatpush.xpose.msra.mxu0 0.0
        %961 = vmatpush.xpose.msra.mxu0 0.0
        %962 = vmatpush.xpose.msra.mxu0 0.0
        %963 = vmatpush.xpose.msra.mxu0 0.0
        %964 = vmatpush.xpose.msra.mxu0 0.0
        %965 = vmatpush.xpose.msra.mxu0 0.0
        %966 = vmatpush.xpose.msra.mxu0 0.0
        %967 = vmatpush.xpose.msra.mxu0 0.0
        %968 = vmatpush.xpose.msra.mxu0 0.0
        %969 = vmatpush.xpose.msra.mxu0 %v952
        %970 = vmatmul.f32.gmra.mxu0 %v950
        %v971 = vpop.f32.mrf.mxu0
        %v972 = vadd.f32 0.0, %v971
        %973 = vdwg.mxu0
        %v974 = vmul.f32 %v972, 0.35355338
        %v975 = vadd.f32 %v974, %v870
        %v976 = vsel %vm949, %v975, -inf
        %977 = vmax.xlane.f32.xlu0 %v976
        %v978 = vpop.xlane.xlu0 %977
        %v979 = vsub.f32 %v975, %v978
        %v980 = vmul.f32 %v979, 1.442695
        %v981 = vpow.pop %v980
        %v982 = vsel %vm949, %v981, 0.0
        %983 = vadd.xlane.f32.xlu0 %v982
        %v984 = vpop.xlane.xlu0 %983
        %v985 = vrcp.pop %v984
        %v986 = vmul.f32 %v981, %v985
        %987 = vrot.lane.b32.xlu0 %v944, 64
        %v988 = vpop.permute.xlu0 %987
        %v991 = vsel %vm949, %v986, 0
        %993 = vmatpush.msra.mxu0 0.0
        %994 = vmatpush.msra.mxu0 0.0
        %995 = vmatpush.msra.mxu0 0.0
        %996 = vmatpush.msra.mxu0 0.0
        %997 = vmatpush.msra.mxu0 0.0
        %998 = vmatpush.msra.mxu0 0.0
        %999 = vmatpush.msra.mxu0 0.0
        %1000 = vmatpush.msra.mxu0 0.0
        %1001 = vmatpush.msra.mxu0 0.0
        %1002 = vmatpush.msra.mxu0 0.0
        %1003 = vmatpush.msra.mxu0 0.0
        %1004 = vmatpush.msra.mxu0 0.0
        %1005 = vmatpush.msra.mxu0 0.0
        %1006 = vmatpush.msra.mxu0 0.0
        %1007 = vmatpush.msra.mxu0 0.0
        %1008 = vmatpush.msra.mxu0 %v988
        %1009 = vmatmul.f32.gmra.mxu0 %v991
        %v1010 = vpop.f32.mrf.mxu0
        %v1011 = vadd.f32 0.0, %v1010
        %1012 = vdwg.mxu0
        %1013 = vrot.lane.b32.xlu0 %v944, 120
        %v1014 = vpop.permute.xlu0 %1013
        %1015 = vrot.lane.b32.xlu0 %v944, 88
        %v1016 = vpop.permute.xlu0 %1015
        %v1017 = vsel %vm949, %v1014, 0
        %v1019 = vsel %vm949, %v1016, 0
        %1021 = vmatpush.xpose.msra.mxu0 0.0
        %1022 = vmatpush.xpose.msra.mxu0 0.0
        %1023 = vmatpush.xpose.msra.mxu0 0.0
        %1024 = vmatpush.xpose.msra.mxu0 0.0
        %1025 = vmatpush.xpose.msra.mxu0 0.0
        %1026 = vmatpush.xpose.msra.mxu0 0.0
        %1027 = vmatpush.xpose.msra.mxu0 0.0
        %1028 = vmatpush.xpose.msra.mxu0 0.0
        %1029 = vmatpush.xpose.msra.mxu0 0.0
        %1030 = vmatpush.xpose.msra.mxu0 0.0
        %1031 = vmatpush.xpose.msra.mxu0 0.0
        %1032 = vmatpush.xpose.msra.mxu0 0.0
        %1033 = vmatpush.xpose.msra.mxu0 0.0
        %1034 = vmatpush.xpose.msra.mxu0 0.0
        %1035 = vmatpush.xpose.msra.mxu0 0.0
        %1036 = vmatpush.xpose.msra.mxu0 %v1019
        %1037 = vmatmul.f32.gmra.mxu0 %v1017
        %v1038 = vpop.f32.mrf.mxu0
        %v1039 = vadd.f32 0.0, %v1038
        %1040 = vdwg.mxu0
        %v1041 = vmul.f32 %v1039, 0.35355338
        %v1042 = vadd.f32 %v1041, %v870
        %v1043 = vsel %vm949, %v1042, -inf
        %1044 = vmax.xlane.f32.xlu0 %v1043
        %v1045 = vpop.xlane.xlu0 %1044
        %v1046 = vsub.f32 %v1042, %v1045
        %v1047 = vmul.f32 %v1046, 1.442695
        %v1048 = vpow.pop %v1047
        %v1049 = vsel %vm949, %v1048, 0.0
        %1050 = vadd.xlane.f32.xlu0 %v1049
        %v1051 = vpop.xlane.xlu0 %1050
        %v1052 = vrcp.pop %v1051
        %v1053 = vmul.f32 %v1048, %v1052
        %1054 = vrot.lane.b32.xlu0 %v944, 56
        %v1055 = vpop.permute.xlu0 %1054
        %v1058 = vsel %vm949, %v1053, 0
        %1060 = vmatpush.msra.mxu0 0.0
        %1061 = vmatpush.msra.mxu0 0.0
        %1062 = vmatpush.msra.mxu0 0.0
        %1063 = vmatpush.msra.mxu0 0.0
        %1064 = vmatpush.msra.mxu0 0.0
        %1065 = vmatpush.msra.mxu0 0.0
        %1066 = vmatpush.msra.mxu0 0.0
        %1067 = vmatpush.msra.mxu0 0.0
        %1068 = vmatpush.msra.mxu0 0.0
        %1069 = vmatpush.msra.mxu0 0.0
        %1070 = vmatpush.msra.mxu0 0.0
        %1071 = vmatpush.msra.mxu0 0.0
        %1072 = vmatpush.msra.mxu0 0.0
        %1073 = vmatpush.msra.mxu0 0.0
        %1074 = vmatpush.msra.mxu0 0.0
        %1075 = vmatpush.msra.mxu0 %v1055
        %1076 = vmatmul.f32.gmra.mxu0 %v1058
        %v1077 = vpop.f32.mrf.mxu0
        %v1078 = vadd.f32 0.0, %v1077
        %1079 = vdwg.mxu0
        %1080 = vrot.lane.b32.xlu0 %v944, 112
        %v1081 = vpop.permute.xlu0 %1080
        %1082 = vrot.lane.b32.xlu0 %v944, 80
        %v1083 = vpop.permute.xlu0 %1082
        %v1084 = vsel %vm949, %v1081, 0
        %v1086 = vsel %vm949, %v1083, 0
        %1088 = vmatpush.xpose.msra.mxu0 0.0
        %1089 = vmatpush.xpose.msra.mxu0 0.0
        %1090 = vmatpush.xpose.msra.mxu0 0.0
        %1091 = vmatpush.xpose.msra.mxu0 0.0
        %1092 = vmatpush.xpose.msra.mxu0 0.0
        %1093 = vmatpush.xpose.msra.mxu0 0.0
        %1094 = vmatpush.xpose.msra.mxu0 0.0
        %1095 = vmatpush.xpose.msra.mxu0 0.0
        %1096 = vmatpush.xpose.msra.mxu0 0.0
        %1097 = vmatpush.xpose.msra.mxu0 0.0
        %1098 = vmatpush.xpose.msra.mxu0 0.0
        %1099 = vmatpush.xpose.msra.mxu0 0.0
        %1100 = vmatpush.xpose.msra.mxu0 0.0
        %1101 = vmatpush.xpose.msra.mxu0 0.0
        %1102 = vmatpush.xpose.msra.mxu0 0.0
        %1103 = vmatpush.xpose.msra.mxu0 %v1086
        %1104 = vmatmul.f32.gmra.mxu0 %v1084
        %v1105 = vpop.f32.mrf.mxu0
        %v1106 = vadd.f32 0.0, %v1105
        %1107 = vdwg.mxu0
        %v1108 = vmul.f32 %v1106, 0.35355338
        %v1109 = vadd.f32 %v1108, %v870
        %v1110 = vsel %vm949, %v1109, -inf
        %1111 = vmax.xlane.f32.xlu0 %v1110
        %v1112 = vpop.xlane.xlu0 %1111
        %v1113 = vsub.f32 %v1109, %v1112
        %v1114 = vmul.f32 %v1113, 1.442695
        %v1115 = vpow.pop %v1114
        %v1116 = vsel %vm949, %v1115, 0.0
        %1117 = vadd.xlane.f32.xlu0 %v1116
        %v1118 = vpop.xlane.xlu0 %1117
        %v1119 = vrcp.pop %v1118
        %v1120 = vmul.f32 %v1115, %v1119
        %1121 = vrot.lane.b32.xlu0 %v944, 48
        %v1122 = vpop.permute.xlu0 %1121
        %v1125 = vsel %vm949, %v1120, 0
        %1127 = vmatpush.msra.mxu0 0.0
        %1128 = vmatpush.msra.mxu0 0.0
        %1129 = vmatpush.msra.mxu0 0.0
        %1130 = vmatpush.msra.mxu0 0.0
        %1131 = vmatpush.msra.mxu0 0.0
        %1132 = vmatpush.msra.mxu0 0.0
        %1133 = vmatpush.msra.mxu0 0.0
        %1134 = vmatpush.msra.mxu0 0.0
        %1135 = vmatpush.msra.mxu0 0.0
        %1136 = vmatpush.msra.mxu0 0.0
        %1137 = vmatpush.msra.mxu0 0.0
        %1138 = vmatpush.msra.mxu0 0.0
        %1139 = vmatpush.msra.mxu0 0.0
        %1140 = vmatpush.msra.mxu0 0.0
        %1141 = vmatpush.msra.mxu0 0.0
        %1142 = vmatpush.msra.mxu0 %v1122
        %1143 = vmatmul.f32.gmra.mxu0 %v1125
        %v1144 = vpop.f32.mrf.mxu0
        %v1145 = vadd.f32 0.0, %v1144
        %1146 = vdwg.mxu0
        %1147 = vrot.lane.b32.xlu0 %v944, 104
        %v1148 = vpop.permute.xlu0 %1147
        %1149 = vrot.lane.b32.xlu0 %v944, 72
        %v1150 = vpop.permute.xlu0 %1149
        %v1151 = vsel %vm949, %v1148, 0
        %v1153 = vsel %vm949, %v1150, 0
        %1155 = vmatpush.xpose.msra.mxu0 0.0
        %1156 = vmatpush.xpose.msra.mxu0 0.0
        %1157 = vmatpush.xpose.msra.mxu0 0.0
        %1158 = vmatpush.xpose.msra.mxu0 0.0
        %1159 = vmatpush.xpose.msra.mxu0 0.0
        %1160 = vmatpush.xpose.msra.mxu0 0.0
        %1161 = vmatpush.xpose.msra.mxu0 0.0
        %1162 = vmatpush.xpose.msra.mxu0 0.0
        %1163 = vmatpush.xpose.msra.mxu0 0.0
        %1164 = vmatpush.xpose.msra.mxu0 0.0
        %1165 = vmatpush.xpose.msra.mxu0 0.0
        %1166 = vmatpush.xpose.msra.mxu0 0.0
        %1167 = vmatpush.xpose.msra.mxu0 0.0
        %1168 = vmatpush.xpose.msra.mxu0 0.0
        %1169 = vmatpush.xpose.msra.mxu0 0.0
        %1170 = vmatpush.xpose.msra.mxu0 %v1153
        %1171 = vmatmul.f32.gmra.mxu0 %v1151
        %v1172 = vpop.f32.mrf.mxu0
        %v1173 = vadd.f32 0.0, %v1172
        %1174 = vdwg.mxu0
        %v1175 = vmul.f32 %v1173, 0.35355338
        %v1176 = vadd.f32 %v1175, %v870
        %v1177 = vsel %vm949, %v1176, -inf
        %1178 = vmax.xlane.f32.xlu0 %v1177
        %v1179 = vpop.xlane.xlu0 %1178
        %v1180 = vsub.f32 %v1176, %v1179
        %v1181 = vmul.f32 %v1180, 1.442695
        %v1182 = vpow.pop %v1181
        %v1183 = vsel %vm949, %v1182, 0.0
        %1184 = vadd.xlane.f32.xlu0 %v1183
        %v1185 = vpop.xlane.xlu0 %1184
        %v1186 = vrcp.pop %v1185
        %v1187 = vmul.f32 %v1182, %v1186
        %1188 = vrot.lane.b32.xlu0 %v944, 40
        %v1189 = vpop.permute.xlu0 %1188
        %v1192 = vsel %vm949, %v1187, 0
        %1194 = vmatpush.msra.mxu0 0.0
        %1195 = vmatpush.msra.mxu0 0.0
        %1196 = vmatpush.msra.mxu0 0.0
        %1197 = vmatpush.msra.mxu0 0.0
        %1198 = vmatpush.msra.mxu0 0.0
        %1199 = vmatpush.msra.mxu0 0.0
        %1200 = vmatpush.msra.mxu0 0.0
        %1201 = vmatpush.msra.mxu0 0.0
        %1202 = vmatpush.msra.mxu0 0.0
        %1203 = vmatpush.msra.mxu0 0.0
        %1204 = vmatpush.msra.mxu0 0.0
        %1205 = vmatpush.msra.mxu0 0.0
        %1206 = vmatpush.msra.mxu0 0.0
        %1207 = vmatpush.msra.mxu0 0.0
        %1208 = vmatpush.msra.mxu0 0.0
        %1209 = vmatpush.msra.mxu0 %v1189
        %1210 = vmatmul.f32.gmra.mxu0 %v1192
        %v1211 = vpop.f32.mrf.mxu0
        %v1212 = vadd.f32 0.0, %v1211
        %1213 = vdwg.mxu0
        %1215 = vrot.lane.b32.xlu0 %v1078, 8
        %v1216 = vpop.permute.xlu0 %1215
        %1219 = vrot.lane.b32.xlu0 %v1145, 16
        %v1220 = vpop.permute.xlu0 %1219
        %1223 = vrot.lane.b32.xlu0 %v1212, 24
        %v1224 = vpop.permute.xlu0 %1223
        %v1226 = vsel %vm949, %v1011, %v1216
        %vm1227 = vcmask 130048
        %v1228 = vsel %vm1227, %v1226, %v1220
        %vm1229 = vcmask 195584
        %v1230 = vsel %vm1229, %v1228, %v1224
        %v1231 = vld [vmem:[%s7] sm:$0xff]
        %v1232 = vld [vmem:[%s7 + $0x8] sm:$0xff]
        %v1233 = vld [vmem:[%s7 + $0x10] sm:$0xff]
        %v1234 = vld [vmem:[%s7 + $0x18] sm:$0xff]
        %v1236 = vsel %vm874, %v1230, 0
        %1238 = vmatpush.msra.mxu0 0.0
        %1239 = vmatpush.msra.mxu0 0.0
        %1240 = vmatpush.msra.mxu0 0.0
        %1241 = vmatpush.msra.mxu0 0.0
        %1242 = vmatpush.msra.mxu0 0.0
        %1243 = vmatpush.msra.mxu0 0.0
        %1244 = vmatpush.msra.mxu0 0.0
        %1245 = vmatpush.msra.mxu0 0.0
        %1246 = vmatpush.msra.mxu0 0.0
        %1247 = vmatpush.msra.mxu0 0.0
        %1248 = vmatpush.msra.mxu0 0.0
        %1249 = vmatpush.msra.mxu0 0.0
        %1250 = vmatpush.msra.mxu0 %v1234
        %1251 = vmatpush.msra.mxu0 %v1233
        %1252 = vmatpush.msra.mxu0 %v1232
        %1253 = vmatpush.msra.mxu0 %v1231
        %1254 = vmatmul.f32.gmra.mxu0 %v1236
        %v1255 = vpop.f32.mrf.mxu0
        %v1256 = vadd.f32 0.0, %v1255
        %1257 = vdwg.mxu0
        %v1258 = vadd.f32 %v868, %v1256
        %v1259 = vld [vmem:[%s8] sm:$0x1]
        %v1261 = vperm.slane %v1259, 0
        %v1263 = vadd.f32 %v1258, %v1261
        %v1264 = vld [vmem:[%s17] sm:$0x1]
        %v1265 = vld [vmem:[%s18] sm:$0x1]
        %v1266 = vsel %vm874, %v1263, 0.0
        %1267 = vadd.xlane.f32.xlu0 %v1266
        %v1268 = vpop.xlane.xlu0 %1267
        %v1269 = vmul.f32 %v1268, %v884
        %v1270 = vsub.f32 %v1263, %v1269
        %v1271 = vmul.f32 %v1270, %v1270
        %v1272 = vsel %vm874, %v1271, 0.0
        %1273 = vadd.xlane.f32.xlu0 %v1272
        %v1274 = vpop.xlane.xlu0 %1273
        %v1275 = vmul.f32 %v1274, 0.032258064
        %v1276 = vrsqrt.pop %v1275
        %v1277 = vmul.f32 %v1276, %v1275
        %v1278 = vmul.f32 %v1277, %v1276
        %v1279 = vmul.f32 0.5, %v1278
        %v1280 = vsub.f32 1.5, %v1279
        %v1281 = vmul.f32 %v1276, %v1280
        %v1282 = vmul.f32 %v1275, %v1281
        %vm1283 = vcmp.eq.f32.partialorder %v1275, inf
        %v1284 = vsel %vm1283, %v1275, %v1282
        %vm1285 = vcmp.eq.f32.partialorder %v1275, 0.0
        %v1286 = vand.u32 %v1275, 2147483648
        %v1287 = vsel %vm1285, %v1286, %v1284
        %v1288 = vadd.f32 %v1287, 1e-06
        %v1289 = vrcp.pop %v1288
        %v1291 = vperm.slane %v1264, 0
        %v1293 = vmul.f32 %v1291, %v1270
        %v1294 = vmul.f32 %v1293, %v1289
        %v1296 = vperm.slane %v1265, 0
        %v1298 = vadd.f32 %v1294, %v1296
        %v1299 = vld [vmem:[%s11] sm:$0xff]
        %v1300 = vld [vmem:[%s11 + $0x8] sm:$0xff]
        %v1301 = vld [vmem:[%s11 + $0x10] sm:$0xff]
        %v1302 = vld [vmem:[%s11 + $0x18] sm:$0xff]
        %v1303 = vld [vmem:[%s12] sm:$0x1]
        %v1305 = vperm.slane %v1303, 0
        %v1308 = vsel %vm874, %v1298, 0
        %1310 = vmatpush.msra.mxu0 0.0
        %1311 = vmatpush.msra.mxu0 0.0
        %1312 = vmatpush.msra.mxu0 0.0
        %1313 = vmatpush.msra.mxu0 0.0
        %1314 = vmatpush.msra.mxu0 0.0
        %1315 = vmatpush.msra.mxu0 0.0
        %1316 = vmatpush.msra.mxu0 0.0
        %1317 = vmatpush.msra.mxu0 0.0
        %1318 = vmatpush.msra.mxu0 0.0
        %1319 = vmatpush.msra.mxu0 0.0
        %1320 = vmatpush.msra.mxu0 0.0
        %1321 = vmatpush.msra.mxu0 0.0
        %1322 = vmatpush.msra.mxu0 %v1302
        %1323 = vmatpush.msra.mxu0 %v1301
        %1324 = vmatpush.msra.mxu0 %v1300
        %1325 = vmatpush.msra.mxu0 %v1299
        %1326 = vmatmul.f32.gmra.mxu0 %v1308
        %v1327 = vpop.f32.mrf.mxu0
        %v1328 = vadd.f32 %v1305, %v1327
        %1329 = vdwg.mxu0
        %v1330 = vld [vmem:[%s13] sm:$0xff]
        %v1331 = vld [vmem:[%s13 + $0x8] sm:$0xff]
        %v1332 = vld [vmem:[%s13 + $0x10] sm:$0xff]
        %v1333 = vld [vmem:[%s13 + $0x18] sm:$0xff]
        %v1334 = vld [vmem:[%s14] sm:$0x1]
        %v1336 = vperm.slane %v1334, 0
        %v1339 = vsel %vm874, %v869, 0
        %1341 = vmatpush.msra.mxu0 0.0
        %1342 = vmatpush.msra.mxu0 0.0
        %1343 = vmatpush.msra.mxu0 0.0
        %1344 = vmatpush.msra.mxu0 0.0
        %1345 = vmatpush.msra.mxu0 0.0
        %1346 = vmatpush.msra.mxu0 0.0
        %1347 = vmatpush.msra.mxu0 0.0
        %1348 = vmatpush.msra.mxu0 0.0
        %1349 = vmatpush.msra.mxu0 0.0
        %1350 = vmatpush.msra.mxu0 0.0
        %1351 = vmatpush.msra.mxu0 0.0
        %1352 = vmatpush.msra.mxu0 0.0
        %1353 = vmatpush.msra.mxu0 %v1333
        %1354 = vmatpush.msra.mxu0 %v1332
        %1355 = vmatpush.msra.mxu0 %v1331
        %1356 = vmatpush.msra.mxu0 %v1330
        %1357 = vmatmul.f32.gmra.mxu0 %v1339
        %v1358 = vpop.f32.mrf.mxu0
        %v1359 = vadd.f32 %v1336, %v1358
        %1360 = vdwg.mxu0
        %v1362 = vsel %vm949, %v1328, 0
        %v1365 = vsel %vm949, %v1359, 0
        %1367 = vmatpush.xpose.msra.mxu0 0.0
        %1368 = vmatpush.xpose.msra.mxu0 0.0
        %1369 = vmatpush.xpose.msra.mxu0 0.0
        %1370 = vmatpush.xpose.msra.mxu0 0.0
        %1371 = vmatpush.xpose.msra.mxu0 0.0
        %1372 = vmatpush.xpose.msra.mxu0 0.0
        %1373 = vmatpush.xpose.msra.mxu0 0.0
        %1374 = vmatpush.xpose.msra.mxu0 0.0
        %1375 = vmatpush.xpose.msra.mxu0 0.0
        %1376 = vmatpush.xpose.msra.mxu0 0.0
        %1377 = vmatpush.xpose.msra.mxu0 0.0
        %1378 = vmatpush.xpose.msra.mxu0 0.0
        %1379 = vmatpush.xpose.msra.mxu0 0.0
        %1380 = vmatpush.xpose.msra.mxu0 0.0
        %1381 = vmatpush.xpose.msra.mxu0 0.0
        %1382 = vmatpush.xpose.msra.mxu0 %v1365
        %1383 = vmatmul.f32.gmra.mxu0 %v1362
        %v1384 = vpop.f32.mrf.mxu0
        %v1385 = vadd.f32 0.0, %v1384
        %1386 = vdwg.mxu0
        %v1387 = vmul.f32 %v1385, 0.35355338
        %v1388 = vadd.f32 %v1387, %v871
        %v1389 = vsel %vm949, %v1388, -inf
        %1390 = vmax.xlane.f32.xlu0 %v1389
        %v1391 = vpop.xlane.xlu0 %1390
        %v1392 = vsub.f32 %v1388, %v1391
        %v1393 = vmul.f32 %v1392, 1.442695
        %v1394 = vpow.pop %v1393
        %v1395 = vsel %vm949, %v1394, 0.0
        %1396 = vadd.xlane.f32.xlu0 %v1395
        %v1397 = vpop.xlane.xlu0 %1396
        %v1398 = vrcp.pop %v1397
        %v1399 = vmul.f32 %v1394, %v1398
        %1400 = vrot.lane.b32.xlu0 %v1359, 96
        %v1401 = vpop.permute.xlu0 %1400
        %v1404 = vsel %vm949, %v1399, 0
        %1406 = vmatpush.msra.mxu0 0.0
        %1407 = vmatpush.msra.mxu0 0.0
        %1408 = vmatpush.msra.mxu0 0.0
        %1409 = vmatpush.msra.mxu0 0.0
        %1410 = vmatpush.msra.mxu0 0.0
        %1411 = vmatpush.msra.mxu0 0.0
        %1412 = vmatpush.msra.mxu0 0.0
        %1413 = vmatpush.msra.mxu0 0.0
        %1414 = vmatpush.msra.mxu0 0.0
        %1415 = vmatpush.msra.mxu0 0.0
        %1416 = vmatpush.msra.mxu0 0.0
        %1417 = vmatpush.msra.mxu0 0.0
        %1418 = vmatpush.msra.mxu0 0.0
        %1419 = vmatpush.msra.mxu0 0.0
        %1420 = vmatpush.msra.mxu0 0.0
        %1421 = vmatpush.msra.mxu0 %v1401
        %1422 = vmatmul.f32.gmra.mxu0 %v1404
        %v1423 = vpop.f32.mrf.mxu0
        %v1424 = vadd.f32 0.0, %v1423
        %1425 = vdwg.mxu0
        %1426 = vrot.lane.b32.xlu0 %v1328, 120
        %v1427 = vpop.permute.xlu0 %1426
        %1428 = vrot.lane.b32.xlu0 %v1359, 120
        %v1429 = vpop.permute.xlu0 %1428
        %v1430 = vsel %vm949, %v1427, 0
        %v1432 = vsel %vm949, %v1429, 0
        %1434 = vmatpush.xpose.msra.mxu0 0.0
        %1435 = vmatpush.xpose.msra.mxu0 0.0
        %1436 = vmatpush.xpose.msra.mxu0 0.0
        %1437 = vmatpush.xpose.msra.mxu0 0.0
        %1438 = vmatpush.xpose.msra.mxu0 0.0
        %1439 = vmatpush.xpose.msra.mxu0 0.0
        %1440 = vmatpush.xpose.msra.mxu0 0.0
        %1441 = vmatpush.xpose.msra.mxu0 0.0
        %1442 = vmatpush.xpose.msra.mxu0 0.0
        %1443 = vmatpush.xpose.msra.mxu0 0.0
        %1444 = vmatpush.xpose.msra.mxu0 0.0
        %1445 = vmatpush.xpose.msra.mxu0 0.0
        %1446 = vmatpush.xpose.msra.mxu0 0.0
        %1447 = vmatpush.xpose.msra.mxu0 0.0
        %1448 = vmatpush.xpose.msra.mxu0 0.0
        %1449 = vmatpush.xpose.msra.mxu0 %v1432
        %1450 = vmatmul.f32.gmra.mxu0 %v1430
        %v1451 = vpop.f32.mrf.mxu0
        %v1452 = vadd.f32 0.0, %v1451
        %1453 = vdwg.mxu0
        %v1454 = vmul.f32 %v1452, 0.35355338
        %v1455 = vadd.f32 %v1454, %v871
        %v1456 = vsel %vm949, %v1455, -inf
        %1457 = vmax.xlane.f32.xlu0 %v1456
        %v1458 = vpop.xlane.xlu0 %1457
        %v1459 = vsub.f32 %v1455, %v1458
        %v1460 = vmul.f32 %v1459, 1.442695
        %v1461 = vpow.pop %v1460
        %v1462 = vsel %vm949, %v1461, 0.0
        %1463 = vadd.xlane.f32.xlu0 %v1462
        %v1464 = vpop.xlane.xlu0 %1463
        %v1465 = vrcp.pop %v1464
        %v1466 = vmul.f32 %v1461, %v1465
        %1467 = vrot.lane.b32.xlu0 %v1359, 88
        %v1468 = vpop.permute.xlu0 %1467
        %v1471 = vsel %vm949, %v1466, 0
        %1473 = vmatpush.msra.mxu0 0.0
        %1474 = vmatpush.msra.mxu0 0.0
        %1475 = vmatpush.msra.mxu0 0.0
        %1476 = vmatpush.msra.mxu0 0.0
        %1477 = vmatpush.msra.mxu0 0.0
        %1478 = vmatpush.msra.mxu0 0.0
        %1479 = vmatpush.msra.mxu0 0.0
        %1480 = vmatpush.msra.mxu0 0.0
        %1481 = vmatpush.msra.mxu0 0.0
        %1482 = vmatpush.msra.mxu0 0.0
        %1483 = vmatpush.msra.mxu0 0.0
        %1484 = vmatpush.msra.mxu0 0.0
        %1485 = vmatpush.msra.mxu0 0.0
        %1486 = vmatpush.msra.mxu0 0.0
        %1487 = vmatpush.msra.mxu0 0.0
        %1488 = vmatpush.msra.mxu0 %v1468
        %1489 = vmatmul.f32.gmra.mxu0 %v1471
        %v1490 = vpop.f32.mrf.mxu0
        %v1491 = vadd.f32 0.0, %v1490
        %1492 = vdwg.mxu0
        %1493 = vrot.lane.b32.xlu0 %v1328, 112
        %v1494 = vpop.permute.xlu0 %1493
        %1495 = vrot.lane.b32.xlu0 %v1359, 112
        %v1496 = vpop.permute.xlu0 %1495
        %v1497 = vsel %vm949, %v1494, 0
        %v1499 = vsel %vm949, %v1496, 0
        %1501 = vmatpush.xpose.msra.mxu0 0.0
        %1502 = vmatpush.xpose.msra.mxu0 0.0
        %1503 = vmatpush.xpose.msra.mxu0 0.0
        %1504 = vmatpush.xpose.msra.mxu0 0.0
        %1505 = vmatpush.xpose.msra.mxu0 0.0
        %1506 = vmatpush.xpose.msra.mxu0 0.0
        %1507 = vmatpush.xpose.msra.mxu0 0.0
        %1508 = vmatpush.xpose.msra.mxu0 0.0
        %1509 = vmatpush.xpose.msra.mxu0 0.0
        %1510 = vmatpush.xpose.msra.mxu0 0.0
        %1511 = vmatpush.xpose.msra.mxu0 0.0
        %1512 = vmatpush.xpose.msra.mxu0 0.0
        %1513 = vmatpush.xpose.msra.mxu0 0.0
        %1514 = vmatpush.xpose.msra.mxu0 0.0
        %1515 = vmatpush.xpose.msra.mxu0 0.0
        %1516 = vmatpush.xpose.msra.mxu0 %v1499
        %1517 = vmatmul.f32.gmra.mxu0 %v1497
        %v1518 = vpop.f32.mrf.mxu0
        %v1519 = vadd.f32 0.0, %v1518
        %1520 = vdwg.mxu0
        %v1521 = vmul.f32 %v1519, 0.35355338
        %v1522 = vadd.f32 %v1521, %v871
        %v1523 = vsel %vm949, %v1522, -inf
        %1524 = vmax.xlane.f32.xlu0 %v1523
        %v1525 = vpop.xlane.xlu0 %1524
        %v1526 = vsub.f32 %v1522, %v1525
        %v1527 = vmul.f32 %v1526, 1.442695
        %v1528 = vpow.pop %v1527
        %v1529 = vsel %vm949, %v1528, 0.0
        %1530 = vadd.xlane.f32.xlu0 %v1529
        %v1531 = vpop.xlane.xlu0 %1530
        %v1532 = vrcp.pop %v1531
        %v1533 = vmul.f32 %v1528, %v1532
        %1534 = vrot.lane.b32.xlu0 %v1359, 80
        %v1535 = vpop.permute.xlu0 %1534
        %v1538 = vsel %vm949, %v1533, 0
        %1540 = vmatpush.msra.mxu0 0.0
        %1541 = vmatpush.msra.mxu0 0.0
        %1542 = vmatpush.msra.mxu0 0.0
        %1543 = vmatpush.msra.mxu0 0.0
        %1544 = vmatpush.msra.mxu0 0.0
        %1545 = vmatpush.msra.mxu0 0.0
        %1546 = vmatpush.msra.mxu0 0.0
        %1547 = vmatpush.msra.mxu0 0.0
        %1548 = vmatpush.msra.mxu0 0.0
        %1549 = vmatpush.msra.mxu0 0.0
        %1550 = vmatpush.msra.mxu0 0.0
        %1551 = vmatpush.msra.mxu0 0.0
        %1552 = vmatpush.msra.mxu0 0.0
        %1553 = vmatpush.msra.mxu0 0.0
        %1554 = vmatpush.msra.mxu0 0.0
        %1555 = vmatpush.msra.mxu0 %v1535
        %1556 = vmatmul.f32.gmra.mxu0 %v1538
        %v1557 = vpop.f32.mrf.mxu0
        %v1558 = vadd.f32 0.0, %v1557
        %1559 = vdwg.mxu0
        %1560 = vrot.lane.b32.xlu0 %v1328, 104
        %v1561 = vpop.permute.xlu0 %1560
        %1562 = vrot.lane.b32.xlu0 %v1359, 104
        %v1563 = vpop.permute.xlu0 %1562
        %v1564 = vsel %vm949, %v1561, 0
        %v1566 = vsel %vm949, %v1563, 0
        %1568 = vmatpush.xpose.msra.mxu0 0.0
        %1569 = vmatpush.xpose.msra.mxu0 0.0
        %1570 = vmatpush.xpose.msra.mxu0 0.0
        %1571 = vmatpush.xpose.msra.mxu0 0.0
        %1572 = vmatpush.xpose.msra.mxu0 0.0
        %1573 = vmatpush.xpose.msra.mxu0 0.0
        %1574 = vmatpush.xpose.msra.mxu0 0.0
        %1575 = vmatpush.xpose.msra.mxu0 0.0
        %1576 = vmatpush.xpose.msra.mxu0 0.0
        %1577 = vmatpush.xpose.msra.mxu0 0.0
        %1578 = vmatpush.xpose.msra.mxu0 0.0
        %1579 = vmatpush.xpose.msra.mxu0 0.0
        %1580 = vmatpush.xpose.msra.mxu0 0.0
        %1581 = vmatpush.xpose.msra.mxu0 0.0
        %1582 = vmatpush.xpose.msra.mxu0 0.0
        %1583 = vmatpush.xpose.msra.mxu0 %v1566
        %1584 = vmatmul.f32.gmra.mxu0 %v1564
        %v1585 = vpop.f32.mrf.mxu0
        %v1586 = vadd.f32 0.0, %v1585
        %1587 = vdwg.mxu0
        %v1588 = vmul.f32 %v1586, 0.35355338
        %v1589 = vadd.f32 %v1588, %v871
        %v1590 = vsel %vm949, %v1589, -inf
        %1591 = vmax.xlane.f32.xlu0 %v1590
        %v1592 = vpop.xlane.xlu0 %1591
        %v1593 = vsub.f32 %v1589, %v1592
        %v1594 = vmul.f32 %v1593, 1.442695
        %v1595 = vpow.pop %v1594
        %v1596 = vsel %vm949, %v1595, 0.0
        %1597 = vadd.xlane.f32.xlu0 %v1596
        %v1598 = vpop.xlane.xlu0 %1597
        %v1599 = vrcp.pop %v1598
        %v1600 = vmul.f32 %v1595, %v1599
        %1601 = vrot.lane.b32.xlu0 %v1359, 72
        %v1602 = vpop.permute.xlu0 %1601
        %v1605 = vsel %vm949, %v1600, 0
        %1607 = vmatpush.msra.mxu0 0.0
        %1608 = vmatpush.msra.mxu0 0.0
        %1609 = vmatpush.msra.mxu0 0.0
        %1610 = vmatpush.msra.mxu0 0.0
        %1611 = vmatpush.msra.mxu0 0.0
        %1612 = vmatpush.msra.mxu0 0.0
        %1613 = vmatpush.msra.mxu0 0.0
        %1614 = vmatpush.msra.mxu0 0.0
        %1615 = vmatpush.msra.mxu0 0.0
        %1616 = vmatpush.msra.mxu0 0.0
        %1617 = vmatpush.msra.mxu0 0.0
        %1618 = vmatpush.msra.mxu0 0.0
        %1619 = vmatpush.msra.mxu0 0.0
        %1620 = vmatpush.msra.mxu0 0.0
        %1621 = vmatpush.msra.mxu0 0.0
        %1622 = vmatpush.msra.mxu0 %v1602
        %1623 = vmatmul.f32.gmra.mxu0 %v1605
        %v1624 = vpop.f32.mrf.mxu0
        %v1625 = vadd.f32 0.0, %v1624
        %1626 = vdwg.mxu0
        %1628 = vrot.lane.b32.xlu0 %v1491, 8
        %v1629 = vpop.permute.xlu0 %1628
        %1632 = vrot.lane.b32.xlu0 %v1558, 16
        %v1633 = vpop.permute.xlu0 %1632
        %1636 = vrot.lane.b32.xlu0 %v1625, 24
        %v1637 = vpop.permute.xlu0 %1636
        %v1639 = vsel %vm949, %v1424, %v1629
        %v1640 = vsel %vm1227, %v1639, %v1633
        %v1641 = vsel %vm1229, %v1640, %v1637
        %v1642 = vld [vmem:[%s15] sm:$0xff]
        %v1643 = vld [vmem:[%s15 + $0x8] sm:$0xff]
        %v1644 = vld [vmem:[%s15 + $0x10] sm:$0xff]
        %v1645 = vld [vmem:[%s15 + $0x18] sm:$0xff]
        %v1647 = vsel %vm874, %v1641, 0
        %1649 = vmatpush.msra.mxu0 0.0
        %1650 = vmatpush.msra.mxu0 0.0
        %1651 = vmatpush.msra.mxu0 0.0
        %1652 = vmatpush.msra.mxu0 0.0
        %1653 = vmatpush.msra.mxu0 0.0
        %1654 = vmatpush.msra.mxu0 0.0
        %1655 = vmatpush.msra.mxu0 0.0
        %1656 = vmatpush.msra.mxu0 0.0
        %1657 = vmatpush.msra.mxu0 0.0
        %1658 = vmatpush.msra.mxu0 0.0
        %1659 = vmatpush.msra.mxu0 0.0
        %1660 = vmatpush.msra.mxu0 0.0
        %1661 = vmatpush.msra.mxu0 %v1645
        %1662 = vmatpush.msra.mxu0 %v1644
        %1663 = vmatpush.msra.mxu0 %v1643
        %1664 = vmatpush.msra.mxu0 %v1642
        %1665 = vmatmul.f32.gmra.mxu0 %v1647
        %v1666 = vpop.f32.mrf.mxu0
        %v1667 = vadd.f32 0.0, %v1666
        %1668 = vdwg.mxu0
        %v1669 = vadd.f32 %v1263, %v1667
        %v1670 = vld [vmem:[%s16] sm:$0x1]
        %v1672 = vperm.slane %v1670, 0
        %v1674 = vadd.f32 %v1669, %v1672
        %v1675 = vld [vmem:[%s23] sm:$0x1]
        %v1676 = vld [vmem:[%s24] sm:$0x1]
        %v1677 = vsel %vm874, %v1674, 0.0
        %1678 = vadd.xlane.f32.xlu0 %v1677
        %v1679 = vpop.xlane.xlu0 %1678
        %v1680 = vmul.f32 %v1679, %v884
        %v1681 = vsub.f32 %v1674, %v1680
        %v1682 = vmul.f32 %v1681, %v1681
        %v1683 = vsel %vm874, %v1682, 0.0
        %1684 = vadd.xlane.f32.xlu0 %v1683
        %v1685 = vpop.xlane.xlu0 %1684
        %v1686 = vmul.f32 %v1685, 0.032258064
        %v1687 = vrsqrt.pop %v1686
        %v1688 = vmul.f32 %v1687, %v1686
        %v1689 = vmul.f32 %v1688, %v1687
        %v1690 = vmul.f32 0.5, %v1689
        %v1691 = vsub.f32 1.5, %v1690
        %v1692 = vmul.f32 %v1687, %v1691
        %v1693 = vmul.f32 %v1686, %v1692
        %vm1694 = vcmp.eq.f32.partialorder %v1686, inf
        %v1695 = vsel %vm1694, %v1686, %v1693
        %vm1696 = vcmp.eq.f32.partialorder %v1686, 0.0
        %v1697 = vand.u32 %v1686, 2147483648
        %v1698 = vsel %vm1696, %v1697, %v1695
        %v1699 = vadd.f32 %v1698, 1e-06
        %v1700 = vrcp.pop %v1699
        %v1702 = vperm.slane %v1675, 0
        %v1704 = vmul.f32 %v1702, %v1681
        %v1705 = vmul.f32 %v1704, %v1700
        %v1707 = vperm.slane %v1676, 0
        %v1709 = vadd.f32 %v1705, %v1707
        %v1710 = vld [vmem:[%s19] sm:$0xff]
        %v1711 = vld [vmem:[%s19 + $0x8] sm:$0xff]
        %v1712 = vld [vmem:[%s19 + $0x10] sm:$0xff]
        %v1713 = vld [vmem:[%s19 + $0x18] sm:$0xff]
        %v1714 = vld [vmem:[%s20] sm:$0x1]
        %v1716 = vperm.slane %v1714, 0
        %v1719 = vsel %vm874, %v1709, 0
        %1721 = vmatpush.msra.mxu0 0.0
        %1722 = vmatpush.msra.mxu0 0.0
        %1723 = vmatpush.msra.mxu0 0.0
        %1724 = vmatpush.msra.mxu0 0.0
        %1725 = vmatpush.msra.mxu0 0.0
        %1726 = vmatpush.msra.mxu0 0.0
        %1727 = vmatpush.msra.mxu0 0.0
        %1728 = vmatpush.msra.mxu0 0.0
        %1729 = vmatpush.msra.mxu0 0.0
        %1730 = vmatpush.msra.mxu0 0.0
        %1731 = vmatpush.msra.mxu0 0.0
        %1732 = vmatpush.msra.mxu0 0.0
        %1733 = vmatpush.msra.mxu0 %v1713
        %1734 = vmatpush.msra.mxu0 %v1712
        %1735 = vmatpush.msra.mxu0 %v1711
        %1736 = vmatpush.msra.mxu0 %v1710
        %1737 = vmatmul.f32.gmra.mxu0 %v1719
        %v1738 = vpop.f32.mrf.mxu0
        %v1739 = vadd.f32 %v1716, %v1738
        %1740 = vdwg.mxu0
        %v1741 = vmax.f32 %v1739, 0.0
        %v1742 = vld [vmem:[%s21] sm:$0xff]
        %v1743 = vld [vmem:[%s21 + $0x8] sm:$0xff]
        %v1744 = vld [vmem:[%s21 + $0x10] sm:$0xff]
        %v1745 = vld [vmem:[%s21 + $0x18] sm:$0xff]
        %v1746 = vld [vmem:[%s21 + $0x20] sm:$0xff]
        %v1747 = vld [vmem:[%s21 + $0x28] sm:$0xff]
        %v1748 = vld [vmem:[%s21 + $0x30] sm:$0xff]
        %v1749 = vld [vmem:[%s21 + $0x38] sm:$0xff]
        %vm1750 = vcmask 523264
        %v1752 = vsel %vm1750, %v1741, 0
        %1754 = vmatpush.msra.mxu0 0.0
        %1755 = vmatpush.msra.mxu0 0.0
        %1756 = vmatpush.msra.mxu0 0.0
        %1757 = vmatpush.msra.mxu0 0.0
        %1758 = vmatpush.msra.mxu0 0.0
        %1759 = vmatpush.msra.mxu0 0.0
        %1760 = vmatpush.msra.mxu0 0.0
        %1761 = vmatpush.msra.mxu0 0.0
        %1762 = vmatpush.msra.mxu0 %v1749
        %1763 = vmatpush.msra.mxu0 %v1748
        %1764 = vmatpush.msra.mxu0 %v1747
        %1765 = vmatpush.msra.mxu0 %v1746
        %1766 = vmatpush.msra.mxu0 %v1745
        %1767 = vmatpush.msra.mxu0 %v1744
        %1768 = vmatpush.msra.mxu0 %v1743
        %1769 = vmatpush.msra.mxu0 %v1742
        %1770 = vmatmul.f32.gmra.mxu0 %v1752
        %v1771 = vpop.f32.mrf.mxu0
        %v1772 = vadd.f32 0.0, %v1771
        %1773 = vdwg.mxu0
        %v1774 = vadd.f32 %v1674, %v1772
        %v1775 = vld [vmem:[%s22] sm:$0x1]
        %v1777 = vperm.slane %v1775, 0
        %v1779 = vadd.f32 %v1774, %v1777
        %s1780 = scalar_lea.vmem %s9, 1
        %v1781 = vld [vmem:[%s1780] sm:$0x1]
        %s1782 = scalar_lea.vmem %s10, 1
        %v1783 = vld [vmem:[%s1782] sm:$0x1]
        %v1784 = vsel %vm874, %v1779, 0.0
        %1785 = vadd.xlane.f32.xlu0 %v1784
        %v1786 = vpop.xlane.xlu0 %1785
        %v1787 = vmul.f32 %v1786, %v884
        %v1788 = vsub.f32 %v1779, %v1787
        %v1789 = vmul.f32 %v1788, %v1788
        %v1790 = vsel %vm874, %v1789, 0.0
        %1791 = vadd.xlane.f32.xlu0 %v1790
        %v1792 = vpop.xlane.xlu0 %1791
        %v1793 = vmul.f32 %v1792, 0.032258064
        %v1794 = vrsqrt.pop %v1793
        %v1795 = vmul.f32 %v1794, %v1793
        %v1796 = vmul.f32 %v1795, %v1794
        %v1797 = vmul.f32 0.5, %v1796
        %v1798 = vsub.f32 1.5, %v1797
        %v1799 = vmul.f32 %v1794, %v1798
        %v1800 = vmul.f32 %v1793, %v1799
        %vm1801 = vcmp.eq.f32.partialorder %v1793, inf
        %v1802 = vsel %vm1801, %v1793, %v1800
        %vm1803 = vcmp.eq.f32.partialorder %v1793, 0.0
        %v1804 = vand.u32 %v1793, 2147483648
        %v1805 = vsel %vm1803, %v1804, %v1802
        %v1806 = vadd.f32 %v1805, 1e-06
        %v1807 = vrcp.pop %v1806
        %v1809 = vperm.slane %v1781, 0
        %v1811 = vmul.f32 %v1809, %v1788
        %v1812 = vmul.f32 %v1811, %v1807
        %v1814 = vperm.slane %v1783, 0
        %v1816 = vadd.f32 %v1812, %v1814
        %s1817 = scalar_lea.vmem %s5, 32
        %v1818 = vld [vmem:[%s1817] sm:$0xff]
        %v1819 = vld [vmem:[%s1817 + $0x8] sm:$0xff]
        %v1820 = vld [vmem:[%s1817 + $0x10] sm:$0xff]
        %v1821 = vld [vmem:[%s1817 + $0x18] sm:$0xff]
        %s1822 = scalar_lea.vmem %s6, 1
        %v1823 = vld [vmem:[%s1822] sm:$0x1]
        %v1825 = vperm.slane %v1823, 0
        %v1828 = vsel %vm874, %v1816, 0
        %1830 = vmatpush.msra.mxu0 0.0
        %1831 = vmatpush.msra.mxu0 0.0
        %1832 = vmatpush.msra.mxu0 0.0
        %1833 = vmatpush.msra.mxu0 0.0
        %1834 = vmatpush.msra.mxu0 0.0
        %1835 = vmatpush.msra.mxu0 0.0
        %1836 = vmatpush.msra.mxu0 0.0
        %1837 = vmatpush.msra.mxu0 0.0
        %1838 = vmatpush.msra.mxu0 0.0
        %1839 = vmatpush.msra.mxu0 0.0
        %1840 = vmatpush.msra.mxu0 0.0
        %1841 = vmatpush.msra.mxu0 0.0
        %1842 = vmatpush.msra.mxu0 %v1821
        %1843 = vmatpush.msra.mxu0 %v1820
        %1844 = vmatpush.msra.mxu0 %v1819
        %1845 = vmatpush.msra.mxu0 %v1818
        %1846 = vmatmul.f32.gmra.mxu0 %v1828
        %v1847 = vpop.f32.mrf.mxu0
        %v1848 = vadd.f32 %v1825, %v1847
        %1849 = vdwg.mxu0
        %1851 = vrot.lane.b32.xlu0 %v1848, 96
        %v1852 = vpop.permute.xlu0 %1851
        %v1853 = vsel %vm949, %v1848, 0
        %v1855 = vsel %vm949, %v1852, 0
        %1857 = vmatpush.xpose.msra.mxu0 0.0
        %1858 = vmatpush.xpose.msra.mxu0 0.0
        %1859 = vmatpush.xpose.msra.mxu0 0.0
        %1860 = vmatpush.xpose.msra.mxu0 0.0
        %1861 = vmatpush.xpose.msra.mxu0 0.0
        %1862 = vmatpush.xpose.msra.mxu0 0.0
        %1863 = vmatpush.xpose.msra.mxu0 0.0
        %1864 = vmatpush.xpose.msra.mxu0 0.0
        %1865 = vmatpush.xpose.msra.mxu0 0.0
        %1866 = vmatpush.xpose.msra.mxu0 0.0
        %1867 = vmatpush.xpose.msra.mxu0 0.0
        %1868 = vmatpush.xpose.msra.mxu0 0.0
        %1869 = vmatpush.xpose.msra.mxu0 0.0
        %1870 = vmatpush.xpose.msra.mxu0 0.0
        %1871 = vmatpush.xpose.msra.mxu0 0.0
        %1872 = vmatpush.xpose.msra.mxu0 %v1855
        %1873 = vmatmul.f32.gmra.mxu0 %v1853
        %v1874 = vpop.f32.mrf.mxu0
        %v1875 = vadd.f32 0.0, %v1874
        %1876 = vdwg.mxu0
        %v1877 = vmul.f32 %v1875, 0.35355338
        %v1878 = vadd.f32 %v1877, %v870
        %v1879 = vsel %vm949, %v1878, -inf
        %1880 = vmax.xlane.f32.xlu0 %v1879
        %v1881 = vpop.xlane.xlu0 %1880
        %v1882 = vsub.f32 %v1878, %v1881
        %v1883 = vmul.f32 %v1882, 1.442695
        %v1884 = vpow.pop %v1883
        %v1885 = vsel %vm949, %v1884, 0.0
        %1886 = vadd.xlane.f32.xlu0 %v1885
        %v1887 = vpop.xlane.xlu0 %1886
        %v1888 = vrcp.pop %v1887
        %v1889 = vmul.f32 %v1884, %v1888
        %1890 = vrot.lane.b32.xlu0 %v1848, 64
        %v1891 = vpop.permute.xlu0 %1890
        %v1894 = vsel %vm949, %v1889, 0
        %1896 = vmatpush.msra.mxu0 0.0
        %1897 = vmatpush.msra.mxu0 0.0
        %1898 = vmatpush.msra.mxu0 0.0
        %1899 = vmatpush.msra.mxu0 0.0
        %1900 = vmatpush.msra.mxu0 0.0
        %1901 = vmatpush.msra.mxu0 0.0
        %1902 = vmatpush.msra.mxu0 0.0
        %1903 = vmatpush.msra.mxu0 0.0
        %1904 = vmatpush.msra.mxu0 0.0
        %1905 = vmatpush.msra.mxu0 0.0
        %1906 = vmatpush.msra.mxu0 0.0
        %1907 = vmatpush.msra.mxu0 0.0
        %1908 = vmatpush.msra.mxu0 0.0
        %1909 = vmatpush.msra.mxu0 0.0
        %1910 = vmatpush.msra.mxu0 0.0
        %1911 = vmatpush.msra.mxu0 %v1891
        %1912 = vmatmul.f32.gmra.mxu0 %v1894
        %v1913 = vpop.f32.mrf.mxu0
        %v1914 = vadd.f32 0.0, %v1913
        %1915 = vdwg.mxu0
        %1916 = vrot.lane.b32.xlu0 %v1848, 120
        %v1917 = vpop.permute.xlu0 %1916
        %1918 = vrot.lane.b32.xlu0 %v1848, 88
        %v1919 = vpop.permute.xlu0 %1918
        %v1920 = vsel %vm949, %v1917, 0
        %v1922 = vsel %vm949, %v1919, 0
        %1924 = vmatpush.xpose.msra.mxu0 0.0
        %1925 = vmatpush.xpose.msra.mxu0 0.0
        %1926 = vmatpush.xpose.msra.mxu0 0.0
        %1927 = vmatpush.xpose.msra.mxu0 0.0
        %1928 = vmatpush.xpose.msra.mxu0 0.0
        %1929 = vmatpush.xpose.msra.mxu0 0.0
        %1930 = vmatpush.xpose.msra.mxu0 0.0
        %1931 = vmatpush.xpose.msra.mxu0 0.0
        %1932 = vmatpush.xpose.msra.mxu0 0.0
        %1933 = vmatpush.xpose.msra.mxu0 0.0
        %1934 = vmatpush.xpose.msra.mxu0 0.0
        %1935 = vmatpush.xpose.msra.mxu0 0.0
        %1936 = vmatpush.xpose.msra.mxu0 0.0
        %1937 = vmatpush.xpose.msra.mxu0 0.0
        %1938 = vmatpush.xpose.msra.mxu0 0.0
        %1939 = vmatpush.xpose.msra.mxu0 %v1922
        %1940 = vmatmul.f32.gmra.mxu0 %v1920
        %v1941 = vpop.f32.mrf.mxu0
        %v1942 = vadd.f32 0.0, %v1941
        %1943 = vdwg.mxu0
        %v1944 = vmul.f32 %v1942, 0.35355338
        %v1945 = vadd.f32 %v1944, %v870
        %v1946 = vsel %vm949, %v1945, -inf
        %1947 = vmax.xlane.f32.xlu0 %v1946
        %v1948 = vpop.xlane.xlu0 %1947
        %v1949 = vsub.f32 %v1945, %v1948
        %v1950 = vmul.f32 %v1949, 1.442695
        %v1951 = vpow.pop %v1950
        %v1952 = vsel %vm949, %v1951, 0.0
        %1953 = vadd.xlane.f32.xlu0 %v1952
        %v1954 = vpop.xlane.xlu0 %1953
        %v1955 = vrcp.pop %v1954
        %v1956 = vmul.f32 %v1951, %v1955
        %1957 = vrot.lane.b32.xlu0 %v1848, 56
        %v1958 = vpop.permute.xlu0 %1957
        %v1961 = vsel %vm949, %v1956, 0
        %1963 = vmatpush.msra.mxu0 0.0
        %1964 = vmatpush.msra.mxu0 0.0
        %1965 = vmatpush.msra.mxu0 0.0
        %1966 = vmatpush.msra.mxu0 0.0
        %1967 = vmatpush.msra.mxu0 0.0
        %1968 = vmatpush.msra.mxu0 0.0
        %1969 = vmatpush.msra.mxu0 0.0
        %1970 = vmatpush.msra.mxu0 0.0
        %1971 = vmatpush.msra.mxu0 0.0
        %1972 = vmatpush.msra.mxu0 0.0
        %1973 = vmatpush.msra.mxu0 0.0
        %1974 = vmatpush.msra.mxu0 0.0
        %1975 = vmatpush.msra.mxu0 0.0
        %1976 = vmatpush.msra.mxu0 0.0
        %1977 = vmatpush.msra.mxu0 0.0
        %1978 = vmatpush.msra.mxu0 %v1958
        %1979 = vmatmul.f32.gmra.mxu0 %v1961
        %v1980 = vpop.f32.mrf.mxu0
        %v1981 = vadd.f32 0.0, %v1980
        %1982 = vdwg.mxu0
        %1983 = vrot.lane.b32.xlu0 %v1848, 112
        %v1984 = vpop.permute.xlu0 %1983
        %1985 = vrot.lane.b32.xlu0 %v1848, 80
        %v1986 = vpop.permute.xlu0 %1985
        %v1987 = vsel %vm949, %v1984, 0
        %v1989 = vsel %vm949, %v1986, 0
        %1991 = vmatpush.xpose.msra.mxu0 0.0
        %1992 = vmatpush.xpose.msra.mxu0 0.0
        %1993 = vmatpush.xpose.msra.mxu0 0.0
        %1994 = vmatpush.xpose.msra.mxu0 0.0
        %1995 = vmatpush.xpose.msra.mxu0 0.0
        %1996 = vmatpush.xpose.msra.mxu0 0.0
        %1997 = vmatpush.xpose.msra.mxu0 0.0
        %1998 = vmatpush.xpose.msra.mxu0 0.0
        %1999 = vmatpush.xpose.msra.mxu0 0.0
        %2000 = vmatpush.xpose.msra.mxu0 0.0
        %2001 = vmatpush.xpose.msra.mxu0 0.0
        %2002 = vmatpush.xpose.msra.mxu0 0.0
        %2003 = vmatpush.xpose.msra.mxu0 0.0
        %2004 = vmatpush.xpose.msra.mxu0 0.0
        %2005 = vmatpush.xpose.msra.mxu0 0.0
        %2006 = vmatpush.xpose.msra.mxu0 %v1989
        %2007 = vmatmul.f32.gmra.mxu0 %v1987
        %v2008 = vpop.f32.mrf.mxu0
        %v2009 = vadd.f32 0.0, %v2008
        %2010 = vdwg.mxu0
        %v2011 = vmul.f32 %v2009, 0.35355338
        %v2012 = vadd.f32 %v2011, %v870
        %v2013 = vsel %vm949, %v2012, -inf
        %2014 = vmax.xlane.f32.xlu0 %v2013
        %v2015 = vpop.xlane.xlu0 %2014
        %v2016 = vsub.f32 %v2012, %v2015
        %v2017 = vmul.f32 %v2016, 1.442695
        %v2018 = vpow.pop %v2017
        %v2019 = vsel %vm949, %v2018, 0.0
        %2020 = vadd.xlane.f32.xlu0 %v2019
        %v2021 = vpop.xlane.xlu0 %2020
        %v2022 = vrcp.pop %v2021
        %v2023 = vmul.f32 %v2018, %v2022
        %2024 = vrot.lane.b32.xlu0 %v1848, 48
        %v2025 = vpop.permute.xlu0 %2024
        %v2028 = vsel %vm949, %v2023, 0
        %2030 = vmatpush.msra.mxu0 0.0
        %2031 = vmatpush.msra.mxu0 0.0
        %2032 = vmatpush.msra.mxu0 0.0
        %2033 = vmatpush.msra.mxu0 0.0
        %2034 = vmatpush.msra.mxu0 0.0
        %2035 = vmatpush.msra.mxu0 0.0
        %2036 = vmatpush.msra.mxu0 0.0
        %2037 = vmatpush.msra.mxu0 0.0
        %2038 = vmatpush.msra.mxu0 0.0
        %2039 = vmatpush.msra.mxu0 0.0
        %2040 = vmatpush.msra.mxu0 0.0
        %2041 = vmatpush.msra.mxu0 0.0
        %2042 = vmatpush.msra.mxu0 0.0
        %2043 = vmatpush.msra.mxu0 0.0
        %2044 = vmatpush.msra.mxu0 0.0
        %2045 = vmatpush.msra.mxu0 %v2025
        %2046 = vmatmul.f32.gmra.mxu0 %v2028
        %v2047 = vpop.f32.mrf.mxu0
        %v2048 = vadd.f32 0.0, %v2047
        %2049 = vdwg.mxu0
        %2050 = vrot.lane.b32.xlu0 %v1848, 104
        %v2051 = vpop.permute.xlu0 %2050
        %2052 = vrot.lane.b32.xlu0 %v1848, 72
        %v2053 = vpop.permute.xlu0 %2052
        %v2054 = vsel %vm949, %v2051, 0
        %v2056 = vsel %vm949, %v2053, 0
        %2058 = vmatpush.xpose.msra.mxu0 0.0
        %2059 = vmatpush.xpose.msra.mxu0 0.0
        %2060 = vmatpush.xpose.msra.mxu0 0.0
        %2061 = vmatpush.xpose.msra.mxu0 0.0
        %2062 = vmatpush.xpose.msra.mxu0 0.0
        %2063 = vmatpush.xpose.msra.mxu0 0.0
        %2064 = vmatpush.xpose.msra.mxu0 0.0
        %2065 = vmatpush.xpose.msra.mxu0 0.0
        %2066 = vmatpush.xpose.msra.mxu0 0.0
        %2067 = vmatpush.xpose.msra.mxu0 0.0
        %2068 = vmatpush.xpose.msra.mxu0 0.0
        %2069 = vmatpush.xpose.msra.mxu0 0.0
        %2070 = vmatpush.xpose.msra.mxu0 0.0
        %2071 = vmatpush.xpose.msra.mxu0 0.0
        %2072 = vmatpush.xpose.msra.mxu0 0.0
        %2073 = vmatpush.xpose.msra.mxu0 %v2056
        %2074 = vmatmul.f32.gmra.mxu0 %v2054
        %v2075 = vpop.f32.mrf.mxu0
        %v2076 = vadd.f32 0.0, %v2075
        %2077 = vdwg.mxu0
        %v2078 = vmul.f32 %v2076, 0.35355338
        %v2079 = vadd.f32 %v2078, %v870
        %v2080 = vsel %vm949, %v2079, -inf
        %2081 = vmax.xlane.f32.xlu0 %v2080
        %v2082 = vpop.xlane.xlu0 %2081
        %v2083 = vsub.f32 %v2079, %v2082
        %v2084 = vmul.f32 %v2083, 1.442695
        %v2085 = vpow.pop %v2084
        %v2086 = vsel %vm949, %v2085, 0.0
        %2087 = vadd.xlane.f32.xlu0 %v2086
        %v2088 = vpop.xlane.xlu0 %2087
        %v2089 = vrcp.pop %v2088
        %v2090 = vmul.f32 %v2085, %v2089
        %2091 = vrot.lane.b32.xlu0 %v1848, 40
        %v2092 = vpop.permute.xlu0 %2091
        %v2095 = vsel %vm949, %v2090, 0
        %2097 = vmatpush.msra.mxu0 0.0
        %2098 = vmatpush.msra.mxu0 0.0
        %2099 = vmatpush.msra.mxu0 0.0
        %2100 = vmatpush.msra.mxu0 0.0
        %2101 = vmatpush.msra.mxu0 0.0
        %2102 = vmatpush.msra.mxu0 0.0
        %2103 = vmatpush.msra.mxu0 0.0
        %2104 = vmatpush.msra.mxu0 0.0
        %2105 = vmatpush.msra.mxu0 0.0
        %2106 = vmatpush.msra.mxu0 0.0
        %2107 = vmatpush.msra.mxu0 0.0
        %2108 = vmatpush.msra.mxu0 0.0
        %2109 = vmatpush.msra.mxu0 0.0
        %2110 = vmatpush.msra.mxu0 0.0
        %2111 = vmatpush.msra.mxu0 0.0
        %2112 = vmatpush.msra.mxu0 %v2092
        %2113 = vmatmul.f32.gmra.mxu0 %v2095
        %v2114 = vpop.f32.mrf.mxu0
        %v2115 = vadd.f32 0.0, %v2114
        %2116 = vdwg.mxu0
        %2118 = vrot.lane.b32.xlu0 %v1981, 8
        %v2119 = vpop.permute.xlu0 %2118
        %2122 = vrot.lane.b32.xlu0 %v2048, 16
        %v2123 = vpop.permute.xlu0 %2122
        %2126 = vrot.lane.b32.xlu0 %v2115, 24
        %v2127 = vpop.permute.xlu0 %2126
        %v2129 = vsel %vm949, %v1914, %v2119
        %v2130 = vsel %vm1227, %v2129, %v2123
        %v2131 = vsel %vm1229, %v2130, %v2127
        %s2132 = scalar_lea.vmem %s7, 32
        %v2133 = vld [vmem:[%s2132] sm:$0xff]
        %v2134 = vld [vmem:[%s2132 + $0x8] sm:$0xff]
        %v2135 = vld [vmem:[%s2132 + $0x10] sm:$0xff]
        %v2136 = vld [vmem:[%s2132 + $0x18] sm:$0xff]
        %v2138 = vsel %vm874, %v2131, 0
        %2140 = vmatpush.msra.mxu0 0.0
        %2141 = vmatpush.msra.mxu0 0.0
        %2142 = vmatpush.msra.mxu0 0.0
        %2143 = vmatpush.msra.mxu0 0.0
        %2144 = vmatpush.msra.mxu0 0.0
        %2145 = vmatpush.msra.mxu0 0.0
        %2146 = vmatpush.msra.mxu0 0.0
        %2147 = vmatpush.msra.mxu0 0.0
        %2148 = vmatpush.msra.mxu0 0.0
        %2149 = vmatpush.msra.mxu0 0.0
        %2150 = vmatpush.msra.mxu0 0.0
        %2151 = vmatpush.msra.mxu0 0.0
        %2152 = vmatpush.msra.mxu0 %v2136
        %2153 = vmatpush.msra.mxu0 %v2135
        %2154 = vmatpush.msra.mxu0 %v2134
        %2155 = vmatpush.msra.mxu0 %v2133
        %2156 = vmatmul.f32.gmra.mxu0 %v2138
        %v2157 = vpop.f32.mrf.mxu0
        %v2158 = vadd.f32 0.0, %v2157
        %2159 = vdwg.mxu0
        %v2160 = vadd.f32 %v1779, %v2158
        %s2161 = scalar_lea.vmem %s8, 1
        %v2162 = vld [vmem:[%s2161] sm:$0x1]
        %v2164 = vperm.slane %v2162, 0
        %v2166 = vadd.f32 %v2160, %v2164
        %s2167 = scalar_lea.vmem %s17, 1
        %v2168 = vld [vmem:[%s2167] sm:$0x1]
        %s2169 = scalar_lea.vmem %s18, 1
        %v2170 = vld [vmem:[%s2169] sm:$0x1]
        %v2171 = vsel %vm874, %v2166, 0.0
        %2172 = vadd.xlane.f32.xlu0 %v2171
        %v2173 = vpop.xlane.xlu0 %2172
        %v2174 = vmul.f32 %v2173, %v884
        %v2175 = vsub.f32 %v2166, %v2174
        %v2176 = vmul.f32 %v2175, %v2175
        %v2177 = vsel %vm874, %v2176, 0.0
        %2178 = vadd.xlane.f32.xlu0 %v2177
        %v2179 = vpop.xlane.xlu0 %2178
        %v2180 = vmul.f32 %v2179, 0.032258064
        %v2181 = vrsqrt.pop %v2180
        %v2182 = vmul.f32 %v2181, %v2180
        %v2183 = vmul.f32 %v2182, %v2181
        %v2184 = vmul.f32 0.5, %v2183
        %v2185 = vsub.f32 1.5, %v2184
        %v2186 = vmul.f32 %v2181, %v2185
        %v2187 = vmul.f32 %v2180, %v2186
        %vm2188 = vcmp.eq.f32.partialorder %v2180, inf
        %v2189 = vsel %vm2188, %v2180, %v2187
        %vm2190 = vcmp.eq.f32.partialorder %v2180, 0.0
        %v2191 = vand.u32 %v2180, 2147483648
        %v2192 = vsel %vm2190, %v2191, %v2189
        %v2193 = vadd.f32 %v2192, 1e-06
        %v2194 = vrcp.pop %v2193
        %v2196 = vperm.slane %v2168, 0
        %v2198 = vmul.f32 %v2196, %v2175
        %v2199 = vmul.f32 %v2198, %v2194
        %v2201 = vperm.slane %v2170, 0
        %v2203 = vadd.f32 %v2199, %v2201
        %s2204 = scalar_lea.vmem %s11, 32
        %v2205 = vld [vmem:[%s2204] sm:$0xff]
        %v2206 = vld [vmem:[%s2204 + $0x8] sm:$0xff]
        %v2207 = vld [vmem:[%s2204 + $0x10] sm:$0xff]
        %v2208 = vld [vmem:[%s2204 + $0x18] sm:$0xff]
        %s2209 = scalar_lea.vmem %s12, 1
        %v2210 = vld [vmem:[%s2209] sm:$0x1]
        %v2212 = vperm.slane %v2210, 0
        %v2215 = vsel %vm874, %v2203, 0
        %2217 = vmatpush.msra.mxu0 0.0
        %2218 = vmatpush.msra.mxu0 0.0
        %2219 = vmatpush.msra.mxu0 0.0
        %2220 = vmatpush.msra.mxu0 0.0
        %2221 = vmatpush.msra.mxu0 0.0
        %2222 = vmatpush.msra.mxu0 0.0
        %2223 = vmatpush.msra.mxu0 0.0
        %2224 = vmatpush.msra.mxu0 0.0
        %2225 = vmatpush.msra.mxu0 0.0
        %2226 = vmatpush.msra.mxu0 0.0
        %2227 = vmatpush.msra.mxu0 0.0
        %2228 = vmatpush.msra.mxu0 0.0
        %2229 = vmatpush.msra.mxu0 %v2208
        %2230 = vmatpush.msra.mxu0 %v2207
        %2231 = vmatpush.msra.mxu0 %v2206
        %2232 = vmatpush.msra.mxu0 %v2205
        %2233 = vmatmul.f32.gmra.mxu0 %v2215
        %v2234 = vpop.f32.mrf.mxu0
        %v2235 = vadd.f32 %v2212, %v2234
        %2236 = vdwg.mxu0
        %s2237 = scalar_lea.vmem %s13, 32
        %v2238 = vld [vmem:[%s2237] sm:$0xff]
        %v2239 = vld [vmem:[%s2237 + $0x8] sm:$0xff]
        %v2240 = vld [vmem:[%s2237 + $0x10] sm:$0xff]
        %v2241 = vld [vmem:[%s2237 + $0x18] sm:$0xff]
        %s2242 = scalar_lea.vmem %s14, 1
        %v2243 = vld [vmem:[%s2242] sm:$0x1]
        %v2245 = vperm.slane %v2243, 0
        %2247 = vmatpush.msra.mxu0 0.0
        %2248 = vmatpush.msra.mxu0 0.0
        %2249 = vmatpush.msra.mxu0 0.0
        %2250 = vmatpush.msra.mxu0 0.0
        %2251 = vmatpush.msra.mxu0 0.0
        %2252 = vmatpush.msra.mxu0 0.0
        %2253 = vmatpush.msra.mxu0 0.0
        %2254 = vmatpush.msra.mxu0 0.0
        %2255 = vmatpush.msra.mxu0 0.0
        %2256 = vmatpush.msra.mxu0 0.0
        %2257 = vmatpush.msra.mxu0 0.0
        %2258 = vmatpush.msra.mxu0 0.0
        %2259 = vmatpush.msra.mxu0 %v2241
        %2260 = vmatpush.msra.mxu0 %v2240
        %2261 = vmatpush.msra.mxu0 %v2239
        %2262 = vmatpush.msra.mxu0 %v2238
        %2263 = vmatmul.f32.gmra.mxu0 %v1339
        %v2264 = vpop.f32.mrf.mxu0
        %v2265 = vadd.f32 %v2245, %v2264
        %2266 = vdwg.mxu0
        %v2268 = vsel %vm949, %v2235, 0
        %v2271 = vsel %vm949, %v2265, 0
        %2273 = vmatpush.xpose.msra.mxu0 0.0
        %2274 = vmatpush.xpose.msra.mxu0 0.0
        %2275 = vmatpush.xpose.msra.mxu0 0.0
        %2276 = vmatpush.xpose.msra.mxu0 0.0
        %2277 = vmatpush.xpose.msra.mxu0 0.0
        %2278 = vmatpush.xpose.msra.mxu0 0.0
        %2279 = vmatpush.xpose.msra.mxu0 0.0
        %2280 = vmatpush.xpose.msra.mxu0 0.0
        %2281 = vmatpush.xpose.msra.mxu0 0.0
        %2282 = vmatpush.xpose.msra.mxu0 0.0
        %2283 = vmatpush.xpose.msra.mxu0 0.0
        %2284 = vmatpush.xpose.msra.mxu0 0.0
        %2285 = vmatpush.xpose.msra.mxu0 0.0
        %2286 = vmatpush.xpose.msra.mxu0 0.0
        %2287 = vmatpush.xpose.msra.mxu0 0.0
        %2288 = vmatpush.xpose.msra.mxu0 %v2271
        %2289 = vmatmul.f32.gmra.mxu0 %v2268
        %v2290 = vpop.f32.mrf.mxu0
        %v2291 = vadd.f32 0.0, %v2290
        %2292 = vdwg.mxu0
        %v2293 = vmul.f32 %v2291, 0.35355338
        %v2294 = vadd.f32 %v2293, %v871
        %v2295 = vsel %vm949, %v2294, -inf
        %2296 = vmax.xlane.f32.xlu0 %v2295
        %v2297 = vpop.xlane.xlu0 %2296
        %v2298 = vsub.f32 %v2294, %v2297
        %v2299 = vmul.f32 %v2298, 1.442695
        %v2300 = vpow.pop %v2299
        %v2301 = vsel %vm949, %v2300, 0.0
        %2302 = vadd.xlane.f32.xlu0 %v2301
        %v2303 = vpop.xlane.xlu0 %2302
        %v2304 = vrcp.pop %v2303
        %v2305 = vmul.f32 %v2300, %v2304
        %2306 = vrot.lane.b32.xlu0 %v2265, 96
        %v2307 = vpop.permute.xlu0 %2306
        %v2310 = vsel %vm949, %v2305, 0
        %2312 = vmatpush.msra.mxu0 0.0
        %2313 = vmatpush.msra.mxu0 0.0
        %2314 = vmatpush.msra.mxu0 0.0
        %2315 = vmatpush.msra.mxu0 0.0
        %2316 = vmatpush.msra.mxu0 0.0
        %2317 = vmatpush.msra.mxu0 0.0
        %2318 = vmatpush.msra.mxu0 0.0
        %2319 = vmatpush.msra.mxu0 0.0
        %2320 = vmatpush.msra.mxu0 0.0
        %2321 = vmatpush.msra.mxu0 0.0
        %2322 = vmatpush.msra.mxu0 0.0
        %2323 = vmatpush.msra.mxu0 0.0
        %2324 = vmatpush.msra.mxu0 0.0
        %2325 = vmatpush.msra.mxu0 0.0
        %2326 = vmatpush.msra.mxu0 0.0
        %2327 = vmatpush.msra.mxu0 %v2307
        %2328 = vmatmul.f32.gmra.mxu0 %v2310
        %v2329 = vpop.f32.mrf.mxu0
        %v2330 = vadd.f32 0.0, %v2329
        %2331 = vdwg.mxu0
        %2332 = vrot.lane.b32.xlu0 %v2235, 120
        %v2333 = vpop.permute.xlu0 %2332
        %2334 = vrot.lane.b32.xlu0 %v2265, 120
        %v2335 = vpop.permute.xlu0 %2334
        %v2336 = vsel %vm949, %v2333, 0
        %v2338 = vsel %vm949, %v2335, 0
        %2340 = vmatpush.xpose.msra.mxu0 0.0
        %2341 = vmatpush.xpose.msra.mxu0 0.0
        %2342 = vmatpush.xpose.msra.mxu0 0.0
        %2343 = vmatpush.xpose.msra.mxu0 0.0
        %2344 = vmatpush.xpose.msra.mxu0 0.0
        %2345 = vmatpush.xpose.msra.mxu0 0.0
        %2346 = vmatpush.xpose.msra.mxu0 0.0
        %2347 = vmatpush.xpose.msra.mxu0 0.0
        %2348 = vmatpush.xpose.msra.mxu0 0.0
        %2349 = vmatpush.xpose.msra.mxu0 0.0
        %2350 = vmatpush.xpose.msra.mxu0 0.0
        %2351 = vmatpush.xpose.msra.mxu0 0.0
        %2352 = vmatpush.xpose.msra.mxu0 0.0
        %2353 = vmatpush.xpose.msra.mxu0 0.0
        %2354 = vmatpush.xpose.msra.mxu0 0.0
        %2355 = vmatpush.xpose.msra.mxu0 %v2338
        %2356 = vmatmul.f32.gmra.mxu0 %v2336
        %v2357 = vpop.f32.mrf.mxu0
        %v2358 = vadd.f32 0.0, %v2357
        %2359 = vdwg.mxu0
        %v2360 = vmul.f32 %v2358, 0.35355338
        %v2361 = vadd.f32 %v2360, %v871
        %v2362 = vsel %vm949, %v2361, -inf
        %2363 = vmax.xlane.f32.xlu0 %v2362
        %v2364 = vpop.xlane.xlu0 %2363
        %v2365 = vsub.f32 %v2361, %v2364
        %v2366 = vmul.f32 %v2365, 1.442695
        %v2367 = vpow.pop %v2366
        %v2368 = vsel %vm949, %v2367, 0.0
        %2369 = vadd.xlane.f32.xlu0 %v2368
        %v2370 = vpop.xlane.xlu0 %2369
        %v2371 = vrcp.pop %v2370
        %v2372 = vmul.f32 %v2367, %v2371
        %2373 = vrot.lane.b32.xlu0 %v2265, 88
        %v2374 = vpop.permute.xlu0 %2373
        %v2377 = vsel %vm949, %v2372, 0
        %2379 = vmatpush.msra.mxu0 0.0
        %2380 = vmatpush.msra.mxu0 0.0
        %2381 = vmatpush.msra.mxu0 0.0
        %2382 = vmatpush.msra.mxu0 0.0
        %2383 = vmatpush.msra.mxu0 0.0
        %2384 = vmatpush.msra.mxu0 0.0
        %2385 = vmatpush.msra.mxu0 0.0
        %2386 = vmatpush.msra.mxu0 0.0
        %2387 = vmatpush.msra.mxu0 0.0
        %2388 = vmatpush.msra.mxu0 0.0
        %2389 = vmatpush.msra.mxu0 0.0
        %2390 = vmatpush.msra.mxu0 0.0
        %2391 = vmatpush.msra.mxu0 0.0
        %2392 = vmatpush.msra.mxu0 0.0
        %2393 = vmatpush.msra.mxu0 0.0
        %2394 = vmatpush.msra.mxu0 %v2374
        %2395 = vmatmul.f32.gmra.mxu0 %v2377
        %v2396 = vpop.f32.mrf.mxu0
        %v2397 = vadd.f32 0.0, %v2396
        %2398 = vdwg.mxu0
        %2399 = vrot.lane.b32.xlu0 %v2235, 112
        %v2400 = vpop.permute.xlu0 %2399
        %2401 = vrot.lane.b32.xlu0 %v2265, 112
        %v2402 = vpop.permute.xlu0 %2401
        %v2403 = vsel %vm949, %v2400, 0
        %v2405 = vsel %vm949, %v2402, 0
        %2407 = vmatpush.xpose.msra.mxu0 0.0
        %2408 = vmatpush.xpose.msra.mxu0 0.0
        %2409 = vmatpush.xpose.msra.mxu0 0.0
        %2410 = vmatpush.xpose.msra.mxu0 0.0
        %2411 = vmatpush.xpose.msra.mxu0 0.0
        %2412 = vmatpush.xpose.msra.mxu0 0.0
        %2413 = vmatpush.xpose.msra.mxu0 0.0
        %2414 = vmatpush.xpose.msra.mxu0 0.0
        %2415 = vmatpush.xpose.msra.mxu0 0.0
        %2416 = vmatpush.xpose.msra.mxu0 0.0
        %2417 = vmatpush.xpose.msra.mxu0 0.0
        %2418 = vmatpush.xpose.msra.mxu0 0.0
        %2419 = vmatpush.xpose.msra.mxu0 0.0
        %2420 = vmatpush.xpose.msra.mxu0 0.0
        %2421 = vmatpush.xpose.msra.mxu0 0.0
        %2422 = vmatpush.xpose.msra.mxu0 %v2405
        %2423 = vmatmul.f32.gmra.mxu0 %v2403
        %v2424 = vpop.f32.mrf.mxu0
        %v2425 = vadd.f32 0.0, %v2424
        %2426 = vdwg.mxu0
        %v2427 = vmul.f32 %v2425, 0.35355338
        %v2428 = vadd.f32 %v2427, %v871
        %v2429 = vsel %vm949, %v2428, -inf
        %2430 = vmax.xlane.f32.xlu0 %v2429
        %v2431 = vpop.xlane.xlu0 %2430
        %v2432 = vsub.f32 %v2428, %v2431
        %v2433 = vmul.f32 %v2432, 1.442695
        %v2434 = vpow.pop %v2433
        %v2435 = vsel %vm949, %v2434, 0.0
        %2436 = vadd.xlane.f32.xlu0 %v2435
        %v2437 = vpop.xlane.xlu0 %2436
        %v2438 = vrcp.pop %v2437
        %v2439 = vmul.f32 %v2434, %v2438
        %2440 = vrot.lane.b32.xlu0 %v2265, 80
        %v2441 = vpop.permute.xlu0 %2440
        %v2444 = vsel %vm949, %v2439, 0
        %2446 = vmatpush.msra.mxu0 0.0
        %2447 = vmatpush.msra.mxu0 0.0
        %2448 = vmatpush.msra.mxu0 0.0
        %2449 = vmatpush.msra.mxu0 0.0
        %2450 = vmatpush.msra.mxu0 0.0
        %2451 = vmatpush.msra.mxu0 0.0
        %2452 = vmatpush.msra.mxu0 0.0
        %2453 = vmatpush.msra.mxu0 0.0
        %2454 = vmatpush.msra.mxu0 0.0
        %2455 = vmatpush.msra.mxu0 0.0
        %2456 = vmatpush.msra.mxu0 0.0
        %2457 = vmatpush.msra.mxu0 0.0
        %2458 = vmatpush.msra.mxu0 0.0
        %2459 = vmatpush.msra.mxu0 0.0
        %2460 = vmatpush.msra.mxu0 0.0
        %2461 = vmatpush.msra.mxu0 %v2441
        %2462 = vmatmul.f32.gmra.mxu0 %v2444
        %v2463 = vpop.f32.mrf.mxu0
        %v2464 = vadd.f32 0.0, %v2463
        %2465 = vdwg.mxu0
        %2466 = vrot.lane.b32.xlu0 %v2235, 104
        %v2467 = vpop.permute.xlu0 %2466
        %2468 = vrot.lane.b32.xlu0 %v2265, 104
        %v2469 = vpop.permute.xlu0 %2468
        %v2470 = vsel %vm949, %v2467, 0
        %v2472 = vsel %vm949, %v2469, 0
        %2474 = vmatpush.xpose.msra.mxu0 0.0
        %2475 = vmatpush.xpose.msra.mxu0 0.0
        %2476 = vmatpush.xpose.msra.mxu0 0.0
        %2477 = vmatpush.xpose.msra.mxu0 0.0
        %2478 = vmatpush.xpose.msra.mxu0 0.0
        %2479 = vmatpush.xpose.msra.mxu0 0.0
        %2480 = vmatpush.xpose.msra.mxu0 0.0
        %2481 = vmatpush.xpose.msra.mxu0 0.0
        %2482 = vmatpush.xpose.msra.mxu0 0.0
        %2483 = vmatpush.xpose.msra.mxu0 0.0
        %2484 = vmatpush.xpose.msra.mxu0 0.0
        %2485 = vmatpush.xpose.msra.mxu0 0.0
        %2486 = vmatpush.xpose.msra.mxu0 0.0
        %2487 = vmatpush.xpose.msra.mxu0 0.0
        %2488 = vmatpush.xpose.msra.mxu0 0.0
        %2489 = vmatpush.xpose.msra.mxu0 %v2472
        %2490 = vmatmul.f32.gmra.mxu0 %v2470
        %v2491 = vpop.f32.mrf.mxu0
        %v2492 = vadd.f32 0.0, %v2491
        %2493 = vdwg.mxu0
        %v2494 = vmul.f32 %v2492, 0.35355338
        %v2495 = vadd.f32 %v2494, %v871
        %v2496 = vsel %vm949, %v2495, -inf
        %2497 = vmax.xlane.f32.xlu0 %v2496
        %v2498 = vpop.xlane.xlu0 %2497
        %v2499 = vsub.f32 %v2495, %v2498
        %v2500 = vmul.f32 %v2499, 1.442695
        %v2501 = vpow.pop %v2500
        %v2502 = vsel %vm949, %v2501, 0.0
        %2503 = vadd.xlane.f32.xlu0 %v2502
        %v2504 = vpop.xlane.xlu0 %2503
        %v2505 = vrcp.pop %v2504
        %v2506 = vmul.f32 %v2501, %v2505
        %2507 = vrot.lane.b32.xlu0 %v2265, 72
        %v2508 = vpop.permute.xlu0 %2507
        %v2511 = vsel %vm949, %v2506, 0
        %2513 = vmatpush.msra.mxu0 0.0
        %2514 = vmatpush.msra.mxu0 0.0
        %2515 = vmatpush.msra.mxu0 0.0
        %2516 = vmatpush.msra.mxu0 0.0
        %2517 = vmatpush.msra.mxu0 0.0
        %2518 = vmatpush.msra.mxu0 0.0
        %2519 = vmatpush.msra.mxu0 0.0
        %2520 = vmatpush.msra.mxu0 0.0
        %2521 = vmatpush.msra.mxu0 0.0
        %2522 = vmatpush.msra.mxu0 0.0
        %2523 = vmatpush.msra.mxu0 0.0
        %2524 = vmatpush.msra.mxu0 0.0
        %2525 = vmatpush.msra.mxu0 0.0
        %2526 = vmatpush.msra.mxu0 0.0
        %2527 = vmatpush.msra.mxu0 0.0
        %2528 = vmatpush.msra.mxu0 %v2508
        %2529 = vmatmul.f32.gmra.mxu0 %v2511
        %v2530 = vpop.f32.mrf.mxu0
        %v2531 = vadd.f32 0.0, %v2530
        %2532 = vdwg.mxu0
        %2534 = vrot.lane.b32.xlu0 %v2397, 8
        %v2535 = vpop.permute.xlu0 %2534
        %2538 = vrot.lane.b32.xlu0 %v2464, 16
        %v2539 = vpop.permute.xlu0 %2538
        %2542 = vrot.lane.b32.xlu0 %v2531, 24
        %v2543 = vpop.permute.xlu0 %2542
        %v2545 = vsel %vm949, %v2330, %v2535
        %v2546 = vsel %vm1227, %v2545, %v2539
        %v2547 = vsel %vm1229, %v2546, %v2543
        %s2548 = scalar_lea.vmem %s15, 32
        %v2549 = vld [vmem:[%s2548] sm:$0xff]
        %v2550 = vld [vmem:[%s2548 + $0x8] sm:$0xff]
        %v2551 = vld [vmem:[%s2548 + $0x10] sm:$0xff]
        %v2552 = vld [vmem:[%s2548 + $0x18] sm:$0xff]
        %v2554 = vsel %vm874, %v2547, 0
        %2556 = vmatpush.msra.mxu0 0.0
        %2557 = vmatpush.msra.mxu0 0.0
        %2558 = vmatpush.msra.mxu0 0.0
        %2559 = vmatpush.msra.mxu0 0.0
        %2560 = vmatpush.msra.mxu0 0.0
        %2561 = vmatpush.msra.mxu0 0.0
        %2562 = vmatpush.msra.mxu0 0.0
        %2563 = vmatpush.msra.mxu0 0.0
        %2564 = vmatpush.msra.mxu0 0.0
        %2565 = vmatpush.msra.mxu0 0.0
        %2566 = vmatpush.msra.mxu0 0.0
        %2567 = vmatpush.msra.mxu0 0.0
        %2568 = vmatpush.msra.mxu0 %v2552
        %2569 = vmatpush.msra.mxu0 %v2551
        %2570 = vmatpush.msra.mxu0 %v2550
        %2571 = vmatpush.msra.mxu0 %v2549
        %2572 = vmatmul.f32.gmra.mxu0 %v2554
        %v2573 = vpop.f32.mrf.mxu0
        %v2574 = vadd.f32 0.0, %v2573
        %2575 = vdwg.mxu0
        %v2576 = vadd.f32 %v2166, %v2574
        %s2577 = scalar_lea.vmem %s16, 1
        %v2578 = vld [vmem:[%s2577] sm:$0x1]
        %v2580 = vperm.slane %v2578, 0
        %v2582 = vadd.f32 %v2576, %v2580
        %s2583 = scalar_lea.vmem %s23, 1
        %v2584 = vld [vmem:[%s2583] sm:$0x1]
        %s2585 = scalar_lea.vmem %s24, 1
        %v2586 = vld [vmem:[%s2585] sm:$0x1]
        %v2587 = vsel %vm874, %v2582, 0.0
        %2588 = vadd.xlane.f32.xlu0 %v2587
        %v2589 = vpop.xlane.xlu0 %2588
        %v2590 = vmul.f32 %v2589, %v884
        %v2591 = vsub.f32 %v2582, %v2590
        %v2592 = vmul.f32 %v2591, %v2591
        %v2593 = vsel %vm874, %v2592, 0.0
        %2594 = vadd.xlane.f32.xlu0 %v2593
        %v2595 = vpop.xlane.xlu0 %2594
        %v2596 = vmul.f32 %v2595, 0.032258064
        %v2597 = vrsqrt.pop %v2596
        %v2598 = vmul.f32 %v2597, %v2596
        %v2599 = vmul.f32 %v2598, %v2597
        %v2600 = vmul.f32 0.5, %v2599
        %v2601 = vsub.f32 1.5, %v2600
        %v2602 = vmul.f32 %v2597, %v2601
        %v2603 = vmul.f32 %v2596, %v2602
        %vm2604 = vcmp.eq.f32.partialorder %v2596, inf
        %v2605 = vsel %vm2604, %v2596, %v2603
        %vm2606 = vcmp.eq.f32.partialorder %v2596, 0.0
        %v2607 = vand.u32 %v2596, 2147483648
        %v2608 = vsel %vm2606, %v2607, %v2605
        %v2609 = vadd.f32 %v2608, 1e-06
        %v2610 = vrcp.pop %v2609
        %v2612 = vperm.slane %v2584, 0
        %v2614 = vmul.f32 %v2612, %v2591
        %v2615 = vmul.f32 %v2614, %v2610
        %v2617 = vperm.slane %v2586, 0
        %v2619 = vadd.f32 %v2615, %v2617
        %s2620 = scalar_lea.vmem %s19, 32
        %v2621 = vld [vmem:[%s2620] sm:$0xff]
        %v2622 = vld [vmem:[%s2620 + $0x8] sm:$0xff]
        %v2623 = vld [vmem:[%s2620 + $0x10] sm:$0xff]
        %v2624 = vld [vmem:[%s2620 + $0x18] sm:$0xff]
        %s2625 = scalar_lea.vmem %s20, 1
        %v2626 = vld [vmem:[%s2625] sm:$0x1]
        %v2628 = vperm.slane %v2626, 0
        %v2631 = vsel %vm874, %v2619, 0
        %2633 = vmatpush.msra.mxu0 0.0
        %2634 = vmatpush.msra.mxu0 0.0
        %2635 = vmatpush.msra.mxu0 0.0
        %2636 = vmatpush.msra.mxu0 0.0
        %2637 = vmatpush.msra.mxu0 0.0
        %2638 = vmatpush.msra.mxu0 0.0
        %2639 = vmatpush.msra.mxu0 0.0
        %2640 = vmatpush.msra.mxu0 0.0
        %2641 = vmatpush.msra.mxu0 0.0
        %2642 = vmatpush.msra.mxu0 0.0
        %2643 = vmatpush.msra.mxu0 0.0
        %2644 = vmatpush.msra.mxu0 0.0
        %2645 = vmatpush.msra.mxu0 %v2624
        %2646 = vmatpush.msra.mxu0 %v2623
        %2647 = vmatpush.msra.mxu0 %v2622
        %2648 = vmatpush.msra.mxu0 %v2621
        %2649 = vmatmul.f32.gmra.mxu0 %v2631
        %v2650 = vpop.f32.mrf.mxu0
        %v2651 = vadd.f32 %v2628, %v2650
        %2652 = vdwg.mxu0
        %v2653 = vmax.f32 %v2651, 0.0
        %s2654 = scalar_lea.vmem %s21, 64
        %v2655 = vld [vmem:[%s2654] sm:$0xff]
        %v2656 = vld [vmem:[%s2654 + $0x8] sm:$0xff]
        %v2657 = vld [vmem:[%s2654 + $0x10] sm:$0xff]
        %v2658 = vld [vmem:[%s2654 + $0x18] sm:$0xff]
        %v2659 = vld [vmem:[%s2654 + $0x20] sm:$0xff]
        %v2660 = vld [vmem:[%s2654 + $0x28] sm:$0xff]
        %v2661 = vld [vmem:[%s2654 + $0x30] sm:$0xff]
        %v2662 = vld [vmem:[%s2654 + $0x38] sm:$0xff]
        %v2664 = vsel %vm1750, %v2653, 0
        %2666 = vmatpush.msra.mxu0 0.0
        %2667 = vmatpush.msra.mxu0 0.0
        %2668 = vmatpush.msra.mxu0 0.0
        %2669 = vmatpush.msra.mxu0 0.0
        %2670 = vmatpush.msra.mxu0 0.0
        %2671 = vmatpush.msra.mxu0 0.0
        %2672 = vmatpush.msra.mxu0 0.0
        %2673 = vmatpush.msra.mxu0 0.0
        %2674 = vmatpush.msra.mxu0 %v2662
        %2675 = vmatpush.msra.mxu0 %v2661
        %2676 = vmatpush.msra.mxu0 %v2660
        %2677 = vmatpush.msra.mxu0 %v2659
        %2678 = vmatpush.msra.mxu0 %v2658
        %2679 = vmatpush.msra.mxu0 %v2657
        %2680 = vmatpush.msra.mxu0 %v2656
        %2681 = vmatpush.msra.mxu0 %v2655
        %2682 = vmatmul.f32.gmra.mxu0 %v2664
        %v2683 = vpop.f32.mrf.mxu0
        %v2684 = vadd.f32 0.0, %v2683
        %2685 = vdwg.mxu0
        %v2686 = vadd.f32 %v2582, %v2684
        %s2687 = scalar_lea.vmem %s22, 1
        %v2688 = vld [vmem:[%s2687] sm:$0x1]
        %v2690 = vperm.slane %v2688, 0
        %v2692 = vadd.f32 %v2686, %v2690
        %v2693 = vld [vmem:[%s25] sm:$0x1]
        %v2694 = vld [vmem:[%s26] sm:$0x1]
        %v2695 = vsel %vm874, %v2692, 0.0
        %2696 = vadd.xlane.f32.xlu0 %v2695
        %v2697 = vpop.xlane.xlu0 %2696
        %v2698 = vmul.f32 %v2697, %v884
        %v2699 = vsub.f32 %v2692, %v2698
        %v2700 = vmul.f32 %v2699, %v2699
        %v2701 = vsel %vm874, %v2700, 0.0
        %2702 = vadd.xlane.f32.xlu0 %v2701
        %v2703 = vpop.xlane.xlu0 %2702
        %v2704 = vmul.f32 %v2703, 0.032258064
        %v2705 = vrsqrt.pop %v2704
        %v2706 = vmul.f32 %v2705, %v2704
        %v2707 = vmul.f32 %v2706, %v2705
        %v2708 = vmul.f32 0.5, %v2707
        %v2709 = vsub.f32 1.5, %v2708
        %v2710 = vmul.f32 %v2705, %v2709
        %v2711 = vmul.f32 %v2704, %v2710
        %vm2712 = vcmp.eq.f32.partialorder %v2704, inf
        %v2713 = vsel %vm2712, %v2704, %v2711
        %vm2714 = vcmp.eq.f32.partialorder %v2704, 0.0
        %v2715 = vand.u32 %v2704, 2147483648
        %v2716 = vsel %vm2714, %v2715, %v2713
        %v2717 = vadd.f32 %v2716, 1e-06
        %v2718 = vrcp.pop %v2717
        %v2720 = vperm.slane %v2693, 0
        %v2722 = vmul.f32 %v2720, %v2699
        %v2723 = vmul.f32 %v2722, %v2718
        %v2725 = vperm.slane %v2694, 0
        %v2727 = vadd.f32 %v2723, %v2725
        %2728 = vst.msk [vmem:[%s848] sm:$0xff] %vm874, %v2727
        %s2729 = sand.u32 %s636, 1
        %s2730 = scalar_lea.sflag [#allocation3], %s2729
        %s2731 = sand.u32 %s636, 1
        %s2732 = smul.addr %s2731, 8
        %s2733 = scalar_lea.vmem [#allocation2], %s2732
        // Predicated region
        $region129: #{transformer_forward.3} parent=127 // pred_check
          %p2734 = pneg %p646
        $region130: #{transformer_forward.3} parent=127 // pred_check_branch
          %2736 = sbr.rel (%p2734) target = $region132
        $region131: #{transformer_forward.3} parent=127 // pred_region
          %2738 = vsyncadd %s2730, 0
          %s2739 = smul.addr %s41, 8
          %s2740 = scalar_lea.hbm %s27, %s2739
          %s2742 = sshll.u32 %s2733, 4
          %s2743 = int_to_ptr.vmem [resolvable:$true] %s2742
          %s2744 = sshll.u32 %s2740, 4
          %s2745 = int_to_ptr.hbm [resolvable:$true] %s2744
          %2747 = dma.vmem_to_hbm [thread:$0]  %s2743, 128, %s2745, %s2730
        $region132: #{transformer_forward.3} parent=127 // pred_fallthru
          _
      $region128: #{transformer_forward.3} parent=5 // pred_fallthru
        _
      %p2748 = scmp.le.s32.totalorder 2, %s36
      // Predicated region
      $region133: #{transformer_forward.3} parent=5 // pred_check
        %p2749 = pneg %p2748
      $region134: #{transformer_forward.3} parent=5 // pred_check_branch
        %2751 = sbr.rel (%p2749) target = $region136
      $region135: #{transformer_forward.3} parent=5 // pred_region
        %s2752 = ssub.s32 %s36, 2
        // Predicated region
        $region137: #{transformer_forward.3} parent=135 // pred_check
          %p2753 = pneg %p652
        $region138: #{transformer_forward.3} parent=135 // pred_check_branch
          %2755 = sbr.rel (%p2753) target = $region140
        $region139: #{transformer_forward.3} parent=135 // pred_region
          %s2756 = sand.u32 %s637, 1
          %s2757 = scalar_lea.sflag [#allocation3], %s2756
          %s2758 = sand.u32 %s637, 1
          %s2759 = smul.addr %s2758, 8
          %s2760 = scalar_lea.vmem [#allocation2], %s2759
          %2762 = dma.done %s2757, 128
        $region140: #{transformer_forward.3} parent=135 // pred_fallthru
          _
      $region136: #{transformer_forward.3} parent=5 // pred_fallthru
        _
    $region6: #{transformer_forward.3} parent=1 // loop_footer
      %s40 = sadd.s32 1, %s36
    $region7: #{transformer_forward.3} parent=1 // loop_footer_branch
      %35 = sbr.rel target = $region3
    $region8: #{transformer_forward.3} parent=1 // loop_exit
      _
    %2763 = vsyncpa [#allocation3], 1
    %s2764 = scalar_lea.sflag [#allocation3], 1
    %2765 = vsyncpa %s2764, 1

</llo_original>
